<compile_context>
chip_gen: v7x
topology: tpu7x:2x2x1
jax: 0.10.0
libtpu: 0.0.40
codegen_flags: <defaults>
</compile_context>

<pallas_src>
import functools

import jax
import jax.numpy as jnp
from jax.experimental import pallas as pl
from jax.experimental.pallas import tpu as pltpu

NEG_INF = -1e9          # additive mask value used by get_extended_attention_mask
LN_EPS = 1e-12          # BERT LayerNorm eps
MXU_DTYPE = jnp.bfloat16  # MXU-native dtype on v5e/v6e/v7x; accumulation stays f32

# Matmul tile caps.  f32 accumulator + bf16 operand blocks, double-buffered, stay
# comfortably under the 32 MiB scoped-VMEM default on every generation (incl. v7x).
TM, TN, TK = 512, 512, 512
LN_TM = 256        # row tile for the LayerNorm-epilogue matmul (blocks are full-H wide)
SK_BLOCK = 512     # Sk tile for flash attention


def _round_up(x, m):
    return ((x + m - 1) // m) * m


def _tile(dim, cap, quantum):
    """Largest tile <= cap.  Prefer an exact divisor of `dim` that is a multiple of
    `quantum` (8 for sublanes, 128 for lanes) so no padding / slice-back is needed;
    otherwise fall back to `cap` with padding."""
    if dim <= cap:
        return dim
    t = (cap // quantum) * quantum
    while t >= quantum:
        if dim % t == 0:
            return t
        t -= quantum
    return cap


def _pad2(a, shape):
    pads = [(0, t - s) for s, t in zip(a.shape, shape)]
    if all(p == (0, 0) for p in pads):
        return a
    return jnp.pad(a, pads)


# ----------------------------- Pallas kernels ------------------------------ #

def _matmul_kernel(x_ref, w_ref, b_ref, o_ref, acc_ref, *, activation):
    """Tiled matmul (bf16 MXU, f32 accum); epilogue = bias (+ optional GELU)."""
    k = pl.program_id(2)

    @pl.when(k == 0)
    def _():
        acc_ref[...] = jnp.zeros_like(acc_ref)

    acc_ref[...] += jnp.dot(x_ref[...].astype(MXU_DTYPE),
                            w_ref[...].astype(MXU_DTYPE),
                            preferred_element_type=jnp.float32)

    @pl.when(k == pl.num_programs(2) - 1)
    def _():
        out = acc_ref[...] + b_ref[...].astype(jnp.float32)
        if activation == "gelu":
            # tanh-approx GELU; TODO(synk): exact erf-GELU if bit-exactness vs torch is needed
            out = jax.nn.gelu(out)
        o_ref[...] = out.astype(o_ref.dtype)


def _matmul_add_ln_kernel(x_ref, w_ref, b_ref, r_ref, g_ref, bb_ref, o_ref,
                          acc_ref, *, eps):
    """Tiled matmul (bf16 MXU, f32 accum); epilogue = bias + residual + LayerNorm."""
    k = pl.program_id(1)

    @pl.when(k == 0)
    def _():
        acc_ref[...] = jnp.zeros_like(acc_ref)

    acc_ref[...] += jnp.dot(x_ref[...].astype(MXU_DTYPE),
                            w_ref[...].astype(MXU_DTYPE),
                            preferred_element_type=jnp.float32)

    @pl.when(k == pl.num_programs(1) - 1)
    def _():
        h = acc_ref[...] + b_ref[...].astype(jnp.float32) + r_ref[...].astype(jnp.float32)
        mu = jnp.mean(h, axis=-1, keepdims=True)
        var = jnp.mean(jnp.square(h - mu), axis=-1, keepdims=True)
        y = (h - mu) * jax.lax.rsqrt(var + eps)
        y = y * g_ref[...].astype(jnp.float32) + bb_ref[...].astype(jnp.float32)
        o_ref[...] = y.astype(o_ref.dtype)


def _flash_attn_kernel(*refs, scale, has_mask):
    """One (batch, head) pair per outer grid step; inner grid axis walks Sk blocks
    with online softmax.  Stats in f32 scratch; output written lane-dense at the
    head's lane offset of a (B, Sq, H) tensor."""
    if has_mask:
        q_ref, k_ref, v_ref, m_ref, o_ref, m_sc, l_sc, acc_sc = refs
    else:
        q_ref, k_ref, v_ref, o_ref, m_sc, l_sc, acc_sc = refs
        m_ref = None
    ks = pl.program_id(2)

    @pl.when(ks == 0)
    def _():
        m_sc[...] = jnp.full_like(m_sc, -jnp.inf)
        l_sc[...] = jnp.zeros_like(l_sc)
        acc_sc[...] = jnp.zeros_like(acc_sc)

    q = q_ref[0].astype(MXU_DTYPE)                    # (Sq, d)
    k = k_ref[0].astype(MXU_DTYPE)                    # (tsk, d)
    v = v_ref[0].astype(MXU_DTYPE)                    # (tsk, d)

    # TODO(synk): feed K pre-transposed as (d, Sk) to avoid any in-loop RHS relayout.
    s = jax.lax.dot_general(q, k, (((1,), (1,)), ((), ())),
                            preferred_element_type=jnp.float32) * scale   # (Sq, tsk)
    if has_mask:
        s = s + (1.0 - m_ref[0].astype(jnp.float32)) * NEG_INF           # (1, tsk) bcast

    m_prev = m_sc[...]                                                    # (Sq, 1)
    m_new = jnp.maximum(m_prev, jnp.max(s, axis=-1, keepdims=True))
    alpha = jnp.exp(m_prev - m_new)
    p = jnp.exp(s - m_new)
    l_sc[...] = alpha * l_sc[...] + jnp.sum(p, axis=-1, keepdims=True)
    acc_sc[...] = alpha * acc_sc[...] + jnp.dot(p.astype(MXU_DTYPE), v,
                                                preferred_element_type=jnp.float32)
    m_sc[...] = m_new

    @pl.when(ks == pl.num_programs(2) - 1)
    def _():
        o_ref[0] = (acc_sc[...] * pl.reciprocal(l_sc[...], approx=True)
                    ).astype(o_ref.dtype)


# ------------------------------ kernel wrappers ----------------------------- #

def linear(x, w, b, activation=None):
    """x: (N, K), w: (K, Out) [transposed vs torch (Out, K)], b: (Out,)."""
    n, kdim = x.shape
    out = w.shape[1]
    bm = _tile(n, TM, 8)
    bn = _tile(out, TN, 128)
    bk = _tile(kdim, TK, 128)
    np_, op_, kp_ = _round_up(n, bm), _round_up(out, bn), _round_up(kdim, bk)
    xp = _pad2(x, (np_, kp_))
    wp = _pad2(w, (kp_, op_))
    bp = _pad2(b.reshape(1, out), (1, op_))
    isz = jnp.dtype(x.dtype).itemsize

    res = pl.pallas_call(
        functools.partial(_matmul_kernel, activation=activation),
        out_shape=jax.ShapeDtypeStruct((np_, op_), x.dtype),
        grid=(np_ // bm, op_ // bn, kp_ // bk),
        in_specs=[
            pl.BlockSpec((bm, bk), lambda i, j, k: (i, k)),
            pl.BlockSpec((bk, bn), lambda i, j, k: (k, j)),
            pl.BlockSpec((1, bn), lambda i, j, k: (0, j)),
        ],
        out_specs=pl.BlockSpec((bm, bn), lambda i, j, k: (i, j)),
        scratch_shapes=[pltpu.VMEM((bm, bn), jnp.float32)],
        compiler_params=pltpu.CompilerParams(
            dimension_semantics=("parallel", "parallel", "arbitrary")),
        cost_estimate=pl.CostEstimate(
            flops=2 * n * kdim * out, transcendentals=0,
            bytes_accessed=(n * kdim + kdim * out + n * out) * isz),
    )(xp, wp, bp)
    if (np_, op_) != (n, out):
        res = res[:n, :out]
    return res


def linear_add_ln(x, w, b, residual, gamma, beta, eps=LN_EPS):
    """out = LayerNorm(x @ w + b + residual); LN over the full (un-tiled) output dim.
    Blocks are full-H wide, so the row tile is kept at LN_TM to stay inside the
    32 MiB scoped-VMEM default on v7x even for wide models."""
    n, kdim = x.shape
    h = w.shape[1]
    bm = _tile(n, LN_TM, 8)
    bk = _tile(kdim, TK, 128)
    np_, kp_ = _round_up(n, bm), _round_up(kdim, bk)
    xp = _pad2(x, (np_, kp_))
    wp = _pad2(w, (kp_, h))
    rp = _pad2(residual, (np_, h))
    isz = jnp.dtype(x.dtype).itemsize

    res = pl.pallas_call(
        functools.partial(_matmul_add_ln_kernel, eps=eps),
        out_shape=jax.ShapeDtypeStruct((np_, h), x.dtype),
        grid=(np_ // bm, kp_ // bk),
        in_specs=[
            pl.BlockSpec((bm, bk), lambda i, k: (i, k)),
            pl.BlockSpec((bk, h), lambda i, k: (k, 0)),
            pl.BlockSpec((1, h), lambda i, k: (0, 0)),
            pl.BlockSpec((bm, h), lambda i, k: (i, 0)),
            pl.BlockSpec((1, h), lambda i, k: (0, 0)),
            pl.BlockSpec((1, h), lambda i, k: (0, 0)),
        ],
        out_specs=pl.BlockSpec((bm, h), lambda i, k: (i, 0)),
        scratch_shapes=[pltpu.VMEM((bm, h), jnp.float32)],
        compiler_params=pltpu.CompilerParams(
            dimension_semantics=("parallel", "arbitrary")),
        cost_estimate=pl.CostEstimate(
            flops=2 * n * kdim * h, transcendentals=0,
            bytes_accessed=(n * kdim + kdim * h + 3 * n * h) * isz),
    )(xp, wp, b.reshape(1, h), rp, gamma.reshape(1, h), beta.reshape(1, h))
    return res[:n] if np_ != n else res


def attention(q_src, kv_src, mask01, *, num_heads, head_dim, q_off, k_off, v_off,
              scale, has_mask):
    """Flash attention over packed projections.

    q_src : (B, Sq, Lq) — head h's query occupies lanes [(q_off+h)*d, (q_off+h+1)*d)
    kv_src: (B, Sk, Lkv) — K at blocks k_off+h, V at blocks v_off+h (block size d)
    mask01: (B, 1, Sk) with 1=keep, 0=mask (only read when has_mask=True)
    Output: (B, Sq, num_heads*d) — heads concatenated onto lanes (lane-dense, no
    JAX-side transpose needed)."""
    B, Sq, _ = q_src.shape
    Sk = kv_src.shape[1]
    d = head_dim
    # TODO(synk): head-grouped lane blocks for head_dim not a multiple of 128 (e.g. 64).
    assert d % 128 == 0, "head_dim must be a multiple of 128 for lane-aligned blocks"
    tsk = SK_BLOCK if (Sk > SK_BLOCK and Sk % SK_BLOCK == 0) else Sk
    nks = Sk // tsk

    in_specs = [
        pl.BlockSpec((1, Sq, d), lambda b, h, k: (b, 0, q_off + h)),
        pl.BlockSpec((1, tsk, d), lambda b, h, k: (b, k, k_off + h)),
        pl.BlockSpec((1, tsk, d), lambda b, h, k: (b, k, v_off + h)),
    ]
    args = [q_src, kv_src, kv_src]
    if has_mask:
        in_specs.append(pl.BlockSpec((1, 1, tsk), lambda b, h, k: (b, 0, k)))
        args.append(mask01)

    return pl.pallas_call(
        functools.partial(_flash_attn_kernel, scale=scale, has_mask=has_mask),
        out_shape=jax.ShapeDtypeStruct((B, Sq, num_heads * d), q_src.dtype),
        grid=(B, num_heads, nks),
        in_specs=in_specs,
        out_specs=pl.BlockSpec((1, Sq, d), lambda b, h, k: (b, 0, h)),
        scratch_shapes=[pltpu.VMEM((Sq, 1), jnp.float32),
                        pltpu.VMEM((Sq, 1), jnp.float32),
                        pltpu.VMEM((Sq, d), jnp.float32)],
        compiler_params=pltpu.CompilerParams(
            dimension_semantics=("parallel", "parallel", "arbitrary")),
    )(*args)


# ----------------------------- model assembly ------------------------------ #

def bert_block(x, cond, cond_mask01, p, num_heads):
    B, S, H = x.shape
    Sc = cond.shape[1]
    d = H // num_heads
    scale = 1.0 / float(d) ** 0.5
    x2 = x.reshape(B * S, H)

    # --- self-attention (attention_mask=None -> mask skipped entirely) ---
    sa = p["self_attn"]
    qkv = linear(x2, sa["wqkv"], sa["bqkv"]).reshape(B, S, 3 * H)   # packed QKV
    ctx = attention(qkv, qkv, None, num_heads=num_heads, head_dim=d,
                    q_off=0, k_off=num_heads, v_off=2 * num_heads,
                    scale=scale, has_mask=False)
    x2 = linear_add_ln(ctx.reshape(B * S, H), sa["wo"], sa["bo"], x2,
                       sa["ln_g"], sa["ln_b"])

    # --- cross-attention over encoder_hidden_states with encoder_attention_mask ---
    ca = p["cross_attn"]
    q = linear(x2, ca["wq"], ca["bq"]).reshape(B, S, H)
    kv = linear(cond.reshape(B * Sc, H), ca["wkv"], ca["bkv"]).reshape(B, Sc, 2 * H)
    ctx = attention(q, kv, cond_mask01, num_heads=num_heads, head_dim=d,
                    q_off=0, k_off=0, v_off=num_heads,
                    scale=scale, has_mask=True)
    x2 = linear_add_ln(ctx.reshape(B * S, H), ca["wo"], ca["bo"], x2,
                       ca["ln_g"], ca["ln_b"])

    # --- feed-forward (GELU) ---
    inter = linear(x2, p["wi"], p["bi"], activation="gelu")
    x2 = linear_add_ln(inter, p["wo2"], p["bo2"], x2, p["ln2_g"], p["ln2_b"])
    return x2.reshape(B, S, H)


def decoder_forward(params, x, cond_x=None, cond_mask=None, *, num_heads):
    B, S, H = x.shape
    # condition_encoder == identity branch (non-'transformer' config)
    cond = cond_x if cond_x is not None else x
    Sc = cond.shape[1]
    if cond_mask is None:   # guard: treat missing mask as all-valid
        cond_mask01 = jnp.ones((B, 1, Sc), x.dtype)
    else:
        cond_mask01 = cond_mask.reshape(B, 1, Sc).astype(x.dtype)

    for blk in params["blocks"]:
        x = bert_block(x, cond, cond_mask01, blk, num_heads)

    V = params["fc_w"].shape[1]
    logits = linear(x.reshape(B * S, H), params["fc_w"], params["fc_b"])
    return logits.reshape(B, S, V)


# ------------------------------- param init -------------------------------- #

def _init_linear(key, din, dout, dtype):
    return (jax.random.normal(key, (din, dout), dtype) * 0.02,
            jnp.zeros((dout,), dtype))


def init_params(key, num_layers, hidden, intermediate, vocab, dtype=MXU_DTYPE):
    blocks = []
    for layer in range(num_layers):
        keys = jax.random.split(jax.random.fold_in(key, layer), 8)
        wqkv, bqkv = _init_linear(keys[0], hidden, 3 * hidden, dtype)
        wo_s, bo_s = _init_linear(keys[1], hidden, hidden, dtype)
        wq, bq = _init_linear(keys[2], hidden, hidden, dtype)
        wkv, bkv = _init_linear(keys[3], hidden, 2 * hidden, dtype)
        wo_c, bo_c = _init_linear(keys[4], hidden, hidden, dtype)
        wi, bi = _init_linear(keys[5], hidden, intermediate, dtype)
        wo2, bo2 = _init_linear(keys[6], intermediate, hidden, dtype)
        blocks.append(dict(
            self_attn=dict(wqkv=wqkv, bqkv=bqkv, wo=wo_s, bo=bo_s,
                           ln_g=jnp.ones((hidden,), dtype),
                           ln_b=jnp.zeros((hidden,), dtype)),
            cross_attn=dict(wq=wq, bq=bq, wkv=wkv, bkv=bkv, wo=wo_c, bo=bo_c,
                            ln_g=jnp.ones((hidden,), dtype),
                            ln_b=jnp.zeros((hidden,), dtype)),
            wi=wi, bi=bi, wo2=wo2, bo2=bo2,
            ln2_g=jnp.ones((hidden,), dtype),
            ln2_b=jnp.zeros((hidden,), dtype),
        ))
    fc_w, fc_b = _init_linear(jax.random.fold_in(key, 999), hidden, vocab, dtype)
    return dict(blocks=blocks, fc_w=fc_w, fc_b=fc_b)


# ---------------------------------- main ----------------------------------- #

if __name__ == "__main__":
    # Small but lane-aligned shapes: head_dim = HIDDEN // HEADS = 128.
    B, S, S_COND = 2, 8, 16
    HIDDEN, HEADS, INTER, VOCAB, LAYERS = 256, 2, 512, 384, 2
    dtype = jnp.bfloat16   # bf16 activations/weights; accumulators & stats stay f32

    root = jax.random.PRNGKey(0)
    k_p, k_x, k_c, k_m = jax.random.split(root, 4)

    params = init_params(k_p, LAYERS, HIDDEN, INTER, VOCAB, dtype)
    x = jax.random.normal(k_x, (B, S, HIDDEN), dtype)
    cond_x = jax.random.normal(k_c, (B, S_COND, HIDDEN), dtype)
    cond_mask = (jax.random.uniform(k_m, (B, S_COND)) > 0.2).astype(dtype)
    cond_mask = cond_mask.at[:, 0].set(1.0)  # guarantee at least one valid cond token

    fwd = jax.jit(functools.partial(decoder_forward, num_heads=HEADS))
    logits = fwd(params, x, cond_x, cond_mask)
    jax.block_until_ready(logits)

    assert logits.shape == (B, S, VOCAB), logits.shape
    assert bool(jnp.all(jnp.isfinite(logits.astype(jnp.float32))))
    print("KERNEL_OK")
</pallas_src>

<mosaic_0001>
module attributes {stable_mosaic.version = 11 : i64} {
  func.func @_flash_attn_kernel(%arg0: i32, %arg1: i32, %arg2: i32, %arg3: memref<1x8x128xbf16, #tpu.memory_space<vmem>>, %arg4: memref<1x8x128xbf16, #tpu.memory_space<vmem>>, %arg5: memref<1x8x128xbf16, #tpu.memory_space<vmem>>, %arg6: memref<1x8x128xbf16, #tpu.memory_space<vmem>>, %arg7: memref<8x1xf32, #tpu.memory_space<vmem>>, %arg8: memref<8x1xf32, #tpu.memory_space<vmem>>, %arg9: memref<8x128xf32, #tpu.memory_space<vmem>>) attributes {dimension_semantics = [#tpu.dimension_semantics<parallel>, #tpu.dimension_semantics<parallel>, #tpu.dimension_semantics<arbitrary>], iteration_bounds = array<i64: 2, 2, 1>, scalar_prefetch = 0 : i64, scratch_operands = 3 : i64, tpu.core_type = #tpu.core_type<tc>, window_params = [{transform_indices = @transform_0, window_bounds = array<i64: 1, 8, 128>}, {transform_indices = @transform_1, window_bounds = array<i64: 1, 8, 128>}, {transform_indices = @transform_2, window_bounds = array<i64: 1, 8, 128>}, {transform_indices = @transform_3, window_bounds = array<i64: 1, 8, 128>}]} {
    %c0_i32 = arith.constant 0 : i32
    %0 = arith.cmpi eq, %arg2, %c0_i32 : i32
    %1 = arith.extui %0 : i1 to i32
    %c0_i32_0 = arith.constant 0 : i32
    %2 = arith.cmpi ne, %1, %c0_i32_0 : i32
    scf.if %2 {
      %cst_27 = arith.constant 0xFF800000 : f32
      %38 = vector.broadcast %cst_27 : f32 to vector<8x1xf32>
      %c0_28 = arith.constant 0 : index
      %c0_29 = arith.constant 0 : index
      %39 = vector.load %arg7[%c0_28, %c0_29] : memref<8x1xf32, #tpu.memory_space<vmem>>, vector<8x1xf32>
      tpu.vector_store %arg7[%c0_28, %c0_29], %38 {strides = array<i32>} : memref<8x1xf32, #tpu.memory_space<vmem>>, vector<8x1xf32>,
      %cst_30 = arith.constant 0.000000e+00 : f32
      %40 = vector.broadcast %cst_30 : f32 to vector<8x1xf32>
      %c0_31 = arith.constant 0 : index
      %c0_32 = arith.constant 0 : index
      %41 = vector.load %arg8[%c0_31, %c0_32] : memref<8x1xf32, #tpu.memory_space<vmem>>, vector<8x1xf32>
      tpu.vector_store %arg8[%c0_31, %c0_32], %40 {strides = array<i32>} : memref<8x1xf32, #tpu.memory_space<vmem>>, vector<8x1xf32>,
      %cst_33 = arith.constant 0.000000e+00 : f32
      %42 = vector.broadcast %cst_33 : f32 to vector<8x128xf32>
      %c0_34 = arith.constant 0 : index
      %c0_35 = arith.constant 0 : index
      %43 = vector.load %arg9[%c0_34, %c0_35] : memref<8x128xf32, #tpu.memory_space<vmem>>, vector<8x128xf32>
      tpu.vector_store %arg9[%c0_34, %c0_35], %42 {strides = array<i32>} : memref<8x128xf32, #tpu.memory_space<vmem>>, vector<8x128xf32>,
    } else {
    }
    %c0 = arith.constant 0 : index
    %c0_1 = arith.constant 0 : index
    %c0_2 = arith.constant 0 : index
    %3 = vector.load %arg3[%c0, %c0_1, %c0_2] : memref<1x8x128xbf16, #tpu.memory_space<vmem>>, vector<1x8x128xbf16>
    %4 = vector.shape_cast %3 : vector<1x8x128xbf16> to vector<8x128xbf16>
    %c0_3 = arith.constant 0 : index
    %c0_4 = arith.constant 0 : index
    %c0_5 = arith.constant 0 : index
    %5 = vector.load %arg4[%c0_3, %c0_4, %c0_5] : memref<1x8x128xbf16, #tpu.memory_space<vmem>>, vector<1x8x128xbf16>
    %6 = vector.shape_cast %5 : vector<1x8x128xbf16> to vector<8x128xbf16>
    %c0_6 = arith.constant 0 : index
    %c0_7 = arith.constant 0 : index
    %c0_8 = arith.constant 0 : index
    %7 = vector.load %arg5[%c0_6, %c0_7, %c0_8] : memref<1x8x128xbf16, #tpu.memory_space<vmem>>, vector<1x8x128xbf16>
    %8 = vector.shape_cast %7 : vector<1x8x128xbf16> to vector<8x128xbf16>
    %cst = arith.constant dense<0.000000e+00> : vector<8x8xf32>
    %9 = tpu.matmul %4, %6, %cst {dimension_numbers = #tpu.dot_dimension_numbers<[1], [1], [0], [0], [0, 0, 1, 0], [], []>} : vector<8x128xbf16>, vector<8x128xbf16>, vector<8x8xf32> -> vector<8x8xf32>
    %cst_9 = arith.constant 0.0883883461 : f32
    %10 = vector.broadcast %cst_9 : f32 to vector<8x8xf32>
    %11 = arith.mulf %9, %10 : vector<8x8xf32>
    %c0_10 = arith.constant 0 : index
    %c0_11 = arith.constant 0 : index
    %12 = vector.load %arg7[%c0_10, %c0_11] : memref<8x1xf32, #tpu.memory_space<vmem>>, vector<8x1xf32>
    %cst_12 = arith.constant dense<0xFF800000> : vector<8xf32>
    %13 = vector.multi_reduction <maximumf>, %11, %cst_12 [1] : vector<8x8xf32> to vector<8xf32>
    %14 = vector.shape_cast %13 : vector<8xf32> to vector<8x1xf32>
    %15 = arith.maximumf %12, %14 : vector<8x1xf32>
    %16 = arith.subf %12, %15 : vector<8x1xf32>
    %17 = math.exp %16 : vector<8x1xf32>
    %18 = vector.broadcast %15 : vector<8x1xf32> to vector<8x8xf32>
    %19 = arith.subf %11, %18 : vector<8x8xf32>
    %20 = math.exp %19 : vector<8x8xf32>
    %c0_13 = arith.constant 0 : index
    %c0_14 = arith.constant 0 : index
    %21 = vector.load %arg8[%c0_13, %c0_14] : memref<8x1xf32, #tpu.memory_space<vmem>>, vector<8x1xf32>
    %22 = arith.mulf %17, %21 : vector<8x1xf32>
    %cst_15 = arith.constant dense<0.000000e+00> : vector<8xf32>
    %23 = vector.multi_reduction <add>, %20, %cst_15 [1] : vector<8x8xf32> to vector<8xf32>
    %24 = vector.shape_cast %23 : vector<8xf32> to vector<8x1xf32>
    %25 = arith.addf %22, %24 : vector<8x1xf32>
    %c0_16 = arith.constant 0 : index
    %c0_17 = arith.constant 0 : index
    %26 = vector.load %arg8[%c0_16, %c0_17] : memref<8x1xf32, #tpu.memory_space<vmem>>, vector<8x1xf32>
    tpu.vector_store %arg8[%c0_16, %c0_17], %25 {strides = array<i32>} : memref<8x1xf32, #tpu.memory_space<vmem>>, vector<8x1xf32>,
    %c0_18 = arith.constant 0 : index
    %c0_19 = arith.constant 0 : index
    %27 = vector.load %arg9[%c0_18, %c0_19] : memref<8x128xf32, #tpu.memory_space<vmem>>, vector<8x128xf32>
    %28 = vector.broadcast %17 : vector<8x1xf32> to vector<8x128xf32>
    %29 = arith.mulf %28, %27 : vector<8x128xf32>
    %30 = arith.truncf %20 : vector<8x8xf32> to vector<8x8xbf16>
    %cst_20 = arith.constant dense<0.000000e+00> : vector<8x128xf32>
    %31 = tpu.matmul %30, %8, %cst_20 {dimension_numbers = #tpu.dot_dimension_numbers<[1], [0], [0], [1], [0, 0, 1, 1], [], []>} : vector<8x8xbf16>, vector<8x128xbf16>, vector<8x128xf32> -> vector<8x128xf32>
    %32 = arith.addf %29, %31 : vector<8x128xf32>
    %c0_21 = arith.constant 0 : index
    %c0_22 = arith.constant 0 : index
    %33 = vector.load %arg9[%c0_21, %c0_22] : memref<8x128xf32, #tpu.memory_space<vmem>>, vector<8x128xf32>
    tpu.vector_store %arg9[%c0_21, %c0_22], %32 {strides = array<i32>} : memref<8x128xf32, #tpu.memory_space<vmem>>, vector<8x128xf32>,
    %c0_23 = arith.constant 0 : index
    %c0_24 = arith.constant 0 : index
    %34 = vector.load %arg7[%c0_23, %c0_24] : memref<8x1xf32, #tpu.memory_space<vmem>>, vector<8x1xf32>
    tpu.vector_store %arg7[%c0_23, %c0_24], %15 {strides = array<i32>} : memref<8x1xf32, #tpu.memory_space<vmem>>, vector<8x1xf32>,
    %c0_i32_25 = arith.constant 0 : i32
    %35 = arith.cmpi eq, %arg2, %c0_i32_25 : i32
    %36 = arith.extui %35 : i1 to i32
    %c0_i32_26 = arith.constant 0 : i32
    %37 = arith.cmpi ne, %36, %c0_i32_26 : i32
    scf.if %37 {
      %c0_27 = arith.constant 0 : index
      %c0_28 = arith.constant 0 : index
      %38 = vector.load %arg9[%c0_27, %c0_28] : memref<8x128xf32, #tpu.memory_space<vmem>>, vector<8x128xf32>
      %c0_29 = arith.constant 0 : index
      %c0_30 = arith.constant 0 : index
      %39 = vector.load %arg8[%c0_29, %c0_30] : memref<8x1xf32, #tpu.memory_space<vmem>>, vector<8x1xf32>
      %40 = tpu.reciprocal %39 {approx = true} : vector<8x1xf32> -> vector<8x1xf32>
      %41 = vector.broadcast %40 : vector<8x1xf32> to vector<8x128xf32>
      %42 = arith.mulf %38, %41 : vector<8x128xf32>
      %43 = arith.truncf %42 : vector<8x128xf32> to vector<8x128xbf16>
      %c0_31 = arith.constant 0 : index
      %c0_32 = arith.constant 0 : index
      %c0_33 = arith.constant 0 : index
      %44 = vector.load %arg6[%c0_31, %c0_32, %c0_33] : memref<1x8x128xbf16, #tpu.memory_space<vmem>>, vector<1x8x128xbf16>
      %45 = vector.shape_cast %44 : vector<1x8x128xbf16> to vector<8x128xbf16>
      %46 = vector.shape_cast %43 : vector<8x128xbf16> to vector<1x8x128xbf16>
      tpu.vector_store %arg6[%c0_31, %c0_32, %c0_33], %46 {strides = array<i32>} : memref<1x8x128xbf16, #tpu.memory_space<vmem>>, vector<1x8x128xbf16>,
    } else {
    }
    return
  }
  func.func @transform_0(%arg0: i32, %arg1: i32, %arg2: i32) -> (i32, i32, i32) {
    %c0_i32 = arith.constant 0 : i32
    %0 = arith.addi %c0_i32, %arg1 : i32
    %c0_i32_0 = arith.constant 0 : i32
    %c0_i32_1 = arith.constant 0 : i32
    return %arg0, %c0_i32_0, %0 : i32, i32, i32
  }
  func.func @transform_1(%arg0: i32, %arg1: i32, %arg2: i32) -> (i32, i32, i32) {
    %c2_i32 = arith.constant 2 : i32
    %0 = arith.addi %c2_i32, %arg1 : i32
    %c0_i32 = arith.constant 0 : i32
    return %arg0, %arg2, %0 : i32, i32, i32
  }
  func.func @transform_2(%arg0: i32, %arg1: i32, %arg2: i32) -> (i32, i32, i32) {
    %c4_i32 = arith.constant 4 : i32
    %0 = arith.addi %c4_i32, %arg1 : i32
    %c0_i32 = arith.constant 0 : i32
    return %arg0, %arg2, %0 : i32, i32, i32
  }
  func.func @transform_3(%arg0: i32, %arg1: i32, %arg2: i32) -> (i32, i32, i32) {
    %c0_i32 = arith.constant 0 : i32
    %c0_i32_0 = arith.constant 0 : i32
    return %arg0, %c0_i32, %arg1 : i32, i32, i32
  }
}

module attributes {stable_mosaic.version = 11 : i64} {
  func.func @_matmul_kernel(%arg0: i32, %arg1: i32, %arg2: i32, %arg3: memref<16x256xbf16, #tpu.memory_space<vmem>>, %arg4: memref<256x384xbf16, #tpu.memory_space<vmem>>, %arg5: memref<1x384xbf16, #tpu.memory_space<vmem>>, %arg6: memref<16x384xbf16, #tpu.memory_space<vmem>>, %arg7: memref<16x384xf32, #tpu.memory_space<vmem>>) attributes {dimension_semantics = [#tpu.dimension_semantics<parallel>, #tpu.dimension_semantics<parallel>, #tpu.dimension_semantics<arbitrary>], iteration_bounds = array<i64: 1, 2, 1>, scalar_prefetch = 0 : i64, scratch_operands = 1 : i64, tpu.core_type = #tpu.core_type<tc>, window_params = [{transform_indices = @transform_0, window_bounds = array<i64: 16, 256>}, {transform_indices = @transform_1, window_bounds = array<i64: 256, 384>}, {transform_indices = @transform_2, window_bounds = array<i64: 1, 384>}, {transform_indices = @transform_3, window_bounds = array<i64: 16, 384>}]} {
    %c0_i32 = arith.constant 0 : i32
    %0 = arith.cmpi eq, %arg2, %c0_i32 : i32
    %1 = arith.extui %0 : i1 to i32
    %c0_i32_0 = arith.constant 0 : i32
    %2 = arith.cmpi ne, %1, %c0_i32_0 : i32
    scf.if %2 {
      %cst_10 = arith.constant 0.000000e+00 : f32
      %12 = vector.broadcast %cst_10 : f32 to vector<16x384xf32>
      %c0_11 = arith.constant 0 : index
      %c0_12 = arith.constant 0 : index
      %13 = vector.load %arg7[%c0_11, %c0_12] : memref<16x384xf32, #tpu.memory_space<vmem>>, vector<16x384xf32>
      tpu.vector_store %arg7[%c0_11, %c0_12], %12 {strides = array<i32>} : memref<16x384xf32, #tpu.memory_space<vmem>>, vector<16x384xf32>,
    } else {
    }
    %c0 = arith.constant 0 : index
    %c0_1 = arith.constant 0 : index
    %3 = vector.load %arg7[%c0, %c0_1] : memref<16x384xf32, #tpu.memory_space<vmem>>, vector<16x384xf32>
    %c0_2 = arith.constant 0 : index
    %c0_3 = arith.constant 0 : index
    %4 = vector.load %arg3[%c0_2, %c0_3] : memref<16x256xbf16, #tpu.memory_space<vmem>>, vector<16x256xbf16>
    %c0_4 = arith.constant 0 : index
    %c0_5 = arith.constant 0 : index
    %5 = vector.load %arg4[%c0_4, %c0_5] : memref<256x384xbf16, #tpu.memory_space<vmem>>, vector<256x384xbf16>
    %cst = arith.constant dense<0.000000e+00> : vector<16x384xf32>
    %6 = tpu.matmul %4, %5, %cst {dimension_numbers = #tpu.dot_dimension_numbers<[1], [0], [0], [1], [0, 0, 1, 1], [], []>} : vector<16x256xbf16>, vector<256x384xbf16>, vector<16x384xf32> -> vector<16x384xf32>
    %7 = arith.addf %3, %6 : vector<16x384xf32>
    %c0_6 = arith.constant 0 : index
    %c0_7 = arith.constant 0 : index
    %8 = vector.load %arg7[%c0_6, %c0_7] : memref<16x384xf32, #tpu.memory_space<vmem>>, vector<16x384xf32>
    tpu.vector_store %arg7[%c0_6, %c0_7], %7 {strides = array<i32>} : memref<16x384xf32, #tpu.memory_space<vmem>>, vector<16x384xf32>,
    %c0_i32_8 = arith.constant 0 : i32
    %9 = arith.cmpi eq, %arg2, %c0_i32_8 : i32
    %10 = arith.extui %9 : i1 to i32
    %c0_i32_9 = arith.constant 0 : i32
    %11 = arith.cmpi ne, %10, %c0_i32_9 : i32
    scf.if %11 {
      %c0_10 = arith.constant 0 : index
      %c0_11 = arith.constant 0 : index
      %12 = vector.load %arg7[%c0_10, %c0_11] : memref<16x384xf32, #tpu.memory_space<vmem>>, vector<16x384xf32>
      %c0_12 = arith.constant 0 : index
      %c0_13 = arith.constant 0 : index
      %13 = vector.load %arg5[%c0_12, %c0_13] : memref<1x384xbf16, #tpu.memory_space<vmem>>, vector<1x384xbf16>
      %14 = arith.extf %13 : vector<1x384xbf16> to vector<1x384xf32>
      %15 = vector.broadcast %14 : vector<1x384xf32> to vector<16x384xf32>
      %16 = arith.addf %12, %15 : vector<16x384xf32>
      %17 = arith.truncf %16 : vector<16x384xf32> to vector<16x384xbf16>
      %c0_14 = arith.constant 0 : index
      %c0_15 = arith.constant 0 : index
      %18 = vector.load %arg6[%c0_14, %c0_15] : memref<16x384xbf16, #tpu.memory_space<vmem>>, vector<16x384xbf16>
      tpu.vector_store %arg6[%c0_14, %c0_15], %17 {strides = array<i32>} : memref<16x384xbf16, #tpu.memory_space<vmem>>, vector<16x384xbf16>,
    } else {
    }
    return
  }
  func.func @transform_0(%arg0: i32, %arg1: i32, %arg2: i32) -> (i32, i32) {
    %c0_i32 = arith.constant 0 : i32
    return %arg0, %arg2 : i32, i32
  }
  func.func @transform_1(%arg0: i32, %arg1: i32, %arg2: i32) -> (i32, i32) {
    %c0_i32 = arith.constant 0 : i32
    return %arg2, %arg1 : i32, i32
  }
  func.func @transform_2(%arg0: i32, %arg1: i32, %arg2: i32) -> (i32, i32) {
    %c0_i32 = arith.constant 0 : i32
    %c0_i32_0 = arith.constant 0 : i32
    return %c0_i32, %arg1 : i32, i32
  }
  func.func @transform_3(%arg0: i32, %arg1: i32, %arg2: i32) -> (i32, i32) {
    %c0_i32 = arith.constant 0 : i32
    return %arg0, %arg1 : i32, i32
  }
}

module attributes {stable_mosaic.version = 11 : i64} {
  func.func @_matmul_kernel(%arg0: i32, %arg1: i32, %arg2: i32, %arg3: memref<16x256xbf16, #tpu.memory_space<vmem>>, %arg4: memref<256x256xbf16, #tpu.memory_space<vmem>>, %arg5: memref<1x256xbf16, #tpu.memory_space<vmem>>, %arg6: memref<16x256xbf16, #tpu.memory_space<vmem>>, %arg7: memref<16x256xf32, #tpu.memory_space<vmem>>) attributes {dimension_semantics = [#tpu.dimension_semantics<parallel>, #tpu.dimension_semantics<parallel>, #tpu.dimension_semantics<arbitrary>], iteration_bounds = array<i64: 1, 1, 1>, scalar_prefetch = 0 : i64, scratch_operands = 1 : i64, tpu.core_type = #tpu.core_type<tc>, window_params = [{transform_indices = @transform_0, window_bounds = array<i64: 16, 256>}, {transform_indices = @transform_1, window_bounds = array<i64: 256, 256>}, {transform_indices = @transform_2, window_bounds = array<i64: 1, 256>}, {transform_indices = @transform_3, window_bounds = array<i64: 16, 256>}]} {
    %c0_i32 = arith.constant 0 : i32
    %0 = arith.cmpi eq, %arg2, %c0_i32 : i32
    %1 = arith.extui %0 : i1 to i32
    %c0_i32_0 = arith.constant 0 : i32
    %2 = arith.cmpi ne, %1, %c0_i32_0 : i32
    scf.if %2 {
      %cst_10 = arith.constant 0.000000e+00 : f32
      %12 = vector.broadcast %cst_10 : f32 to vector<16x256xf32>
      %c0_11 = arith.constant 0 : index
      %c0_12 = arith.constant 0 : index
      %13 = vector.load %arg7[%c0_11, %c0_12] : memref<16x256xf32, #tpu.memory_space<vmem>>, vector<16x256xf32>
      tpu.vector_store %arg7[%c0_11, %c0_12], %12 {strides = array<i32>} : memref<16x256xf32, #tpu.memory_space<vmem>>, vector<16x256xf32>,
    } else {
    }
    %c0 = arith.constant 0 : index
    %c0_1 = arith.constant 0 : index
    %3 = vector.load %arg7[%c0, %c0_1] : memref<16x256xf32, #tpu.memory_space<vmem>>, vector<16x256xf32>
    %c0_2 = arith.constant 0 : index
    %c0_3 = arith.constant 0 : index
    %4 = vector.load %arg3[%c0_2, %c0_3] : memref<16x256xbf16, #tpu.memory_space<vmem>>, vector<16x256xbf16>
    %c0_4 = arith.constant 0 : index
    %c0_5 = arith.constant 0 : index
    %5 = vector.load %arg4[%c0_4, %c0_5] : memref<256x256xbf16, #tpu.memory_space<vmem>>, vector<256x256xbf16>
    %cst = arith.constant dense<0.000000e+00> : vector<16x256xf32>
    %6 = tpu.matmul %4, %5, %cst {dimension_numbers = #tpu.dot_dimension_numbers<[1], [0], [0], [1], [0, 0, 1, 1], [], []>} : vector<16x256xbf16>, vector<256x256xbf16>, vector<16x256xf32> -> vector<16x256xf32>
    %7 = arith.addf %3, %6 : vector<16x256xf32>
    %c0_6 = arith.constant 0 : index
    %c0_7 = arith.constant 0 : index
    %8 = vector.load %arg7[%c0_6, %c0_7] : memref<16x256xf32, #tpu.memory_space<vmem>>, vector<16x256xf32>
    tpu.vector_store %arg7[%c0_6, %c0_7], %7 {strides = array<i32>} : memref<16x256xf32, #tpu.memory_space<vmem>>, vector<16x256xf32>,
    %c0_i32_8 = arith.constant 0 : i32
    %9 = arith.cmpi eq, %arg2, %c0_i32_8 : i32
    %10 = arith.extui %9 : i1 to i32
    %c0_i32_9 = arith.constant 0 : i32
    %11 = arith.cmpi ne, %10, %c0_i32_9 : i32
    scf.if %11 {
      %c0_10 = arith.constant 0 : index
      %c0_11 = arith.constant 0 : index
      %12 = vector.load %arg7[%c0_10, %c0_11] : memref<16x256xf32, #tpu.memory_space<vmem>>, vector<16x256xf32>
      %c0_12 = arith.constant 0 : index
      %c0_13 = arith.constant 0 : index
      %13 = vector.load %arg5[%c0_12, %c0_13] : memref<1x256xbf16, #tpu.memory_space<vmem>>, vector<1x256xbf16>
      %14 = arith.extf %13 : vector<1x256xbf16> to vector<1x256xf32>
      %15 = vector.broadcast %14 : vector<1x256xf32> to vector<16x256xf32>
      %16 = arith.addf %12, %15 : vector<16x256xf32>
      %17 = arith.truncf %16 : vector<16x256xf32> to vector<16x256xbf16>
      %c0_14 = arith.constant 0 : index
      %c0_15 = arith.constant 0 : index
      %18 = vector.load %arg6[%c0_14, %c0_15] : memref<16x256xbf16, #tpu.memory_space<vmem>>, vector<16x256xbf16>
      tpu.vector_store %arg6[%c0_14, %c0_15], %17 {strides = array<i32>} : memref<16x256xbf16, #tpu.memory_space<vmem>>, vector<16x256xbf16>,
    } else {
    }
    return
  }
  func.func @transform_0(%arg0: i32, %arg1: i32, %arg2: i32) -> (i32, i32) {
    %c0_i32 = arith.constant 0 : i32
    return %arg0, %arg2 : i32, i32
  }
  func.func @transform_1(%arg0: i32, %arg1: i32, %arg2: i32) -> (i32, i32) {
    %c0_i32 = arith.constant 0 : i32
    return %arg2, %arg1 : i32, i32
  }
  func.func @transform_2(%arg0: i32, %arg1: i32, %arg2: i32) -> (i32, i32) {
    %c0_i32 = arith.constant 0 : i32
    %c0_i32_0 = arith.constant 0 : i32
    return %c0_i32, %arg1 : i32, i32
  }
  func.func @transform_3(%arg0: i32, %arg1: i32, %arg2: i32) -> (i32, i32) {
    %c0_i32 = arith.constant 0 : i32
    return %arg0, %arg1 : i32, i32
  }
}

module attributes {stable_mosaic.version = 11 : i64} {
  func.func @_matmul_add_ln_kernel(%arg0: i32, %arg1: i32, %arg2: memref<16x256xbf16, #tpu.memory_space<vmem>>, %arg3: memref<256x256xbf16, #tpu.memory_space<vmem>>, %arg4: memref<1x256xbf16, #tpu.memory_space<vmem>>, %arg5: memref<16x256xbf16, #tpu.memory_space<vmem>>, %arg6: memref<1x256xbf16, #tpu.memory_space<vmem>>, %arg7: memref<1x256xbf16, #tpu.memory_space<vmem>>, %arg8: memref<16x256xbf16, #tpu.memory_space<vmem>>, %arg9: memref<16x256xf32, #tpu.memory_space<vmem>>) attributes {dimension_semantics = [#tpu.dimension_semantics<parallel>, #tpu.dimension_semantics<arbitrary>], iteration_bounds = array<i64: 1, 1>, scalar_prefetch = 0 : i64, scratch_operands = 1 : i64, tpu.core_type = #tpu.core_type<tc>, window_params = [{transform_indices = @transform_0, window_bounds = array<i64: 16, 256>}, {transform_indices = @transform_1, window_bounds = array<i64: 256, 256>}, {pipeline_mode = #tpu.pipeline_mode<synchronous>, transform_indices = @transform_2, window_bounds = array<i64: 1, 256>}, {transform_indices = @transform_3, window_bounds = array<i64: 16, 256>}, {pipeline_mode = #tpu.pipeline_mode<synchronous>, transform_indices = @transform_4, window_bounds = array<i64: 1, 256>}, {pipeline_mode = #tpu.pipeline_mode<synchronous>, transform_indices = @transform_5, window_bounds = array<i64: 1, 256>}, {transform_indices = @transform_6, window_bounds = array<i64: 16, 256>}]} {
    %c0_i32 = arith.constant 0 : i32
    %0 = arith.cmpi eq, %arg1, %c0_i32 : i32
    %1 = arith.extui %0 : i1 to i32
    %c0_i32_0 = arith.constant 0 : i32
    %2 = arith.cmpi ne, %1, %c0_i32_0 : i32
    scf.if %2 {
      %cst_10 = arith.constant 0.000000e+00 : f32
      %12 = vector.broadcast %cst_10 : f32 to vector<16x256xf32>
      %c0_11 = arith.constant 0 : index
      %c0_12 = arith.constant 0 : index
      %13 = vector.load %arg9[%c0_11, %c0_12] : memref<16x256xf32, #tpu.memory_space<vmem>>, vector<16x256xf32>
      tpu.vector_store %arg9[%c0_11, %c0_12], %12 {strides = array<i32>} : memref<16x256xf32, #tpu.memory_space<vmem>>, vector<16x256xf32>,
    } else {
    }
    %c0 = arith.constant 0 : index
    %c0_1 = arith.constant 0 : index
    %3 = vector.load %arg9[%c0, %c0_1] : memref<16x256xf32, #tpu.memory_space<vmem>>, vector<16x256xf32>
    %c0_2 = arith.constant 0 : index
    %c0_3 = arith.constant 0 : index
    %4 = vector.load %arg2[%c0_2, %c0_3] : memref<16x256xbf16, #tpu.memory_space<vmem>>, vector<16x256xbf16>
    %c0_4 = arith.constant 0 : index
    %c0_5 = arith.constant 0 : index
    %5 = vector.load %arg3[%c0_4, %c0_5] : memref<256x256xbf16, #tpu.memory_space<vmem>>, vector<256x256xbf16>
    %cst = arith.constant dense<0.000000e+00> : vector<16x256xf32>
    %6 = tpu.matmul %4, %5, %cst {dimension_numbers = #tpu.dot_dimension_numbers<[1], [0], [0], [1], [0, 0, 1, 1], [], []>} : vector<16x256xbf16>, vector<256x256xbf16>, vector<16x256xf32> -> vector<16x256xf32>
    %7 = arith.addf %3, %6 : vector<16x256xf32>
    %c0_6 = arith.constant 0 : index
    %c0_7 = arith.constant 0 : index
    %8 = vector.load %arg9[%c0_6, %c0_7] : memref<16x256xf32, #tpu.memory_space<vmem>>, vector<16x256xf32>
    tpu.vector_store %arg9[%c0_6, %c0_7], %7 {strides = array<i32>} : memref<16x256xf32, #tpu.memory_space<vmem>>, vector<16x256xf32>,
    %c0_i32_8 = arith.constant 0 : i32
    %9 = arith.cmpi eq, %arg1, %c0_i32_8 : i32
    %10 = arith.extui %9 : i1 to i32
    %c0_i32_9 = arith.constant 0 : i32
    %11 = arith.cmpi ne, %10, %c0_i32_9 : i32
    scf.if %11 {
      %c0_10 = arith.constant 0 : index
      %c0_11 = arith.constant 0 : index
      %12 = vector.load %arg9[%c0_10, %c0_11] : memref<16x256xf32, #tpu.memory_space<vmem>>, vector<16x256xf32>
      %c0_12 = arith.constant 0 : index
      %c0_13 = arith.constant 0 : index
      %13 = vector.load %arg4[%c0_12, %c0_13] : memref<1x256xbf16, #tpu.memory_space<vmem>>, vector<1x256xbf16>
      %14 = arith.extf %13 : vector<1x256xbf16> to vector<1x256xf32>
      %15 = vector.broadcast %14 : vector<1x256xf32> to vector<16x256xf32>
      %16 = arith.addf %12, %15 : vector<16x256xf32>
      %c0_14 = arith.constant 0 : index
      %c0_15 = arith.constant 0 : index
      %17 = vector.load %arg5[%c0_14, %c0_15] : memref<16x256xbf16, #tpu.memory_space<vmem>>, vector<16x256xbf16>
      %18 = arith.extf %17 : vector<16x256xbf16> to vector<16x256xf32>
      %19 = arith.addf %16, %18 : vector<16x256xf32>
      %cst_16 = arith.constant dense<0.000000e+00> : vector<16xf32>
      %20 = vector.multi_reduction <add>, %19, %cst_16 [1] : vector<16x256xf32> to vector<16xf32>
      %21 = vector.shape_cast %20 : vector<16xf32> to vector<16x1xf32>
      %cst_17 = arith.constant 2.560000e+02 : f32
      %22 = vector.broadcast %cst_17 : f32 to vector<16x1xf32>
      %23 = arith.divf %21, %22 : vector<16x1xf32>
      %24 = vector.broadcast %23 : vector<16x1xf32> to vector<16x256xf32>
      %25 = arith.subf %19, %24 : vector<16x256xf32>
      %26 = arith.mulf %25, %25 : vector<16x256xf32>
      %cst_18 = arith.constant dense<0.000000e+00> : vector<16xf32>
      %27 = vector.multi_reduction <add>, %26, %cst_18 [1] : vector<16x256xf32> to vector<16xf32>
      %28 = vector.shape_cast %27 : vector<16xf32> to vector<16x1xf32>
      %cst_19 = arith.constant 2.560000e+02 : f32
      %29 = vector.broadcast %cst_19 : f32 to vector<16x1xf32>
      %30 = arith.divf %28, %29 : vector<16x1xf32>
      %31 = vector.broadcast %23 : vector<16x1xf32> to vector<16x256xf32>
      %32 = arith.subf %19, %31 : vector<16x256xf32>
      %cst_20 = arith.constant 9.99999996E-13 : f32
      %33 = vector.broadcast %cst_20 : f32 to vector<16x1xf32>
      %34 = arith.addf %30, %33 : vector<16x1xf32>
      %35 = math.rsqrt %34 : vector<16x1xf32>
      %36 = vector.broadcast %35 : vector<16x1xf32> to vector<16x256xf32>
      %37 = arith.mulf %32, %36 : vector<16x256xf32>
      %c0_21 = arith.constant 0 : index
      %c0_22 = arith.constant 0 : index
      %38 = vector.load %arg6[%c0_21, %c0_22] : memref<1x256xbf16, #tpu.memory_space<vmem>>, vector<1x256xbf16>
      %39 = arith.extf %38 : vector<1x256xbf16> to vector<1x256xf32>
      %40 = vector.broadcast %39 : vector<1x256xf32> to vector<16x256xf32>
      %41 = arith.mulf %37, %40 : vector<16x256xf32>
      %c0_23 = arith.constant 0 : index
      %c0_24 = arith.constant 0 : index
      %42 = vector.load %arg7[%c0_23, %c0_24] : memref<1x256xbf16, #tpu.memory_space<vmem>>, vector<1x256xbf16>
      %43 = arith.extf %42 : vector<1x256xbf16> to vector<1x256xf32>
      %44 = vector.broadcast %43 : vector<1x256xf32> to vector<16x256xf32>
      %45 = arith.addf %41, %44 : vector<16x256xf32>
      %46 = arith.truncf %45 : vector<16x256xf32> to vector<16x256xbf16>
      %c0_25 = arith.constant 0 : index
      %c0_26 = arith.constant 0 : index
      %47 = vector.load %arg8[%c0_25, %c0_26] : memref<16x256xbf16, #tpu.memory_space<vmem>>, vector<16x256xbf16>
      tpu.vector_store %arg8[%c0_25, %c0_26], %46 {strides = array<i32>} : memref<16x256xbf16, #tpu.memory_space<vmem>>, vector<16x256xbf16>,
    } else {
    }
    return
  }
  func.func @transform_0(%arg0: i32, %arg1: i32) -> (i32, i32) {
    %c0_i32 = arith.constant 0 : i32
    return %arg0, %arg1 : i32, i32
  }
  func.func @transform_1(%arg0: i32, %arg1: i32) -> (i32, i32) {
    %c0_i32 = arith.constant 0 : i32
    %c0_i32_0 = arith.constant 0 : i32
    return %arg1, %c0_i32 : i32, i32
  }
  func.func @transform_2(%arg0: i32, %arg1: i32) -> (i32, i32) {
    %c0_i32 = arith.constant 0 : i32
    %c0_i32_0 = arith.constant 0 : i32
    %c0_i32_1 = arith.constant 0 : i32
    return %c0_i32, %c0_i32_0 : i32, i32
  }
  func.func @transform_3(%arg0: i32, %arg1: i32) -> (i32, i32) {
    %c0_i32 = arith.constant 0 : i32
    %c0_i32_0 = arith.constant 0 : i32
    return %arg0, %c0_i32 : i32, i32
  }
  func.func @transform_4(%arg0: i32, %arg1: i32) -> (i32, i32) {
    %c0_i32 = arith.constant 0 : i32
    %c0_i32_0 = arith.constant 0 : i32
    %c0_i32_1 = arith.constant 0 : i32
    return %c0_i32, %c0_i32_0 : i32, i32
  }
  func.func @transform_5(%arg0: i32, %arg1: i32) -> (i32, i32) {
    %c0_i32 = arith.constant 0 : i32
    %c0_i32_0 = arith.constant 0 : i32
    %c0_i32_1 = arith.constant 0 : i32
    return %c0_i32, %c0_i32_0 : i32, i32
  }
  func.func @transform_6(%arg0: i32, %arg1: i32) -> (i32, i32) {
    %c0_i32 = arith.constant 0 : i32
    %c0_i32_0 = arith.constant 0 : i32
    return %arg0, %c0_i32 : i32, i32
  }
}

module attributes {stable_mosaic.version = 11 : i64} {
  func.func @_matmul_kernel(%arg0: i32, %arg1: i32, %arg2: i32, %arg3: memref<32x256xbf16, #tpu.memory_space<vmem>>, %arg4: memref<256x512xbf16, #tpu.memory_space<vmem>>, %arg5: memref<1x512xbf16, #tpu.memory_space<vmem>>, %arg6: memref<32x512xbf16, #tpu.memory_space<vmem>>, %arg7: memref<32x512xf32, #tpu.memory_space<vmem>>) attributes {dimension_semantics = [#tpu.dimension_semantics<parallel>, #tpu.dimension_semantics<parallel>, #tpu.dimension_semantics<arbitrary>], iteration_bounds = array<i64: 1, 1, 1>, scalar_prefetch = 0 : i64, scratch_operands = 1 : i64, tpu.core_type = #tpu.core_type<tc>, window_params = [{transform_indices = @transform_0, window_bounds = array<i64: 32, 256>}, {transform_indices = @transform_1, window_bounds = array<i64: 256, 512>}, {transform_indices = @transform_2, window_bounds = array<i64: 1, 512>}, {transform_indices = @transform_3, window_bounds = array<i64: 32, 512>}]} {
    %c0_i32 = arith.constant 0 : i32
    %0 = arith.cmpi eq, %arg2, %c0_i32 : i32
    %1 = arith.extui %0 : i1 to i32
    %c0_i32_0 = arith.constant 0 : i32
    %2 = arith.cmpi ne, %1, %c0_i32_0 : i32
    scf.if %2 {
      %cst_10 = arith.constant 0.000000e+00 : f32
      %12 = vector.broadcast %cst_10 : f32 to vector<32x512xf32>
      %c0_11 = arith.constant 0 : index
      %c0_12 = arith.constant 0 : index
      %13 = vector.load %arg7[%c0_11, %c0_12] : memref<32x512xf32, #tpu.memory_space<vmem>>, vector<32x512xf32>
      tpu.vector_store %arg7[%c0_11, %c0_12], %12 {strides = array<i32>} : memref<32x512xf32, #tpu.memory_space<vmem>>, vector<32x512xf32>,
    } else {
    }
    %c0 = arith.constant 0 : index
    %c0_1 = arith.constant 0 : index
    %3 = vector.load %arg7[%c0, %c0_1] : memref<32x512xf32, #tpu.memory_space<vmem>>, vector<32x512xf32>
    %c0_2 = arith.constant 0 : index
    %c0_3 = arith.constant 0 : index
    %4 = vector.load %arg3[%c0_2, %c0_3] : memref<32x256xbf16, #tpu.memory_space<vmem>>, vector<32x256xbf16>
    %c0_4 = arith.constant 0 : index
    %c0_5 = arith.constant 0 : index
    %5 = vector.load %arg4[%c0_4, %c0_5] : memref<256x512xbf16, #tpu.memory_space<vmem>>, vector<256x512xbf16>
    %cst = arith.constant dense<0.000000e+00> : vector<32x512xf32>
    %6 = tpu.matmul %4, %5, %cst {dimension_numbers = #tpu.dot_dimension_numbers<[1], [0], [0], [1], [0, 0, 1, 1], [], []>} : vector<32x256xbf16>, vector<256x512xbf16>, vector<32x512xf32> -> vector<32x512xf32>
    %7 = arith.addf %3, %6 : vector<32x512xf32>
    %c0_6 = arith.constant 0 : index
    %c0_7 = arith.constant 0 : index
    %8 = vector.load %arg7[%c0_6, %c0_7] : memref<32x512xf32, #tpu.memory_space<vmem>>, vector<32x512xf32>
    tpu.vector_store %arg7[%c0_6, %c0_7], %7 {strides = array<i32>} : memref<32x512xf32, #tpu.memory_space<vmem>>, vector<32x512xf32>,
    %c0_i32_8 = arith.constant 0 : i32
    %9 = arith.cmpi eq, %arg2, %c0_i32_8 : i32
    %10 = arith.extui %9 : i1 to i32
    %c0_i32_9 = arith.constant 0 : i32
    %11 = arith.cmpi ne, %10, %c0_i32_9 : i32
    scf.if %11 {
      %c0_10 = arith.constant 0 : index
      %c0_11 = arith.constant 0 : index
      %12 = vector.load %arg7[%c0_10, %c0_11] : memref<32x512xf32, #tpu.memory_space<vmem>>, vector<32x512xf32>
      %c0_12 = arith.constant 0 : index
      %c0_13 = arith.constant 0 : index
      %13 = vector.load %arg5[%c0_12, %c0_13] : memref<1x512xbf16, #tpu.memory_space<vmem>>, vector<1x512xbf16>
      %14 = arith.extf %13 : vector<1x512xbf16> to vector<1x512xf32>
      %15 = vector.broadcast %14 : vector<1x512xf32> to vector<32x512xf32>
      %16 = arith.addf %12, %15 : vector<32x512xf32>
      %17 = arith.truncf %16 : vector<32x512xf32> to vector<32x512xbf16>
      %c0_14 = arith.constant 0 : index
      %c0_15 = arith.constant 0 : index
      %18 = vector.load %arg6[%c0_14, %c0_15] : memref<32x512xbf16, #tpu.memory_space<vmem>>, vector<32x512xbf16>
      tpu.vector_store %arg6[%c0_14, %c0_15], %17 {strides = array<i32>} : memref<32x512xbf16, #tpu.memory_space<vmem>>, vector<32x512xbf16>,
    } else {
    }
    return
  }
  func.func @transform_0(%arg0: i32, %arg1: i32, %arg2: i32) -> (i32, i32) {
    %c0_i32 = arith.constant 0 : i32
    return %arg0, %arg2 : i32, i32
  }
  func.func @transform_1(%arg0: i32, %arg1: i32, %arg2: i32) -> (i32, i32) {
    %c0_i32 = arith.constant 0 : i32
    return %arg2, %arg1 : i32, i32
  }
  func.func @transform_2(%arg0: i32, %arg1: i32, %arg2: i32) -> (i32, i32) {
    %c0_i32 = arith.constant 0 : i32
    %c0_i32_0 = arith.constant 0 : i32
    return %c0_i32, %arg1 : i32, i32
  }
  func.func @transform_3(%arg0: i32, %arg1: i32, %arg2: i32) -> (i32, i32) {
    %c0_i32 = arith.constant 0 : i32
    return %arg0, %arg1 : i32, i32
  }
}

module attributes {stable_mosaic.version = 11 : i64} {
  func.func @_flash_attn_kernel(%arg0: i32, %arg1: i32, %arg2: i32, %arg3: memref<1x8x128xbf16, #tpu.memory_space<vmem>>, %arg4: memref<1x16x128xbf16, #tpu.memory_space<vmem>>, %arg5: memref<1x16x128xbf16, #tpu.memory_space<vmem>>, %arg6: memref<1x1x16xbf16, #tpu.memory_space<vmem>>, %arg7: memref<1x8x128xbf16, #tpu.memory_space<vmem>>, %arg8: memref<8x1xf32, #tpu.memory_space<vmem>>, %arg9: memref<8x1xf32, #tpu.memory_space<vmem>>, %arg10: memref<8x128xf32, #tpu.memory_space<vmem>>) attributes {dimension_semantics = [#tpu.dimension_semantics<parallel>, #tpu.dimension_semantics<parallel>, #tpu.dimension_semantics<arbitrary>], iteration_bounds = array<i64: 2, 2, 1>, scalar_prefetch = 0 : i64, scratch_operands = 3 : i64, tpu.core_type = #tpu.core_type<tc>, window_params = [{transform_indices = @transform_0, window_bounds = array<i64: 1, 8, 128>}, {transform_indices = @transform_1, window_bounds = array<i64: 1, 16, 128>}, {transform_indices = @transform_2, window_bounds = array<i64: 1, 16, 128>}, {transform_indices = @transform_3, window_bounds = array<i64: 1, 1, 16>}, {transform_indices = @transform_4, window_bounds = array<i64: 1, 8, 128>}]} {
    %c0_i32 = arith.constant 0 : i32
    %0 = arith.cmpi eq, %arg2, %c0_i32 : i32
    %1 = arith.extui %0 : i1 to i32
    %c0_i32_0 = arith.constant 0 : i32
    %2 = arith.cmpi ne, %1, %c0_i32_0 : i32
    scf.if %2 {
      %cst_32 = arith.constant 0xFF800000 : f32
      %47 = vector.broadcast %cst_32 : f32 to vector<8x1xf32>
      %c0_33 = arith.constant 0 : index
      %c0_34 = arith.constant 0 : index
      %48 = vector.load %arg8[%c0_33, %c0_34] : memref<8x1xf32, #tpu.memory_space<vmem>>, vector<8x1xf32>
      tpu.vector_store %arg8[%c0_33, %c0_34], %47 {strides = array<i32>} : memref<8x1xf32, #tpu.memory_space<vmem>>, vector<8x1xf32>,
      %cst_35 = arith.constant 0.000000e+00 : f32
      %49 = vector.broadcast %cst_35 : f32 to vector<8x1xf32>
      %c0_36 = arith.constant 0 : index
      %c0_37 = arith.constant 0 : index
      %50 = vector.load %arg9[%c0_36, %c0_37] : memref<8x1xf32, #tpu.memory_space<vmem>>, vector<8x1xf32>
      tpu.vector_store %arg9[%c0_36, %c0_37], %49 {strides = array<i32>} : memref<8x1xf32, #tpu.memory_space<vmem>>, vector<8x1xf32>,
      %cst_38 = arith.constant 0.000000e+00 : f32
      %51 = vector.broadcast %cst_38 : f32 to vector<8x128xf32>
      %c0_39 = arith.constant 0 : index
      %c0_40 = arith.constant 0 : index
      %52 = vector.load %arg10[%c0_39, %c0_40] : memref<8x128xf32, #tpu.memory_space<vmem>>, vector<8x128xf32>
      tpu.vector_store %arg10[%c0_39, %c0_40], %51 {strides = array<i32>} : memref<8x128xf32, #tpu.memory_space<vmem>>, vector<8x128xf32>,
    } else {
    }
    %c0 = arith.constant 0 : index
    %c0_1 = arith.constant 0 : index
    %c0_2 = arith.constant 0 : index
    %3 = vector.load %arg3[%c0, %c0_1, %c0_2] : memref<1x8x128xbf16, #tpu.memory_space<vmem>>, vector<1x8x128xbf16>
    %4 = vector.shape_cast %3 : vector<1x8x128xbf16> to vector<8x128xbf16>
    %c0_3 = arith.constant 0 : index
    %c0_4 = arith.constant 0 : index
    %c0_5 = arith.constant 0 : index
    %5 = vector.load %arg4[%c0_3, %c0_4, %c0_5] : memref<1x16x128xbf16, #tpu.memory_space<vmem>>, vector<1x16x128xbf16>
    %6 = vector.shape_cast %5 : vector<1x16x128xbf16> to vector<16x128xbf16>
    %c0_6 = arith.constant 0 : index
    %c0_7 = arith.constant 0 : index
    %c0_8 = arith.constant 0 : index
    %7 = vector.load %arg5[%c0_6, %c0_7, %c0_8] : memref<1x16x128xbf16, #tpu.memory_space<vmem>>, vector<1x16x128xbf16>
    %8 = vector.shape_cast %7 : vector<1x16x128xbf16> to vector<16x128xbf16>
    %cst = arith.constant dense<0.000000e+00> : vector<8x16xf32>
    %9 = tpu.matmul %4, %6, %cst {dimension_numbers = #tpu.dot_dimension_numbers<[1], [1], [0], [0], [0, 0, 1, 0], [], []>} : vector<8x128xbf16>, vector<16x128xbf16>, vector<8x16xf32> -> vector<8x16xf32>
    %cst_9 = arith.constant 0.0883883461 : f32
    %10 = vector.broadcast %cst_9 : f32 to vector<8x16xf32>
    %11 = arith.mulf %9, %10 : vector<8x16xf32>
    %c0_10 = arith.constant 0 : index
    %c0_11 = arith.constant 0 : index
    %c0_12 = arith.constant 0 : index
    %12 = vector.load %arg6[%c0_10, %c0_11, %c0_12] : memref<1x1x16xbf16, #tpu.memory_space<vmem>>, vector<1x1x16xbf16>
    %13 = vector.shape_cast %12 : vector<1x1x16xbf16> to vector<1x16xbf16>
    %14 = arith.extf %13 : vector<1x16xbf16> to vector<1x16xf32>
    %cst_13 = arith.constant 1.000000e+00 : f32
    %15 = vector.broadcast %cst_13 : f32 to vector<1x16xf32>
    %16 = arith.subf %15, %14 : vector<1x16xf32>
    %cst_14 = arith.constant -1.000000e+09 : f32
    %17 = vector.broadcast %cst_14 : f32 to vector<1x16xf32>
    %18 = arith.mulf %16, %17 : vector<1x16xf32>
    %19 = vector.broadcast %18 : vector<1x16xf32> to vector<8x16xf32>
    %20 = arith.addf %11, %19 : vector<8x16xf32>
    %c0_15 = arith.constant 0 : index
    %c0_16 = arith.constant 0 : index
    %21 = vector.load %arg8[%c0_15, %c0_16] : memref<8x1xf32, #tpu.memory_space<vmem>>, vector<8x1xf32>
    %cst_17 = arith.constant dense<0xFF800000> : vector<8xf32>
    %22 = vector.multi_reduction <maximumf>, %20, %cst_17 [1] : vector<8x16xf32> to vector<8xf32>
    %23 = vector.shape_cast %22 : vector<8xf32> to vector<8x1xf32>
    %24 = arith.maximumf %21, %23 : vector<8x1xf32>
    %25 = arith.subf %21, %24 : vector<8x1xf32>
    %26 = math.exp %25 : vector<8x1xf32>
    %27 = vector.broadcast %24 : vector<8x1xf32> to vector<8x16xf32>
    %28 = arith.subf %20, %27 : vector<8x16xf32>
    %29 = math.exp %28 : vector<8x16xf32>
    %c0_18 = arith.constant 0 : index
    %c0_19 = arith.constant 0 : index
    %30 = vector.load %arg9[%c0_18, %c0_19] : memref<8x1xf32, #tpu.memory_space<vmem>>, vector<8x1xf32>
    %31 = arith.mulf %26, %30 : vector<8x1xf32>
    %cst_20 = arith.constant dense<0.000000e+00> : vector<8xf32>
    %32 = vector.multi_reduction <add>, %29, %cst_20 [1] : vector<8x16xf32> to vector<8xf32>
    %33 = vector.shape_cast %32 : vector<8xf32> to vector<8x1xf32>
    %34 = arith.addf %31, %33 : vector<8x1xf32>
    %c0_21 = arith.constant 0 : index
    %c0_22 = arith.constant 0 : index
    %35 = vector.load %arg9[%c0_21, %c0_22] : memref<8x1xf32, #tpu.memory_space<vmem>>, vector<8x1xf32>
    tpu.vector_store %arg9[%c0_21, %c0_22], %34 {strides = array<i32>} : memref<8x1xf32, #tpu.memory_space<vmem>>, vector<8x1xf32>,
    %c0_23 = arith.constant 0 : index
    %c0_24 = arith.constant 0 : index
    %36 = vector.load %arg10[%c0_23, %c0_24] : memref<8x128xf32, #tpu.memory_space<vmem>>, vector<8x128xf32>
    %37 = vector.broadcast %26 : vector<8x1xf32> to vector<8x128xf32>
    %38 = arith.mulf %37, %36 : vector<8x128xf32>
    %39 = arith.truncf %29 : vector<8x16xf32> to vector<8x16xbf16>
    %cst_25 = arith.constant dense<0.000000e+00> : vector<8x128xf32>
    %40 = tpu.matmul %39, %8, %cst_25 {dimension_numbers = #tpu.dot_dimension_numbers<[1], [0], [0], [1], [0, 0, 1, 1], [], []>} : vector<8x16xbf16>, vector<16x128xbf16>, vector<8x128xf32> -> vector<8x128xf32>
    %41 = arith.addf %38, %40 : vector<8x128xf32>
    %c0_26 = arith.constant 0 : index
    %c0_27 = arith.constant 0 : index
    %42 = vector.load %arg10[%c0_26, %c0_27] : memref<8x128xf32, #tpu.memory_space<vmem>>, vector<8x128xf32>
    tpu.vector_store %arg10[%c0_26, %c0_27], %41 {strides = array<i32>} : memref<8x128xf32, #tpu.memory_space<vmem>>, vector<8x128xf32>,
    %c0_28 = arith.constant 0 : index
    %c0_29 = arith.constant 0 : index
    %43 = vector.load %arg8[%c0_28, %c0_29] : memref<8x1xf32, #tpu.memory_space<vmem>>, vector<8x1xf32>
    tpu.vector_store %arg8[%c0_28, %c0_29], %24 {strides = array<i32>} : memref<8x1xf32, #tpu.memory_space<vmem>>, vector<8x1xf32>,
    %c0_i32_30 = arith.constant 0 : i32
    %44 = arith.cmpi eq, %arg2, %c0_i32_30 : i32
    %45 = arith.extui %44 : i1 to i32
    %c0_i32_31 = arith.constant 0 : i32
    %46 = arith.cmpi ne, %45, %c0_i32_31 : i32
    scf.if %46 {
      %c0_32 = arith.constant 0 : index
      %c0_33 = arith.constant 0 : index
      %47 = vector.load %arg10[%c0_32, %c0_33] : memref<8x128xf32, #tpu.memory_space<vmem>>, vector<8x128xf32>
      %c0_34 = arith.constant 0 : index
      %c0_35 = arith.constant 0 : index
      %48 = vector.load %arg9[%c0_34, %c0_35] : memref<8x1xf32, #tpu.memory_space<vmem>>, vector<8x1xf32>
      %49 = tpu.reciprocal %48 {approx = true} : vector<8x1xf32> -> vector<8x1xf32>
      %50 = vector.broadcast %49 : vector<8x1xf32> to vector<8x128xf32>
      %51 = arith.mulf %47, %50 : vector<8x128xf32>
      %52 = arith.truncf %51 : vector<8x128xf32> to vector<8x128xbf16>
      %c0_36 = arith.constant 0 : index
      %c0_37 = arith.constant 0 : index
      %c0_38 = arith.constant 0 : index
      %53 = vector.load %arg7[%c0_36, %c0_37, %c0_38] : memref<1x8x128xbf16, #tpu.memory_space<vmem>>, vector<1x8x128xbf16>
      %54 = vector.shape_cast %53 : vector<1x8x128xbf16> to vector<8x128xbf16>
      %55 = vector.shape_cast %52 : vector<8x128xbf16> to vector<1x8x128xbf16>
      tpu.vector_store %arg7[%c0_36, %c0_37, %c0_38], %55 {strides = array<i32>} : memref<1x8x128xbf16, #tpu.memory_space<vmem>>, vector<1x8x128xbf16>,
    } else {
    }
    return
  }
  func.func @transform_0(%arg0: i32, %arg1: i32, %arg2: i32) -> (i32, i32, i32) {
    %c0_i32 = arith.constant 0 : i32
    %0 = arith.addi %c0_i32, %arg1 : i32
    %c0_i32_0 = arith.constant 0 : i32
    %c0_i32_1 = arith.constant 0 : i32
    return %arg0, %c0_i32_0, %0 : i32, i32, i32
  }
  func.func @transform_1(%arg0: i32, %arg1: i32, %arg2: i32) -> (i32, i32, i32) {
    %c0_i32 = arith.constant 0 : i32
    %0 = arith.addi %c0_i32, %arg1 : i32
    %c0_i32_0 = arith.constant 0 : i32
    return %arg0, %arg2, %0 : i32, i32, i32
  }
  func.func @transform_2(%arg0: i32, %arg1: i32, %arg2: i32) -> (i32, i32, i32) {
    %c2_i32 = arith.constant 2 : i32
    %0 = arith.addi %c2_i32, %arg1 : i32
    %c0_i32 = arith.constant 0 : i32
    return %arg0, %arg2, %0 : i32, i32, i32
  }
  func.func @transform_3(%arg0: i32, %arg1: i32, %arg2: i32) -> (i32, i32, i32) {
    %c0_i32 = arith.constant 0 : i32
    %c0_i32_0 = arith.constant 0 : i32
    return %arg0, %c0_i32, %arg2 : i32, i32, i32
  }
  func.func @transform_4(%arg0: i32, %arg1: i32, %arg2: i32) -> (i32, i32, i32) {
    %c0_i32 = arith.constant 0 : i32
    %c0_i32_0 = arith.constant 0 : i32
    return %arg0, %c0_i32, %arg1 : i32, i32, i32
  }
}

module attributes {stable_mosaic.version = 11 : i64} {
  func.func @_matmul_kernel(%arg0: i32, %arg1: i32, %arg2: i32, %arg3: memref<16x256xbf16, #tpu.memory_space<vmem>>, %arg4: memref<256x512xbf16, #tpu.memory_space<vmem>>, %arg5: memref<1x512xbf16, #tpu.memory_space<vmem>>, %arg6: memref<16x512xbf16, #tpu.memory_space<vmem>>, %arg7: memref<16x512xf32, #tpu.memory_space<vmem>>) attributes {dimension_semantics = [#tpu.dimension_semantics<parallel>, #tpu.dimension_semantics<parallel>, #tpu.dimension_semantics<arbitrary>], iteration_bounds = array<i64: 1, 1, 1>, scalar_prefetch = 0 : i64, scratch_operands = 1 : i64, tpu.core_type = #tpu.core_type<tc>, window_params = [{transform_indices = @transform_0, window_bounds = array<i64: 16, 256>}, {transform_indices = @transform_1, window_bounds = array<i64: 256, 512>}, {transform_indices = @transform_2, window_bounds = array<i64: 1, 512>}, {transform_indices = @transform_3, window_bounds = array<i64: 16, 512>}]} {
    %c0_i32 = arith.constant 0 : i32
    %0 = arith.cmpi eq, %arg2, %c0_i32 : i32
    %1 = arith.extui %0 : i1 to i32
    %c0_i32_0 = arith.constant 0 : i32
    %2 = arith.cmpi ne, %1, %c0_i32_0 : i32
    scf.if %2 {
      %cst_10 = arith.constant 0.000000e+00 : f32
      %12 = vector.broadcast %cst_10 : f32 to vector<16x512xf32>
      %c0_11 = arith.constant 0 : index
      %c0_12 = arith.constant 0 : index
      %13 = vector.load %arg7[%c0_11, %c0_12] : memref<16x512xf32, #tpu.memory_space<vmem>>, vector<16x512xf32>
      tpu.vector_store %arg7[%c0_11, %c0_12], %12 {strides = array<i32>} : memref<16x512xf32, #tpu.memory_space<vmem>>, vector<16x512xf32>,
    } else {
    }
    %c0 = arith.constant 0 : index
    %c0_1 = arith.constant 0 : index
    %3 = vector.load %arg7[%c0, %c0_1] : memref<16x512xf32, #tpu.memory_space<vmem>>, vector<16x512xf32>
    %c0_2 = arith.constant 0 : index
    %c0_3 = arith.constant 0 : index
    %4 = vector.load %arg3[%c0_2, %c0_3] : memref<16x256xbf16, #tpu.memory_space<vmem>>, vector<16x256xbf16>
    %c0_4 = arith.constant 0 : index
    %c0_5 = arith.constant 0 : index
    %5 = vector.load %arg4[%c0_4, %c0_5] : memref<256x512xbf16, #tpu.memory_space<vmem>>, vector<256x512xbf16>
    %cst = arith.constant dense<0.000000e+00> : vector<16x512xf32>
    %6 = tpu.matmul %4, %5, %cst {dimension_numbers = #tpu.dot_dimension_numbers<[1], [0], [0], [1], [0, 0, 1, 1], [], []>} : vector<16x256xbf16>, vector<256x512xbf16>, vector<16x512xf32> -> vector<16x512xf32>
    %7 = arith.addf %3, %6 : vector<16x512xf32>
    %c0_6 = arith.constant 0 : index
    %c0_7 = arith.constant 0 : index
    %8 = vector.load %arg7[%c0_6, %c0_7] : memref<16x512xf32, #tpu.memory_space<vmem>>, vector<16x512xf32>
    tpu.vector_store %arg7[%c0_6, %c0_7], %7 {strides = array<i32>} : memref<16x512xf32, #tpu.memory_space<vmem>>, vector<16x512xf32>,
    %c0_i32_8 = arith.constant 0 : i32
    %9 = arith.cmpi eq, %arg2, %c0_i32_8 : i32
    %10 = arith.extui %9 : i1 to i32
    %c0_i32_9 = arith.constant 0 : i32
    %11 = arith.cmpi ne, %10, %c0_i32_9 : i32
    scf.if %11 {
      %c0_10 = arith.constant 0 : index
      %c0_11 = arith.constant 0 : index
      %12 = vector.load %arg7[%c0_10, %c0_11] : memref<16x512xf32, #tpu.memory_space<vmem>>, vector<16x512xf32>
      %c0_12 = arith.constant 0 : index
      %c0_13 = arith.constant 0 : index
      %13 = vector.load %arg5[%c0_12, %c0_13] : memref<1x512xbf16, #tpu.memory_space<vmem>>, vector<1x512xbf16>
      %14 = arith.extf %13 : vector<1x512xbf16> to vector<1x512xf32>
      %15 = vector.broadcast %14 : vector<1x512xf32> to vector<16x512xf32>
      %16 = arith.addf %12, %15 : vector<16x512xf32>
      %17 = arith.mulf %16, %16 : vector<16x512xf32>
      %18 = arith.mulf %16, %17 : vector<16x512xf32>
      %cst_14 = arith.constant 4.471500e-02 : f32
      %19 = vector.broadcast %cst_14 : f32 to vector<16x512xf32>
      %20 = arith.mulf %19, %18 : vector<16x512xf32>
      %21 = arith.addf %16, %20 : vector<16x512xf32>
      %cst_15 = arith.constant 0.797884583 : f32
      %22 = vector.broadcast %cst_15 : f32 to vector<16x512xf32>
      %23 = arith.mulf %22, %21 : vector<16x512xf32>
      %24 = math.tanh %23 : vector<16x512xf32>
      %cst_16 = arith.constant 1.000000e+00 : f32
      %25 = vector.broadcast %cst_16 : f32 to vector<16x512xf32>
      %26 = arith.addf %25, %24 : vector<16x512xf32>
      %cst_17 = arith.constant 5.000000e-01 : f32
      %27 = vector.broadcast %cst_17 : f32 to vector<16x512xf32>
      %28 = arith.mulf %27, %26 : vector<16x512xf32>
      %29 = arith.mulf %16, %28 : vector<16x512xf32>
      %30 = arith.truncf %29 : vector<16x512xf32> to vector<16x512xbf16>
      %c0_18 = arith.constant 0 : index
      %c0_19 = arith.constant 0 : index
      %31 = vector.load %arg6[%c0_18, %c0_19] : memref<16x512xbf16, #tpu.memory_space<vmem>>, vector<16x512xbf16>
      tpu.vector_store %arg6[%c0_18, %c0_19], %30 {strides = array<i32>} : memref<16x512xbf16, #tpu.memory_space<vmem>>, vector<16x512xbf16>,
    } else {
    }
    return
  }
  func.func @transform_0(%arg0: i32, %arg1: i32, %arg2: i32) -> (i32, i32) {
    %c0_i32 = arith.constant 0 : i32
    return %arg0, %arg2 : i32, i32
  }
  func.func @transform_1(%arg0: i32, %arg1: i32, %arg2: i32) -> (i32, i32) {
    %c0_i32 = arith.constant 0 : i32
    return %arg2, %arg1 : i32, i32
  }
  func.func @transform_2(%arg0: i32, %arg1: i32, %arg2: i32) -> (i32, i32) {
    %c0_i32 = arith.constant 0 : i32
    %c0_i32_0 = arith.constant 0 : i32
    return %c0_i32, %arg1 : i32, i32
  }
  func.func @transform_3(%arg0: i32, %arg1: i32, %arg2: i32) -> (i32, i32) {
    %c0_i32 = arith.constant 0 : i32
    return %arg0, %arg1 : i32, i32
  }
}

module attributes {stable_mosaic.version = 11 : i64} {
  func.func @_matmul_kernel(%arg0: i32, %arg1: i32, %arg2: i32, %arg3: memref<16x256xbf16, #tpu.memory_space<vmem>>, %arg4: memref<256x384xbf16, #tpu.memory_space<vmem>>, %arg5: memref<1x384xbf16, #tpu.memory_space<vmem>>, %arg6: memref<16x384xbf16, #tpu.memory_space<vmem>>, %arg7: memref<16x384xf32, #tpu.memory_space<vmem>>) attributes {dimension_semantics = [#tpu.dimension_semantics<parallel>, #tpu.dimension_semantics<parallel>, #tpu.dimension_semantics<arbitrary>], iteration_bounds = array<i64: 1, 2, 1>, scalar_prefetch = 0 : i64, scratch_operands = 1 : i64, tpu.core_type = #tpu.core_type<tc>, window_params = [{transform_indices = @transform_0, window_bounds = array<i64: 16, 256>}, {transform_indices = @transform_1, window_bounds = array<i64: 256, 384>}, {transform_indices = @transform_2, window_bounds = array<i64: 1, 384>}, {transform_indices = @transform_3, window_bounds = array<i64: 16, 384>}]} {
    %c0_i32 = arith.constant 0 : i32
    %0 = arith.cmpi eq, %arg2, %c0_i32 : i32
    %1 = arith.extui %0 : i1 to i32
    %c0_i32_0 = arith.constant 0 : i32
    %2 = arith.cmpi ne, %1, %c0_i32_0 : i32
    scf.if %2 {
      %cst_10 = arith.constant 0.000000e+00 : f32
      %12 = vector.broadcast %cst_10 : f32 to vector<16x384xf32>
      %c0_11 = arith.constant 0 : index
      %c0_12 = arith.constant 0 : index
      %13 = vector.load %arg7[%c0_11, %c0_12] : memref<16x384xf32, #tpu.memory_space<vmem>>, vector<16x384xf32>
      tpu.vector_store %arg7[%c0_11, %c0_12], %12 {strides = array<i32>} : memref<16x384xf32, #tpu.memory_space<vmem>>, vector<16x384xf32>,
    } else {
    }
    %c0 = arith.constant 0 : index
    %c0_1 = arith.constant 0 : index
    %3 = vector.load %arg7[%c0, %c0_1] : memref<16x384xf32, #tpu.memory_space<vmem>>, vector<16x384xf32>
    %c0_2 = arith.constant 0 : index
    %c0_3 = arith.constant 0 : index
    %4 = vector.load %arg3[%c0_2, %c0_3] : memref<16x256xbf16, #tpu.memory_space<vmem>>, vector<16x256xbf16>
    %c0_4 = arith.constant 0 : index
    %c0_5 = arith.constant 0 : index
    %5 = vector.load %arg4[%c0_4, %c0_5] : memref<256x384xbf16, #tpu.memory_space<vmem>>, vector<256x384xbf16>
    %cst = arith.constant dense<0.000000e+00> : vector<16x384xf32>
    %6 = tpu.matmul %4, %5, %cst {dimension_numbers = #tpu.dot_dimension_numbers<[1], [0], [0], [1], [0, 0, 1, 1], [], []>} : vector<16x256xbf16>, vector<256x384xbf16>, vector<16x384xf32> -> vector<16x384xf32>
    %7 = arith.addf %3, %6 : vector<16x384xf32>
    %c0_6 = arith.constant 0 : index
    %c0_7 = arith.constant 0 : index
    %8 = vector.load %arg7[%c0_6, %c0_7] : memref<16x384xf32, #tpu.memory_space<vmem>>, vector<16x384xf32>
    tpu.vector_store %arg7[%c0_6, %c0_7], %7 {strides = array<i32>} : memref<16x384xf32, #tpu.memory_space<vmem>>, vector<16x384xf32>,
    %c0_i32_8 = arith.constant 0 : i32
    %9 = arith.cmpi eq, %arg2, %c0_i32_8 : i32
    %10 = arith.extui %9 : i1 to i32
    %c0_i32_9 = arith.constant 0 : i32
    %11 = arith.cmpi ne, %10, %c0_i32_9 : i32
    scf.if %11 {
      %c0_10 = arith.constant 0 : index
      %c0_11 = arith.constant 0 : index
      %12 = vector.load %arg7[%c0_10, %c0_11] : memref<16x384xf32, #tpu.memory_space<vmem>>, vector<16x384xf32>
      %c0_12 = arith.constant 0 : index
      %c0_13 = arith.constant 0 : index
      %13 = vector.load %arg5[%c0_12, %c0_13] : memref<1x384xbf16, #tpu.memory_space<vmem>>, vector<1x384xbf16>
      %14 = arith.extf %13 : vector<1x384xbf16> to vector<1x384xf32>
      %15 = vector.broadcast %14 : vector<1x384xf32> to vector<16x384xf32>
      %16 = arith.addf %12, %15 : vector<16x384xf32>
      %17 = arith.truncf %16 : vector<16x384xf32> to vector<16x384xbf16>
      %c0_14 = arith.constant 0 : index
      %c0_15 = arith.constant 0 : index
      %18 = vector.load %arg6[%c0_14, %c0_15] : memref<16x384xbf16, #tpu.memory_space<vmem>>, vector<16x384xbf16>
      tpu.vector_store %arg6[%c0_14, %c0_15], %17 {strides = array<i32>} : memref<16x384xbf16, #tpu.memory_space<vmem>>, vector<16x384xbf16>,
    } else {
    }
    return
  }
  func.func @transform_0(%arg0: i32, %arg1: i32, %arg2: i32) -> (i32, i32) {
    %c0_i32 = arith.constant 0 : i32
    return %arg0, %arg2 : i32, i32
  }
  func.func @transform_1(%arg0: i32, %arg1: i32, %arg2: i32) -> (i32, i32) {
    %c0_i32 = arith.constant 0 : i32
    return %arg2, %arg1 : i32, i32
  }
  func.func @transform_2(%arg0: i32, %arg1: i32, %arg2: i32) -> (i32, i32) {
    %c0_i32 = arith.constant 0 : i32
    %c0_i32_0 = arith.constant 0 : i32
    return %c0_i32, %arg1 : i32, i32
  }
  func.func @transform_3(%arg0: i32, %arg1: i32, %arg2: i32) -> (i32, i32) {
    %c0_i32 = arith.constant 0 : i32
    return %arg0, %arg1 : i32, i32
  }
}

module attributes {stable_mosaic.version = 11 : i64} {
  func.func @_matmul_add_ln_kernel(%arg0: i32, %arg1: i32, %arg2: memref<16x512xbf16, #tpu.memory_space<vmem>>, %arg3: memref<512x256xbf16, #tpu.memory_space<vmem>>, %arg4: memref<1x256xbf16, #tpu.memory_space<vmem>>, %arg5: memref<16x256xbf16, #tpu.memory_space<vmem>>, %arg6: memref<1x256xbf16, #tpu.memory_space<vmem>>, %arg7: memref<1x256xbf16, #tpu.memory_space<vmem>>, %arg8: memref<16x256xbf16, #tpu.memory_space<vmem>>, %arg9: memref<16x256xf32, #tpu.memory_space<vmem>>) attributes {dimension_semantics = [#tpu.dimension_semantics<parallel>, #tpu.dimension_semantics<arbitrary>], iteration_bounds = array<i64: 1, 1>, scalar_prefetch = 0 : i64, scratch_operands = 1 : i64, tpu.core_type = #tpu.core_type<tc>, window_params = [{transform_indices = @transform_0, window_bounds = array<i64: 16, 512>}, {transform_indices = @transform_1, window_bounds = array<i64: 512, 256>}, {pipeline_mode = #tpu.pipeline_mode<synchronous>, transform_indices = @transform_2, window_bounds = array<i64: 1, 256>}, {transform_indices = @transform_3, window_bounds = array<i64: 16, 256>}, {pipeline_mode = #tpu.pipeline_mode<synchronous>, transform_indices = @transform_4, window_bounds = array<i64: 1, 256>}, {pipeline_mode = #tpu.pipeline_mode<synchronous>, transform_indices = @transform_5, window_bounds = array<i64: 1, 256>}, {transform_indices = @transform_6, window_bounds = array<i64: 16, 256>}]} {
    %c0_i32 = arith.constant 0 : i32
    %0 = arith.cmpi eq, %arg1, %c0_i32 : i32
    %1 = arith.extui %0 : i1 to i32
    %c0_i32_0 = arith.constant 0 : i32
    %2 = arith.cmpi ne, %1, %c0_i32_0 : i32
    scf.if %2 {
      %cst_10 = arith.constant 0.000000e+00 : f32
      %12 = vector.broadcast %cst_10 : f32 to vector<16x256xf32>
      %c0_11 = arith.constant 0 : index
      %c0_12 = arith.constant 0 : index
      %13 = vector.load %arg9[%c0_11, %c0_12] : memref<16x256xf32, #tpu.memory_space<vmem>>, vector<16x256xf32>
      tpu.vector_store %arg9[%c0_11, %c0_12], %12 {strides = array<i32>} : memref<16x256xf32, #tpu.memory_space<vmem>>, vector<16x256xf32>,
    } else {
    }
    %c0 = arith.constant 0 : index
    %c0_1 = arith.constant 0 : index
    %3 = vector.load %arg9[%c0, %c0_1] : memref<16x256xf32, #tpu.memory_space<vmem>>, vector<16x256xf32>
    %c0_2 = arith.constant 0 : index
    %c0_3 = arith.constant 0 : index
    %4 = vector.load %arg2[%c0_2, %c0_3] : memref<16x512xbf16, #tpu.memory_space<vmem>>, vector<16x512xbf16>
    %c0_4 = arith.constant 0 : index
    %c0_5 = arith.constant 0 : index
    %5 = vector.load %arg3[%c0_4, %c0_5] : memref<512x256xbf16, #tpu.memory_space<vmem>>, vector<512x256xbf16>
    %cst = arith.constant dense<0.000000e+00> : vector<16x256xf32>
    %6 = tpu.matmul %4, %5, %cst {dimension_numbers = #tpu.dot_dimension_numbers<[1], [0], [0], [1], [0, 0, 1, 1], [], []>} : vector<16x512xbf16>, vector<512x256xbf16>, vector<16x256xf32> -> vector<16x256xf32>
    %7 = arith.addf %3, %6 : vector<16x256xf32>
    %c0_6 = arith.constant 0 : index
    %c0_7 = arith.constant 0 : index
    %8 = vector.load %arg9[%c0_6, %c0_7] : memref<16x256xf32, #tpu.memory_space<vmem>>, vector<16x256xf32>
    tpu.vector_store %arg9[%c0_6, %c0_7], %7 {strides = array<i32>} : memref<16x256xf32, #tpu.memory_space<vmem>>, vector<16x256xf32>,
    %c0_i32_8 = arith.constant 0 : i32
    %9 = arith.cmpi eq, %arg1, %c0_i32_8 : i32
    %10 = arith.extui %9 : i1 to i32
    %c0_i32_9 = arith.constant 0 : i32
    %11 = arith.cmpi ne, %10, %c0_i32_9 : i32
    scf.if %11 {
      %c0_10 = arith.constant 0 : index
      %c0_11 = arith.constant 0 : index
      %12 = vector.load %arg9[%c0_10, %c0_11] : memref<16x256xf32, #tpu.memory_space<vmem>>, vector<16x256xf32>
      %c0_12 = arith.constant 0 : index
      %c0_13 = arith.constant 0 : index
      %13 = vector.load %arg4[%c0_12, %c0_13] : memref<1x256xbf16, #tpu.memory_space<vmem>>, vector<1x256xbf16>
      %14 = arith.extf %13 : vector<1x256xbf16> to vector<1x256xf32>
      %15 = vector.broadcast %14 : vector<1x256xf32> to vector<16x256xf32>
      %16 = arith.addf %12, %15 : vector<16x256xf32>
      %c0_14 = arith.constant 0 : index
      %c0_15 = arith.constant 0 : index
      %17 = vector.load %arg5[%c0_14, %c0_15] : memref<16x256xbf16, #tpu.memory_space<vmem>>, vector<16x256xbf16>
      %18 = arith.extf %17 : vector<16x256xbf16> to vector<16x256xf32>
      %19 = arith.addf %16, %18 : vector<16x256xf32>
      %cst_16 = arith.constant dense<0.000000e+00> : vector<16xf32>
      %20 = vector.multi_reduction <add>, %19, %cst_16 [1] : vector<16x256xf32> to vector<16xf32>
      %21 = vector.shape_cast %20 : vector<16xf32> to vector<16x1xf32>
      %cst_17 = arith.constant 2.560000e+02 : f32
      %22 = vector.broadcast %cst_17 : f32 to vector<16x1xf32>
      %23 = arith.divf %21, %22 : vector<16x1xf32>
      %24 = vector.broadcast %23 : vector<16x1xf32> to vector<16x256xf32>
      %25 = arith.subf %19, %24 : vector<16x256xf32>
      %26 = arith.mulf %25, %25 : vector<16x256xf32>
      %cst_18 = arith.constant dense<0.000000e+00> : vector<16xf32>
      %27 = vector.multi_reduction <add>, %26, %cst_18 [1] : vector<16x256xf32> to vector<16xf32>
      %28 = vector.shape_cast %27 : vector<16xf32> to vector<16x1xf32>
      %cst_19 = arith.constant 2.560000e+02 : f32
      %29 = vector.broadcast %cst_19 : f32 to vector<16x1xf32>
      %30 = arith.divf %28, %29 : vector<16x1xf32>
      %31 = vector.broadcast %23 : vector<16x1xf32> to vector<16x256xf32>
      %32 = arith.subf %19, %31 : vector<16x256xf32>
      %cst_20 = arith.constant 9.99999996E-13 : f32
      %33 = vector.broadcast %cst_20 : f32 to vector<16x1xf32>
      %34 = arith.addf %30, %33 : vector<16x1xf32>
      %35 = math.rsqrt %34 : vector<16x1xf32>
      %36 = vector.broadcast %35 : vector<16x1xf32> to vector<16x256xf32>
      %37 = arith.mulf %32, %36 : vector<16x256xf32>
      %c0_21 = arith.constant 0 : index
      %c0_22 = arith.constant 0 : index
      %38 = vector.load %arg6[%c0_21, %c0_22] : memref<1x256xbf16, #tpu.memory_space<vmem>>, vector<1x256xbf16>
      %39 = arith.extf %38 : vector<1x256xbf16> to vector<1x256xf32>
      %40 = vector.broadcast %39 : vector<1x256xf32> to vector<16x256xf32>
      %41 = arith.mulf %37, %40 : vector<16x256xf32>
      %c0_23 = arith.constant 0 : index
      %c0_24 = arith.constant 0 : index
      %42 = vector.load %arg7[%c0_23, %c0_24] : memref<1x256xbf16, #tpu.memory_space<vmem>>, vector<1x256xbf16>
      %43 = arith.extf %42 : vector<1x256xbf16> to vector<1x256xf32>
      %44 = vector.broadcast %43 : vector<1x256xf32> to vector<16x256xf32>
      %45 = arith.addf %41, %44 : vector<16x256xf32>
      %46 = arith.truncf %45 : vector<16x256xf32> to vector<16x256xbf16>
      %c0_25 = arith.constant 0 : index
      %c0_26 = arith.constant 0 : index
      %47 = vector.load %arg8[%c0_25, %c0_26] : memref<16x256xbf16, #tpu.memory_space<vmem>>, vector<16x256xbf16>
      tpu.vector_store %arg8[%c0_25, %c0_26], %46 {strides = array<i32>} : memref<16x256xbf16, #tpu.memory_space<vmem>>, vector<16x256xbf16>,
    } else {
    }
    return
  }
  func.func @transform_0(%arg0: i32, %arg1: i32) -> (i32, i32) {
    %c0_i32 = arith.constant 0 : i32
    return %arg0, %arg1 : i32, i32
  }
  func.func @transform_1(%arg0: i32, %arg1: i32) -> (i32, i32) {
    %c0_i32 = arith.constant 0 : i32
    %c0_i32_0 = arith.constant 0 : i32
    return %arg1, %c0_i32 : i32, i32
  }
  func.func @transform_2(%arg0: i32, %arg1: i32) -> (i32, i32) {
    %c0_i32 = arith.constant 0 : i32
    %c0_i32_0 = arith.constant 0 : i32
    %c0_i32_1 = arith.constant 0 : i32
    return %c0_i32, %c0_i32_0 : i32, i32
  }
  func.func @transform_3(%arg0: i32, %arg1: i32) -> (i32, i32) {
    %c0_i32 = arith.constant 0 : i32
    %c0_i32_0 = arith.constant 0 : i32
    return %arg0, %c0_i32 : i32, i32
  }
  func.func @transform_4(%arg0: i32, %arg1: i32) -> (i32, i32) {
    %c0_i32 = arith.constant 0 : i32
    %c0_i32_0 = arith.constant 0 : i32
    %c0_i32_1 = arith.constant 0 : i32
    return %c0_i32, %c0_i32_0 : i32, i32
  }
  func.func @transform_5(%arg0: i32, %arg1: i32) -> (i32, i32) {
    %c0_i32 = arith.constant 0 : i32
    %c0_i32_0 = arith.constant 0 : i32
    %c0_i32_1 = arith.constant 0 : i32
    return %c0_i32, %c0_i32_0 : i32, i32
  }
  func.func @transform_6(%arg0: i32, %arg1: i32) -> (i32, i32) {
    %c0_i32 = arith.constant 0 : i32
    %c0_i32_0 = arith.constant 0 : i32
    return %arg0, %c0_i32 : i32, i32
  }
}

module attributes {stable_mosaic.version = 11 : i64} {
  func.func @_matmul_kernel(%arg0: i32, %arg1: i32, %arg2: i32, %arg3: memref<16x256xbf16, #tpu.memory_space<vmem>>, %arg4: memref<256x384xbf16, #tpu.memory_space<vmem>>, %arg5: memref<1x384xbf16, #tpu.memory_space<vmem>>, %arg6: memref<16x384xbf16, #tpu.memory_space<vmem>>, %arg7: memref<16x384xf32, #tpu.memory_space<vmem>>) attributes {dimension_semantics = [#tpu.dimension_semantics<parallel>, #tpu.dimension_semantics<parallel>, #tpu.dimension_semantics<arbitrary>], iteration_bounds = array<i64: 1, 1, 1>, scalar_prefetch = 0 : i64, scratch_operands = 1 : i64, tpu.core_type = #tpu.core_type<tc>, window_params = [{transform_indices = @transform_0, window_bounds = array<i64: 16, 256>}, {transform_indices = @transform_1, window_bounds = array<i64: 256, 384>}, {transform_indices = @transform_2, window_bounds = array<i64: 1, 384>}, {transform_indices = @transform_3, window_bounds = array<i64: 16, 384>}]} {
    %c0_i32 = arith.constant 0 : i32
    %0 = arith.cmpi eq, %arg2, %c0_i32 : i32
    %1 = arith.extui %0 : i1 to i32
    %c0_i32_0 = arith.constant 0 : i32
    %2 = arith.cmpi ne, %1, %c0_i32_0 : i32
    scf.if %2 {
      %cst_10 = arith.constant 0.000000e+00 : f32
      %12 = vector.broadcast %cst_10 : f32 to vector<16x384xf32>
      %c0_11 = arith.constant 0 : index
      %c0_12 = arith.constant 0 : index
      %13 = vector.load %arg7[%c0_11, %c0_12] : memref<16x384xf32, #tpu.memory_space<vmem>>, vector<16x384xf32>
      tpu.vector_store %arg7[%c0_11, %c0_12], %12 {strides = array<i32>} : memref<16x384xf32, #tpu.memory_space<vmem>>, vector<16x384xf32>,
    } else {
    }
    %c0 = arith.constant 0 : index
    %c0_1 = arith.constant 0 : index
    %3 = vector.load %arg7[%c0, %c0_1] : memref<16x384xf32, #tpu.memory_space<vmem>>, vector<16x384xf32>
    %c0_2 = arith.constant 0 : index
    %c0_3 = arith.constant 0 : index
    %4 = vector.load %arg3[%c0_2, %c0_3] : memref<16x256xbf16, #tpu.memory_space<vmem>>, vector<16x256xbf16>
    %c0_4 = arith.constant 0 : index
    %c0_5 = arith.constant 0 : index
    %5 = vector.load %arg4[%c0_4, %c0_5] : memref<256x384xbf16, #tpu.memory_space<vmem>>, vector<256x384xbf16>
    %cst = arith.constant dense<0.000000e+00> : vector<16x384xf32>
    %6 = tpu.matmul %4, %5, %cst {dimension_numbers = #tpu.dot_dimension_numbers<[1], [0], [0], [1], [0, 0, 1, 1], [], []>} : vector<16x256xbf16>, vector<256x384xbf16>, vector<16x384xf32> -> vector<16x384xf32>
    %7 = arith.addf %3, %6 : vector<16x384xf32>
    %c0_6 = arith.constant 0 : index
    %c0_7 = arith.constant 0 : index
    %8 = vector.load %arg7[%c0_6, %c0_7] : memref<16x384xf32, #tpu.memory_space<vmem>>, vector<16x384xf32>
    tpu.vector_store %arg7[%c0_6, %c0_7], %7 {strides = array<i32>} : memref<16x384xf32, #tpu.memory_space<vmem>>, vector<16x384xf32>,
    %c0_i32_8 = arith.constant 0 : i32
    %9 = arith.cmpi eq, %arg2, %c0_i32_8 : i32
    %10 = arith.extui %9 : i1 to i32
    %c0_i32_9 = arith.constant 0 : i32
    %11 = arith.cmpi ne, %10, %c0_i32_9 : i32
    scf.if %11 {
      %c0_10 = arith.constant 0 : index
      %c0_11 = arith.constant 0 : index
      %12 = vector.load %arg7[%c0_10, %c0_11] : memref<16x384xf32, #tpu.memory_space<vmem>>, vector<16x384xf32>
      %c0_12 = arith.constant 0 : index
      %c0_13 = arith.constant 0 : index
      %13 = vector.load %arg5[%c0_12, %c0_13] : memref<1x384xbf16, #tpu.memory_space<vmem>>, vector<1x384xbf16>
      %14 = arith.extf %13 : vector<1x384xbf16> to vector<1x384xf32>
      %15 = vector.broadcast %14 : vector<1x384xf32> to vector<16x384xf32>
      %16 = arith.addf %12, %15 : vector<16x384xf32>
      %17 = arith.truncf %16 : vector<16x384xf32> to vector<16x384xbf16>
      %c0_14 = arith.constant 0 : index
      %c0_15 = arith.constant 0 : index
      %18 = vector.load %arg6[%c0_14, %c0_15] : memref<16x384xbf16, #tpu.memory_space<vmem>>, vector<16x384xbf16>
      tpu.vector_store %arg6[%c0_14, %c0_15], %17 {strides = array<i32>} : memref<16x384xbf16, #tpu.memory_space<vmem>>, vector<16x384xbf16>,
    } else {
    }
    return
  }
  func.func @transform_0(%arg0: i32, %arg1: i32, %arg2: i32) -> (i32, i32) {
    %c0_i32 = arith.constant 0 : i32
    return %arg0, %arg2 : i32, i32
  }
  func.func @transform_1(%arg0: i32, %arg1: i32, %arg2: i32) -> (i32, i32) {
    %c0_i32 = arith.constant 0 : i32
    return %arg2, %arg1 : i32, i32
  }
  func.func @transform_2(%arg0: i32, %arg1: i32, %arg2: i32) -> (i32, i32) {
    %c0_i32 = arith.constant 0 : i32
    %c0_i32_0 = arith.constant 0 : i32
    return %c0_i32, %arg1 : i32, i32
  }
  func.func @transform_3(%arg0: i32, %arg1: i32, %arg2: i32) -> (i32, i32) {
    %c0_i32 = arith.constant 0 : i32
    return %arg0, %arg1 : i32, i32
  }
}

</mosaic_0001>

<llo_original>
// kernel: decoder_forward.20
$region0: #{decoder_forward.20}
  #allocation0 [shape = 'u32[]', space=smem, size = 0x4, offset = 0x4, fixed_abs, tag = 'smem constant byte address 0x4 - core index']
  #allocation1 [shape = 'u32[144,128]{1,0:T(1,128)}', space=vmem, size = 0x12000, scoped, tag = 'internal scratch']
  #allocation2 [shape = 'f32[8,1]{1,0:T(8,128)}', space=vmem, size = 0x1000, scoped, tag = 'scratch operand']
  #allocation3 [shape = 'f32[8,1]{1,0:T(8,128)}', space=vmem, size = 0x1000, scoped, tag = 'scratch operand']
  #allocation4 [shape = 'f32[8,128]{1,0:T(8,128)}', space=vmem, size = 0x1000, scoped, tag = 'scratch operand']
  %s0 = inlined_call_operand.vmem [shape: bf16[2,8,768], index: 0, kind: input, shape index: {}, may-alias: {0,1,2}]
  %s1 = inlined_call_operand.vmem [shape: bf16[2,8,768], index: 1, kind: input, shape index: {}, may-alias: {0,1,2}]
  %s2 = inlined_call_operand.vmem [shape: bf16[2,8,768], index: 2, kind: input, shape index: {}, may-alias: {0,1,2}]
  %s3 = inlined_call_operand.vmem [shape: bf16[2,8,256], index: 3, kind: output, shape index: {}]
  %s4 = sld [smem:[#allocation0]]
  $region53: #{decoder_forward.20} parent=0
    _
  %s6 = ssub.s32 1, %s4
  %s7 = scalar_select 0, %s6, %s4
  loop: start=0, step=1, limit=6
  $region2: #{decoder_forward.20} parent=0 // loop_pre_header
    _
  $region3: #{decoder_forward.20} parent=0 // loop_header
    %s9 = sphi 0, %s13
    %p10 = scmp.ge.s32.totalorder %s9, 6
    %s16 = sphi 0, %s35
    %s17 = sphi 0, %s31
    %s18 = sphi 0, %s27
    %s19 = sphi 0, %s16
    %s20 = sphi 0, %s17
    %s21 = sphi 0, %s18
    %s22 = sphi 0, %s19
    %s23 = sphi 0, %s20
    %s24 = sphi 0, %s21
    %s40 = sphi 0, %s42
    %s43 = sphi 0, %s40
    %s44 = sphi 0, %s43
    %s60 = sphi 0, %s44
    %s72 = sphi 0, %s74
    %s75 = sphi 0, %s72
    %s76 = sphi 0, %s75
    %s92 = sphi 0, %s76
    %s104 = sphi 0, %s106
    %s107 = sphi 0, %s104
    %s108 = sphi 0, %s107
    %s124 = sphi 0, %s108
    %s132 = sphi 0, %s134
    %s135 = sphi 0, %s132
    %s136 = sphi 0, %s135
    %s152 = sphi 0, %s136
  $region4: #{decoder_forward.20} parent=0 // loop_header_branch
    %12 = sbr.rel (%p10) target = $region8
  $region5: #{decoder_forward.20} parent=0 // loop_body
    %s14 = ssub.s32 %s9, 1
    %s15 = ssub.s32 %s9, 2
    %s25 = sadd.s32 1, %s18
    %p26 = scmp.ge.s32.totalorder %s25, 1
    %s27 = scalar_select %p26, 0, %s25
    %s28 = sadd.s32 1, %s17
    %s29 = scalar_select %p26, %s28, %s17
    %p30 = scmp.ge.s32.totalorder %s29, 2
    %s31 = scalar_select %p30, 0, %s29
    %s32 = sadd.s32 1, %s16
    %s33 = scalar_select %p30, %s32, %s16
    %p34 = scmp.ge.s32.totalorder %s33, 2
    %s35 = scalar_select %p34, 0, %s33
    %s36 = ssub.s32 %s16, %s35
    %s37 = ssub.s32 %s17, %s31
    %s38 = sor.u32 %s36, %s37
    %p39 = scmp.eq.s32.totalorder %s38, 0
    %s41 = sadd.s32 %s40, 1
    %s42 = scalar_select %p39, %s40, %s41
    %p45 = pneg %p39
    %p46 = scmp.eq.s32.totalorder %s9, 3
    %p47 = por %p45, %p46
    %p48 = scmp.ne.s32.totalorder %s40, %s43
    %p49 = scmp.eq.s32.totalorder %s9, 0
    %p50 = por %p48, %p49
    %p51 = scmp.ne.s32.totalorder %s40, %s43
    %p52 = scmp.eq.s32.totalorder %s14, 3
    %p53 = por %p51, %p52
    %p54 = scmp.ne.s32.totalorder %s43, %s44
    %p55 = scmp.eq.s32.totalorder %s14, 0
    %p56 = por %p54, %p55
    %p57 = scmp.ne.s32.totalorder %s43, %s44
    %p58 = scmp.eq.s32.totalorder %s15, 3
    %p59 = por %p57, %p58
    %p61 = scmp.ne.s32.totalorder %s44, %s60
    %p62 = scmp.eq.s32.totalorder %s15, 0
    %p63 = por %p61, %p62
    %s64 = sadd.s32 %s17, 2
    %s65 = sadd.s32 %s31, 2
    %s66 = ssub.s32 %s16, %s35
    %s67 = ssub.s32 %s18, %s27
    %s68 = sor.u32 %s66, %s67
    %s69 = ssub.s32 %s64, %s65
    %s70 = sor.u32 %s68, %s69
    %p71 = scmp.eq.s32.totalorder %s70, 0
    %s73 = sadd.s32 %s72, 1
    %s74 = scalar_select %p71, %s72, %s73
    %p77 = pneg %p71
    %p78 = scmp.eq.s32.totalorder %s9, 3
    %p79 = por %p77, %p78
    %p80 = scmp.ne.s32.totalorder %s72, %s75
    %p81 = scmp.eq.s32.totalorder %s9, 0
    %p82 = por %p80, %p81
    %p83 = scmp.ne.s32.totalorder %s72, %s75
    %p84 = scmp.eq.s32.totalorder %s14, 3
    %p85 = por %p83, %p84
    %p86 = scmp.ne.s32.totalorder %s75, %s76
    %p87 = scmp.eq.s32.totalorder %s14, 0
    %p88 = por %p86, %p87
    %p89 = scmp.ne.s32.totalorder %s75, %s76
    %p90 = scmp.eq.s32.totalorder %s15, 3
    %p91 = por %p89, %p90
    %p93 = scmp.ne.s32.totalorder %s76, %s92
    %p94 = scmp.eq.s32.totalorder %s15, 0
    %p95 = por %p93, %p94
    %s96 = sadd.s32 %s17, 4
    %s97 = sadd.s32 %s31, 4
    %s98 = ssub.s32 %s16, %s35
    %s99 = ssub.s32 %s18, %s27
    %s100 = sor.u32 %s98, %s99
    %s101 = ssub.s32 %s96, %s97
    %s102 = sor.u32 %s100, %s101
    %p103 = scmp.eq.s32.totalorder %s102, 0
    %s105 = sadd.s32 %s104, 1
    %s106 = scalar_select %p103, %s104, %s105
    %p109 = pneg %p103
    %p110 = scmp.eq.s32.totalorder %s9, 3
    %p111 = por %p109, %p110
    %p112 = scmp.ne.s32.totalorder %s104, %s107
    %p113 = scmp.eq.s32.totalorder %s9, 0
    %p114 = por %p112, %p113
    %p115 = scmp.ne.s32.totalorder %s104, %s107
    %p116 = scmp.eq.s32.totalorder %s14, 3
    %p117 = por %p115, %p116
    %p118 = scmp.ne.s32.totalorder %s107, %s108
    %p119 = scmp.eq.s32.totalorder %s14, 0
    %p120 = por %p118, %p119
    %p121 = scmp.ne.s32.totalorder %s107, %s108
    %p122 = scmp.eq.s32.totalorder %s15, 3
    %p123 = por %p121, %p122
    %p125 = scmp.ne.s32.totalorder %s108, %s124
    %p126 = scmp.eq.s32.totalorder %s15, 0
    %p127 = por %p125, %p126
    %s128 = ssub.s32 %s16, %s35
    %s129 = ssub.s32 %s17, %s31
    %s130 = sor.u32 %s128, %s129
    %p131 = scmp.eq.s32.totalorder %s130, 0
    %s133 = sadd.s32 %s132, 1
    %s134 = scalar_select %p131, %s132, %s133
    %p137 = pneg %p131
    %p138 = scmp.eq.s32.totalorder %s9, 3
    %p139 = por %p137, %p138
    %p140 = scmp.ne.s32.totalorder %s132, %s135
    %p141 = scmp.eq.s32.totalorder %s9, 0
    %p142 = por %p140, %p141
    %p143 = scmp.ne.s32.totalorder %s132, %s135
    %p144 = scmp.eq.s32.totalorder %s14, 3
    %p145 = por %p143, %p144
    %p146 = scmp.ne.s32.totalorder %s135, %s136
    %p147 = scmp.eq.s32.totalorder %s14, 0
    %p148 = por %p146, %p147
    %p149 = scmp.ne.s32.totalorder %s135, %s136
    %p150 = scmp.eq.s32.totalorder %s15, 3
    %p151 = por %p149, %p150
    %p153 = scmp.ne.s32.totalorder %s136, %s152
    %p154 = scmp.eq.s32.totalorder %s15, 0
    %p155 = por %p153, %p154
    %p156 = scmp.le.s32.totalorder 1, %s9
    %p157 = scmp.lt.s32.totalorder %s9, 5
    %p158 = pnand %p156, %p157
    %p159 = pneg %p158
    // Predicated region
    $region9: #{decoder_forward.20} parent=5 // pred_check
      _
    $region10: #{decoder_forward.20} parent=5 // pred_check_branch
      %161 = sbr.rel (%p158) target = $region12
    $region11: #{decoder_forward.20} parent=5 // pred_region
      %s162 = ssub.s32 %s9, 1
    $region12: #{decoder_forward.20} parent=5 // pred_fallthru
      _
    %p163 = scmp.lt.s32.totalorder %s9, 4
    // Predicated region
    $region13: #{decoder_forward.20} parent=5 // pred_check
      %p164 = pneg %p163
    $region14: #{decoder_forward.20} parent=5 // pred_check_branch
      %166 = sbr.rel (%p164) target = $region16
    $region15: #{decoder_forward.20} parent=5 // pred_region
      // Predicated region
      $region17: #{decoder_forward.20} parent=15 // pred_check
        %p167 = pneg %p50
      $region18: #{decoder_forward.20} parent=15 // pred_check_branch
        %169 = sbr.rel (%p167) target = $region20
      $region19: #{decoder_forward.20} parent=15 // pred_region
        %p170 = scmp.lt.s32.totalorder %s16, 1
        %s171 = scalar_select %p170, %s16, 1
        %p172 = scmp.lt.s32.totalorder %s17, 5
        %s173 = scalar_select %p172, %s17, 5
        %s174 = smul.addr %s171, 6
        %s175 = sadd.s32 %s173, %s174
        %s176 = smul.addr %s175, 4
        %s177 = scalar_lea.vmem %s0, %s176
      $region20: #{decoder_forward.20} parent=15 // pred_fallthru
        _
      // Predicated region
      $region21: #{decoder_forward.20} parent=15 // pred_check
        %p178 = pneg %p82
      $region22: #{decoder_forward.20} parent=15 // pred_check_branch
        %180 = sbr.rel (%p178) target = $region24
      $region23: #{decoder_forward.20} parent=15 // pred_region
        %s181 = sadd.s32 %s17, 2
        %p182 = scmp.lt.s32.totalorder %s16, 1
        %s183 = scalar_select %p182, %s16, 1
        %p184 = scmp.lt.s32.totalorder %s18, 0
        %s185 = scalar_select %p184, %s18, 0
        %p186 = scmp.lt.s32.totalorder %s181, 5
        %s187 = scalar_select %p186, %s181, 5
        %s188 = smul.addr %s185, 6
        %s189 = sadd.s32 %s187, %s188
        %s190 = smul.addr %s183, 6
        %s191 = sadd.s32 %s189, %s190
        %s192 = smul.addr %s191, 4
        %s193 = scalar_lea.vmem %s1, %s192
        %s194 = sadd.s32 %s17, 2
      $region24: #{decoder_forward.20} parent=15 // pred_fallthru
        _
      // Predicated region
      $region25: #{decoder_forward.20} parent=15 // pred_check
        %p195 = pneg %p114
      $region26: #{decoder_forward.20} parent=15 // pred_check_branch
        %197 = sbr.rel (%p195) target = $region28
      $region27: #{decoder_forward.20} parent=15 // pred_region
        %s198 = sadd.s32 %s17, 4
        %p199 = scmp.lt.s32.totalorder %s16, 1
        %s200 = scalar_select %p199, %s16, 1
        %p201 = scmp.lt.s32.totalorder %s18, 0
        %s202 = scalar_select %p201, %s18, 0
        %p203 = scmp.lt.s32.totalorder %s198, 5
        %s204 = scalar_select %p203, %s198, 5
        %s205 = smul.addr %s202, 6
        %s206 = sadd.s32 %s204, %s205
        %s207 = smul.addr %s200, 6
        %s208 = sadd.s32 %s206, %s207
        %s209 = smul.addr %s208, 4
        %s210 = scalar_lea.vmem %s2, %s209
        %s211 = sadd.s32 %s17, 4
      $region28: #{decoder_forward.20} parent=15 // pred_fallthru
        _
    $region16: #{decoder_forward.20} parent=5 // pred_fallthru
      _
    %p212 = scmp.le.s32.totalorder 1, %s9
    %p213 = scmp.lt.s32.totalorder %s9, 5
    %p214 = pnand %p212, %p213
    %p215 = pneg %p214
    // Predicated region
    $region29: #{decoder_forward.20} parent=5 // pred_check
      _
    $region30: #{decoder_forward.20} parent=5 // pred_check_branch
      %217 = sbr.rel (%p214) target = $region32
    $region31: #{decoder_forward.20} parent=5 // pred_region
      %s218 = ssub.s32 %s9, 1
      %p219 = scmp.lt.s32.totalorder %s19, 1
      %s220 = scalar_select %p219, %s19, 1
      %p221 = scmp.lt.s32.totalorder %s20, 5
      %s222 = scalar_select %p221, %s20, 5
      %s223 = smul.addr %s220, 6
      %s224 = sadd.s32 %s222, %s223
      %s225 = smul.addr %s224, 4
      %s226 = scalar_lea.vmem %s0, %s225
      %p227 = pneg %p56
      %p228 = pneg %p53
      %s229 = sadd.s32 %s20, 2
      %p230 = scmp.lt.s32.totalorder %s19, 1
      %s231 = scalar_select %p230, %s19, 1
      %p232 = scmp.lt.s32.totalorder %s21, 0
      %s233 = scalar_select %p232, %s21, 0
      %p234 = scmp.lt.s32.totalorder %s229, 5
      %s235 = scalar_select %p234, %s229, 5
      %s236 = smul.addr %s233, 6
      %s237 = sadd.s32 %s235, %s236
      %s238 = smul.addr %s231, 6
      %s239 = sadd.s32 %s237, %s238
      %s240 = smul.addr %s239, 4
      %s241 = scalar_lea.vmem %s1, %s240
      %p242 = pneg %p88
      %p243 = pneg %p85
      %s244 = sadd.s32 %s20, 4
      %p245 = scmp.lt.s32.totalorder %s19, 1
      %s246 = scalar_select %p245, %s19, 1
      %p247 = scmp.lt.s32.totalorder %s21, 0
      %s248 = scalar_select %p247, %s21, 0
      %p249 = scmp.lt.s32.totalorder %s244, 5
      %s250 = scalar_select %p249, %s244, 5
      %s251 = smul.addr %s248, 6
      %s252 = sadd.s32 %s250, %s251
      %s253 = smul.addr %s246, 6
      %s254 = sadd.s32 %s252, %s253
      %s255 = smul.addr %s254, 4
      %s256 = scalar_lea.vmem %s2, %s255
      %p257 = pneg %p120
      %p258 = pneg %p117
      %p259 = pneg %p148
      %p260 = pneg %p145
      %p261 = scmp.lt.s32.totalorder %s19, 1
      %s262 = scalar_select %p261, %s19, 1
      %p263 = scmp.lt.s32.totalorder %s20, 1
      %s264 = scalar_select %p263, %s20, 1
      %s265 = smul.addr %s262, 2
      %s266 = sadd.s32 %s264, %s265
      %s267 = smul.addr %s266, 4
      %s268 = scalar_lea.vmem %s3, %s267
      %p269 = scmp.lt.s32.totalorder %s19, 1
      %s270 = scalar_select %p269, %s19, 1
      %p271 = scmp.lt.s32.totalorder %s20, 5
      %s272 = scalar_select %p271, %s20, 5
      %s273 = smul.addr %s270, 6
      %s274 = sadd.s32 %s272, %s273
      %s275 = smul.addr %s274, 4
      %s276 = scalar_lea.vmem %s0, %s275
      %s277 = sadd.s32 %s20, 2
      %p278 = scmp.lt.s32.totalorder %s19, 1
      %s279 = scalar_select %p278, %s19, 1
      %p280 = scmp.lt.s32.totalorder %s21, 0
      %s281 = scalar_select %p280, %s21, 0
      %p282 = scmp.lt.s32.totalorder %s277, 5
      %s283 = scalar_select %p282, %s277, 5
      %s284 = smul.addr %s281, 6
      %s285 = sadd.s32 %s283, %s284
      %s286 = smul.addr %s279, 6
      %s287 = sadd.s32 %s285, %s286
      %s288 = smul.addr %s287, 4
      %s289 = scalar_lea.vmem %s1, %s288
      %s290 = sadd.s32 %s20, 2
      %s291 = sadd.s32 %s20, 4
      %p292 = scmp.lt.s32.totalorder %s19, 1
      %s293 = scalar_select %p292, %s19, 1
      %p294 = scmp.lt.s32.totalorder %s21, 0
      %s295 = scalar_select %p294, %s21, 0
      %p296 = scmp.lt.s32.totalorder %s291, 5
      %s297 = scalar_select %p296, %s291, 5
      %s298 = smul.addr %s295, 6
      %s299 = sadd.s32 %s297, %s298
      %s300 = smul.addr %s293, 6
      %s301 = sadd.s32 %s299, %s300
      %s302 = smul.addr %s301, 4
      %s303 = scalar_lea.vmem %s2, %s302
      %s304 = sadd.s32 %s20, 4
      %p305 = scmp.lt.s32.totalorder %s19, 1
      %s306 = scalar_select %p305, %s19, 1
      %p307 = scmp.lt.s32.totalorder %s20, 1
      %s308 = scalar_select %p307, %s20, 1
      %s309 = smul.addr %s306, 2
      %s310 = sadd.s32 %s308, %s309
      %s311 = smul.addr %s310, 4
      %s312 = scalar_lea.vmem %s3, %s311
      %p314 = scmp.eq.s32.totalorder %s21, 0
      // Predicated region
      $region33: #{decoder_forward.20} parent=31 // pred_check
        %p315 = pneg %p314
      $region34: #{decoder_forward.20} parent=31 // pred_check_branch
        %317 = sbr.rel (%p315) target = $region36
      $region35: #{decoder_forward.20} parent=31 // pred_region
        %vm318 = vcmask 7168
        %319 = vst.msk [vmem:[#allocation2] sm:$0xff] %vm318, -inf
        %320 = vst.msk [vmem:[#allocation3] sm:$0xff] %vm318, 0.0
        %321 = vst [vmem:[#allocation4] sm:$0xff] 0.0
      $region36: #{decoder_forward.20} parent=31 // pred_fallthru
        _
      %v322 = vld [vmem:[%s276] sm:$0xf]
      %v323 = vld [vmem:[%s289] sm:$0xf]
      %v324 = vld [vmem:[%s303] sm:$0xf]
      %325 = vmatprep.subr.bf16.mxu0 0
      %326 = vmatpush1.bf16.xpose.msra.mxu0 %v323
      %327 = vmatprep.subr.bf16.mxu0 0
      %328 = vmatpush1.bf16.xpose.msra.mxu0 0
      %329 = vmatprep.subr.bf16.mxu0 0
      %330 = vmatpush1.bf16.xpose.msra.mxu0 0
      %331 = vmatprep.subr.bf16.mxu0 0
      %332 = vmatpush1.bf16.xpose.msra.mxu0 0
      %333 = vmatprep.subr.bf16.mxu0 0
      %334 = vmatpush1.bf16.xpose.msra.mxu0 0
      %335 = vmatprep.subr.bf16.mxu0 0
      %336 = vmatpush1.bf16.xpose.msra.mxu0 0
      %337 = vmatprep.subr.bf16.mxu0 0
      %338 = vmatpush1.bf16.xpose.msra.mxu0 0
      %339 = vmatprep.subr.bf16.mxu0 0
      %340 = vmatpush1.bf16.xpose.msra.mxu0 0
      %341 = vmatprep.subr.bf16.mxu0 0
      %342 = vmatpush1.bf16.xpose.msra.mxu0 0
      %343 = vmatprep.subr.bf16.mxu0 0
      %344 = vmatpush1.bf16.xpose.msra.mxu0 0
      %345 = vmatprep.subr.bf16.mxu0 0
      %346 = vmatpush1.bf16.xpose.msra.mxu0 0
      %347 = vmatprep.subr.bf16.mxu0 0
      %348 = vmatpush1.bf16.xpose.msra.mxu0 0
      %349 = vmatprep.subr.bf16.mxu0 0
      %350 = vmatpush1.bf16.xpose.msra.mxu0 0
      %351 = vmatprep.subr.bf16.mxu0 0
      %352 = vmatpush1.bf16.xpose.msra.mxu0 0
      %353 = vmatprep.subr.bf16.mxu0 0
      %354 = vmatpush1.bf16.xpose.msra.mxu0 0
      %355 = vmatprep.subr.bf16.mxu0 0
      %356 = vmatpush1.bf16.xpose.msra.mxu0 0
      %357 = vmatprep.mubr.bf16.mxu0 0
      %358 = vmatmul.mubr.bf16.gmra.mrb[0].mxu0 %v322
      %v359 = vpop.f32.mrb[0].mxu0
      %v360 = vadd.f32 0.0, %v359
      %v361 = vpop.f32.mrb[0].mxu0
      %v362 = vpop.f32.mrb[0].mxu0
      %v363 = vpop.f32.mrb[0].mxu0
      %364 = vdwg.mxu0
      %v365 = vmul.f32 %v360, 0.088388346
      %v366 = vld [vmem:[#allocation2] sm:$0xff]
      %vm367 = vcmask 64512
      %v368 = vsel %vm367, %v365, -inf
      %369 = vmax.xlane.f32.xlu0 %v368
      %v370 = vpop.xlane.xlu0 %369
      %v371 = vmax.f32 %v366, %v370
      %v372 = vsub.f32 %v366, %v371
      %v373 = vmul.f32 %v372, 1.442695
      %v374 = vpow.pop %v373
      %376 = vset.pattern.permute.xlu0 0
      %377 = vperm.xlu0 %376, %v371
      %v378 = vpop.permute.xlu0 %377
      %v380 = vsub.f32 %v365, %v378
      %v381 = vmul.f32 %v380, 1.442695
      %v382 = vpow.pop %v381
      %v383 = vld [vmem:[#allocation3] sm:$0xff]
      %v384 = vmul.f32 %v374, %v383
      %v385 = vsel %vm367, %v382, 0.0
      %386 = vadd.xlane.f32.xlu0 %v385
      %v387 = vpop.xlane.xlu0 %386
      %v388 = vadd.f32 %v384, %v387
      %vm389 = vcmask 7168
      %390 = vst.msk [vmem:[#allocation3] sm:$0xff] %vm389, %v388
      %v391 = vld [vmem:[#allocation4] sm:$0xff]
      %393 = vset.pattern.permute.xlu0 0
      %394 = vperm.xlu0 %393, %v374
      %v395 = vpop.permute.xlu0 %394
      %v397 = vmul.f32 %v395, %v391
      %v398 = vpack.c.bf16 %v382, %v382
      %v400 = vsel %vm367, %v398, 0
      %vm402 = vcmask 1043456
      %v404 = vsel %vm402, %v324, 0
      %406 = vmatprep.subr.bf16.mxu0 0
      %407 = vmatpush1.bf16.msra.mxu0 %v404
      %408 = vmatprep.subr.bf16.mxu0 0
      %409 = vmatpush1.bf16.msra.mxu0 0
      %410 = vmatprep.subr.bf16.mxu0 0
      %411 = vmatpush1.bf16.msra.mxu0 0
      %412 = vmatprep.subr.bf16.mxu0 0
      %413 = vmatpush1.bf16.msra.mxu0 0
      %414 = vmatprep.subr.bf16.mxu0 0
      %415 = vmatpush1.bf16.msra.mxu0 0
      %416 = vmatprep.subr.bf16.mxu0 0
      %417 = vmatpush1.bf16.msra.mxu0 0
      %418 = vmatprep.subr.bf16.mxu0 0
      %419 = vmatpush1.bf16.msra.mxu0 0
      %420 = vmatprep.subr.bf16.mxu0 0
      %421 = vmatpush1.bf16.msra.mxu0 0
      %422 = vmatprep.subr.bf16.mxu0 0
      %423 = vmatpush1.bf16.msra.mxu0 0
      %424 = vmatprep.subr.bf16.mxu0 0
      %425 = vmatpush1.bf16.msra.mxu0 0
      %426 = vmatprep.subr.bf16.mxu0 0
      %427 = vmatpush1.bf16.msra.mxu0 0
      %428 = vmatprep.subr.bf16.mxu0 0
      %429 = vmatpush1.bf16.msra.mxu0 0
      %430 = vmatprep.subr.bf16.mxu0 0
      %431 = vmatpush1.bf16.msra.mxu0 0
      %432 = vmatprep.subr.bf16.mxu0 0
      %433 = vmatpush1.bf16.msra.mxu0 0
      %434 = vmatprep.subr.bf16.mxu0 0
      %435 = vmatpush1.bf16.msra.mxu0 0
      %436 = vmatprep.subr.bf16.mxu0 0
      %437 = vmatpush1.bf16.msra.mxu0 0
      %438 = vmatprep.mubr.bf16.mxu0 0
      %439 = vmatmul.mubr.bf16.gmra.mrb[0].mxu0 %v400
      %v440 = vpop.f32.mrb[0].mxu0
      %v441 = vadd.f32 0.0, %v440
      %v442 = vpop.f32.mrb[0].mxu0
      %v443 = vpop.f32.mrb[0].mxu0
      %v444 = vpop.f32.mrb[0].mxu0
      %445 = vdwg.mxu0
      %v446 = vadd.f32 %v397, %v441
      %447 = vst [vmem:[#allocation4] sm:$0xff] %v446
      %448 = vst.msk [vmem:[#allocation2] sm:$0xff] %vm389, %v371
      // Predicated region
      $region37: #{decoder_forward.20} parent=31 // pred_check
        %p449 = pneg %p314
      $region38: #{decoder_forward.20} parent=31 // pred_check_branch
        %451 = sbr.rel (%p449) target = $region40
      $region39: #{decoder_forward.20} parent=31 // pred_region
        %v452 = vld [vmem:[#allocation4] sm:$0xff]
        %v453 = vld [vmem:[#allocation3] sm:$0xff]
        %v454 = vrcp.pop %v453
        %456 = vset.pattern.permute.xlu0 0
        %457 = vperm.xlu0 %456, %v454
        %v458 = vpop.permute.xlu0 %457
        %v460 = vmul.f32 %v452, %v458
        %v461 = vpack.c.bf16 %v460, %v460
        %462 = vst [vmem:[%s312] sm:$0xf] %v461
      $region40: #{decoder_forward.20} parent=31 // pred_fallthru
        _
      %p463 = scmp.lt.s32.totalorder %s19, 1
      %s464 = scalar_select %p463, %s19, 1
      %p465 = scmp.lt.s32.totalorder %s20, 1
      %s466 = scalar_select %p465, %s20, 1
      %s467 = smul.addr %s464, 2
      %s468 = sadd.s32 %s466, %s467
      %s469 = smul.addr %s468, 4
      %s470 = scalar_lea.vmem %s3, %s469
      // Predicated region
      $region41: #{decoder_forward.20} parent=31 // pred_check
        %p471 = pneg %p145
      $region42: #{decoder_forward.20} parent=31 // pred_check_branch
        %473 = sbr.rel (%p471) target = $region44
      $region43: #{decoder_forward.20} parent=31 // pred_region
        _
      $region44: #{decoder_forward.20} parent=31 // pred_fallthru
        _
    $region32: #{decoder_forward.20} parent=5 // pred_fallthru
      _
    %p474 = scmp.le.s32.totalorder 2, %s9
    // Predicated region
    $region45: #{decoder_forward.20} parent=5 // pred_check
      %p475 = pneg %p474
    $region46: #{decoder_forward.20} parent=5 // pred_check_branch
      %477 = sbr.rel (%p475) target = $region48
    $region47: #{decoder_forward.20} parent=5 // pred_region
      %s478 = ssub.s32 %s9, 2
      // Predicated region
      $region49: #{decoder_forward.20} parent=47 // pred_check
        %p479 = pneg %p151
      $region50: #{decoder_forward.20} parent=47 // pred_check_branch
        %481 = sbr.rel (%p479) target = $region52
      $region51: #{decoder_forward.20} parent=47 // pred_region
        %p482 = scmp.lt.s32.totalorder %s22, 1
        %s483 = scalar_select %p482, %s22, 1
        %p484 = scmp.lt.s32.totalorder %s23, 1
        %s485 = scalar_select %p484, %s23, 1
        %s486 = smul.addr %s483, 2
        %s487 = sadd.s32 %s485, %s486
        %s488 = smul.addr %s487, 4
        %s489 = scalar_lea.vmem %s3, %s488
      $region52: #{decoder_forward.20} parent=47 // pred_fallthru
        _
    $region48: #{decoder_forward.20} parent=5 // pred_fallthru
      _
  $region6: #{decoder_forward.20} parent=0 // loop_footer
    %s13 = sadd.s32 1, %s9
  $region7: #{decoder_forward.20} parent=0 // loop_footer_branch
    %8 = sbr.rel target = $region3
  $region8: #{decoder_forward.20} parent=0 // loop_exit
    _

// kernel: decoder_forward.19
$region0: #{decoder_forward.19}
  #allocation0 [shape = 'u32[]', space=smem, size = 0x4, offset = 0x4, fixed_abs, tag = 'smem constant byte address 0x4 - core index']
  #allocation1 [shape = 'u32[144,128]{1,0:T(1,128)}', space=vmem, size = 0x12000, scoped, tag = 'internal scratch']
  #allocation2 [shape = 'f32[16,384]{1,0:T(8,128)}', space=vmem, size = 0x6000, scoped, tag = 'scratch operand']
  %s0 = inlined_call_operand.vmem [shape: bf16[16,256], index: 0, kind: input, shape index: {}]
  %s1 = inlined_call_operand.hbm [shape: bf16[256,768], index: 1, kind: input, shape index: {}]
  %s2 = inlined_call_operand.vmem [shape: bf16[1,768], index: 2, kind: input, shape index: {}]
  %s3 = inlined_call_operand.vmem [shape: bf16[16,768], index: 3, kind: output, shape index: {}]
  %s4 = sld [smem:[#allocation0]]
  $region79: #{decoder_forward.19} parent=0
    _
  %s6 = ssub.s32 1, %s4
  %s7 = scalar_select 0, %s6, %s4
  $region1: #{decoder_forward.19} parent=0
    #allocation3 [shape = 'u8[393216]{0}', space=vmem, size = 0x60000, scoped, tag = 'input window, operand 1']
    #allocation4 [shape = 's32[2]{0}', space=sflag, size = 0x8, scoped, tag = 'scoped memory for decoder_forward.19']
    #allocation5 [shape = 'u8[24576]{0}', space=vmem, size = 0x6000, scoped, tag = 'output window, operand 0']
    %8 = vsyncpa [#allocation4], 0
    %s9 = scalar_lea.sflag [#allocation4], 1
    %10 = vsyncpa %s9, 0
    loop: start=0, step=1, limit=4
    $region2: #{decoder_forward.19} parent=1 // loop_pre_header
      _
    $region3: #{decoder_forward.19} parent=1 // loop_header
      %s12 = sphi 0, %s16
      %p13 = scmp.ge.s32.totalorder %s12, 4
      %s19 = sphi 0, %s38
      %s20 = sphi 0, %s34
      %s21 = sphi 0, %s30
      %s22 = sphi 0, %s19
      %s23 = sphi 0, %s20
      %s24 = sphi 0, %s21
      %s25 = sphi 0, %s22
      %s26 = sphi 0, %s23
      %s27 = sphi 0, %s24
      %s43 = sphi 0, %s45
      %s46 = sphi 0, %s43
      %s47 = sphi 0, %s46
      %s63 = sphi 0, %s47
      %s71 = sphi 0, %s73
      %s74 = sphi 0, %s71
      %s75 = sphi 0, %s74
      %s91 = sphi 0, %s75
      %s97 = sphi 0, %s99
      %s100 = sphi 0, %s97
      %s101 = sphi 0, %s100
      %s117 = sphi 0, %s101
      %s125 = sphi 0, %s127
      %s128 = sphi 0, %s125
      %s129 = sphi 0, %s128
      %s145 = sphi 0, %s129
    $region4: #{decoder_forward.19} parent=1 // loop_header_branch
      %15 = sbr.rel (%p13) target = $region8
    $region5: #{decoder_forward.19} parent=1 // loop_body
      %s17 = ssub.s32 %s12, 1
      %s18 = ssub.s32 %s12, 2
      %s28 = sadd.s32 1, %s21
      %p29 = scmp.ge.s32.totalorder %s28, 1
      %s30 = scalar_select %p29, 0, %s28
      %s31 = sadd.s32 1, %s20
      %s32 = scalar_select %p29, %s31, %s20
      %p33 = scmp.ge.s32.totalorder %s32, 2
      %s34 = scalar_select %p33, 0, %s32
      %s35 = sadd.s32 1, %s19
      %s36 = scalar_select %p33, %s35, %s19
      %p37 = scmp.ge.s32.totalorder %s36, 1
      %s38 = scalar_select %p37, 0, %s36
      %s39 = ssub.s32 %s19, %s38
      %s40 = ssub.s32 %s21, %s30
      %s41 = sor.u32 %s39, %s40
      %p42 = scmp.eq.s32.totalorder %s41, 0
      %s44 = sadd.s32 %s43, 1
      %s45 = scalar_select %p42, %s43, %s44
      %p48 = pneg %p42
      %p49 = scmp.eq.s32.totalorder %s12, 1
      %p50 = por %p48, %p49
      %p51 = scmp.ne.s32.totalorder %s43, %s46
      %p52 = scmp.eq.s32.totalorder %s12, 0
      %p53 = por %p51, %p52
      %p54 = scmp.ne.s32.totalorder %s43, %s46
      %p55 = scmp.eq.s32.totalorder %s17, 1
      %p56 = por %p54, %p55
      %p57 = scmp.ne.s32.totalorder %s46, %s47
      %p58 = scmp.eq.s32.totalorder %s17, 0
      %p59 = por %p57, %p58
      %p60 = scmp.ne.s32.totalorder %s46, %s47
      %p61 = scmp.eq.s32.totalorder %s18, 1
      %p62 = por %p60, %p61
      %p64 = scmp.ne.s32.totalorder %s47, %s63
      %p65 = scmp.eq.s32.totalorder %s18, 0
      %p66 = por %p64, %p65
      %s67 = ssub.s32 %s21, %s30
      %s68 = ssub.s32 %s20, %s34
      %s69 = sor.u32 %s67, %s68
      %p70 = scmp.eq.s32.totalorder %s69, 0
      %s72 = sadd.s32 %s71, 1
      %s73 = scalar_select %p70, %s71, %s72
      %p76 = pneg %p70
      %p77 = scmp.eq.s32.totalorder %s12, 1
      %p78 = por %p76, %p77
      %p79 = scmp.ne.s32.totalorder %s71, %s74
      %p80 = scmp.eq.s32.totalorder %s12, 0
      %p81 = por %p79, %p80
      %p82 = scmp.ne.s32.totalorder %s71, %s74
      %p83 = scmp.eq.s32.totalorder %s17, 1
      %p84 = por %p82, %p83
      %p85 = scmp.ne.s32.totalorder %s74, %s75
      %p86 = scmp.eq.s32.totalorder %s17, 0
      %p87 = por %p85, %p86
      %p88 = scmp.ne.s32.totalorder %s74, %s75
      %p89 = scmp.eq.s32.totalorder %s18, 1
      %p90 = por %p88, %p89
      %p92 = scmp.ne.s32.totalorder %s75, %s91
      %p93 = scmp.eq.s32.totalorder %s18, 0
      %p94 = por %p92, %p93
      %s95 = ssub.s32 %s20, %s34
      %p96 = scmp.eq.s32.totalorder %s95, 0
      %s98 = sadd.s32 %s97, 1
      %s99 = scalar_select %p96, %s97, %s98
      %p102 = pneg %p96
      %p103 = scmp.eq.s32.totalorder %s12, 1
      %p104 = por %p102, %p103
      %p105 = scmp.ne.s32.totalorder %s97, %s100
      %p106 = scmp.eq.s32.totalorder %s12, 0
      %p107 = por %p105, %p106
      %p108 = scmp.ne.s32.totalorder %s97, %s100
      %p109 = scmp.eq.s32.totalorder %s17, 1
      %p110 = por %p108, %p109
      %p111 = scmp.ne.s32.totalorder %s100, %s101
      %p112 = scmp.eq.s32.totalorder %s17, 0
      %p113 = por %p111, %p112
      %p114 = scmp.ne.s32.totalorder %s100, %s101
      %p115 = scmp.eq.s32.totalorder %s18, 1
      %p116 = por %p114, %p115
      %p118 = scmp.ne.s32.totalorder %s101, %s117
      %p119 = scmp.eq.s32.totalorder %s18, 0
      %p120 = por %p118, %p119
      %s121 = ssub.s32 %s19, %s38
      %s122 = ssub.s32 %s20, %s34
      %s123 = sor.u32 %s121, %s122
      %p124 = scmp.eq.s32.totalorder %s123, 0
      %s126 = sadd.s32 %s125, 1
      %s127 = scalar_select %p124, %s125, %s126
      %p130 = pneg %p124
      %p131 = scmp.eq.s32.totalorder %s12, 1
      %p132 = por %p130, %p131
      %p133 = scmp.ne.s32.totalorder %s125, %s128
      %p134 = scmp.eq.s32.totalorder %s12, 0
      %p135 = por %p133, %p134
      %p136 = scmp.ne.s32.totalorder %s125, %s128
      %p137 = scmp.eq.s32.totalorder %s17, 1
      %p138 = por %p136, %p137
      %p139 = scmp.ne.s32.totalorder %s128, %s129
      %p140 = scmp.eq.s32.totalorder %s17, 0
      %p141 = por %p139, %p140
      %p142 = scmp.ne.s32.totalorder %s128, %s129
      %p143 = scmp.eq.s32.totalorder %s18, 1
      %p144 = por %p142, %p143
      %p146 = scmp.ne.s32.totalorder %s129, %s145
      %p147 = scmp.eq.s32.totalorder %s18, 0
      %p148 = por %p146, %p147
      %p149 = scmp.le.s32.totalorder 1, %s12
      %p150 = scmp.lt.s32.totalorder %s12, 3
      %p151 = pnand %p149, %p150
      %p152 = pneg %p151
      // Predicated region
      $region9: #{decoder_forward.19} parent=5 // pred_check
        _
      $region10: #{decoder_forward.19} parent=5 // pred_check_branch
        %154 = sbr.rel (%p151) target = $region12
      $region11: #{decoder_forward.19} parent=5 // pred_region
        %s155 = ssub.s32 %s12, 1
        // Predicated region
        $region13: #{decoder_forward.19} parent=11 // pred_check
          %p156 = pneg %p59
        $region14: #{decoder_forward.19} parent=11 // pred_check_branch
          %158 = sbr.rel (%p156) target = $region16
        $region15: #{decoder_forward.19} parent=11 // pred_region
          %s159 = smul.u32 2, %s22
          %s160 = smul.u32 2, %s24
          %p161 = scmp.lt.s32.totalorder %s159, 1
          %s162 = scalar_select %p161, %s159, 1
          %p163 = scmp.lt.s32.totalorder %s160, 1
          %s164 = scalar_select %p163, %s160, 1
          %s165 = smul.addr %s162, 2
          %s166 = sadd.s32 %s164, %s165
          %s167 = smul.addr %s166, 4
          %s168 = scalar_lea.vmem %s0, %s167
          %s169 = smul.u32 2, %s22
          %s170 = smul.u32 2, %s24
        $region16: #{decoder_forward.19} parent=11 // pred_fallthru
          _
      $region12: #{decoder_forward.19} parent=5 // pred_fallthru
        _
      %p171 = scmp.lt.s32.totalorder %s12, 2
      // Predicated region
      $region17: #{decoder_forward.19} parent=5 // pred_check
        %p172 = pneg %p171
      $region18: #{decoder_forward.19} parent=5 // pred_check_branch
        %174 = sbr.rel (%p172) target = $region20
      $region19: #{decoder_forward.19} parent=5 // pred_region
        // Predicated region
        $region21: #{decoder_forward.19} parent=19 // pred_check
          %p175 = pneg %p81
        $region22: #{decoder_forward.19} parent=19 // pred_check_branch
          %177 = sbr.rel (%p175) target = $region24
        $region23: #{decoder_forward.19} parent=19 // pred_region
          %s178 = sand.u32 %s71, 1
          %s179 = scalar_lea.sflag [#allocation4], %s178
          %s180 = sand.u32 %s71, 1
          %s181 = smul.addr %s180, 384
          %s182 = scalar_lea.vmem [#allocation3], %s181
          %s183 = smul.u32 32, %s21
          %s184 = smul.u32 3, %s20
          %s186 = ssub.s32 6144, 6144
          %187 = vsyncadd %s179, %s186
          %s188 = smul.addr %s183, 6
          %s189 = sadd.s32 %s184, %s188
          %s190 = smul.addr %s189, 64
          %s191 = scalar_lea.hbm %s1, %s190
          %s192 = sshll.u32 %s182, 4
          %s193 = int_to_ptr.vmem [resolvable:$true] %s192
          %198 = dma.hbm_to_vmem [thread:$0]  %s191, 6144, %s193, %s179, 384, 192, 12
        $region24: #{decoder_forward.19} parent=19 // pred_fallthru
          _
        // Predicated region
        $region25: #{decoder_forward.19} parent=19 // pred_check
          %p199 = pneg %p107
        $region26: #{decoder_forward.19} parent=19 // pred_check_branch
          %201 = sbr.rel (%p199) target = $region28
        $region27: #{decoder_forward.19} parent=19 // pred_region
          %s202 = smul.u32 3, %s20
          %p203 = scmp.lt.s32.totalorder %s202, 5
          %s204 = scalar_select %p203, %s202, 5
          %s205 = scalar_lea.vmem %s2, %s204
          %s206 = smul.u32 3, %s20
        $region28: #{decoder_forward.19} parent=19 // pred_fallthru
          _
      $region20: #{decoder_forward.19} parent=5 // pred_fallthru
        _
      %p207 = scmp.le.s32.totalorder 1, %s12
      %p208 = scmp.lt.s32.totalorder %s12, 3
      %p209 = pnand %p207, %p208
      %p210 = pneg %p209
      // Predicated region
      $region29: #{decoder_forward.19} parent=5 // pred_check
        _
      $region30: #{decoder_forward.19} parent=5 // pred_check_branch
        %212 = sbr.rel (%p209) target = $region32
      $region31: #{decoder_forward.19} parent=5 // pred_region
        %s213 = ssub.s32 %s12, 1
        %s214 = sand.u32 %s74, 1
        %s215 = scalar_lea.sflag [#allocation4], %s214
        %s216 = sand.u32 %s74, 1
        %s217 = smul.addr %s216, 384
        %s218 = scalar_lea.vmem [#allocation3], %s217
        // Predicated region
        $region33: #{decoder_forward.19} parent=31 // pred_check
          %p219 = pneg %p87
        $region34: #{decoder_forward.19} parent=31 // pred_check_branch
          %221 = sbr.rel (%p219) target = $region36
        $region35: #{decoder_forward.19} parent=31 // pred_region
          %222 = dma.done %s215, 6144
        $region36: #{decoder_forward.19} parent=31 // pred_fallthru
          _
        %s223 = smul.u32 2, %s22
        %s224 = smul.u32 2, %s24
        %p225 = scmp.lt.s32.totalorder %s223, 1
        %s226 = scalar_select %p225, %s223, 1
        %p227 = scmp.lt.s32.totalorder %s224, 1
        %s228 = scalar_select %p227, %s224, 1
        %s229 = smul.addr %s226, 2
        %s230 = sadd.s32 %s228, %s229
        %s231 = smul.addr %s230, 4
        %s232 = scalar_lea.vmem %s0, %s231
        %p233 = pneg %p59
        %p234 = pneg %p56
        %s235 = sand.u32 %s74, 1
        %s236 = scalar_lea.sflag [#allocation4], %s235
        %s237 = sand.u32 %s74, 1
        %s238 = smul.addr %s237, 384
        %s239 = scalar_lea.vmem [#allocation3], %s238
        %p240 = pneg %p87
        %p241 = pneg %p84
        %s242 = smul.u32 3, %s23
        %p243 = scmp.lt.s32.totalorder %s242, 5
        %s244 = scalar_select %p243, %s242, 5
        %s245 = scalar_lea.vmem %s2, %s244
        %p246 = pneg %p113
        %p247 = pneg %p110
        %p248 = pneg %p141
        %p249 = pneg %p138
        %s250 = sand.u32 %s128, 1
        %s251 = sand.u32 %s128, 1
        %s252 = smul.addr %s251, 24
        %s253 = scalar_lea.vmem [#allocation5], %s252
        %s254 = smul.u32 2, %s22
        %s255 = smul.u32 2, %s24
        %p256 = scmp.lt.s32.totalorder %s254, 1
        %s257 = scalar_select %p256, %s254, 1
        %p258 = scmp.lt.s32.totalorder %s255, 1
        %s259 = scalar_select %p258, %s255, 1
        %s260 = smul.addr %s257, 2
        %s261 = sadd.s32 %s259, %s260
        %s262 = smul.addr %s261, 4
        %s263 = scalar_lea.vmem %s0, %s262
        %s264 = smul.u32 2, %s22
        %s265 = smul.u32 2, %s24
        %s266 = smul.u32 32, %s24
        %s267 = smul.u32 3, %s23
        %s268 = smul.u32 3, %s23
        %p269 = scmp.lt.s32.totalorder %s268, 5
        %s270 = scalar_select %p269, %s268, 5
        %s271 = scalar_lea.vmem %s2, %s270
        %s272 = smul.u32 3, %s23
        %s273 = smul.u32 2, %s22
        %s274 = smul.u32 3, %s23
        %p276 = scmp.eq.s32.totalorder %s24, 0
        // Predicated region
        $region37: #{decoder_forward.19} parent=31 // pred_check
          %p277 = pneg %p276
        $region38: #{decoder_forward.19} parent=31 // pred_check_branch
          %279 = sbr.rel (%p277) target = $region40
        $region39: #{decoder_forward.19} parent=31 // pred_region
          %280 = vst [vmem:[#allocation2] sm:$0xff] 0.0
          %281 = vst [vmem:[#allocation2 + $0x8] sm:$0xff] 0.0
          %282 = vst [vmem:[#allocation2 + $0x10] sm:$0xff] 0.0
          %283 = vst [vmem:[#allocation2 + $0x18] sm:$0xff] 0.0
          %284 = vst [vmem:[#allocation2 + $0x20] sm:$0xff] 0.0
          %285 = vst [vmem:[#allocation2 + $0x28] sm:$0xff] 0.0
        $region40: #{decoder_forward.19} parent=31 // pred_fallthru
          _
        %v286 = vld [vmem:[#allocation2] sm:$0xff]
        %v287 = vld [vmem:[#allocation2 + $0x8] sm:$0xff]
        %v288 = vld [vmem:[#allocation2 + $0x10] sm:$0xff]
        %v289 = vld [vmem:[#allocation2 + $0x18] sm:$0xff]
        %v290 = vld [vmem:[#allocation2 + $0x20] sm:$0xff]
        %v291 = vld [vmem:[#allocation2 + $0x28] sm:$0xff]
        %v292 = vld [vmem:[%s263] sm:$0xff]
        %v293 = vld [vmem:[%s263 + $0x8] sm:$0xff]
        %v294 = vld [vmem:[%s218] sm:$0xff]
        %v295 = vld [vmem:[%s218 + $0x8] sm:$0xf]
        %v296 = vld [vmem:[%s218 + $0xc] sm:$0xff]
        %v297 = vld [vmem:[%s218 + $0x14] sm:$0xf]
        %v298 = vld [vmem:[%s218 + $0x18] sm:$0xff]
        %v299 = vld [vmem:[%s218 + $0x20] sm:$0xf]
        %v300 = vld [vmem:[%s218 + $0x24] sm:$0xff]
        %v301 = vld [vmem:[%s218 + $0x2c] sm:$0xf]
        %v302 = vld [vmem:[%s218 + $0x30] sm:$0xff]
        %v303 = vld [vmem:[%s218 + $0x38] sm:$0xf]
        %v304 = vld [vmem:[%s218 + $0x3c] sm:$0xff]
        %v305 = vld [vmem:[%s218 + $0x44] sm:$0xf]
        %v306 = vld [vmem:[%s218 + $0x48] sm:$0xff]
        %v307 = vld [vmem:[%s218 + $0x50] sm:$0xf]
        %v308 = vld [vmem:[%s218 + $0x54] sm:$0xff]
        %v309 = vld [vmem:[%s218 + $0x5c] sm:$0xf]
        %v310 = vld [vmem:[%s218 + $0x60] sm:$0xff]
        %v311 = vld [vmem:[%s218 + $0x68] sm:$0xf]
        %v312 = vld [vmem:[%s218 + $0x6c] sm:$0xff]
        %v313 = vld [vmem:[%s218 + $0x74] sm:$0xf]
        %v314 = vld [vmem:[%s218 + $0x78] sm:$0xff]
        %v315 = vld [vmem:[%s218 + $0x80] sm:$0xf]
        %v316 = vld [vmem:[%s218 + $0x84] sm:$0xff]
        %v317 = vld [vmem:[%s218 + $0x8c] sm:$0xf]
        %v318 = vld [vmem:[%s218 + $0x90] sm:$0xff]
        %v319 = vld [vmem:[%s218 + $0x98] sm:$0xf]
        %v320 = vld [vmem:[%s218 + $0x9c] sm:$0xff]
        %v321 = vld [vmem:[%s218 + $0xa4] sm:$0xf]
        %v322 = vld [vmem:[%s218 + $0xa8] sm:$0xff]
        %v323 = vld [vmem:[%s218 + $0xb0] sm:$0xf]
        %v324 = vld [vmem:[%s218 + $0xb4] sm:$0xff]
        %v325 = vld [vmem:[%s218 + $0xbc] sm:$0xf]
        %v326 = vld [vmem:[%s218 + $0xc0] sm:$0xff]
        %v327 = vld [vmem:[%s218 + $0xc8] sm:$0xf]
        %v328 = vld [vmem:[%s218 + $0xcc] sm:$0xff]
        %v329 = vld [vmem:[%s218 + $0xd4] sm:$0xf]
        %v330 = vld [vmem:[%s218 + $0xd8] sm:$0xff]
        %v331 = vld [vmem:[%s218 + $0xe0] sm:$0xf]
        %v332 = vld [vmem:[%s218 + $0xe4] sm:$0xff]
        %v333 = vld [vmem:[%s218 + $0xec] sm:$0xf]
        %v334 = vld [vmem:[%s218 + $0xf0] sm:$0xff]
        %v335 = vld [vmem:[%s218 + $0xf8] sm:$0xf]
        %v336 = vld [vmem:[%s218 + $0xfc] sm:$0xff]
        %v337 = vld [vmem:[%s218 + $0x104] sm:$0xf]
        %v338 = vld [vmem:[%s218 + $0x108] sm:$0xff]
        %v339 = vld [vmem:[%s218 + $0x110] sm:$0xf]
        %v340 = vld [vmem:[%s218 + $0x114] sm:$0xff]
        %v341 = vld [vmem:[%s218 + $0x11c] sm:$0xf]
        %v342 = vld [vmem:[%s218 + $0x120] sm:$0xff]
        %v343 = vld [vmem:[%s218 + $0x128] sm:$0xf]
        %v344 = vld [vmem:[%s218 + $0x12c] sm:$0xff]
        %v345 = vld [vmem:[%s218 + $0x134] sm:$0xf]
        %v346 = vld [vmem:[%s218 + $0x138] sm:$0xff]
        %v347 = vld [vmem:[%s218 + $0x140] sm:$0xf]
        %v348 = vld [vmem:[%s218 + $0x144] sm:$0xff]
        %v349 = vld [vmem:[%s218 + $0x14c] sm:$0xf]
        %v350 = vld [vmem:[%s218 + $0x150] sm:$0xff]
        %v351 = vld [vmem:[%s218 + $0x158] sm:$0xf]
        %v352 = vld [vmem:[%s218 + $0x15c] sm:$0xff]
        %v353 = vld [vmem:[%s218 + $0x164] sm:$0xf]
        %v354 = vld [vmem:[%s218 + $0x168] sm:$0xff]
        %v355 = vld [vmem:[%s218 + $0x170] sm:$0xf]
        %v356 = vld [vmem:[%s218 + $0x174] sm:$0xff]
        %v357 = vld [vmem:[%s218 + $0x17c] sm:$0xf]
        %v360 = vunpack.c.l.b16 %v292
        %v361 = vunpack.c.h.b16 %v292
        %v362 = vunpack.c.l.b16 %v293
        %v363 = vunpack.c.h.b16 %v293
        %v364 = vpack.c.b16 %v362, %v360
        %v365 = vpack.c.b16 %v363, %v361
        %v432 = vunpack.c.l.b16 %v294
        %v433 = vunpack.c.h.b16 %v294
        %v434 = vunpack.c.l.b16 %v295
        %v435 = vunpack.c.l.b16 %v296
        %v436 = vunpack.c.h.b16 %v296
        %v437 = vunpack.c.l.b16 %v297
        %v438 = vunpack.c.l.b16 %v298
        %v439 = vunpack.c.h.b16 %v298
        %v440 = vunpack.c.l.b16 %v299
        %v441 = vunpack.c.l.b16 %v300
        %v442 = vunpack.c.h.b16 %v300
        %v443 = vunpack.c.l.b16 %v301
        %v444 = vunpack.c.l.b16 %v302
        %v445 = vunpack.c.h.b16 %v302
        %v446 = vunpack.c.l.b16 %v303
        %v447 = vunpack.c.l.b16 %v304
        %v448 = vunpack.c.h.b16 %v304
        %v449 = vunpack.c.l.b16 %v305
        %v450 = vunpack.c.l.b16 %v306
        %v451 = vunpack.c.h.b16 %v306
        %v452 = vunpack.c.l.b16 %v307
        %v453 = vunpack.c.l.b16 %v308
        %v454 = vunpack.c.h.b16 %v308
        %v455 = vunpack.c.l.b16 %v309
        %v456 = vunpack.c.l.b16 %v310
        %v457 = vunpack.c.h.b16 %v310
        %v458 = vunpack.c.l.b16 %v311
        %v459 = vunpack.c.l.b16 %v312
        %v460 = vunpack.c.h.b16 %v312
        %v461 = vunpack.c.l.b16 %v313
        %v462 = vunpack.c.l.b16 %v314
        %v463 = vunpack.c.h.b16 %v314
        %v464 = vunpack.c.l.b16 %v315
        %v465 = vunpack.c.l.b16 %v316
        %v466 = vunpack.c.h.b16 %v316
        %v467 = vunpack.c.l.b16 %v317
        %v468 = vunpack.c.l.b16 %v318
        %v469 = vunpack.c.h.b16 %v318
        %v470 = vunpack.c.l.b16 %v319
        %v471 = vunpack.c.l.b16 %v320
        %v472 = vunpack.c.h.b16 %v320
        %v473 = vunpack.c.l.b16 %v321
        %v474 = vunpack.c.l.b16 %v322
        %v475 = vunpack.c.h.b16 %v322
        %v476 = vunpack.c.l.b16 %v323
        %v477 = vunpack.c.l.b16 %v324
        %v478 = vunpack.c.h.b16 %v324
        %v479 = vunpack.c.l.b16 %v325
        %v480 = vunpack.c.l.b16 %v326
        %v481 = vunpack.c.h.b16 %v326
        %v482 = vunpack.c.l.b16 %v327
        %v483 = vunpack.c.l.b16 %v328
        %v484 = vunpack.c.h.b16 %v328
        %v485 = vunpack.c.l.b16 %v329
        %v486 = vunpack.c.l.b16 %v330
        %v487 = vunpack.c.h.b16 %v330
        %v488 = vunpack.c.l.b16 %v331
        %v489 = vunpack.c.l.b16 %v332
        %v490 = vunpack.c.h.b16 %v332
        %v491 = vunpack.c.l.b16 %v333
        %v492 = vunpack.c.l.b16 %v334
        %v493 = vunpack.c.h.b16 %v334
        %v494 = vunpack.c.l.b16 %v335
        %v495 = vunpack.c.l.b16 %v336
        %v496 = vunpack.c.h.b16 %v336
        %v497 = vunpack.c.l.b16 %v337
        %v498 = vunpack.c.l.b16 %v338
        %v499 = vunpack.c.h.b16 %v338
        %v500 = vunpack.c.l.b16 %v339
        %v501 = vunpack.c.l.b16 %v340
        %v502 = vunpack.c.h.b16 %v340
        %v503 = vunpack.c.l.b16 %v341
        %v504 = vunpack.c.l.b16 %v342
        %v505 = vunpack.c.h.b16 %v342
        %v506 = vunpack.c.l.b16 %v343
        %v507 = vunpack.c.l.b16 %v344
        %v508 = vunpack.c.h.b16 %v344
        %v509 = vunpack.c.l.b16 %v345
        %v510 = vunpack.c.l.b16 %v346
        %v511 = vunpack.c.h.b16 %v346
        %v512 = vunpack.c.l.b16 %v347
        %v513 = vunpack.c.l.b16 %v348
        %v514 = vunpack.c.h.b16 %v348
        %v515 = vunpack.c.l.b16 %v349
        %v516 = vunpack.c.l.b16 %v350
        %v517 = vunpack.c.h.b16 %v350
        %v518 = vunpack.c.l.b16 %v351
        %v519 = vunpack.c.l.b16 %v352
        %v520 = vunpack.c.h.b16 %v352
        %v521 = vunpack.c.l.b16 %v353
        %v522 = vunpack.c.l.b16 %v354
        %v523 = vunpack.c.h.b16 %v354
        %v524 = vunpack.c.l.b16 %v355
        %v525 = vunpack.c.l.b16 %v356
        %v526 = vunpack.c.h.b16 %v356
        %v527 = vunpack.c.l.b16 %v357
        %v528 = vpack.c.b16 %v435, %v432
        %v529 = vpack.c.b16 %v436, %v433
        %v530 = vpack.c.b16 %v437, %v434
        %v531 = vpack.c.b16 %v441, %v438
        %v532 = vpack.c.b16 %v442, %v439
        %v533 = vpack.c.b16 %v443, %v440
        %v534 = vpack.c.b16 %v447, %v444
        %v535 = vpack.c.b16 %v448, %v445
        %v536 = vpack.c.b16 %v449, %v446
        %v537 = vpack.c.b16 %v453, %v450
        %v538 = vpack.c.b16 %v454, %v451
        %v539 = vpack.c.b16 %v455, %v452
        %v540 = vpack.c.b16 %v459, %v456
        %v541 = vpack.c.b16 %v460, %v457
        %v542 = vpack.c.b16 %v461, %v458
        %v543 = vpack.c.b16 %v465, %v462
        %v544 = vpack.c.b16 %v466, %v463
        %v545 = vpack.c.b16 %v467, %v464
        %v546 = vpack.c.b16 %v471, %v468
        %v547 = vpack.c.b16 %v472, %v469
        %v548 = vpack.c.b16 %v473, %v470
        %v549 = vpack.c.b16 %v477, %v474
        %v550 = vpack.c.b16 %v478, %v475
        %v551 = vpack.c.b16 %v479, %v476
        %v552 = vpack.c.b16 %v483, %v480
        %v553 = vpack.c.b16 %v484, %v481
        %v554 = vpack.c.b16 %v485, %v482
        %v555 = vpack.c.b16 %v489, %v486
        %v556 = vpack.c.b16 %v490, %v487
        %v557 = vpack.c.b16 %v491, %v488
        %v558 = vpack.c.b16 %v495, %v492
        %v559 = vpack.c.b16 %v496, %v493
        %v560 = vpack.c.b16 %v497, %v494
        %v561 = vpack.c.b16 %v501, %v498
        %v562 = vpack.c.b16 %v502, %v499
        %v563 = vpack.c.b16 %v503, %v500
        %v564 = vpack.c.b16 %v507, %v504
        %v565 = vpack.c.b16 %v508, %v505
        %v566 = vpack.c.b16 %v509, %v506
        %v567 = vpack.c.b16 %v513, %v510
        %v568 = vpack.c.b16 %v514, %v511
        %v569 = vpack.c.b16 %v515, %v512
        %v570 = vpack.c.b16 %v519, %v516
        %v571 = vpack.c.b16 %v520, %v517
        %v572 = vpack.c.b16 %v521, %v518
        %v573 = vpack.c.b16 %v525, %v522
        %v574 = vpack.c.b16 %v526, %v523
        %v575 = vpack.c.b16 %v527, %v524
        %624 = vmatprep.subr.bf16.mxu0 %v529
        %625 = vmatpush1.bf16.msra.mxu0 %v528
        %626 = vmatprep.subr.bf16.mxu0 %v532
        %627 = vmatpush1.bf16.msra.mxu0 %v531
        %628 = vmatprep.subr.bf16.mxu0 %v535
        %629 = vmatpush1.bf16.msra.mxu0 %v534
        %630 = vmatprep.subr.bf16.mxu0 %v538
        %631 = vmatpush1.bf16.msra.mxu0 %v537
        %632 = vmatprep.subr.bf16.mxu0 %v541
        %633 = vmatpush1.bf16.msra.mxu0 %v540
        %634 = vmatprep.subr.bf16.mxu0 %v544
        %635 = vmatpush1.bf16.msra.mxu0 %v543
        %636 = vmatprep.subr.bf16.mxu0 %v547
        %637 = vmatpush1.bf16.msra.mxu0 %v546
        %638 = vmatprep.subr.bf16.mxu0 %v550
        %639 = vmatpush1.bf16.msra.mxu0 %v549
        %640 = vmatprep.subr.bf16.mxu0 %v553
        %641 = vmatpush1.bf16.msra.mxu0 %v552
        %642 = vmatprep.subr.bf16.mxu0 %v556
        %643 = vmatpush1.bf16.msra.mxu0 %v555
        %644 = vmatprep.subr.bf16.mxu0 %v559
        %645 = vmatpush1.bf16.msra.mxu0 %v558
        %646 = vmatprep.subr.bf16.mxu0 %v562
        %647 = vmatpush1.bf16.msra.mxu0 %v561
        %648 = vmatprep.subr.bf16.mxu0 %v565
        %649 = vmatpush1.bf16.msra.mxu0 %v564
        %650 = vmatprep.subr.bf16.mxu0 %v568
        %651 = vmatpush1.bf16.msra.mxu0 %v567
        %652 = vmatprep.subr.bf16.mxu0 %v571
        %653 = vmatpush1.bf16.msra.mxu0 %v570
        %654 = vmatprep.subr.bf16.mxu0 %v574
        %655 = vmatpush1.bf16.msra.mxu0 %v573
        %656 = vmatprep.mubr.bf16.mxu0 %v365
        %657 = vmatmul.mubr.bf16.gmra.mrb[0].mxu0 %v364
        %v658 = vpop.f32.mrb[0].mxu0
        %v659 = vadd.f32 0.0, %v658
        %v660 = vpop.f32.mrb[0].mxu0
        %v661 = vadd.f32 0.0, %v660
        %v662 = vpop.f32.mrb[0].mxu0
        %v663 = vadd.f32 0.0, %v662
        %v664 = vpop.f32.mrb[0].mxu0
        %v665 = vadd.f32 0.0, %v664
        %666 = vdwg.mxu0
        %667 = vmatprep.subr.bf16.mxu0 0
        %668 = vmatpush1.bf16.msra.mxu0 %v530
        %669 = vmatprep.subr.bf16.mxu0 0
        %670 = vmatpush1.bf16.msra.mxu0 %v533
        %671 = vmatprep.subr.bf16.mxu0 0
        %672 = vmatpush1.bf16.msra.mxu0 %v536
        %673 = vmatprep.subr.bf16.mxu0 0
        %674 = vmatpush1.bf16.msra.mxu0 %v539
        %675 = vmatprep.subr.bf16.mxu0 0
        %676 = vmatpush1.bf16.msra.mxu0 %v542
        %677 = vmatprep.subr.bf16.mxu0 0
        %678 = vmatpush1.bf16.msra.mxu0 %v545
        %679 = vmatprep.subr.bf16.mxu0 0
        %680 = vmatpush1.bf16.msra.mxu0 %v548
        %681 = vmatprep.subr.bf16.mxu0 0
        %682 = vmatpush1.bf16.msra.mxu0 %v551
        %683 = vmatprep.subr.bf16.mxu0 0
        %684 = vmatpush1.bf16.msra.mxu0 %v554
        %685 = vmatprep.subr.bf16.mxu0 0
        %686 = vmatpush1.bf16.msra.mxu0 %v557
        %687 = vmatprep.subr.bf16.mxu0 0
        %688 = vmatpush1.bf16.msra.mxu0 %v560
        %689 = vmatprep.subr.bf16.mxu0 0
        %690 = vmatpush1.bf16.msra.mxu0 %v563
        %691 = vmatprep.subr.bf16.mxu0 0
        %692 = vmatpush1.bf16.msra.mxu0 %v566
        %693 = vmatprep.subr.bf16.mxu0 0
        %694 = vmatpush1.bf16.msra.mxu0 %v569
        %695 = vmatprep.subr.bf16.mxu0 0
        %696 = vmatpush1.bf16.msra.mxu0 %v572
        %697 = vmatprep.subr.bf16.mxu0 0
        %698 = vmatpush1.bf16.msra.mxu0 %v575
        %699 = vmatprep.mubr.bf16.mxu0 %v365
        %700 = vmatmul.mubr.bf16.gmra.mrb[0].mxu0 %v364
        %v701 = vpop.f32.mrb[0].mxu0
        %v702 = vadd.f32 0.0, %v701
        %v703 = vpop.f32.mrb[0].mxu0
        %v704 = vpop.f32.mrb[0].mxu0
        %v705 = vadd.f32 0.0, %v704
        %v706 = vpop.f32.mrb[0].mxu0
        %707 = vdwg.mxu0
        %v708 = vadd.f32 %v286, %v659
        %v709 = vadd.f32 %v287, %v661
        %v710 = vadd.f32 %v288, %v702
        %v711 = vadd.f32 %v289, %v663
        %v712 = vadd.f32 %v290, %v665
        %v713 = vadd.f32 %v291, %v705
        %714 = vst [vmem:[#allocation2] sm:$0xff] %v708
        %715 = vst [vmem:[#allocation2 + $0x8] sm:$0xff] %v709
        %716 = vst [vmem:[#allocation2 + $0x10] sm:$0xff] %v710
        %717 = vst [vmem:[#allocation2 + $0x18] sm:$0xff] %v711
        %718 = vst [vmem:[#allocation2 + $0x20] sm:$0xff] %v712
        %719 = vst [vmem:[#allocation2 + $0x28] sm:$0xff] %v713
        // Predicated region
        $region41: #{decoder_forward.19} parent=31 // pred_check
          %p720 = pneg %p276
        $region42: #{decoder_forward.19} parent=31 // pred_check_branch
          %722 = sbr.rel (%p720) target = $region44
        $region43: #{decoder_forward.19} parent=31 // pred_region
          %v723 = vld [vmem:[#allocation2] sm:$0xff]
          %v724 = vld [vmem:[#allocation2 + $0x8] sm:$0xff]
          %v725 = vld [vmem:[#allocation2 + $0x10] sm:$0xff]
          %v726 = vld [vmem:[#allocation2 + $0x18] sm:$0xff]
          %v727 = vld [vmem:[#allocation2 + $0x20] sm:$0xff]
          %v728 = vld [vmem:[#allocation2 + $0x28] sm:$0xff]
          %v729 = vld [vmem:[%s271] sm:$0x7]
          %v730 = vunpack.c.l.bf16 %v729
          %v732 = vlaneseq
          %v733 = vshrl.u32 %v732, 7
          %v734 = vsub.s32 0, %v733
          %v735 = vrot.slane %v730, %v734
          %v736 = vlaneseq
          %v737 = vshrl.u32 %v736, 7
          %v738 = vsub.s32 2, %v737
          %v739 = vrot.slane %v730, %v738
          %v740 = vlaneseq
          %v741 = vshrl.u32 %v740, 7
          %v742 = vsub.s32 4, %v741
          %v743 = vrot.slane %v730, %v742
          %v747 = vlaneseq
          %v748 = vshrl.u32 %v747, 7
          %v749 = vsub.s32 0, %v748
          %v750 = vrot.slane %v735, %v749
          %v751 = vlaneseq
          %v752 = vshrl.u32 %v751, 7
          %v753 = vsub.s32 0, %v752
          %v754 = vrot.slane %v739, %v753
          %v755 = vlaneseq
          %v756 = vshrl.u32 %v755, 7
          %v757 = vsub.s32 0, %v756
          %v758 = vrot.slane %v743, %v757
          %v759 = vadd.f32 %v723, %v750
          %v760 = vadd.f32 %v724, %v754
          %v761 = vadd.f32 %v725, %v758
          %v762 = vadd.f32 %v726, %v750
          %v763 = vadd.f32 %v727, %v754
          %v764 = vadd.f32 %v728, %v758
          %v765 = vpack.c.bf16 %v762, %v759
          %v766 = vpack.c.bf16 %v763, %v760
          %v767 = vpack.c.bf16 %v764, %v761
          %v771 = vunpack.c.l.b16 %v765
          %v772 = vunpack.c.l.b16 %v766
          %v773 = vunpack.c.l.b16 %v767
          %v774 = vunpack.c.h.b16 %v765
          %v775 = vunpack.c.h.b16 %v766
          %v776 = vunpack.c.h.b16 %v767
          %v777 = vpack.c.b16 %v772, %v771
          %v778 = vpack.c.b16 %v773, %v773
          %v779 = vpack.c.b16 %v775, %v774
          %v780 = vpack.c.b16 %v776, %v776
          %785 = vst [vmem:[%s253] sm:$0xff] %v777
          %786 = vst [vmem:[%s253 + $0x8] sm:$0xf] %v778
          %787 = vst [vmem:[%s253 + $0xc] sm:$0xff] %v779
          %788 = vst [vmem:[%s253 + $0x14] sm:$0xf] %v780
        $region44: #{decoder_forward.19} parent=31 // pred_fallthru
          _
        %s789 = sand.u32 %s128, 1
        %s790 = sand.u32 %s128, 1
        %s791 = smul.addr %s790, 24
        %s792 = scalar_lea.vmem [#allocation5], %s791
        // Predicated region
        $region45: #{decoder_forward.19} parent=31 // pred_check
          %p793 = pneg %p138
        $region46: #{decoder_forward.19} parent=31 // pred_check_branch
          %795 = sbr.rel (%p793) target = $region48
        $region47: #{decoder_forward.19} parent=31 // pred_region
          %s796 = smul.u32 2, %s22
          %s797 = smul.u32 3, %s23
          %s798 = smul.addr %s796, 6
          %s799 = sadd.s32 %s797, %s798
          %s800 = smul.addr %s799, 4
          %s801 = scalar_lea.vmem %s3, %s800
          // Predicated region
          $region49: #{decoder_forward.19} parent=47 // pred_check
            _
          $region50: #{decoder_forward.19} parent=47 // pred_check_branch
            %803 = sbr.rel (0) target = $region52
          $region51: #{decoder_forward.19} parent=47 // pred_region
            // Predicated region
            $region53: #{decoder_forward.19} parent=51 // pred_check
              _
            $region54: #{decoder_forward.19} parent=51 // pred_check_branch
              %805 = sbr.rel (0) target = $region56
            $region55: #{decoder_forward.19} parent=51 // pred_region
              %s806 = scalar_lea.vmem %s792, 8 [#allocation5]
              %s807 = scalar_lea.vmem %s801, 8
              loop: start=0, step=1, limit=1
              $region57: #{decoder_forward.19} parent=55 // loop_pre_header
                _
              $region58: #{decoder_forward.19} parent=55 // loop_header
                %s809 = sphi 0, %s813
                %p810 = scmp.ge.s32.totalorder %s809, 1
                %s814 = sphi %s792, %s792
                %s815 = sphi %s801, %s801
              $region59: #{decoder_forward.19} parent=55 // loop_header_branch
                %812 = sbr.rel (%p810) target = $region63
              $region60: #{decoder_forward.19} parent=55 // loop_body
                %v816 = vld [vmem:[%s814] sm:$0xff]
                %817 = vst [vmem:[%s815] sm:$0xff] %v816
                %v818 = vld [vmem:[%s814 + $0xc] sm:$0xff]
                %819 = vst [vmem:[%s815 + $0x18] sm:$0xff] %v818
              $region61: #{decoder_forward.19} parent=55 // loop_footer
                %s813 = sadd.s32 1, %s809
              $region62: #{decoder_forward.19} parent=55 // loop_footer_branch
                %808 = sbr.rel target = $region58
              $region63: #{decoder_forward.19} parent=55 // loop_exit
                _
              loop: start=0, step=1, limit=1
              $region64: #{decoder_forward.19} parent=55 // loop_pre_header
                _
              $region65: #{decoder_forward.19} parent=55 // loop_header
                %s822 = sphi 0, %s826
                %p823 = scmp.ge.s32.totalorder %s822, 1
                %s827 = sphi %s806, %s806
                %s828 = sphi %s807, %s807
              $region66: #{decoder_forward.19} parent=55 // loop_header_branch
                %825 = sbr.rel (%p823) target = $region70
              $region67: #{decoder_forward.19} parent=55 // loop_body
                %v829 = vld [vmem:[%s827] sm:$0xf]
                %830 = vst [vmem:[%s828] sm:$0xf] %v829
                %v831 = vld [vmem:[%s827 + $0xc] sm:$0xf]
                %832 = vst [vmem:[%s828 + $0x18] sm:$0xf] %v831
              $region68: #{decoder_forward.19} parent=55 // loop_footer
                %s826 = sadd.s32 1, %s822
              $region69: #{decoder_forward.19} parent=55 // loop_footer_branch
                %821 = sbr.rel target = $region65
              $region70: #{decoder_forward.19} parent=55 // loop_exit
                _
            $region56: #{decoder_forward.19} parent=51 // pred_fallthru
              _
          $region52: #{decoder_forward.19} parent=47 // pred_fallthru
            _
          %833 = vnop
        $region48: #{decoder_forward.19} parent=31 // pred_fallthru
          _
      $region32: #{decoder_forward.19} parent=5 // pred_fallthru
        _
      %p834 = scmp.le.s32.totalorder 2, %s12
      // Predicated region
      $region71: #{decoder_forward.19} parent=5 // pred_check
        %p835 = pneg %p834
      $region72: #{decoder_forward.19} parent=5 // pred_check_branch
        %837 = sbr.rel (%p835) target = $region74
      $region73: #{decoder_forward.19} parent=5 // pred_region
        %s838 = ssub.s32 %s12, 2
        // Predicated region
        $region75: #{decoder_forward.19} parent=73 // pred_check
          %p839 = pneg %p144
        $region76: #{decoder_forward.19} parent=73 // pred_check_branch
          %841 = sbr.rel (%p839) target = $region78
        $region77: #{decoder_forward.19} parent=73 // pred_region
          %s842 = sand.u32 %s129, 1
          %s843 = sand.u32 %s129, 1
          %s844 = smul.addr %s843, 24
          %s845 = scalar_lea.vmem [#allocation5], %s844
        $region78: #{decoder_forward.19} parent=73 // pred_fallthru
          _
      $region74: #{decoder_forward.19} parent=5 // pred_fallthru
        _
    $region6: #{decoder_forward.19} parent=1 // loop_footer
      %s16 = sadd.s32 1, %s12
    $region7: #{decoder_forward.19} parent=1 // loop_footer_branch
      %11 = sbr.rel target = $region3
    $region8: #{decoder_forward.19} parent=1 // loop_exit
      _
    %846 = vsyncpa [#allocation4], 1
    %s847 = scalar_lea.sflag [#allocation4], 1
    %848 = vsyncpa %s847, 1

// kernel: decoder_forward.22
$region0: #{decoder_forward.22}
  #allocation0 [shape = 'u32[]', space=smem, size = 0x4, offset = 0x4, fixed_abs, tag = 'smem constant byte address 0x4 - core index']
  #allocation1 [shape = 'u32[144,128]{1,0:T(1,128)}', space=vmem, size = 0x12000, scoped, tag = 'internal scratch']
  #allocation2 [shape = 'f32[16,256]{1,0:T(8,128)}', space=vmem, size = 0x4000, scoped, tag = 'scratch operand']
  %s0 = inlined_call_operand.vmem [shape: bf16[16,256], index: 0, kind: input, shape index: {}]
  %s1 = inlined_call_operand.vmem [shape: bf16[256,256], index: 1, kind: input, shape index: {}]
  %s2 = inlined_call_operand.vmem [shape: bf16[1,256], index: 2, kind: input, shape index: {}]
  %s3 = inlined_call_operand.vmem [shape: bf16[16,256], index: 3, kind: output, shape index: {}]
  %s4 = sld [smem:[#allocation0]]
  $region30: #{decoder_forward.22} parent=0
    _
  %s6 = ssub.s32 1, %s4
  %s7 = scalar_select 0, %s6, %s4
  // Predicated region
  $region2: #{decoder_forward.22} parent=0 // pred_check
    _
  $region3: #{decoder_forward.22} parent=0 // pred_check_branch
    %9 = sbr.rel (0) target = $region5
  $region4: #{decoder_forward.22} parent=0 // pred_region
    _
  $region5: #{decoder_forward.22} parent=0 // pred_fallthru
    _
  // Predicated region
  $region6: #{decoder_forward.22} parent=0 // pred_check
    _
  $region7: #{decoder_forward.22} parent=0 // pred_check_branch
    %11 = sbr.rel (0) target = $region9
  $region8: #{decoder_forward.22} parent=0 // pred_region
    _
  $region9: #{decoder_forward.22} parent=0 // pred_fallthru
    _
  // Predicated region
  $region10: #{decoder_forward.22} parent=0 // pred_check
    _
  $region11: #{decoder_forward.22} parent=0 // pred_check_branch
    %13 = sbr.rel (0) target = $region13
  $region12: #{decoder_forward.22} parent=0 // pred_region
    _
  $region13: #{decoder_forward.22} parent=0 // pred_fallthru
    _
  %p14 = scmp.eq.s32.totalorder 0, 0
  // Predicated region
  $region14: #{decoder_forward.22} parent=0 // pred_check
    %p15 = pneg %p14
  $region15: #{decoder_forward.22} parent=0 // pred_check_branch
    %17 = sbr.rel (%p15) target = $region17
  $region16: #{decoder_forward.22} parent=0 // pred_region
    %18 = vst [vmem:[#allocation2] sm:$0xff] 0.0
    %19 = vst [vmem:[#allocation2 + $0x8] sm:$0xff] 0.0
    %20 = vst [vmem:[#allocation2 + $0x10] sm:$0xff] 0.0
    %21 = vst [vmem:[#allocation2 + $0x18] sm:$0xff] 0.0
  $region17: #{decoder_forward.22} parent=0 // pred_fallthru
    _
  %v22 = vld [vmem:[#allocation2] sm:$0xff]
  %v23 = vld [vmem:[#allocation2 + $0x8] sm:$0xff]
  %v24 = vld [vmem:[#allocation2 + $0x10] sm:$0xff]
  %v25 = vld [vmem:[#allocation2 + $0x18] sm:$0xff]
  %v26 = vld [vmem:[%s0] sm:$0xff]
  %v27 = vld [vmem:[%s0 + $0x8] sm:$0xff]
  %v28 = vld [vmem:[%s1] sm:$0xff]
  %v29 = vld [vmem:[%s1 + $0x8] sm:$0xff]
  %v30 = vld [vmem:[%s1 + $0x10] sm:$0xff]
  %v31 = vld [vmem:[%s1 + $0x18] sm:$0xff]
  %v32 = vld [vmem:[%s1 + $0x20] sm:$0xff]
  %v33 = vld [vmem:[%s1 + $0x28] sm:$0xff]
  %v34 = vld [vmem:[%s1 + $0x30] sm:$0xff]
  %v35 = vld [vmem:[%s1 + $0x38] sm:$0xff]
  %v36 = vld [vmem:[%s1 + $0x40] sm:$0xff]
  %v37 = vld [vmem:[%s1 + $0x48] sm:$0xff]
  %v38 = vld [vmem:[%s1 + $0x50] sm:$0xff]
  %v39 = vld [vmem:[%s1 + $0x58] sm:$0xff]
  %v40 = vld [vmem:[%s1 + $0x60] sm:$0xff]
  %v41 = vld [vmem:[%s1 + $0x68] sm:$0xff]
  %v42 = vld [vmem:[%s1 + $0x70] sm:$0xff]
  %v43 = vld [vmem:[%s1 + $0x78] sm:$0xff]
  %v44 = vld [vmem:[%s1 + $0x80] sm:$0xff]
  %v45 = vld [vmem:[%s1 + $0x88] sm:$0xff]
  %v46 = vld [vmem:[%s1 + $0x90] sm:$0xff]
  %v47 = vld [vmem:[%s1 + $0x98] sm:$0xff]
  %v48 = vld [vmem:[%s1 + $0xa0] sm:$0xff]
  %v49 = vld [vmem:[%s1 + $0xa8] sm:$0xff]
  %v50 = vld [vmem:[%s1 + $0xb0] sm:$0xff]
  %v51 = vld [vmem:[%s1 + $0xb8] sm:$0xff]
  %v52 = vld [vmem:[%s1 + $0xc0] sm:$0xff]
  %v53 = vld [vmem:[%s1 + $0xc8] sm:$0xff]
  %v54 = vld [vmem:[%s1 + $0xd0] sm:$0xff]
  %v55 = vld [vmem:[%s1 + $0xd8] sm:$0xff]
  %v56 = vld [vmem:[%s1 + $0xe0] sm:$0xff]
  %v57 = vld [vmem:[%s1 + $0xe8] sm:$0xff]
  %v58 = vld [vmem:[%s1 + $0xf0] sm:$0xff]
  %v59 = vld [vmem:[%s1 + $0xf8] sm:$0xff]
  %v62 = vunpack.c.l.b16 %v26
  %v63 = vunpack.c.h.b16 %v26
  %v64 = vunpack.c.l.b16 %v27
  %v65 = vunpack.c.h.b16 %v27
  %v66 = vpack.c.b16 %v64, %v62
  %v67 = vpack.c.b16 %v65, %v63
  %v102 = vunpack.c.l.b16 %v28
  %v103 = vunpack.c.h.b16 %v28
  %v104 = vunpack.c.l.b16 %v29
  %v105 = vunpack.c.h.b16 %v29
  %v106 = vunpack.c.l.b16 %v30
  %v107 = vunpack.c.h.b16 %v30
  %v108 = vunpack.c.l.b16 %v31
  %v109 = vunpack.c.h.b16 %v31
  %v110 = vunpack.c.l.b16 %v32
  %v111 = vunpack.c.h.b16 %v32
  %v112 = vunpack.c.l.b16 %v33
  %v113 = vunpack.c.h.b16 %v33
  %v114 = vunpack.c.l.b16 %v34
  %v115 = vunpack.c.h.b16 %v34
  %v116 = vunpack.c.l.b16 %v35
  %v117 = vunpack.c.h.b16 %v35
  %v118 = vunpack.c.l.b16 %v36
  %v119 = vunpack.c.h.b16 %v36
  %v120 = vunpack.c.l.b16 %v37
  %v121 = vunpack.c.h.b16 %v37
  %v122 = vunpack.c.l.b16 %v38
  %v123 = vunpack.c.h.b16 %v38
  %v124 = vunpack.c.l.b16 %v39
  %v125 = vunpack.c.h.b16 %v39
  %v126 = vunpack.c.l.b16 %v40
  %v127 = vunpack.c.h.b16 %v40
  %v128 = vunpack.c.l.b16 %v41
  %v129 = vunpack.c.h.b16 %v41
  %v130 = vunpack.c.l.b16 %v42
  %v131 = vunpack.c.h.b16 %v42
  %v132 = vunpack.c.l.b16 %v43
  %v133 = vunpack.c.h.b16 %v43
  %v134 = vunpack.c.l.b16 %v44
  %v135 = vunpack.c.h.b16 %v44
  %v136 = vunpack.c.l.b16 %v45
  %v137 = vunpack.c.h.b16 %v45
  %v138 = vunpack.c.l.b16 %v46
  %v139 = vunpack.c.h.b16 %v46
  %v140 = vunpack.c.l.b16 %v47
  %v141 = vunpack.c.h.b16 %v47
  %v142 = vunpack.c.l.b16 %v48
  %v143 = vunpack.c.h.b16 %v48
  %v144 = vunpack.c.l.b16 %v49
  %v145 = vunpack.c.h.b16 %v49
  %v146 = vunpack.c.l.b16 %v50
  %v147 = vunpack.c.h.b16 %v50
  %v148 = vunpack.c.l.b16 %v51
  %v149 = vunpack.c.h.b16 %v51
  %v150 = vunpack.c.l.b16 %v52
  %v151 = vunpack.c.h.b16 %v52
  %v152 = vunpack.c.l.b16 %v53
  %v153 = vunpack.c.h.b16 %v53
  %v154 = vunpack.c.l.b16 %v54
  %v155 = vunpack.c.h.b16 %v54
  %v156 = vunpack.c.l.b16 %v55
  %v157 = vunpack.c.h.b16 %v55
  %v158 = vunpack.c.l.b16 %v56
  %v159 = vunpack.c.h.b16 %v56
  %v160 = vunpack.c.l.b16 %v57
  %v161 = vunpack.c.h.b16 %v57
  %v162 = vunpack.c.l.b16 %v58
  %v163 = vunpack.c.h.b16 %v58
  %v164 = vunpack.c.l.b16 %v59
  %v165 = vunpack.c.h.b16 %v59
  %v166 = vpack.c.b16 %v104, %v102
  %v167 = vpack.c.b16 %v105, %v103
  %v168 = vpack.c.b16 %v108, %v106
  %v169 = vpack.c.b16 %v109, %v107
  %v170 = vpack.c.b16 %v112, %v110
  %v171 = vpack.c.b16 %v113, %v111
  %v172 = vpack.c.b16 %v116, %v114
  %v173 = vpack.c.b16 %v117, %v115
  %v174 = vpack.c.b16 %v120, %v118
  %v175 = vpack.c.b16 %v121, %v119
  %v176 = vpack.c.b16 %v124, %v122
  %v177 = vpack.c.b16 %v125, %v123
  %v178 = vpack.c.b16 %v128, %v126
  %v179 = vpack.c.b16 %v129, %v127
  %v180 = vpack.c.b16 %v132, %v130
  %v181 = vpack.c.b16 %v133, %v131
  %v182 = vpack.c.b16 %v136, %v134
  %v183 = vpack.c.b16 %v137, %v135
  %v184 = vpack.c.b16 %v140, %v138
  %v185 = vpack.c.b16 %v141, %v139
  %v186 = vpack.c.b16 %v144, %v142
  %v187 = vpack.c.b16 %v145, %v143
  %v188 = vpack.c.b16 %v148, %v146
  %v189 = vpack.c.b16 %v149, %v147
  %v190 = vpack.c.b16 %v152, %v150
  %v191 = vpack.c.b16 %v153, %v151
  %v192 = vpack.c.b16 %v156, %v154
  %v193 = vpack.c.b16 %v157, %v155
  %v194 = vpack.c.b16 %v160, %v158
  %v195 = vpack.c.b16 %v161, %v159
  %v196 = vpack.c.b16 %v164, %v162
  %v197 = vpack.c.b16 %v165, %v163
  %230 = vmatprep.subr.bf16.mxu0 %v167
  %231 = vmatpush1.bf16.msra.mxu0 %v166
  %232 = vmatprep.subr.bf16.mxu0 %v169
  %233 = vmatpush1.bf16.msra.mxu0 %v168
  %234 = vmatprep.subr.bf16.mxu0 %v171
  %235 = vmatpush1.bf16.msra.mxu0 %v170
  %236 = vmatprep.subr.bf16.mxu0 %v173
  %237 = vmatpush1.bf16.msra.mxu0 %v172
  %238 = vmatprep.subr.bf16.mxu0 %v175
  %239 = vmatpush1.bf16.msra.mxu0 %v174
  %240 = vmatprep.subr.bf16.mxu0 %v177
  %241 = vmatpush1.bf16.msra.mxu0 %v176
  %242 = vmatprep.subr.bf16.mxu0 %v179
  %243 = vmatpush1.bf16.msra.mxu0 %v178
  %244 = vmatprep.subr.bf16.mxu0 %v181
  %245 = vmatpush1.bf16.msra.mxu0 %v180
  %246 = vmatprep.subr.bf16.mxu0 %v183
  %247 = vmatpush1.bf16.msra.mxu0 %v182
  %248 = vmatprep.subr.bf16.mxu0 %v185
  %249 = vmatpush1.bf16.msra.mxu0 %v184
  %250 = vmatprep.subr.bf16.mxu0 %v187
  %251 = vmatpush1.bf16.msra.mxu0 %v186
  %252 = vmatprep.subr.bf16.mxu0 %v189
  %253 = vmatpush1.bf16.msra.mxu0 %v188
  %254 = vmatprep.subr.bf16.mxu0 %v191
  %255 = vmatpush1.bf16.msra.mxu0 %v190
  %256 = vmatprep.subr.bf16.mxu0 %v193
  %257 = vmatpush1.bf16.msra.mxu0 %v192
  %258 = vmatprep.subr.bf16.mxu0 %v195
  %259 = vmatpush1.bf16.msra.mxu0 %v194
  %260 = vmatprep.subr.bf16.mxu0 %v197
  %261 = vmatpush1.bf16.msra.mxu0 %v196
  %262 = vmatprep.mubr.bf16.mxu0 %v67
  %263 = vmatmul.mubr.bf16.gmra.mrb[0].mxu0 %v66
  %v264 = vpop.f32.mrb[0].mxu0
  %v265 = vadd.f32 0.0, %v264
  %v266 = vpop.f32.mrb[0].mxu0
  %v267 = vadd.f32 0.0, %v266
  %v268 = vpop.f32.mrb[0].mxu0
  %v269 = vadd.f32 0.0, %v268
  %v270 = vpop.f32.mrb[0].mxu0
  %v271 = vadd.f32 0.0, %v270
  %272 = vdwg.mxu0
  %v273 = vadd.f32 %v22, %v265
  %v274 = vadd.f32 %v23, %v267
  %v275 = vadd.f32 %v24, %v269
  %v276 = vadd.f32 %v25, %v271
  %277 = vst [vmem:[#allocation2] sm:$0xff] %v273
  %278 = vst [vmem:[#allocation2 + $0x8] sm:$0xff] %v274
  %279 = vst [vmem:[#allocation2 + $0x10] sm:$0xff] %v275
  %280 = vst [vmem:[#allocation2 + $0x18] sm:$0xff] %v276
  // Predicated region
  $region18: #{decoder_forward.22} parent=0 // pred_check
    %p281 = pneg %p14
  $region19: #{decoder_forward.22} parent=0 // pred_check_branch
    %283 = sbr.rel (%p281) target = $region21
  $region20: #{decoder_forward.22} parent=0 // pred_region
    %v284 = vld [vmem:[#allocation2] sm:$0xff]
    %v285 = vld [vmem:[#allocation2 + $0x8] sm:$0xff]
    %v286 = vld [vmem:[#allocation2 + $0x10] sm:$0xff]
    %v287 = vld [vmem:[#allocation2 + $0x18] sm:$0xff]
    %v288 = vld [vmem:[%s2] sm:$0x3]
    %v289 = vunpack.c.l.bf16 %v288
    %v291 = vlaneseq
    %v292 = vshrl.u32 %v291, 7
    %v293 = vsub.s32 0, %v292
    %v294 = vrot.slane %v289, %v293
    %v295 = vlaneseq
    %v296 = vshrl.u32 %v295, 7
    %v297 = vsub.s32 2, %v296
    %v298 = vrot.slane %v289, %v297
    %v301 = vlaneseq
    %v302 = vshrl.u32 %v301, 7
    %v303 = vsub.s32 0, %v302
    %v304 = vrot.slane %v294, %v303
    %v305 = vlaneseq
    %v306 = vshrl.u32 %v305, 7
    %v307 = vsub.s32 0, %v306
    %v308 = vrot.slane %v298, %v307
    %v309 = vadd.f32 %v284, %v304
    %v310 = vadd.f32 %v285, %v308
    %v311 = vadd.f32 %v286, %v304
    %v312 = vadd.f32 %v287, %v308
    %v313 = vpack.c.bf16 %v311, %v309
    %v314 = vpack.c.bf16 %v312, %v310
    %v317 = vunpack.c.l.b16 %v313
    %v318 = vunpack.c.l.b16 %v314
    %v319 = vunpack.c.h.b16 %v313
    %v320 = vunpack.c.h.b16 %v314
    %v321 = vpack.c.b16 %v318, %v317
    %v322 = vpack.c.b16 %v320, %v319
    %325 = vst [vmem:[%s3] sm:$0xff] %v321
    %326 = vst [vmem:[%s3 + $0x8] sm:$0xff] %v322
  $region21: #{decoder_forward.22} parent=0 // pred_fallthru
    _
  // Predicated region
  $region22: #{decoder_forward.22} parent=0 // pred_check
    _
  $region23: #{decoder_forward.22} parent=0 // pred_check_branch
    %328 = sbr.rel (0) target = $region25
  $region24: #{decoder_forward.22} parent=0 // pred_region
    _
  $region25: #{decoder_forward.22} parent=0 // pred_fallthru
    _
  // Predicated region
  $region26: #{decoder_forward.22} parent=0 // pred_check
    _
  $region27: #{decoder_forward.22} parent=0 // pred_check_branch
    %330 = sbr.rel (0) target = $region29
  $region28: #{decoder_forward.22} parent=0 // pred_region
    _
  $region29: #{decoder_forward.22} parent=0 // pred_fallthru
    _

// kernel: decoder_forward.21
$region0: #{decoder_forward.21}
  #allocation0 [shape = 'u32[]', space=smem, size = 0x4, offset = 0x4, fixed_abs, tag = 'smem constant byte address 0x4 - core index']
  #allocation1 [shape = 'u32[144,128]{1,0:T(1,128)}', space=vmem, size = 0x12000, scoped, tag = 'internal scratch']
  #allocation2 [shape = 'f32[16,256]{1,0:T(8,128)}', space=vmem, size = 0x4000, scoped, tag = 'scratch operand']
  %s0 = inlined_call_operand.vmem [shape: bf16[16,256], index: 0, kind: input, shape index: {}]
  %s1 = inlined_call_operand.vmem [shape: bf16[256,256], index: 1, kind: input, shape index: {}]
  %s2 = inlined_call_operand.vmem [shape: bf16[1,256], index: 2, kind: input, shape index: {}]
  %s3 = inlined_call_operand.vmem [shape: bf16[16,256], index: 3, kind: input, shape index: {}]
  %s4 = inlined_call_operand.vmem [shape: bf16[1,256], index: 4, kind: input, shape index: {}]
  %s5 = inlined_call_operand.vmem [shape: bf16[1,256], index: 5, kind: input, shape index: {}]
  %s6 = inlined_call_operand.vmem [shape: bf16[16,256], index: 6, kind: output, shape index: {}]
  %s7 = sld [smem:[#allocation0]]
  $region42: #{decoder_forward.21} parent=0
    _
  %s9 = ssub.s32 1, %s7
  %s10 = scalar_select 0, %s9, %s7
  // Predicated region
  $region2: #{decoder_forward.21} parent=0 // pred_check
    _
  $region3: #{decoder_forward.21} parent=0 // pred_check_branch
    %12 = sbr.rel (0) target = $region5
  $region4: #{decoder_forward.21} parent=0 // pred_region
    _
  $region5: #{decoder_forward.21} parent=0 // pred_fallthru
    _
  // Predicated region
  $region6: #{decoder_forward.21} parent=0 // pred_check
    _
  $region7: #{decoder_forward.21} parent=0 // pred_check_branch
    %14 = sbr.rel (0) target = $region9
  $region8: #{decoder_forward.21} parent=0 // pred_region
    _
  $region9: #{decoder_forward.21} parent=0 // pred_fallthru
    _
  // Predicated region
  $region10: #{decoder_forward.21} parent=0 // pred_check
    _
  $region11: #{decoder_forward.21} parent=0 // pred_check_branch
    %16 = sbr.rel (0) target = $region13
  $region12: #{decoder_forward.21} parent=0 // pred_region
    _
  $region13: #{decoder_forward.21} parent=0 // pred_fallthru
    _
  // Predicated region
  $region14: #{decoder_forward.21} parent=0 // pred_check
    _
  $region15: #{decoder_forward.21} parent=0 // pred_check_branch
    %18 = sbr.rel (0) target = $region17
  $region16: #{decoder_forward.21} parent=0 // pred_region
    _
  $region17: #{decoder_forward.21} parent=0 // pred_fallthru
    _
  // Predicated region
  $region18: #{decoder_forward.21} parent=0 // pred_check
    _
  $region19: #{decoder_forward.21} parent=0 // pred_check_branch
    %20 = sbr.rel (0) target = $region21
  $region20: #{decoder_forward.21} parent=0 // pred_region
    _
  $region21: #{decoder_forward.21} parent=0 // pred_fallthru
    _
  // Predicated region
  $region22: #{decoder_forward.21} parent=0 // pred_check
    _
  $region23: #{decoder_forward.21} parent=0 // pred_check_branch
    %22 = sbr.rel (0) target = $region25
  $region24: #{decoder_forward.21} parent=0 // pred_region
    _
  $region25: #{decoder_forward.21} parent=0 // pred_fallthru
    _
  %p23 = scmp.eq.s32.totalorder 0, 0
  // Predicated region
  $region26: #{decoder_forward.21} parent=0 // pred_check
    %p24 = pneg %p23
  $region27: #{decoder_forward.21} parent=0 // pred_check_branch
    %26 = sbr.rel (%p24) target = $region29
  $region28: #{decoder_forward.21} parent=0 // pred_region
    %27 = vst [vmem:[#allocation2] sm:$0xff] 0.0
    %28 = vst [vmem:[#allocation2 + $0x8] sm:$0xff] 0.0
    %29 = vst [vmem:[#allocation2 + $0x10] sm:$0xff] 0.0
    %30 = vst [vmem:[#allocation2 + $0x18] sm:$0xff] 0.0
  $region29: #{decoder_forward.21} parent=0 // pred_fallthru
    _
  %v31 = vld [vmem:[#allocation2] sm:$0xff]
  %v32 = vld [vmem:[#allocation2 + $0x8] sm:$0xff]
  %v33 = vld [vmem:[#allocation2 + $0x10] sm:$0xff]
  %v34 = vld [vmem:[#allocation2 + $0x18] sm:$0xff]
  %v35 = vld [vmem:[%s0] sm:$0xff]
  %v36 = vld [vmem:[%s0 + $0x8] sm:$0xff]
  %v37 = vld [vmem:[%s1] sm:$0xff]
  %v38 = vld [vmem:[%s1 + $0x8] sm:$0xff]
  %v39 = vld [vmem:[%s1 + $0x10] sm:$0xff]
  %v40 = vld [vmem:[%s1 + $0x18] sm:$0xff]
  %v41 = vld [vmem:[%s1 + $0x20] sm:$0xff]
  %v42 = vld [vmem:[%s1 + $0x28] sm:$0xff]
  %v43 = vld [vmem:[%s1 + $0x30] sm:$0xff]
  %v44 = vld [vmem:[%s1 + $0x38] sm:$0xff]
  %v45 = vld [vmem:[%s1 + $0x40] sm:$0xff]
  %v46 = vld [vmem:[%s1 + $0x48] sm:$0xff]
  %v47 = vld [vmem:[%s1 + $0x50] sm:$0xff]
  %v48 = vld [vmem:[%s1 + $0x58] sm:$0xff]
  %v49 = vld [vmem:[%s1 + $0x60] sm:$0xff]
  %v50 = vld [vmem:[%s1 + $0x68] sm:$0xff]
  %v51 = vld [vmem:[%s1 + $0x70] sm:$0xff]
  %v52 = vld [vmem:[%s1 + $0x78] sm:$0xff]
  %v53 = vld [vmem:[%s1 + $0x80] sm:$0xff]
  %v54 = vld [vmem:[%s1 + $0x88] sm:$0xff]
  %v55 = vld [vmem:[%s1 + $0x90] sm:$0xff]
  %v56 = vld [vmem:[%s1 + $0x98] sm:$0xff]
  %v57 = vld [vmem:[%s1 + $0xa0] sm:$0xff]
  %v58 = vld [vmem:[%s1 + $0xa8] sm:$0xff]
  %v59 = vld [vmem:[%s1 + $0xb0] sm:$0xff]
  %v60 = vld [vmem:[%s1 + $0xb8] sm:$0xff]
  %v61 = vld [vmem:[%s1 + $0xc0] sm:$0xff]
  %v62 = vld [vmem:[%s1 + $0xc8] sm:$0xff]
  %v63 = vld [vmem:[%s1 + $0xd0] sm:$0xff]
  %v64 = vld [vmem:[%s1 + $0xd8] sm:$0xff]
  %v65 = vld [vmem:[%s1 + $0xe0] sm:$0xff]
  %v66 = vld [vmem:[%s1 + $0xe8] sm:$0xff]
  %v67 = vld [vmem:[%s1 + $0xf0] sm:$0xff]
  %v68 = vld [vmem:[%s1 + $0xf8] sm:$0xff]
  %v71 = vunpack.c.l.b16 %v35
  %v72 = vunpack.c.h.b16 %v35
  %v73 = vunpack.c.l.b16 %v36
  %v74 = vunpack.c.h.b16 %v36
  %v75 = vpack.c.b16 %v73, %v71
  %v76 = vpack.c.b16 %v74, %v72
  %v111 = vunpack.c.l.b16 %v37
  %v112 = vunpack.c.h.b16 %v37
  %v113 = vunpack.c.l.b16 %v38
  %v114 = vunpack.c.h.b16 %v38
  %v115 = vunpack.c.l.b16 %v39
  %v116 = vunpack.c.h.b16 %v39
  %v117 = vunpack.c.l.b16 %v40
  %v118 = vunpack.c.h.b16 %v40
  %v119 = vunpack.c.l.b16 %v41
  %v120 = vunpack.c.h.b16 %v41
  %v121 = vunpack.c.l.b16 %v42
  %v122 = vunpack.c.h.b16 %v42
  %v123 = vunpack.c.l.b16 %v43
  %v124 = vunpack.c.h.b16 %v43
  %v125 = vunpack.c.l.b16 %v44
  %v126 = vunpack.c.h.b16 %v44
  %v127 = vunpack.c.l.b16 %v45
  %v128 = vunpack.c.h.b16 %v45
  %v129 = vunpack.c.l.b16 %v46
  %v130 = vunpack.c.h.b16 %v46
  %v131 = vunpack.c.l.b16 %v47
  %v132 = vunpack.c.h.b16 %v47
  %v133 = vunpack.c.l.b16 %v48
  %v134 = vunpack.c.h.b16 %v48
  %v135 = vunpack.c.l.b16 %v49
  %v136 = vunpack.c.h.b16 %v49
  %v137 = vunpack.c.l.b16 %v50
  %v138 = vunpack.c.h.b16 %v50
  %v139 = vunpack.c.l.b16 %v51
  %v140 = vunpack.c.h.b16 %v51
  %v141 = vunpack.c.l.b16 %v52
  %v142 = vunpack.c.h.b16 %v52
  %v143 = vunpack.c.l.b16 %v53
  %v144 = vunpack.c.h.b16 %v53
  %v145 = vunpack.c.l.b16 %v54
  %v146 = vunpack.c.h.b16 %v54
  %v147 = vunpack.c.l.b16 %v55
  %v148 = vunpack.c.h.b16 %v55
  %v149 = vunpack.c.l.b16 %v56
  %v150 = vunpack.c.h.b16 %v56
  %v151 = vunpack.c.l.b16 %v57
  %v152 = vunpack.c.h.b16 %v57
  %v153 = vunpack.c.l.b16 %v58
  %v154 = vunpack.c.h.b16 %v58
  %v155 = vunpack.c.l.b16 %v59
  %v156 = vunpack.c.h.b16 %v59
  %v157 = vunpack.c.l.b16 %v60
  %v158 = vunpack.c.h.b16 %v60
  %v159 = vunpack.c.l.b16 %v61
  %v160 = vunpack.c.h.b16 %v61
  %v161 = vunpack.c.l.b16 %v62
  %v162 = vunpack.c.h.b16 %v62
  %v163 = vunpack.c.l.b16 %v63
  %v164 = vunpack.c.h.b16 %v63
  %v165 = vunpack.c.l.b16 %v64
  %v166 = vunpack.c.h.b16 %v64
  %v167 = vunpack.c.l.b16 %v65
  %v168 = vunpack.c.h.b16 %v65
  %v169 = vunpack.c.l.b16 %v66
  %v170 = vunpack.c.h.b16 %v66
  %v171 = vunpack.c.l.b16 %v67
  %v172 = vunpack.c.h.b16 %v67
  %v173 = vunpack.c.l.b16 %v68
  %v174 = vunpack.c.h.b16 %v68
  %v175 = vpack.c.b16 %v113, %v111
  %v176 = vpack.c.b16 %v114, %v112
  %v177 = vpack.c.b16 %v117, %v115
  %v178 = vpack.c.b16 %v118, %v116
  %v179 = vpack.c.b16 %v121, %v119
  %v180 = vpack.c.b16 %v122, %v120
  %v181 = vpack.c.b16 %v125, %v123
  %v182 = vpack.c.b16 %v126, %v124
  %v183 = vpack.c.b16 %v129, %v127
  %v184 = vpack.c.b16 %v130, %v128
  %v185 = vpack.c.b16 %v133, %v131
  %v186 = vpack.c.b16 %v134, %v132
  %v187 = vpack.c.b16 %v137, %v135
  %v188 = vpack.c.b16 %v138, %v136
  %v189 = vpack.c.b16 %v141, %v139
  %v190 = vpack.c.b16 %v142, %v140
  %v191 = vpack.c.b16 %v145, %v143
  %v192 = vpack.c.b16 %v146, %v144
  %v193 = vpack.c.b16 %v149, %v147
  %v194 = vpack.c.b16 %v150, %v148
  %v195 = vpack.c.b16 %v153, %v151
  %v196 = vpack.c.b16 %v154, %v152
  %v197 = vpack.c.b16 %v157, %v155
  %v198 = vpack.c.b16 %v158, %v156
  %v199 = vpack.c.b16 %v161, %v159
  %v200 = vpack.c.b16 %v162, %v160
  %v201 = vpack.c.b16 %v165, %v163
  %v202 = vpack.c.b16 %v166, %v164
  %v203 = vpack.c.b16 %v169, %v167
  %v204 = vpack.c.b16 %v170, %v168
  %v205 = vpack.c.b16 %v173, %v171
  %v206 = vpack.c.b16 %v174, %v172
  %239 = vmatprep.subr.bf16.mxu0 %v176
  %240 = vmatpush1.bf16.msra.mxu0 %v175
  %241 = vmatprep.subr.bf16.mxu0 %v178
  %242 = vmatpush1.bf16.msra.mxu0 %v177
  %243 = vmatprep.subr.bf16.mxu0 %v180
  %244 = vmatpush1.bf16.msra.mxu0 %v179
  %245 = vmatprep.subr.bf16.mxu0 %v182
  %246 = vmatpush1.bf16.msra.mxu0 %v181
  %247 = vmatprep.subr.bf16.mxu0 %v184
  %248 = vmatpush1.bf16.msra.mxu0 %v183
  %249 = vmatprep.subr.bf16.mxu0 %v186
  %250 = vmatpush1.bf16.msra.mxu0 %v185
  %251 = vmatprep.subr.bf16.mxu0 %v188
  %252 = vmatpush1.bf16.msra.mxu0 %v187
  %253 = vmatprep.subr.bf16.mxu0 %v190
  %254 = vmatpush1.bf16.msra.mxu0 %v189
  %255 = vmatprep.subr.bf16.mxu0 %v192
  %256 = vmatpush1.bf16.msra.mxu0 %v191
  %257 = vmatprep.subr.bf16.mxu0 %v194
  %258 = vmatpush1.bf16.msra.mxu0 %v193
  %259 = vmatprep.subr.bf16.mxu0 %v196
  %260 = vmatpush1.bf16.msra.mxu0 %v195
  %261 = vmatprep.subr.bf16.mxu0 %v198
  %262 = vmatpush1.bf16.msra.mxu0 %v197
  %263 = vmatprep.subr.bf16.mxu0 %v200
  %264 = vmatpush1.bf16.msra.mxu0 %v199
  %265 = vmatprep.subr.bf16.mxu0 %v202
  %266 = vmatpush1.bf16.msra.mxu0 %v201
  %267 = vmatprep.subr.bf16.mxu0 %v204
  %268 = vmatpush1.bf16.msra.mxu0 %v203
  %269 = vmatprep.subr.bf16.mxu0 %v206
  %270 = vmatpush1.bf16.msra.mxu0 %v205
  %271 = vmatprep.mubr.bf16.mxu0 %v76
  %272 = vmatmul.mubr.bf16.gmra.mrb[0].mxu0 %v75
  %v273 = vpop.f32.mrb[0].mxu0
  %v274 = vadd.f32 0.0, %v273
  %v275 = vpop.f32.mrb[0].mxu0
  %v276 = vadd.f32 0.0, %v275
  %v277 = vpop.f32.mrb[0].mxu0
  %v278 = vadd.f32 0.0, %v277
  %v279 = vpop.f32.mrb[0].mxu0
  %v280 = vadd.f32 0.0, %v279
  %281 = vdwg.mxu0
  %v282 = vadd.f32 %v31, %v274
  %v283 = vadd.f32 %v32, %v276
  %v284 = vadd.f32 %v33, %v278
  %v285 = vadd.f32 %v34, %v280
  %286 = vst [vmem:[#allocation2] sm:$0xff] %v282
  %287 = vst [vmem:[#allocation2 + $0x8] sm:$0xff] %v283
  %288 = vst [vmem:[#allocation2 + $0x10] sm:$0xff] %v284
  %289 = vst [vmem:[#allocation2 + $0x18] sm:$0xff] %v285
  // Predicated region
  $region30: #{decoder_forward.21} parent=0 // pred_check
    %p290 = pneg %p23
  $region31: #{decoder_forward.21} parent=0 // pred_check_branch
    %292 = sbr.rel (%p290) target = $region33
  $region32: #{decoder_forward.21} parent=0 // pred_region
    %v293 = vld [vmem:[#allocation2] sm:$0xff]
    %v294 = vld [vmem:[#allocation2 + $0x8] sm:$0xff]
    %v295 = vld [vmem:[#allocation2 + $0x10] sm:$0xff]
    %v296 = vld [vmem:[#allocation2 + $0x18] sm:$0xff]
    %v297 = vld [vmem:[%s2] sm:$0x3]
    %v298 = vunpack.c.l.bf16 %v297
    %v300 = vlaneseq
    %v301 = vshrl.u32 %v300, 7
    %v302 = vsub.s32 0, %v301
    %v303 = vrot.slane %v298, %v302
    %v304 = vlaneseq
    %v305 = vshrl.u32 %v304, 7
    %v306 = vsub.s32 2, %v305
    %v307 = vrot.slane %v298, %v306
    %v310 = vlaneseq
    %v311 = vshrl.u32 %v310, 7
    %v312 = vsub.s32 0, %v311
    %v313 = vrot.slane %v303, %v312
    %v314 = vlaneseq
    %v315 = vshrl.u32 %v314, 7
    %v316 = vsub.s32 0, %v315
    %v317 = vrot.slane %v307, %v316
    %v318 = vadd.f32 %v293, %v313
    %v319 = vadd.f32 %v294, %v317
    %v320 = vadd.f32 %v295, %v313
    %v321 = vadd.f32 %v296, %v317
    %v322 = vld [vmem:[%s3] sm:$0xff]
    %v323 = vld [vmem:[%s3 + $0x8] sm:$0xff]
    %v324 = vunpack.c.l.bf16 %v322
    %v325 = vunpack.c.h.bf16 %v322
    %v326 = vunpack.c.l.bf16 %v323
    %v327 = vunpack.c.h.bf16 %v323
    %v328 = vadd.f32 %v318, %v324
    %v329 = vadd.f32 %v319, %v325
    %v330 = vadd.f32 %v320, %v326
    %v331 = vadd.f32 %v321, %v327
    %v332 = vadd.f32 %v328, %v329
    %333 = vadd.xlane.f32.xlu0 %v332
    %v334 = vpop.xlane.xlu0 %333
    %v335 = vadd.f32 %v330, %v331
    %336 = vadd.xlane.f32.xlu0 %v335
    %v337 = vpop.xlane.xlu0 %336
    %v338 = vrcp.pop 256.0
    %v339 = vmul.f32 %v334, %v338
    %v340 = vmul.f32 %v337, %v338
    %v341 = vsub.f32 %v328, %v339
    %v342 = vsub.f32 %v329, %v339
    %v343 = vsub.f32 %v330, %v340
    %v344 = vsub.f32 %v331, %v340
    %v345 = vmul.f32 %v341, %v341
    %v346 = vmul.f32 %v342, %v342
    %v347 = vmul.f32 %v343, %v343
    %v348 = vmul.f32 %v344, %v344
    %v349 = vadd.f32 %v345, %v346
    %350 = vadd.xlane.f32.xlu0 %v349
    %v351 = vpop.xlane.xlu0 %350
    %v352 = vadd.f32 %v347, %v348
    %353 = vadd.xlane.f32.xlu0 %v352
    %v354 = vpop.xlane.xlu0 %353
    %v355 = vmul.f32 %v351, %v338
    %v356 = vmul.f32 %v354, %v338
    %v357 = vadd.f32 %v355, 1e-12
    %v358 = vadd.f32 %v356, 1e-12
    %v359 = vrsqrt.pop %v357
    %v360 = vrsqrt.pop %v358
    %v361 = vmul.f32 %v341, %v359
    %v362 = vmul.f32 %v342, %v359
    %v363 = vmul.f32 %v343, %v360
    %v364 = vmul.f32 %v344, %v360
    %v365 = vld [vmem:[%s4] sm:$0x3]
    %v366 = vunpack.c.l.bf16 %v365
    %v368 = vlaneseq
    %v369 = vshrl.u32 %v368, 7
    %v370 = vsub.s32 0, %v369
    %v371 = vrot.slane %v366, %v370
    %v372 = vlaneseq
    %v373 = vshrl.u32 %v372, 7
    %v374 = vsub.s32 2, %v373
    %v375 = vrot.slane %v366, %v374
    %v378 = vlaneseq
    %v379 = vshrl.u32 %v378, 7
    %v380 = vsub.s32 0, %v379
    %v381 = vrot.slane %v371, %v380
    %v382 = vlaneseq
    %v383 = vshrl.u32 %v382, 7
    %v384 = vsub.s32 0, %v383
    %v385 = vrot.slane %v375, %v384
    %v386 = vmul.f32 %v361, %v381
    %v387 = vmul.f32 %v362, %v385
    %v388 = vmul.f32 %v363, %v381
    %v389 = vmul.f32 %v364, %v385
    %v390 = vld [vmem:[%s5] sm:$0x3]
    %v391 = vunpack.c.l.bf16 %v390
    %v393 = vlaneseq
    %v394 = vshrl.u32 %v393, 7
    %v395 = vsub.s32 0, %v394
    %v396 = vrot.slane %v391, %v395
    %v397 = vlaneseq
    %v398 = vshrl.u32 %v397, 7
    %v399 = vsub.s32 2, %v398
    %v400 = vrot.slane %v391, %v399
    %v403 = vlaneseq
    %v404 = vshrl.u32 %v403, 7
    %v405 = vsub.s32 0, %v404
    %v406 = vrot.slane %v396, %v405
    %v407 = vlaneseq
    %v408 = vshrl.u32 %v407, 7
    %v409 = vsub.s32 0, %v408
    %v410 = vrot.slane %v400, %v409
    %v411 = vadd.f32 %v386, %v406
    %v412 = vadd.f32 %v387, %v410
    %v413 = vadd.f32 %v388, %v406
    %v414 = vadd.f32 %v389, %v410
    %v415 = vpack.c.bf16 %v413, %v411
    %v416 = vpack.c.bf16 %v414, %v412
    %v419 = vunpack.c.l.b16 %v415
    %v420 = vunpack.c.l.b16 %v416
    %v421 = vunpack.c.h.b16 %v415
    %v422 = vunpack.c.h.b16 %v416
    %v423 = vpack.c.b16 %v420, %v419
    %v424 = vpack.c.b16 %v422, %v421
    %427 = vst [vmem:[%s6] sm:$0xff] %v423
    %428 = vst [vmem:[%s6 + $0x8] sm:$0xff] %v424
  $region33: #{decoder_forward.21} parent=0 // pred_fallthru
    _
  // Predicated region
  $region34: #{decoder_forward.21} parent=0 // pred_check
    _
  $region35: #{decoder_forward.21} parent=0 // pred_check_branch
    %430 = sbr.rel (0) target = $region37
  $region36: #{decoder_forward.21} parent=0 // pred_region
    _
  $region37: #{decoder_forward.21} parent=0 // pred_fallthru
    _
  // Predicated region
  $region38: #{decoder_forward.21} parent=0 // pred_check
    _
  $region39: #{decoder_forward.21} parent=0 // pred_check_branch
    %432 = sbr.rel (0) target = $region41
  $region40: #{decoder_forward.21} parent=0 // pred_region
    _
  $region41: #{decoder_forward.21} parent=0 // pred_fallthru
    _

// kernel: decoder_forward.24
$region0: #{decoder_forward.24}
  #allocation0 [shape = 'u32[]', space=smem, size = 0x4, offset = 0x4, fixed_abs, tag = 'smem constant byte address 0x4 - core index']
  #allocation1 [shape = 'u32[144,128]{1,0:T(1,128)}', space=vmem, size = 0x12000, scoped, tag = 'internal scratch']
  #allocation2 [shape = 'f32[8,1]{1,0:T(8,128)}', space=vmem, size = 0x1000, scoped, tag = 'scratch operand']
  #allocation3 [shape = 'f32[8,1]{1,0:T(8,128)}', space=vmem, size = 0x1000, scoped, tag = 'scratch operand']
  #allocation4 [shape = 'f32[8,128]{1,0:T(8,128)}', space=vmem, size = 0x1000, scoped, tag = 'scratch operand']
  %s0 = inlined_call_operand.vmem [shape: bf16[2,8,256], index: 0, kind: input, shape index: {}]
  %s1 = inlined_call_operand.vmem [shape: bf16[2,16,512], index: 1, kind: input, shape index: {}, may-alias: {1,2}]
  %s2 = inlined_call_operand.vmem [shape: bf16[2,16,512], index: 2, kind: input, shape index: {}, may-alias: {1,2}]
  %s3 = inlined_call_operand.vmem [shape: bf16[2,1,16], index: 3, kind: input, shape index: {}]
  %s4 = inlined_call_operand.vmem [shape: bf16[2,8,256], index: 4, kind: output, shape index: {}]
  %s5 = sld [smem:[#allocation0]]
  $region139: #{decoder_forward.24} parent=0
    _
  %s7 = ssub.s32 1, %s5
  %s8 = scalar_select 0, %s7, %s5
  $region1: #{decoder_forward.24} parent=0
    #allocation5 [shape = 'u8[8192]{0}', space=vmem, size = 0x2000, scoped, tag = 'input window, operand 1']
    #allocation6 [shape = 'u8[8192]{0}', space=vmem, size = 0x2000, scoped, tag = 'input window, operand 2']
    loop: start=0, step=1, limit=6
    $region2: #{decoder_forward.24} parent=1 // loop_pre_header
      _
    $region3: #{decoder_forward.24} parent=1 // loop_header
      %s10 = sphi 0, %s14
      %p11 = scmp.ge.s32.totalorder %s10, 6
      %s17 = sphi 0, %s36
      %s18 = sphi 0, %s32
      %s19 = sphi 0, %s28
      %s20 = sphi 0, %s17
      %s21 = sphi 0, %s18
      %s22 = sphi 0, %s19
      %s23 = sphi 0, %s20
      %s24 = sphi 0, %s21
      %s25 = sphi 0, %s22
      %s41 = sphi 0, %s43
      %s44 = sphi 0, %s41
      %s45 = sphi 0, %s44
      %s61 = sphi 0, %s45
      %s71 = sphi 0, %s73
      %s74 = sphi 0, %s71
      %s75 = sphi 0, %s74
      %s91 = sphi 0, %s75
      %s103 = sphi 0, %s105
      %s106 = sphi 0, %s103
      %s107 = sphi 0, %s106
      %s123 = sphi 0, %s107
      %s131 = sphi 0, %s133
      %s134 = sphi 0, %s131
      %s135 = sphi 0, %s134
      %s151 = sphi 0, %s135
      %s159 = sphi 0, %s161
      %s162 = sphi 0, %s159
      %s163 = sphi 0, %s162
      %s179 = sphi 0, %s163
    $region4: #{decoder_forward.24} parent=1 // loop_header_branch
      %13 = sbr.rel (%p11) target = $region8
    $region5: #{decoder_forward.24} parent=1 // loop_body
      %s15 = ssub.s32 %s10, 1
      %s16 = ssub.s32 %s10, 2
      %s26 = sadd.s32 1, %s19
      %p27 = scmp.ge.s32.totalorder %s26, 1
      %s28 = scalar_select %p27, 0, %s26
      %s29 = sadd.s32 1, %s18
      %s30 = scalar_select %p27, %s29, %s18
      %p31 = scmp.ge.s32.totalorder %s30, 2
      %s32 = scalar_select %p31, 0, %s30
      %s33 = sadd.s32 1, %s17
      %s34 = scalar_select %p31, %s33, %s17
      %p35 = scmp.ge.s32.totalorder %s34, 2
      %s36 = scalar_select %p35, 0, %s34
      %s37 = ssub.s32 %s17, %s36
      %s38 = ssub.s32 %s18, %s32
      %s39 = sor.u32 %s37, %s38
      %p40 = scmp.eq.s32.totalorder %s39, 0
      %s42 = sadd.s32 %s41, 1
      %s43 = scalar_select %p40, %s41, %s42
      %p46 = pneg %p40
      %p47 = scmp.eq.s32.totalorder %s10, 3
      %p48 = por %p46, %p47
      %p49 = scmp.ne.s32.totalorder %s41, %s44
      %p50 = scmp.eq.s32.totalorder %s10, 0
      %p51 = por %p49, %p50
      %p52 = scmp.ne.s32.totalorder %s41, %s44
      %p53 = scmp.eq.s32.totalorder %s15, 3
      %p54 = por %p52, %p53
      %p55 = scmp.ne.s32.totalorder %s44, %s45
      %p56 = scmp.eq.s32.totalorder %s15, 0
      %p57 = por %p55, %p56
      %p58 = scmp.ne.s32.totalorder %s44, %s45
      %p59 = scmp.eq.s32.totalorder %s16, 3
      %p60 = por %p58, %p59
      %p62 = scmp.ne.s32.totalorder %s45, %s61
      %p63 = scmp.eq.s32.totalorder %s16, 0
      %p64 = por %p62, %p63
      %s65 = ssub.s32 %s17, %s36
      %s66 = ssub.s32 %s19, %s28
      %s67 = sor.u32 %s65, %s66
      %s68 = ssub.s32 %s18, %s32
      %s69 = sor.u32 %s67, %s68
      %p70 = scmp.eq.s32.totalorder %s69, 0
      %s72 = sadd.s32 %s71, 1
      %s73 = scalar_select %p70, %s71, %s72
      %p76 = pneg %p70
      %p77 = scmp.eq.s32.totalorder %s10, 3
      %p78 = por %p76, %p77
      %p79 = scmp.ne.s32.totalorder %s71, %s74
      %p80 = scmp.eq.s32.totalorder %s10, 0
      %p81 = por %p79, %p80
      %p82 = scmp.ne.s32.totalorder %s71, %s74
      %p83 = scmp.eq.s32.totalorder %s15, 3
      %p84 = por %p82, %p83
      %p85 = scmp.ne.s32.totalorder %s74, %s75
      %p86 = scmp.eq.s32.totalorder %s15, 0
      %p87 = por %p85, %p86
      %p88 = scmp.ne.s32.totalorder %s74, %s75
      %p89 = scmp.eq.s32.totalorder %s16, 3
      %p90 = por %p88, %p89
      %p92 = scmp.ne.s32.totalorder %s75, %s91
      %p93 = scmp.eq.s32.totalorder %s16, 0
      %p94 = por %p92, %p93
      %s95 = sadd.s32 %s18, 2
      %s96 = sadd.s32 %s32, 2
      %s97 = ssub.s32 %s17, %s36
      %s98 = ssub.s32 %s19, %s28
      %s99 = sor.u32 %s97, %s98
      %s100 = ssub.s32 %s95, %s96
      %s101 = sor.u32 %s99, %s100
      %p102 = scmp.eq.s32.totalorder %s101, 0
      %s104 = sadd.s32 %s103, 1
      %s105 = scalar_select %p102, %s103, %s104
      %p108 = pneg %p102
      %p109 = scmp.eq.s32.totalorder %s10, 3
      %p110 = por %p108, %p109
      %p111 = scmp.ne.s32.totalorder %s103, %s106
      %p112 = scmp.eq.s32.totalorder %s10, 0
      %p113 = por %p111, %p112
      %p114 = scmp.ne.s32.totalorder %s103, %s106
      %p115 = scmp.eq.s32.totalorder %s15, 3
      %p116 = por %p114, %p115
      %p117 = scmp.ne.s32.totalorder %s106, %s107
      %p118 = scmp.eq.s32.totalorder %s15, 0
      %p119 = por %p117, %p118
      %p120 = scmp.ne.s32.totalorder %s106, %s107
      %p121 = scmp.eq.s32.totalorder %s16, 3
      %p122 = por %p120, %p121
      %p124 = scmp.ne.s32.totalorder %s107, %s123
      %p125 = scmp.eq.s32.totalorder %s16, 0
      %p126 = por %p124, %p125
      %s127 = ssub.s32 %s17, %s36
      %s128 = ssub.s32 %s19, %s28
      %s129 = sor.u32 %s127, %s128
      %p130 = scmp.eq.s32.totalorder %s129, 0
      %s132 = sadd.s32 %s131, 1
      %s133 = scalar_select %p130, %s131, %s132
      %p136 = pneg %p130
      %p137 = scmp.eq.s32.totalorder %s10, 3
      %p138 = por %p136, %p137
      %p139 = scmp.ne.s32.totalorder %s131, %s134
      %p140 = scmp.eq.s32.totalorder %s10, 0
      %p141 = por %p139, %p140
      %p142 = scmp.ne.s32.totalorder %s131, %s134
      %p143 = scmp.eq.s32.totalorder %s15, 3
      %p144 = por %p142, %p143
      %p145 = scmp.ne.s32.totalorder %s134, %s135
      %p146 = scmp.eq.s32.totalorder %s15, 0
      %p147 = por %p145, %p146
      %p148 = scmp.ne.s32.totalorder %s134, %s135
      %p149 = scmp.eq.s32.totalorder %s16, 3
      %p150 = por %p148, %p149
      %p152 = scmp.ne.s32.totalorder %s135, %s151
      %p153 = scmp.eq.s32.totalorder %s16, 0
      %p154 = por %p152, %p153
      %s155 = ssub.s32 %s17, %s36
      %s156 = ssub.s32 %s18, %s32
      %s157 = sor.u32 %s155, %s156
      %p158 = scmp.eq.s32.totalorder %s157, 0
      %s160 = sadd.s32 %s159, 1
      %s161 = scalar_select %p158, %s159, %s160
      %p164 = pneg %p158
      %p165 = scmp.eq.s32.totalorder %s10, 3
      %p166 = por %p164, %p165
      %p167 = scmp.ne.s32.totalorder %s159, %s162
      %p168 = scmp.eq.s32.totalorder %s10, 0
      %p169 = por %p167, %p168
      %p170 = scmp.ne.s32.totalorder %s159, %s162
      %p171 = scmp.eq.s32.totalorder %s15, 3
      %p172 = por %p170, %p171
      %p173 = scmp.ne.s32.totalorder %s162, %s163
      %p174 = scmp.eq.s32.totalorder %s15, 0
      %p175 = por %p173, %p174
      %p176 = scmp.ne.s32.totalorder %s162, %s163
      %p177 = scmp.eq.s32.totalorder %s16, 3
      %p178 = por %p176, %p177
      %p180 = scmp.ne.s32.totalorder %s163, %s179
      %p181 = scmp.eq.s32.totalorder %s16, 0
      %p182 = por %p180, %p181
      %p183 = scmp.le.s32.totalorder 1, %s10
      %p184 = scmp.lt.s32.totalorder %s10, 5
      %p185 = pnand %p183, %p184
      %p186 = pneg %p185
      // Predicated region
      $region9: #{decoder_forward.24} parent=5 // pred_check
        _
      $region10: #{decoder_forward.24} parent=5 // pred_check_branch
        %188 = sbr.rel (%p185) target = $region12
      $region11: #{decoder_forward.24} parent=5 // pred_region
        %s189 = ssub.s32 %s10, 1
      $region12: #{decoder_forward.24} parent=5 // pred_fallthru
        _
      %p190 = scmp.lt.s32.totalorder %s10, 4
      // Predicated region
      $region13: #{decoder_forward.24} parent=5 // pred_check
        %p191 = pneg %p190
      $region14: #{decoder_forward.24} parent=5 // pred_check_branch
        %193 = sbr.rel (%p191) target = $region16
      $region15: #{decoder_forward.24} parent=5 // pred_region
        // Predicated region
        $region17: #{decoder_forward.24} parent=15 // pred_check
          %p194 = pneg %p51
        $region18: #{decoder_forward.24} parent=15 // pred_check_branch
          %196 = sbr.rel (%p194) target = $region20
        $region19: #{decoder_forward.24} parent=15 // pred_region
          %p197 = scmp.lt.s32.totalorder %s17, 1
          %s198 = scalar_select %p197, %s17, 1
          %p199 = scmp.lt.s32.totalorder %s18, 1
          %s200 = scalar_select %p199, %s18, 1
          %s201 = smul.addr %s198, 2
          %s202 = sadd.s32 %s200, %s201
          %s203 = smul.addr %s202, 4
          %s204 = scalar_lea.vmem %s0, %s203
        $region20: #{decoder_forward.24} parent=15 // pred_fallthru
          _
        // Predicated region
        $region21: #{decoder_forward.24} parent=15 // pred_check
          %p205 = pneg %p81
        $region22: #{decoder_forward.24} parent=15 // pred_check_branch
          %207 = sbr.rel (%p205) target = $region24
        $region23: #{decoder_forward.24} parent=15 // pred_region
          %s208 = sand.u32 %s71, 1
          %s209 = sand.u32 %s71, 1
          %s210 = smul.addr %s209, 8
          %s211 = scalar_lea.vmem [#allocation5], %s210
          %s212 = smul.u32 2, %s19
          %s213 = smul.addr %s212, 4
          %s214 = sadd.s32 %s18, %s213
          %s215 = smul.addr %s17, 8
          %s216 = sadd.s32 %s214, %s215
          %s217 = smul.addr %s216, 4
          %s218 = scalar_lea.vmem %s1, %s217
          // Predicated region
          $region25: #{decoder_forward.24} parent=23 // pred_check
            _
          $region26: #{decoder_forward.24} parent=23 // pred_check_branch
            %220 = sbr.rel (0) target = $region28
          $region27: #{decoder_forward.24} parent=23 // pred_region
            // Predicated region
            $region29: #{decoder_forward.24} parent=27 // pred_check
              _
            $region30: #{decoder_forward.24} parent=27 // pred_check_branch
              %222 = sbr.rel target = $region32
            $region31: #{decoder_forward.24} parent=27 // pred_region
              // Predicated region
              $region44: #{decoder_forward.24} parent=31 // pred_check
                _
              $region45: #{decoder_forward.24} parent=31 // pred_check_branch
                %239 = sbr.rel (0) target = $region47
              $region46: #{decoder_forward.24} parent=31 // pred_region
                loop: start=0, step=1, limit=1
                $region48: #{decoder_forward.24} parent=46 // loop_pre_header
                  _
                $region49: #{decoder_forward.24} parent=46 // loop_header
                  %s241 = sphi 0, %s245
                  %p242 = scmp.ge.s32.totalorder %s241, 1
                  %s246 = sphi %s218, %s218
                  %s247 = sphi %s211, %s211
                $region50: #{decoder_forward.24} parent=46 // loop_header_branch
                  %244 = sbr.rel (%p242) target = $region54
                $region51: #{decoder_forward.24} parent=46 // loop_body
                  _
                $region52: #{decoder_forward.24} parent=46 // loop_footer
                  %s245 = sadd.s32 1, %s241
                $region53: #{decoder_forward.24} parent=46 // loop_footer_branch
                  %240 = sbr.rel target = $region49
                $region54: #{decoder_forward.24} parent=46 // loop_exit
                  _
                loop: start=0, step=1, limit=1
                $region55: #{decoder_forward.24} parent=46 // loop_pre_header
                  _
                $region56: #{decoder_forward.24} parent=46 // loop_header
                  %s250 = sphi 0, %s254
                  %p251 = scmp.ge.s32.totalorder %s250, 1
                  %s255 = sphi %s218, %s218
                  %s256 = sphi %s211, %s211
                $region57: #{decoder_forward.24} parent=46 // loop_header_branch
                  %253 = sbr.rel (%p251) target = $region61
                $region58: #{decoder_forward.24} parent=46 // loop_body
                  %v257 = vld [vmem:[%s255] sm:$0xf]
                  %258 = vst [vmem:[%s256] sm:$0xf] %v257
                  %v259 = vld [vmem:[%s255 + $0x10] sm:$0xf]
                  %260 = vst [vmem:[%s256 + $0x4] sm:$0xf] %v259
                $region59: #{decoder_forward.24} parent=46 // loop_footer
                  %s254 = sadd.s32 1, %s250
                $region60: #{decoder_forward.24} parent=46 // loop_footer_branch
                  %249 = sbr.rel target = $region56
                $region61: #{decoder_forward.24} parent=46 // loop_exit
                  _
              $region47: #{decoder_forward.24} parent=31 // pred_fallthru
                _
            $region32: #{decoder_forward.24} parent=27 // pred_fallthru
              _
            // Predicated region
            $region33: #{decoder_forward.24} parent=27 // pred_check
              _
            $region34: #{decoder_forward.24} parent=27 // pred_check_branch
              %224 = sbr.rel (0) target = $region36
            $region35: #{decoder_forward.24} parent=27 // pred_region
              loop: start=0, step=1, limit=1
              $region37: #{decoder_forward.24} parent=35 // loop_pre_header
                _
              $region38: #{decoder_forward.24} parent=35 // loop_header
                %s227 = sphi 0, %s231
                %p228 = scmp.ge.s32.totalorder %s227, 1
                %s232 = sphi %s218, %s218
                %s233 = sphi %s211, %s211
              $region39: #{decoder_forward.24} parent=35 // loop_header_branch
                %230 = sbr.rel (%p228) target = $region43
              $region40: #{decoder_forward.24} parent=35 // loop_body
                %v234 = vld [vmem:[%s232] sm:$0xf]
                %235 = vst [vmem:[%s233] sm:$0xf] %v234
                %v236 = vld [vmem:[%s232 + $0x10] sm:$0xf]
                %237 = vst [vmem:[%s233 + $0x4] sm:$0xf] %v236
              $region41: #{decoder_forward.24} parent=35 // loop_footer
                %s231 = sadd.s32 1, %s227
              $region42: #{decoder_forward.24} parent=35 // loop_footer_branch
                %226 = sbr.rel target = $region38
              $region43: #{decoder_forward.24} parent=35 // loop_exit
                _
            $region36: #{decoder_forward.24} parent=27 // pred_fallthru
              _
          $region28: #{decoder_forward.24} parent=23 // pred_fallthru
            _
          %261 = vnop
        $region24: #{decoder_forward.24} parent=15 // pred_fallthru
          _
        // Predicated region
        $region62: #{decoder_forward.24} parent=15 // pred_check
          %p262 = pneg %p113
        $region63: #{decoder_forward.24} parent=15 // pred_check_branch
          %264 = sbr.rel (%p262) target = $region65
        $region64: #{decoder_forward.24} parent=15 // pred_region
          %s265 = sand.u32 %s103, 1
          %s266 = sand.u32 %s103, 1
          %s267 = smul.addr %s266, 8
          %s268 = scalar_lea.vmem [#allocation6], %s267
          %s269 = sadd.s32 %s18, 2
          %s270 = smul.u32 2, %s19
          %s271 = smul.addr %s270, 4
          %s272 = sadd.s32 %s269, %s271
          %s273 = smul.addr %s17, 8
          %s274 = sadd.s32 %s272, %s273
          %s275 = smul.addr %s274, 4
          %s276 = scalar_lea.vmem %s2, %s275
          // Predicated region
          $region66: #{decoder_forward.24} parent=64 // pred_check
            _
          $region67: #{decoder_forward.24} parent=64 // pred_check_branch
            %278 = sbr.rel (0) target = $region69
          $region68: #{decoder_forward.24} parent=64 // pred_region
            // Predicated region
            $region70: #{decoder_forward.24} parent=68 // pred_check
              _
            $region71: #{decoder_forward.24} parent=68 // pred_check_branch
              %280 = sbr.rel target = $region73
            $region72: #{decoder_forward.24} parent=68 // pred_region
              // Predicated region
              $region85: #{decoder_forward.24} parent=72 // pred_check
                _
              $region86: #{decoder_forward.24} parent=72 // pred_check_branch
                %297 = sbr.rel (0) target = $region88
              $region87: #{decoder_forward.24} parent=72 // pred_region
                loop: start=0, step=1, limit=1
                $region89: #{decoder_forward.24} parent=87 // loop_pre_header
                  _
                $region90: #{decoder_forward.24} parent=87 // loop_header
                  %s299 = sphi 0, %s303
                  %p300 = scmp.ge.s32.totalorder %s299, 1
                  %s304 = sphi %s276, %s276
                  %s305 = sphi %s268, %s268
                $region91: #{decoder_forward.24} parent=87 // loop_header_branch
                  %302 = sbr.rel (%p300) target = $region95
                $region92: #{decoder_forward.24} parent=87 // loop_body
                  _
                $region93: #{decoder_forward.24} parent=87 // loop_footer
                  %s303 = sadd.s32 1, %s299
                $region94: #{decoder_forward.24} parent=87 // loop_footer_branch
                  %298 = sbr.rel target = $region90
                $region95: #{decoder_forward.24} parent=87 // loop_exit
                  _
                loop: start=0, step=1, limit=1
                $region96: #{decoder_forward.24} parent=87 // loop_pre_header
                  _
                $region97: #{decoder_forward.24} parent=87 // loop_header
                  %s308 = sphi 0, %s312
                  %p309 = scmp.ge.s32.totalorder %s308, 1
                  %s313 = sphi %s276, %s276
                  %s314 = sphi %s268, %s268
                $region98: #{decoder_forward.24} parent=87 // loop_header_branch
                  %311 = sbr.rel (%p309) target = $region102
                $region99: #{decoder_forward.24} parent=87 // loop_body
                  %v315 = vld [vmem:[%s313] sm:$0xf]
                  %316 = vst [vmem:[%s314] sm:$0xf] %v315
                  %v317 = vld [vmem:[%s313 + $0x10] sm:$0xf]
                  %318 = vst [vmem:[%s314 + $0x4] sm:$0xf] %v317
                $region100: #{decoder_forward.24} parent=87 // loop_footer
                  %s312 = sadd.s32 1, %s308
                $region101: #{decoder_forward.24} parent=87 // loop_footer_branch
                  %307 = sbr.rel target = $region97
                $region102: #{decoder_forward.24} parent=87 // loop_exit
                  _
              $region88: #{decoder_forward.24} parent=72 // pred_fallthru
                _
            $region73: #{decoder_forward.24} parent=68 // pred_fallthru
              _
            // Predicated region
            $region74: #{decoder_forward.24} parent=68 // pred_check
              _
            $region75: #{decoder_forward.24} parent=68 // pred_check_branch
              %282 = sbr.rel (0) target = $region77
            $region76: #{decoder_forward.24} parent=68 // pred_region
              loop: start=0, step=1, limit=1
              $region78: #{decoder_forward.24} parent=76 // loop_pre_header
                _
              $region79: #{decoder_forward.24} parent=76 // loop_header
                %s285 = sphi 0, %s289
                %p286 = scmp.ge.s32.totalorder %s285, 1
                %s290 = sphi %s276, %s276
                %s291 = sphi %s268, %s268
              $region80: #{decoder_forward.24} parent=76 // loop_header_branch
                %288 = sbr.rel (%p286) target = $region84
              $region81: #{decoder_forward.24} parent=76 // loop_body
                %v292 = vld [vmem:[%s290] sm:$0xf]
                %293 = vst [vmem:[%s291] sm:$0xf] %v292
                %v294 = vld [vmem:[%s290 + $0x10] sm:$0xf]
                %295 = vst [vmem:[%s291 + $0x4] sm:$0xf] %v294
              $region82: #{decoder_forward.24} parent=76 // loop_footer
                %s289 = sadd.s32 1, %s285
              $region83: #{decoder_forward.24} parent=76 // loop_footer_branch
                %284 = sbr.rel target = $region79
              $region84: #{decoder_forward.24} parent=76 // loop_exit
                _
            $region77: #{decoder_forward.24} parent=68 // pred_fallthru
              _
          $region69: #{decoder_forward.24} parent=64 // pred_fallthru
            _
          %319 = vnop
        $region65: #{decoder_forward.24} parent=15 // pred_fallthru
          _
        // Predicated region
        $region103: #{decoder_forward.24} parent=15 // pred_check
          %p320 = pneg %p141
        $region104: #{decoder_forward.24} parent=15 // pred_check_branch
          %322 = sbr.rel (%p320) target = $region106
        $region105: #{decoder_forward.24} parent=15 // pred_region
          %p323 = scmp.lt.s32.totalorder %s17, 1
          %s324 = scalar_select %p323, %s17, 1
          %p325 = scmp.lt.s32.totalorder %s19, 0
          %s326 = scalar_select %p325, %s19, 0
          %s327 = sadd.s32 %s326, %s324
          %s328 = scalar_lea.vmem %s3, %s327
        $region106: #{decoder_forward.24} parent=15 // pred_fallthru
          _
      $region16: #{decoder_forward.24} parent=5 // pred_fallthru
        _
      %p329 = scmp.le.s32.totalorder 1, %s10
      %p330 = scmp.lt.s32.totalorder %s10, 5
      %p331 = pnand %p329, %p330
      %p332 = pneg %p331
      // Predicated region
      $region107: #{decoder_forward.24} parent=5 // pred_check
        _
      $region108: #{decoder_forward.24} parent=5 // pred_check_branch
        %334 = sbr.rel (%p331) target = $region110
      $region109: #{decoder_forward.24} parent=5 // pred_region
        %s335 = ssub.s32 %s10, 1
        %s336 = sand.u32 %s74, 1
        %s337 = sand.u32 %s74, 1
        %s338 = smul.addr %s337, 8
        %s339 = scalar_lea.vmem [#allocation5], %s338
        // Predicated region
        $region111: #{decoder_forward.24} parent=109 // pred_check
          %p340 = pneg %p87
        $region112: #{decoder_forward.24} parent=109 // pred_check_branch
          %342 = sbr.rel (%p340) target = $region114
        $region113: #{decoder_forward.24} parent=109 // pred_region
          _
        $region114: #{decoder_forward.24} parent=109 // pred_fallthru
          _
        %s343 = sand.u32 %s106, 1
        %s344 = sand.u32 %s106, 1
        %s345 = smul.addr %s344, 8
        %s346 = scalar_lea.vmem [#allocation6], %s345
        // Predicated region
        $region115: #{decoder_forward.24} parent=109 // pred_check
          %p347 = pneg %p119
        $region116: #{decoder_forward.24} parent=109 // pred_check_branch
          %349 = sbr.rel (%p347) target = $region118
        $region117: #{decoder_forward.24} parent=109 // pred_region
          _
        $region118: #{decoder_forward.24} parent=109 // pred_fallthru
          _
        %p350 = scmp.lt.s32.totalorder %s20, 1
        %s351 = scalar_select %p350, %s20, 1
        %p352 = scmp.lt.s32.totalorder %s21, 1
        %s353 = scalar_select %p352, %s21, 1
        %s354 = smul.addr %s351, 2
        %s355 = sadd.s32 %s353, %s354
        %s356 = smul.addr %s355, 4
        %s357 = scalar_lea.vmem %s0, %s356
        %p358 = pneg %p57
        %p359 = pneg %p54
        %s360 = sand.u32 %s74, 1
        %s361 = sand.u32 %s74, 1
        %s362 = smul.addr %s361, 8
        %s363 = scalar_lea.vmem [#allocation5], %s362
        %p364 = pneg %p87
        %p365 = pneg %p84
        %s366 = sand.u32 %s106, 1
        %s367 = sand.u32 %s106, 1
        %s368 = smul.addr %s367, 8
        %s369 = scalar_lea.vmem [#allocation6], %s368
        %p370 = pneg %p119
        %p371 = pneg %p116
        %p372 = scmp.lt.s32.totalorder %s20, 1
        %s373 = scalar_select %p372, %s20, 1
        %p374 = scmp.lt.s32.totalorder %s22, 0
        %s375 = scalar_select %p374, %s22, 0
        %s376 = sadd.s32 %s375, %s373
        %s377 = scalar_lea.vmem %s3, %s376
        %p378 = pneg %p147
        %p379 = pneg %p144
        %p380 = pneg %p175
        %p381 = pneg %p172
        %p382 = scmp.lt.s32.totalorder %s20, 1
        %s383 = scalar_select %p382, %s20, 1
        %p384 = scmp.lt.s32.totalorder %s21, 1
        %s385 = scalar_select %p384, %s21, 1
        %s386 = smul.addr %s383, 2
        %s387 = sadd.s32 %s385, %s386
        %s388 = smul.addr %s387, 4
        %s389 = scalar_lea.vmem %s4, %s388
        %p390 = scmp.lt.s32.totalorder %s20, 1
        %s391 = scalar_select %p390, %s20, 1
        %p392 = scmp.lt.s32.totalorder %s21, 1
        %s393 = scalar_select %p392, %s21, 1
        %s394 = smul.addr %s391, 2
        %s395 = sadd.s32 %s393, %s394
        %s396 = smul.addr %s395, 4
        %s397 = scalar_lea.vmem %s0, %s396
        %s398 = smul.u32 2, %s22
        %s399 = sadd.s32 %s21, 2
        %s400 = smul.u32 2, %s22
        %p401 = scmp.lt.s32.totalorder %s20, 1
        %s402 = scalar_select %p401, %s20, 1
        %p403 = scmp.lt.s32.totalorder %s22, 0
        %s404 = scalar_select %p403, %s22, 0
        %s405 = sadd.s32 %s404, %s402
        %s406 = scalar_lea.vmem %s3, %s405
        %p407 = scmp.lt.s32.totalorder %s20, 1
        %s408 = scalar_select %p407, %s20, 1
        %p409 = scmp.lt.s32.totalorder %s21, 1
        %s410 = scalar_select %p409, %s21, 1
        %s411 = smul.addr %s408, 2
        %s412 = sadd.s32 %s410, %s411
        %s413 = smul.addr %s412, 4
        %s414 = scalar_lea.vmem %s4, %s413
        %p416 = scmp.eq.s32.totalorder %s22, 0
        // Predicated region
        $region119: #{decoder_forward.24} parent=109 // pred_check
          %p417 = pneg %p416
        $region120: #{decoder_forward.24} parent=109 // pred_check_branch
          %419 = sbr.rel (%p417) target = $region122
        $region121: #{decoder_forward.24} parent=109 // pred_region
          %vm420 = vcmask 7168
          %421 = vst.msk [vmem:[#allocation2] sm:$0xff] %vm420, -inf
          %422 = vst.msk [vmem:[#allocation3] sm:$0xff] %vm420, 0.0
          %423 = vst [vmem:[#allocation4] sm:$0xff] 0.0
        $region122: #{decoder_forward.24} parent=109 // pred_fallthru
          _
        %v424 = vld [vmem:[%s397] sm:$0xf]
        %v425 = vld [vmem:[%s339] sm:$0xf]
        %v426 = vld [vmem:[%s339 + $0x4] sm:$0xf]
        %v427 = vld [vmem:[%s346] sm:$0xf]
        %v428 = vld [vmem:[%s346 + $0x4] sm:$0xf]
        %v431 = vunpack.c.l.b16 %v425
        %v432 = vunpack.c.l.b16 %v426
        %v433 = vpack.c.b16 %v432, %v431
        %435 = vmatprep.subr.bf16.mxu0 0
        %436 = vmatpush1.bf16.xpose.msra.mxu0 %v433
        %437 = vmatprep.subr.bf16.mxu0 0
        %438 = vmatpush1.bf16.xpose.msra.mxu0 0
        %439 = vmatprep.subr.bf16.mxu0 0
        %440 = vmatpush1.bf16.xpose.msra.mxu0 0
        %441 = vmatprep.subr.bf16.mxu0 0
        %442 = vmatpush1.bf16.xpose.msra.mxu0 0
        %443 = vmatprep.subr.bf16.mxu0 0
        %444 = vmatpush1.bf16.xpose.msra.mxu0 0
        %445 = vmatprep.subr.bf16.mxu0 0
        %446 = vmatpush1.bf16.xpose.msra.mxu0 0
        %447 = vmatprep.subr.bf16.mxu0 0
        %448 = vmatpush1.bf16.xpose.msra.mxu0 0
        %449 = vmatprep.subr.bf16.mxu0 0
        %450 = vmatpush1.bf16.xpose.msra.mxu0 0
        %451 = vmatprep.subr.bf16.mxu0 0
        %452 = vmatpush1.bf16.xpose.msra.mxu0 0
        %453 = vmatprep.subr.bf16.mxu0 0
        %454 = vmatpush1.bf16.xpose.msra.mxu0 0
        %455 = vmatprep.subr.bf16.mxu0 0
        %456 = vmatpush1.bf16.xpose.msra.mxu0 0
        %457 = vmatprep.subr.bf16.mxu0 0
        %458 = vmatpush1.bf16.xpose.msra.mxu0 0
        %459 = vmatprep.subr.bf16.mxu0 0
        %460 = vmatpush1.bf16.xpose.msra.mxu0 0
        %461 = vmatprep.subr.bf16.mxu0 0
        %462 = vmatpush1.bf16.xpose.msra.mxu0 0
        %463 = vmatprep.subr.bf16.mxu0 0
        %464 = vmatpush1.bf16.xpose.msra.mxu0 0
        %465 = vmatprep.subr.bf16.mxu0 0
        %466 = vmatpush1.bf16.xpose.msra.mxu0 0
        %467 = vmatprep.mubr.bf16.mxu0 0
        %468 = vmatmul.mubr.bf16.gmra.mrb[0].mxu0 %v424
        %v469 = vpop.f32.mrb[0].mxu0
        %v470 = vadd.f32 0.0, %v469
        %v471 = vpop.f32.mrb[0].mxu0
        %v472 = vpop.f32.mrb[0].mxu0
        %v473 = vpop.f32.mrb[0].mxu0
        %474 = vdwg.mxu0
        %v475 = vmul.f32 %v470, 0.088388346
        %v476 = vld [vmem:[%s406] sm:$0x1]
        %v477 = vunpack.c.l.bf16 %v476
        %v478 = vsub.f32 1.0, %v477
        %v479 = vmul.f32 %v478, -1e+09
        %v480 = vlaneseq
        %v481 = vshrl.u32 %v480, 7
        %v482 = vsub.s32 0, %v481
        %v483 = vrot.slane %v479, %v482
        %v484 = vadd.f32 %v475, %v483
        %v485 = vld [vmem:[#allocation2] sm:$0xff]
        %vm486 = vcmask 130048
        %v487 = vsel %vm486, %v484, -inf
        %488 = vmax.xlane.f32.xlu0 %v487
        %v489 = vpop.xlane.xlu0 %488
        %v490 = vmax.f32 %v485, %v489
        %v491 = vsub.f32 %v485, %v490
        %v492 = vmul.f32 %v491, 1.442695
        %v493 = vpow.pop %v492
        %495 = vset.pattern.permute.xlu0 0
        %496 = vperm.xlu0 %495, %v490
        %v497 = vpop.permute.xlu0 %496
        %v499 = vsub.f32 %v484, %v497
        %v500 = vmul.f32 %v499, 1.442695
        %v501 = vpow.pop %v500
        %v502 = vld [vmem:[#allocation3] sm:$0xff]
        %v503 = vmul.f32 %v493, %v502
        %v504 = vsel %vm486, %v501, 0.0
        %505 = vadd.xlane.f32.xlu0 %v504
        %v506 = vpop.xlane.xlu0 %505
        %v507 = vadd.f32 %v503, %v506
        %vm508 = vcmask 7168
        %509 = vst.msk [vmem:[#allocation3] sm:$0xff] %vm508, %v507
        %v510 = vld [vmem:[#allocation4] sm:$0xff]
        %512 = vset.pattern.permute.xlu0 0
        %513 = vperm.xlu0 %512, %v493
        %v514 = vpop.permute.xlu0 %513
        %v516 = vmul.f32 %v514, %v510
        %v517 = vpack.c.bf16 %v501, %v501
        %v520 = vunpack.c.l.b16 %v427
        %v521 = vunpack.c.l.b16 %v428
        %v522 = vpack.c.b16 %v521, %v520
        %v525 = vsel %vm486, %v517, 0
        %527 = vmatprep.subr.bf16.mxu0 0
        %528 = vmatpush1.bf16.msra.mxu0 %v522
        %529 = vmatprep.subr.bf16.mxu0 0
        %530 = vmatpush1.bf16.msra.mxu0 0
        %531 = vmatprep.subr.bf16.mxu0 0
        %532 = vmatpush1.bf16.msra.mxu0 0
        %533 = vmatprep.subr.bf16.mxu0 0
        %534 = vmatpush1.bf16.msra.mxu0 0
        %535 = vmatprep.subr.bf16.mxu0 0
        %536 = vmatpush1.bf16.msra.mxu0 0
        %537 = vmatprep.subr.bf16.mxu0 0
        %538 = vmatpush1.bf16.msra.mxu0 0
        %539 = vmatprep.subr.bf16.mxu0 0
        %540 = vmatpush1.bf16.msra.mxu0 0
        %541 = vmatprep.subr.bf16.mxu0 0
        %542 = vmatpush1.bf16.msra.mxu0 0
        %543 = vmatprep.subr.bf16.mxu0 0
        %544 = vmatpush1.bf16.msra.mxu0 0
        %545 = vmatprep.subr.bf16.mxu0 0
        %546 = vmatpush1.bf16.msra.mxu0 0
        %547 = vmatprep.subr.bf16.mxu0 0
        %548 = vmatpush1.bf16.msra.mxu0 0
        %549 = vmatprep.subr.bf16.mxu0 0
        %550 = vmatpush1.bf16.msra.mxu0 0
        %551 = vmatprep.subr.bf16.mxu0 0
        %552 = vmatpush1.bf16.msra.mxu0 0
        %553 = vmatprep.subr.bf16.mxu0 0
        %554 = vmatpush1.bf16.msra.mxu0 0
        %555 = vmatprep.subr.bf16.mxu0 0
        %556 = vmatpush1.bf16.msra.mxu0 0
        %557 = vmatprep.subr.bf16.mxu0 0
        %558 = vmatpush1.bf16.msra.mxu0 0
        %559 = vmatprep.mubr.bf16.mxu0 0
        %560 = vmatmul.mubr.bf16.gmra.mrb[0].mxu0 %v525
        %v561 = vpop.f32.mrb[0].mxu0
        %v562 = vadd.f32 0.0, %v561
        %v563 = vpop.f32.mrb[0].mxu0
        %v564 = vpop.f32.mrb[0].mxu0
        %v565 = vpop.f32.mrb[0].mxu0
        %566 = vdwg.mxu0
        %v567 = vadd.f32 %v516, %v562
        %568 = vst [vmem:[#allocation4] sm:$0xff] %v567
        %569 = vst.msk [vmem:[#allocation2] sm:$0xff] %vm508, %v490
        // Predicated region
        $region123: #{decoder_forward.24} parent=109 // pred_check
          %p570 = pneg %p416
        $region124: #{decoder_forward.24} parent=109 // pred_check_branch
          %572 = sbr.rel (%p570) target = $region126
        $region125: #{decoder_forward.24} parent=109 // pred_region
          %v573 = vld [vmem:[#allocation4] sm:$0xff]
          %v574 = vld [vmem:[#allocation3] sm:$0xff]
          %v575 = vrcp.pop %v574
          %577 = vset.pattern.permute.xlu0 0
          %578 = vperm.xlu0 %577, %v575
          %v579 = vpop.permute.xlu0 %578
          %v581 = vmul.f32 %v573, %v579
          %v582 = vpack.c.bf16 %v581, %v581
          %583 = vst [vmem:[%s414] sm:$0xf] %v582
        $region126: #{decoder_forward.24} parent=109 // pred_fallthru
          _
        %p584 = scmp.lt.s32.totalorder %s20, 1
        %s585 = scalar_select %p584, %s20, 1
        %p586 = scmp.lt.s32.totalorder %s21, 1
        %s587 = scalar_select %p586, %s21, 1
        %s588 = smul.addr %s585, 2
        %s589 = sadd.s32 %s587, %s588
        %s590 = smul.addr %s589, 4
        %s591 = scalar_lea.vmem %s4, %s590
        // Predicated region
        $region127: #{decoder_forward.24} parent=109 // pred_check
          %p592 = pneg %p172
        $region128: #{decoder_forward.24} parent=109 // pred_check_branch
          %594 = sbr.rel (%p592) target = $region130
        $region129: #{decoder_forward.24} parent=109 // pred_region
          _
        $region130: #{decoder_forward.24} parent=109 // pred_fallthru
          _
      $region110: #{decoder_forward.24} parent=5 // pred_fallthru
        _
      %p595 = scmp.le.s32.totalorder 2, %s10
      // Predicated region
      $region131: #{decoder_forward.24} parent=5 // pred_check
        %p596 = pneg %p595
      $region132: #{decoder_forward.24} parent=5 // pred_check_branch
        %598 = sbr.rel (%p596) target = $region134
      $region133: #{decoder_forward.24} parent=5 // pred_region
        %s599 = ssub.s32 %s10, 2
        // Predicated region
        $region135: #{decoder_forward.24} parent=133 // pred_check
          %p600 = pneg %p178
        $region136: #{decoder_forward.24} parent=133 // pred_check_branch
          %602 = sbr.rel (%p600) target = $region138
        $region137: #{decoder_forward.24} parent=133 // pred_region
          %p603 = scmp.lt.s32.totalorder %s23, 1
          %s604 = scalar_select %p603, %s23, 1
          %p605 = scmp.lt.s32.totalorder %s24, 1
          %s606 = scalar_select %p605, %s24, 1
          %s607 = smul.addr %s604, 2
          %s608 = sadd.s32 %s606, %s607
          %s609 = smul.addr %s608, 4
          %s610 = scalar_lea.vmem %s4, %s609
        $region138: #{decoder_forward.24} parent=133 // pred_fallthru
          _
      $region134: #{decoder_forward.24} parent=5 // pred_fallthru
        _
    $region6: #{decoder_forward.24} parent=1 // loop_footer
      %s14 = sadd.s32 1, %s10
    $region7: #{decoder_forward.24} parent=1 // loop_footer_branch
      %9 = sbr.rel target = $region3
    $region8: #{decoder_forward.24} parent=1 // loop_exit
      _

// kernel: decoder_forward.23
$region0: #{decoder_forward.23}
  #allocation0 [shape = 'u32[]', space=smem, size = 0x4, offset = 0x4, fixed_abs, tag = 'smem constant byte address 0x4 - core index']
  #allocation1 [shape = 'u32[144,128]{1,0:T(1,128)}', space=vmem, size = 0x12000, scoped, tag = 'internal scratch']
  #allocation2 [shape = 'f32[32,512]{1,0:T(8,128)}', space=vmem, size = 0x10000, scoped, tag = 'scratch operand']
  %s0 = inlined_call_operand.vmem [shape: bf16[32,256], index: 0, kind: input, shape index: {}]
  %s1 = inlined_call_operand.vmem [shape: bf16[256,512], index: 1, kind: input, shape index: {}]
  %s2 = inlined_call_operand.vmem [shape: bf16[1,512], index: 2, kind: input, shape index: {}]
  %s3 = inlined_call_operand.vmem [shape: bf16[32,512], index: 3, kind: output, shape index: {}]
  %s4 = sld [smem:[#allocation0]]
  $region30: #{decoder_forward.23} parent=0
    _
  %s6 = ssub.s32 1, %s4
  %s7 = scalar_select 0, %s6, %s4
  // Predicated region
  $region2: #{decoder_forward.23} parent=0 // pred_check
    _
  $region3: #{decoder_forward.23} parent=0 // pred_check_branch
    %9 = sbr.rel (0) target = $region5
  $region4: #{decoder_forward.23} parent=0 // pred_region
    _
  $region5: #{decoder_forward.23} parent=0 // pred_fallthru
    _
  // Predicated region
  $region6: #{decoder_forward.23} parent=0 // pred_check
    _
  $region7: #{decoder_forward.23} parent=0 // pred_check_branch
    %11 = sbr.rel (0) target = $region9
  $region8: #{decoder_forward.23} parent=0 // pred_region
    _
  $region9: #{decoder_forward.23} parent=0 // pred_fallthru
    _
  // Predicated region
  $region10: #{decoder_forward.23} parent=0 // pred_check
    _
  $region11: #{decoder_forward.23} parent=0 // pred_check_branch
    %13 = sbr.rel (0) target = $region13
  $region12: #{decoder_forward.23} parent=0 // pred_region
    _
  $region13: #{decoder_forward.23} parent=0 // pred_fallthru
    _
  %p14 = scmp.eq.s32.totalorder 0, 0
  // Predicated region
  $region14: #{decoder_forward.23} parent=0 // pred_check
    %p15 = pneg %p14
  $region15: #{decoder_forward.23} parent=0 // pred_check_branch
    %17 = sbr.rel (%p15) target = $region17
  $region16: #{decoder_forward.23} parent=0 // pred_region
    %18 = vst [vmem:[#allocation2] sm:$0xff] 0.0
    %19 = vst [vmem:[#allocation2 + $0x8] sm:$0xff] 0.0
    %20 = vst [vmem:[#allocation2 + $0x10] sm:$0xff] 0.0
    %21 = vst [vmem:[#allocation2 + $0x18] sm:$0xff] 0.0
    %22 = vst [vmem:[#allocation2 + $0x20] sm:$0xff] 0.0
    %23 = vst [vmem:[#allocation2 + $0x28] sm:$0xff] 0.0
    %24 = vst [vmem:[#allocation2 + $0x30] sm:$0xff] 0.0
    %25 = vst [vmem:[#allocation2 + $0x38] sm:$0xff] 0.0
    %26 = vst [vmem:[#allocation2 + $0x40] sm:$0xff] 0.0
    %27 = vst [vmem:[#allocation2 + $0x48] sm:$0xff] 0.0
    %28 = vst [vmem:[#allocation2 + $0x50] sm:$0xff] 0.0
    %29 = vst [vmem:[#allocation2 + $0x58] sm:$0xff] 0.0
    %30 = vst [vmem:[#allocation2 + $0x60] sm:$0xff] 0.0
    %31 = vst [vmem:[#allocation2 + $0x68] sm:$0xff] 0.0
    %32 = vst [vmem:[#allocation2 + $0x70] sm:$0xff] 0.0
    %33 = vst [vmem:[#allocation2 + $0x78] sm:$0xff] 0.0
  $region17: #{decoder_forward.23} parent=0 // pred_fallthru
    _
  %v34 = vld [vmem:[#allocation2] sm:$0xff]
  %v35 = vld [vmem:[#allocation2 + $0x8] sm:$0xff]
  %v36 = vld [vmem:[#allocation2 + $0x10] sm:$0xff]
  %v37 = vld [vmem:[#allocation2 + $0x18] sm:$0xff]
  %v38 = vld [vmem:[#allocation2 + $0x20] sm:$0xff]
  %v39 = vld [vmem:[#allocation2 + $0x28] sm:$0xff]
  %v40 = vld [vmem:[#allocation2 + $0x30] sm:$0xff]
  %v41 = vld [vmem:[#allocation2 + $0x38] sm:$0xff]
  %v42 = vld [vmem:[#allocation2 + $0x40] sm:$0xff]
  %v43 = vld [vmem:[#allocation2 + $0x48] sm:$0xff]
  %v44 = vld [vmem:[#allocation2 + $0x50] sm:$0xff]
  %v45 = vld [vmem:[#allocation2 + $0x58] sm:$0xff]
  %v46 = vld [vmem:[#allocation2 + $0x60] sm:$0xff]
  %v47 = vld [vmem:[#allocation2 + $0x68] sm:$0xff]
  %v48 = vld [vmem:[#allocation2 + $0x70] sm:$0xff]
  %v49 = vld [vmem:[#allocation2 + $0x78] sm:$0xff]
  %v50 = vld [vmem:[%s0] sm:$0xff]
  %v51 = vld [vmem:[%s0 + $0x8] sm:$0xff]
  %v52 = vld [vmem:[%s0 + $0x10] sm:$0xff]
  %v53 = vld [vmem:[%s0 + $0x18] sm:$0xff]
  %v54 = vld [vmem:[%s1] sm:$0xff]
  %v55 = vld [vmem:[%s1 + $0x8] sm:$0xff]
  %v56 = vld [vmem:[%s1 + $0x10] sm:$0xff]
  %v57 = vld [vmem:[%s1 + $0x18] sm:$0xff]
  %v58 = vld [vmem:[%s1 + $0x20] sm:$0xff]
  %v59 = vld [vmem:[%s1 + $0x28] sm:$0xff]
  %v60 = vld [vmem:[%s1 + $0x30] sm:$0xff]
  %v61 = vld [vmem:[%s1 + $0x38] sm:$0xff]
  %v62 = vld [vmem:[%s1 + $0x40] sm:$0xff]
  %v63 = vld [vmem:[%s1 + $0x48] sm:$0xff]
  %v64 = vld [vmem:[%s1 + $0x50] sm:$0xff]
  %v65 = vld [vmem:[%s1 + $0x58] sm:$0xff]
  %v66 = vld [vmem:[%s1 + $0x60] sm:$0xff]
  %v67 = vld [vmem:[%s1 + $0x68] sm:$0xff]
  %v68 = vld [vmem:[%s1 + $0x70] sm:$0xff]
  %v69 = vld [vmem:[%s1 + $0x78] sm:$0xff]
  %v70 = vld [vmem:[%s1 + $0x80] sm:$0xff]
  %v71 = vld [vmem:[%s1 + $0x88] sm:$0xff]
  %v72 = vld [vmem:[%s1 + $0x90] sm:$0xff]
  %v73 = vld [vmem:[%s1 + $0x98] sm:$0xff]
  %v74 = vld [vmem:[%s1 + $0xa0] sm:$0xff]
  %v75 = vld [vmem:[%s1 + $0xa8] sm:$0xff]
  %v76 = vld [vmem:[%s1 + $0xb0] sm:$0xff]
  %v77 = vld [vmem:[%s1 + $0xb8] sm:$0xff]
  %v78 = vld [vmem:[%s1 + $0xc0] sm:$0xff]
  %v79 = vld [vmem:[%s1 + $0xc8] sm:$0xff]
  %v80 = vld [vmem:[%s1 + $0xd0] sm:$0xff]
  %v81 = vld [vmem:[%s1 + $0xd8] sm:$0xff]
  %v82 = vld [vmem:[%s1 + $0xe0] sm:$0xff]
  %v83 = vld [vmem:[%s1 + $0xe8] sm:$0xff]
  %v84 = vld [vmem:[%s1 + $0xf0] sm:$0xff]
  %v85 = vld [vmem:[%s1 + $0xf8] sm:$0xff]
  %v86 = vld [vmem:[%s1 + $0x100] sm:$0xff]
  %v87 = vld [vmem:[%s1 + $0x108] sm:$0xff]
  %v88 = vld [vmem:[%s1 + $0x110] sm:$0xff]
  %v89 = vld [vmem:[%s1 + $0x118] sm:$0xff]
  %v90 = vld [vmem:[%s1 + $0x120] sm:$0xff]
  %v91 = vld [vmem:[%s1 + $0x128] sm:$0xff]
  %v92 = vld [vmem:[%s1 + $0x130] sm:$0xff]
  %v93 = vld [vmem:[%s1 + $0x138] sm:$0xff]
  %v94 = vld [vmem:[%s1 + $0x140] sm:$0xff]
  %v95 = vld [vmem:[%s1 + $0x148] sm:$0xff]
  %v96 = vld [vmem:[%s1 + $0x150] sm:$0xff]
  %v97 = vld [vmem:[%s1 + $0x158] sm:$0xff]
  %v98 = vld [vmem:[%s1 + $0x160] sm:$0xff]
  %v99 = vld [vmem:[%s1 + $0x168] sm:$0xff]
  %v100 = vld [vmem:[%s1 + $0x170] sm:$0xff]
  %v101 = vld [vmem:[%s1 + $0x178] sm:$0xff]
  %v102 = vld [vmem:[%s1 + $0x180] sm:$0xff]
  %v103 = vld [vmem:[%s1 + $0x188] sm:$0xff]
  %v104 = vld [vmem:[%s1 + $0x190] sm:$0xff]
  %v105 = vld [vmem:[%s1 + $0x198] sm:$0xff]
  %v106 = vld [vmem:[%s1 + $0x1a0] sm:$0xff]
  %v107 = vld [vmem:[%s1 + $0x1a8] sm:$0xff]
  %v108 = vld [vmem:[%s1 + $0x1b0] sm:$0xff]
  %v109 = vld [vmem:[%s1 + $0x1b8] sm:$0xff]
  %v110 = vld [vmem:[%s1 + $0x1c0] sm:$0xff]
  %v111 = vld [vmem:[%s1 + $0x1c8] sm:$0xff]
  %v112 = vld [vmem:[%s1 + $0x1d0] sm:$0xff]
  %v113 = vld [vmem:[%s1 + $0x1d8] sm:$0xff]
  %v114 = vld [vmem:[%s1 + $0x1e0] sm:$0xff]
  %v115 = vld [vmem:[%s1 + $0x1e8] sm:$0xff]
  %v116 = vld [vmem:[%s1 + $0x1f0] sm:$0xff]
  %v117 = vld [vmem:[%s1 + $0x1f8] sm:$0xff]
  %v122 = vunpack.c.l.b16 %v50
  %v123 = vunpack.c.h.b16 %v50
  %v124 = vunpack.c.l.b16 %v51
  %v125 = vunpack.c.h.b16 %v51
  %v126 = vunpack.c.l.b16 %v52
  %v127 = vunpack.c.h.b16 %v52
  %v128 = vunpack.c.l.b16 %v53
  %v129 = vunpack.c.h.b16 %v53
  %v130 = vpack.c.b16 %v124, %v122
  %v131 = vpack.c.b16 %v125, %v123
  %v132 = vpack.c.b16 %v128, %v126
  %v133 = vpack.c.b16 %v129, %v127
  %v202 = vunpack.c.l.b16 %v54
  %v203 = vunpack.c.h.b16 %v54
  %v204 = vunpack.c.l.b16 %v55
  %v205 = vunpack.c.h.b16 %v55
  %v206 = vunpack.c.l.b16 %v56
  %v207 = vunpack.c.h.b16 %v56
  %v208 = vunpack.c.l.b16 %v57
  %v209 = vunpack.c.h.b16 %v57
  %v210 = vunpack.c.l.b16 %v58
  %v211 = vunpack.c.h.b16 %v58
  %v212 = vunpack.c.l.b16 %v59
  %v213 = vunpack.c.h.b16 %v59
  %v214 = vunpack.c.l.b16 %v60
  %v215 = vunpack.c.h.b16 %v60
  %v216 = vunpack.c.l.b16 %v61
  %v217 = vunpack.c.h.b16 %v61
  %v218 = vunpack.c.l.b16 %v62
  %v219 = vunpack.c.h.b16 %v62
  %v220 = vunpack.c.l.b16 %v63
  %v221 = vunpack.c.h.b16 %v63
  %v222 = vunpack.c.l.b16 %v64
  %v223 = vunpack.c.h.b16 %v64
  %v224 = vunpack.c.l.b16 %v65
  %v225 = vunpack.c.h.b16 %v65
  %v226 = vunpack.c.l.b16 %v66
  %v227 = vunpack.c.h.b16 %v66
  %v228 = vunpack.c.l.b16 %v67
  %v229 = vunpack.c.h.b16 %v67
  %v230 = vunpack.c.l.b16 %v68
  %v231 = vunpack.c.h.b16 %v68
  %v232 = vunpack.c.l.b16 %v69
  %v233 = vunpack.c.h.b16 %v69
  %v234 = vunpack.c.l.b16 %v70
  %v235 = vunpack.c.h.b16 %v70
  %v236 = vunpack.c.l.b16 %v71
  %v237 = vunpack.c.h.b16 %v71
  %v238 = vunpack.c.l.b16 %v72
  %v239 = vunpack.c.h.b16 %v72
  %v240 = vunpack.c.l.b16 %v73
  %v241 = vunpack.c.h.b16 %v73
  %v242 = vunpack.c.l.b16 %v74
  %v243 = vunpack.c.h.b16 %v74
  %v244 = vunpack.c.l.b16 %v75
  %v245 = vunpack.c.h.b16 %v75
  %v246 = vunpack.c.l.b16 %v76
  %v247 = vunpack.c.h.b16 %v76
  %v248 = vunpack.c.l.b16 %v77
  %v249 = vunpack.c.h.b16 %v77
  %v250 = vunpack.c.l.b16 %v78
  %v251 = vunpack.c.h.b16 %v78
  %v252 = vunpack.c.l.b16 %v79
  %v253 = vunpack.c.h.b16 %v79
  %v254 = vunpack.c.l.b16 %v80
  %v255 = vunpack.c.h.b16 %v80
  %v256 = vunpack.c.l.b16 %v81
  %v257 = vunpack.c.h.b16 %v81
  %v258 = vunpack.c.l.b16 %v82
  %v259 = vunpack.c.h.b16 %v82
  %v260 = vunpack.c.l.b16 %v83
  %v261 = vunpack.c.h.b16 %v83
  %v262 = vunpack.c.l.b16 %v84
  %v263 = vunpack.c.h.b16 %v84
  %v264 = vunpack.c.l.b16 %v85
  %v265 = vunpack.c.h.b16 %v85
  %v266 = vunpack.c.l.b16 %v86
  %v267 = vunpack.c.h.b16 %v86
  %v268 = vunpack.c.l.b16 %v87
  %v269 = vunpack.c.h.b16 %v87
  %v270 = vunpack.c.l.b16 %v88
  %v271 = vunpack.c.h.b16 %v88
  %v272 = vunpack.c.l.b16 %v89
  %v273 = vunpack.c.h.b16 %v89
  %v274 = vunpack.c.l.b16 %v90
  %v275 = vunpack.c.h.b16 %v90
  %v276 = vunpack.c.l.b16 %v91
  %v277 = vunpack.c.h.b16 %v91
  %v278 = vunpack.c.l.b16 %v92
  %v279 = vunpack.c.h.b16 %v92
  %v280 = vunpack.c.l.b16 %v93
  %v281 = vunpack.c.h.b16 %v93
  %v282 = vunpack.c.l.b16 %v94
  %v283 = vunpack.c.h.b16 %v94
  %v284 = vunpack.c.l.b16 %v95
  %v285 = vunpack.c.h.b16 %v95
  %v286 = vunpack.c.l.b16 %v96
  %v287 = vunpack.c.h.b16 %v96
  %v288 = vunpack.c.l.b16 %v97
  %v289 = vunpack.c.h.b16 %v97
  %v290 = vunpack.c.l.b16 %v98
  %v291 = vunpack.c.h.b16 %v98
  %v292 = vunpack.c.l.b16 %v99
  %v293 = vunpack.c.h.b16 %v99
  %v294 = vunpack.c.l.b16 %v100
  %v295 = vunpack.c.h.b16 %v100
  %v296 = vunpack.c.l.b16 %v101
  %v297 = vunpack.c.h.b16 %v101
  %v298 = vunpack.c.l.b16 %v102
  %v299 = vunpack.c.h.b16 %v102
  %v300 = vunpack.c.l.b16 %v103
  %v301 = vunpack.c.h.b16 %v103
  %v302 = vunpack.c.l.b16 %v104
  %v303 = vunpack.c.h.b16 %v104
  %v304 = vunpack.c.l.b16 %v105
  %v305 = vunpack.c.h.b16 %v105
  %v306 = vunpack.c.l.b16 %v106
  %v307 = vunpack.c.h.b16 %v106
  %v308 = vunpack.c.l.b16 %v107
  %v309 = vunpack.c.h.b16 %v107
  %v310 = vunpack.c.l.b16 %v108
  %v311 = vunpack.c.h.b16 %v108
  %v312 = vunpack.c.l.b16 %v109
  %v313 = vunpack.c.h.b16 %v109
  %v314 = vunpack.c.l.b16 %v110
  %v315 = vunpack.c.h.b16 %v110
  %v316 = vunpack.c.l.b16 %v111
  %v317 = vunpack.c.h.b16 %v111
  %v318 = vunpack.c.l.b16 %v112
  %v319 = vunpack.c.h.b16 %v112
  %v320 = vunpack.c.l.b16 %v113
  %v321 = vunpack.c.h.b16 %v113
  %v322 = vunpack.c.l.b16 %v114
  %v323 = vunpack.c.h.b16 %v114
  %v324 = vunpack.c.l.b16 %v115
  %v325 = vunpack.c.h.b16 %v115
  %v326 = vunpack.c.l.b16 %v116
  %v327 = vunpack.c.h.b16 %v116
  %v328 = vunpack.c.l.b16 %v117
  %v329 = vunpack.c.h.b16 %v117
  %v330 = vpack.c.b16 %v206, %v202
  %v331 = vpack.c.b16 %v207, %v203
  %v332 = vpack.c.b16 %v208, %v204
  %v333 = vpack.c.b16 %v209, %v205
  %v334 = vpack.c.b16 %v214, %v210
  %v335 = vpack.c.b16 %v215, %v211
  %v336 = vpack.c.b16 %v216, %v212
  %v337 = vpack.c.b16 %v217, %v213
  %v338 = vpack.c.b16 %v222, %v218
  %v339 = vpack.c.b16 %v223, %v219
  %v340 = vpack.c.b16 %v224, %v220
  %v341 = vpack.c.b16 %v225, %v221
  %v342 = vpack.c.b16 %v230, %v226
  %v343 = vpack.c.b16 %v231, %v227
  %v344 = vpack.c.b16 %v232, %v228
  %v345 = vpack.c.b16 %v233, %v229
  %v346 = vpack.c.b16 %v238, %v234
  %v347 = vpack.c.b16 %v239, %v235
  %v348 = vpack.c.b16 %v240, %v236
  %v349 = vpack.c.b16 %v241, %v237
  %v350 = vpack.c.b16 %v246, %v242
  %v351 = vpack.c.b16 %v247, %v243
  %v352 = vpack.c.b16 %v248, %v244
  %v353 = vpack.c.b16 %v249, %v245
  %v354 = vpack.c.b16 %v254, %v250
  %v355 = vpack.c.b16 %v255, %v251
  %v356 = vpack.c.b16 %v256, %v252
  %v357 = vpack.c.b16 %v257, %v253
  %v358 = vpack.c.b16 %v262, %v258
  %v359 = vpack.c.b16 %v263, %v259
  %v360 = vpack.c.b16 %v264, %v260
  %v361 = vpack.c.b16 %v265, %v261
  %v362 = vpack.c.b16 %v270, %v266
  %v363 = vpack.c.b16 %v271, %v267
  %v364 = vpack.c.b16 %v272, %v268
  %v365 = vpack.c.b16 %v273, %v269
  %v366 = vpack.c.b16 %v278, %v274
  %v367 = vpack.c.b16 %v279, %v275
  %v368 = vpack.c.b16 %v280, %v276
  %v369 = vpack.c.b16 %v281, %v277
  %v370 = vpack.c.b16 %v286, %v282
  %v371 = vpack.c.b16 %v287, %v283
  %v372 = vpack.c.b16 %v288, %v284
  %v373 = vpack.c.b16 %v289, %v285
  %v374 = vpack.c.b16 %v294, %v290
  %v375 = vpack.c.b16 %v295, %v291
  %v376 = vpack.c.b16 %v296, %v292
  %v377 = vpack.c.b16 %v297, %v293
  %v378 = vpack.c.b16 %v302, %v298
  %v379 = vpack.c.b16 %v303, %v299
  %v380 = vpack.c.b16 %v304, %v300
  %v381 = vpack.c.b16 %v305, %v301
  %v382 = vpack.c.b16 %v310, %v306
  %v383 = vpack.c.b16 %v311, %v307
  %v384 = vpack.c.b16 %v312, %v308
  %v385 = vpack.c.b16 %v313, %v309
  %v386 = vpack.c.b16 %v318, %v314
  %v387 = vpack.c.b16 %v319, %v315
  %v388 = vpack.c.b16 %v320, %v316
  %v389 = vpack.c.b16 %v321, %v317
  %v390 = vpack.c.b16 %v326, %v322
  %v391 = vpack.c.b16 %v327, %v323
  %v392 = vpack.c.b16 %v328, %v324
  %v393 = vpack.c.b16 %v329, %v325
  %458 = vmatprep.subr.bf16.mxu0 %v331
  %459 = vmatpush1.bf16.msra.mxu0 %v330
  %460 = vmatprep.subr.bf16.mxu0 %v335
  %461 = vmatpush1.bf16.msra.mxu0 %v334
  %462 = vmatprep.subr.bf16.mxu0 %v339
  %463 = vmatpush1.bf16.msra.mxu0 %v338
  %464 = vmatprep.subr.bf16.mxu0 %v343
  %465 = vmatpush1.bf16.msra.mxu0 %v342
  %466 = vmatprep.subr.bf16.mxu0 %v347
  %467 = vmatpush1.bf16.msra.mxu0 %v346
  %468 = vmatprep.subr.bf16.mxu0 %v351
  %469 = vmatpush1.bf16.msra.mxu0 %v350
  %470 = vmatprep.subr.bf16.mxu0 %v355
  %471 = vmatpush1.bf16.msra.mxu0 %v354
  %472 = vmatprep.subr.bf16.mxu0 %v359
  %473 = vmatpush1.bf16.msra.mxu0 %v358
  %474 = vmatprep.subr.bf16.mxu0 %v363
  %475 = vmatpush1.bf16.msra.mxu0 %v362
  %476 = vmatprep.subr.bf16.mxu0 %v367
  %477 = vmatpush1.bf16.msra.mxu0 %v366
  %478 = vmatprep.subr.bf16.mxu0 %v371
  %479 = vmatpush1.bf16.msra.mxu0 %v370
  %480 = vmatprep.subr.bf16.mxu0 %v375
  %481 = vmatpush1.bf16.msra.mxu0 %v374
  %482 = vmatprep.subr.bf16.mxu0 %v379
  %483 = vmatpush1.bf16.msra.mxu0 %v378
  %484 = vmatprep.subr.bf16.mxu0 %v383
  %485 = vmatpush1.bf16.msra.mxu0 %v382
  %486 = vmatprep.subr.bf16.mxu0 %v387
  %487 = vmatpush1.bf16.msra.mxu0 %v386
  %488 = vmatprep.subr.bf16.mxu0 %v391
  %489 = vmatpush1.bf16.msra.mxu0 %v390
  %490 = vmatprep.mubr.bf16.mxu0 %v131
  %491 = vmatmul.mubr.bf16.gmra.mrb[0].mxu0 %v130
  %v492 = vpop.f32.mrb[0].mxu0
  %v493 = vadd.f32 0.0, %v492
  %v494 = vpop.f32.mrb[0].mxu0
  %v495 = vadd.f32 0.0, %v494
  %v496 = vpop.f32.mrb[0].mxu0
  %v497 = vadd.f32 0.0, %v496
  %v498 = vpop.f32.mrb[0].mxu0
  %v499 = vadd.f32 0.0, %v498
  %500 = vmatprep.mubr.bf16.mxu0 %v133
  %501 = vmatmul.mubr.bf16.gmra.mrb[0].mxu0 %v132
  %v502 = vpop.f32.mrb[0].mxu0
  %v503 = vadd.f32 0.0, %v502
  %v504 = vpop.f32.mrb[0].mxu0
  %v505 = vadd.f32 0.0, %v504
  %v506 = vpop.f32.mrb[0].mxu0
  %v507 = vadd.f32 0.0, %v506
  %v508 = vpop.f32.mrb[0].mxu0
  %v509 = vadd.f32 0.0, %v508
  %510 = vdwg.mxu0
  %511 = vmatprep.subr.bf16.mxu0 %v333
  %512 = vmatpush1.bf16.msra.mxu0 %v332
  %513 = vmatprep.subr.bf16.mxu0 %v337
  %514 = vmatpush1.bf16.msra.mxu0 %v336
  %515 = vmatprep.subr.bf16.mxu0 %v341
  %516 = vmatpush1.bf16.msra.mxu0 %v340
  %517 = vmatprep.subr.bf16.mxu0 %v345
  %518 = vmatpush1.bf16.msra.mxu0 %v344
  %519 = vmatprep.subr.bf16.mxu0 %v349
  %520 = vmatpush1.bf16.msra.mxu0 %v348
  %521 = vmatprep.subr.bf16.mxu0 %v353
  %522 = vmatpush1.bf16.msra.mxu0 %v352
  %523 = vmatprep.subr.bf16.mxu0 %v357
  %524 = vmatpush1.bf16.msra.mxu0 %v356
  %525 = vmatprep.subr.bf16.mxu0 %v361
  %526 = vmatpush1.bf16.msra.mxu0 %v360
  %527 = vmatprep.subr.bf16.mxu0 %v365
  %528 = vmatpush1.bf16.msra.mxu0 %v364
  %529 = vmatprep.subr.bf16.mxu0 %v369
  %530 = vmatpush1.bf16.msra.mxu0 %v368
  %531 = vmatprep.subr.bf16.mxu0 %v373
  %532 = vmatpush1.bf16.msra.mxu0 %v372
  %533 = vmatprep.subr.bf16.mxu0 %v377
  %534 = vmatpush1.bf16.msra.mxu0 %v376
  %535 = vmatprep.subr.bf16.mxu0 %v381
  %536 = vmatpush1.bf16.msra.mxu0 %v380
  %537 = vmatprep.subr.bf16.mxu0 %v385
  %538 = vmatpush1.bf16.msra.mxu0 %v384
  %539 = vmatprep.subr.bf16.mxu0 %v389
  %540 = vmatpush1.bf16.msra.mxu0 %v388
  %541 = vmatprep.subr.bf16.mxu0 %v393
  %542 = vmatpush1.bf16.msra.mxu0 %v392
  %543 = vmatprep.mubr.bf16.mxu0 %v131
  %544 = vmatmul.mubr.bf16.gmra.mrb[0].mxu0 %v130
  %v545 = vpop.f32.mrb[0].mxu0
  %v546 = vadd.f32 0.0, %v545
  %v547 = vpop.f32.mrb[0].mxu0
  %v548 = vadd.f32 0.0, %v547
  %v549 = vpop.f32.mrb[0].mxu0
  %v550 = vadd.f32 0.0, %v549
  %v551 = vpop.f32.mrb[0].mxu0
  %v552 = vadd.f32 0.0, %v551
  %553 = vmatprep.mubr.bf16.mxu0 %v133
  %554 = vmatmul.mubr.bf16.gmra.mrb[0].mxu0 %v132
  %v555 = vpop.f32.mrb[0].mxu0
  %v556 = vadd.f32 0.0, %v555
  %v557 = vpop.f32.mrb[0].mxu0
  %v558 = vadd.f32 0.0, %v557
  %v559 = vpop.f32.mrb[0].mxu0
  %v560 = vadd.f32 0.0, %v559
  %v561 = vpop.f32.mrb[0].mxu0
  %v562 = vadd.f32 0.0, %v561
  %563 = vdwg.mxu0
  %v564 = vadd.f32 %v34, %v493
  %v565 = vadd.f32 %v35, %v495
  %v566 = vadd.f32 %v36, %v546
  %v567 = vadd.f32 %v37, %v548
  %v568 = vadd.f32 %v38, %v497
  %v569 = vadd.f32 %v39, %v499
  %v570 = vadd.f32 %v40, %v550
  %v571 = vadd.f32 %v41, %v552
  %v572 = vadd.f32 %v42, %v503
  %v573 = vadd.f32 %v43, %v505
  %v574 = vadd.f32 %v44, %v556
  %v575 = vadd.f32 %v45, %v558
  %v576 = vadd.f32 %v46, %v507
  %v577 = vadd.f32 %v47, %v509
  %v578 = vadd.f32 %v48, %v560
  %v579 = vadd.f32 %v49, %v562
  %580 = vst [vmem:[#allocation2] sm:$0xff] %v564
  %581 = vst [vmem:[#allocation2 + $0x8] sm:$0xff] %v565
  %582 = vst [vmem:[#allocation2 + $0x10] sm:$0xff] %v566
  %583 = vst [vmem:[#allocation2 + $0x18] sm:$0xff] %v567
  %584 = vst [vmem:[#allocation2 + $0x20] sm:$0xff] %v568
  %585 = vst [vmem:[#allocation2 + $0x28] sm:$0xff] %v569
  %586 = vst [vmem:[#allocation2 + $0x30] sm:$0xff] %v570
  %587 = vst [vmem:[#allocation2 + $0x38] sm:$0xff] %v571
  %588 = vst [vmem:[#allocation2 + $0x40] sm:$0xff] %v572
  %589 = vst [vmem:[#allocation2 + $0x48] sm:$0xff] %v573
  %590 = vst [vmem:[#allocation2 + $0x50] sm:$0xff] %v574
  %591 = vst [vmem:[#allocation2 + $0x58] sm:$0xff] %v575
  %592 = vst [vmem:[#allocation2 + $0x60] sm:$0xff] %v576
  %593 = vst [vmem:[#allocation2 + $0x68] sm:$0xff] %v577
  %594 = vst [vmem:[#allocation2 + $0x70] sm:$0xff] %v578
  %595 = vst [vmem:[#allocation2 + $0x78] sm:$0xff] %v579
  // Predicated region
  $region18: #{decoder_forward.23} parent=0 // pred_check
    %p596 = pneg %p14
  $region19: #{decoder_forward.23} parent=0 // pred_check_branch
    %598 = sbr.rel (%p596) target = $region21
  $region20: #{decoder_forward.23} parent=0 // pred_region
    %v599 = vld [vmem:[#allocation2] sm:$0xff]
    %v600 = vld [vmem:[#allocation2 + $0x8] sm:$0xff]
    %v601 = vld [vmem:[#allocation2 + $0x10] sm:$0xff]
    %v602 = vld [vmem:[#allocation2 + $0x18] sm:$0xff]
    %v603 = vld [vmem:[#allocation2 + $0x20] sm:$0xff]
    %v604 = vld [vmem:[#allocation2 + $0x28] sm:$0xff]
    %v605 = vld [vmem:[#allocation2 + $0x30] sm:$0xff]
    %v606 = vld [vmem:[#allocation2 + $0x38] sm:$0xff]
    %v607 = vld [vmem:[#allocation2 + $0x40] sm:$0xff]
    %v608 = vld [vmem:[#allocation2 + $0x48] sm:$0xff]
    %v609 = vld [vmem:[#allocation2 + $0x50] sm:$0xff]
    %v610 = vld [vmem:[#allocation2 + $0x58] sm:$0xff]
    %v611 = vld [vmem:[#allocation2 + $0x60] sm:$0xff]
    %v612 = vld [vmem:[#allocation2 + $0x68] sm:$0xff]
    %v613 = vld [vmem:[#allocation2 + $0x70] sm:$0xff]
    %v614 = vld [vmem:[#allocation2 + $0x78] sm:$0xff]
    %v615 = vld [vmem:[%s2] sm:$0xf]
    %v616 = vunpack.c.l.bf16 %v615
    %v618 = vlaneseq
    %v619 = vshrl.u32 %v618, 7
    %v620 = vsub.s32 0, %v619
    %v621 = vrot.slane %v616, %v620
    %v622 = vlaneseq
    %v623 = vshrl.u32 %v622, 7
    %v624 = vsub.s32 2, %v623
    %v625 = vrot.slane %v616, %v624
    %v626 = vlaneseq
    %v627 = vshrl.u32 %v626, 7
    %v628 = vsub.s32 4, %v627
    %v629 = vrot.slane %v616, %v628
    %v630 = vlaneseq
    %v631 = vshrl.u32 %v630, 7
    %v632 = vsub.s32 6, %v631
    %v633 = vrot.slane %v616, %v632
    %v638 = vlaneseq
    %v639 = vshrl.u32 %v638, 7
    %v640 = vsub.s32 0, %v639
    %v641 = vrot.slane %v621, %v640
    %v642 = vlaneseq
    %v643 = vshrl.u32 %v642, 7
    %v644 = vsub.s32 0, %v643
    %v645 = vrot.slane %v625, %v644
    %v646 = vlaneseq
    %v647 = vshrl.u32 %v646, 7
    %v648 = vsub.s32 0, %v647
    %v649 = vrot.slane %v629, %v648
    %v650 = vlaneseq
    %v651 = vshrl.u32 %v650, 7
    %v652 = vsub.s32 0, %v651
    %v653 = vrot.slane %v633, %v652
    %v654 = vadd.f32 %v599, %v641
    %v655 = vadd.f32 %v600, %v645
    %v656 = vadd.f32 %v601, %v649
    %v657 = vadd.f32 %v602, %v653
    %v658 = vadd.f32 %v603, %v641
    %v659 = vadd.f32 %v604, %v645
    %v660 = vadd.f32 %v605, %v649
    %v661 = vadd.f32 %v606, %v653
    %v662 = vadd.f32 %v607, %v641
    %v663 = vadd.f32 %v608, %v645
    %v664 = vadd.f32 %v609, %v649
    %v665 = vadd.f32 %v610, %v653
    %v666 = vadd.f32 %v611, %v641
    %v667 = vadd.f32 %v612, %v645
    %v668 = vadd.f32 %v613, %v649
    %v669 = vadd.f32 %v614, %v653
    %v670 = vpack.c.bf16 %v658, %v654
    %v671 = vpack.c.bf16 %v659, %v655
    %v672 = vpack.c.bf16 %v660, %v656
    %v673 = vpack.c.bf16 %v661, %v657
    %v674 = vpack.c.bf16 %v666, %v662
    %v675 = vpack.c.bf16 %v667, %v663
    %v676 = vpack.c.bf16 %v668, %v664
    %v677 = vpack.c.bf16 %v669, %v665
    %v686 = vunpack.c.l.b16 %v670
    %v687 = vunpack.c.l.b16 %v671
    %v688 = vunpack.c.l.b16 %v672
    %v689 = vunpack.c.l.b16 %v673
    %v690 = vunpack.c.h.b16 %v670
    %v691 = vunpack.c.h.b16 %v671
    %v692 = vunpack.c.h.b16 %v672
    %v693 = vunpack.c.h.b16 %v673
    %v694 = vunpack.c.l.b16 %v674
    %v695 = vunpack.c.l.b16 %v675
    %v696 = vunpack.c.l.b16 %v676
    %v697 = vunpack.c.l.b16 %v677
    %v698 = vunpack.c.h.b16 %v674
    %v699 = vunpack.c.h.b16 %v675
    %v700 = vunpack.c.h.b16 %v676
    %v701 = vunpack.c.h.b16 %v677
    %v702 = vpack.c.b16 %v687, %v686
    %v703 = vpack.c.b16 %v689, %v688
    %v704 = vpack.c.b16 %v691, %v690
    %v705 = vpack.c.b16 %v693, %v692
    %v706 = vpack.c.b16 %v695, %v694
    %v707 = vpack.c.b16 %v697, %v696
    %v708 = vpack.c.b16 %v699, %v698
    %v709 = vpack.c.b16 %v701, %v700
    %718 = vst [vmem:[%s3] sm:$0xff] %v702
    %719 = vst [vmem:[%s3 + $0x8] sm:$0xff] %v703
    %720 = vst [vmem:[%s3 + $0x10] sm:$0xff] %v704
    %721 = vst [vmem:[%s3 + $0x18] sm:$0xff] %v705
    %722 = vst [vmem:[%s3 + $0x20] sm:$0xff] %v706
    %723 = vst [vmem:[%s3 + $0x28] sm:$0xff] %v707
    %724 = vst [vmem:[%s3 + $0x30] sm:$0xff] %v708
    %725 = vst [vmem:[%s3 + $0x38] sm:$0xff] %v709
  $region21: #{decoder_forward.23} parent=0 // pred_fallthru
    _
  // Predicated region
  $region22: #{decoder_forward.23} parent=0 // pred_check
    _
  $region23: #{decoder_forward.23} parent=0 // pred_check_branch
    %727 = sbr.rel (0) target = $region25
  $region24: #{decoder_forward.23} parent=0 // pred_region
    _
  $region25: #{decoder_forward.23} parent=0 // pred_fallthru
    _
  // Predicated region
  $region26: #{decoder_forward.23} parent=0 // pred_check
    _
  $region27: #{decoder_forward.23} parent=0 // pred_check_branch
    %729 = sbr.rel (0) target = $region29
  $region28: #{decoder_forward.23} parent=0 // pred_region
    _
  $region29: #{decoder_forward.23} parent=0 // pred_fallthru
    _

// kernel: decoder_forward.26
$region0: #{decoder_forward.26}
  #allocation0 [shape = 'u32[]', space=smem, size = 0x4, offset = 0x4, fixed_abs, tag = 'smem constant byte address 0x4 - core index']
  #allocation1 [shape = 'u32[144,128]{1,0:T(1,128)}', space=vmem, size = 0x12000, scoped, tag = 'internal scratch']
  #allocation2 [shape = 'f32[16,512]{1,0:T(8,128)}', space=vmem, size = 0x8000, scoped, tag = 'scratch operand']
  %s0 = inlined_call_operand.vmem [shape: bf16[16,256], index: 0, kind: input, shape index: {}]
  %s1 = inlined_call_operand.vmem [shape: bf16[256,512], index: 1, kind: input, shape index: {}]
  %s2 = inlined_call_operand.vmem [shape: bf16[1,512], index: 2, kind: input, shape index: {}]
  %s3 = inlined_call_operand.vmem [shape: bf16[16,512], index: 3, kind: output, shape index: {}]
  %s4 = sld [smem:[#allocation0]]
  $region30: #{decoder_forward.26} parent=0
    _
  %s6 = ssub.s32 1, %s4
  %s7 = scalar_select 0, %s6, %s4
  // Predicated region
  $region2: #{decoder_forward.26} parent=0 // pred_check
    _
  $region3: #{decoder_forward.26} parent=0 // pred_check_branch
    %9 = sbr.rel (0) target = $region5
  $region4: #{decoder_forward.26} parent=0 // pred_region
    _
  $region5: #{decoder_forward.26} parent=0 // pred_fallthru
    _
  // Predicated region
  $region6: #{decoder_forward.26} parent=0 // pred_check
    _
  $region7: #{decoder_forward.26} parent=0 // pred_check_branch
    %11 = sbr.rel (0) target = $region9
  $region8: #{decoder_forward.26} parent=0 // pred_region
    _
  $region9: #{decoder_forward.26} parent=0 // pred_fallthru
    _
  // Predicated region
  $region10: #{decoder_forward.26} parent=0 // pred_check
    _
  $region11: #{decoder_forward.26} parent=0 // pred_check_branch
    %13 = sbr.rel (0) target = $region13
  $region12: #{decoder_forward.26} parent=0 // pred_region
    _
  $region13: #{decoder_forward.26} parent=0 // pred_fallthru
    _
  %p14 = scmp.eq.s32.totalorder 0, 0
  // Predicated region
  $region14: #{decoder_forward.26} parent=0 // pred_check
    %p15 = pneg %p14
  $region15: #{decoder_forward.26} parent=0 // pred_check_branch
    %17 = sbr.rel (%p15) target = $region17
  $region16: #{decoder_forward.26} parent=0 // pred_region
    %18 = vst [vmem:[#allocation2] sm:$0xff] 0.0
    %19 = vst [vmem:[#allocation2 + $0x8] sm:$0xff] 0.0
    %20 = vst [vmem:[#allocation2 + $0x10] sm:$0xff] 0.0
    %21 = vst [vmem:[#allocation2 + $0x18] sm:$0xff] 0.0
    %22 = vst [vmem:[#allocation2 + $0x20] sm:$0xff] 0.0
    %23 = vst [vmem:[#allocation2 + $0x28] sm:$0xff] 0.0
    %24 = vst [vmem:[#allocation2 + $0x30] sm:$0xff] 0.0
    %25 = vst [vmem:[#allocation2 + $0x38] sm:$0xff] 0.0
  $region17: #{decoder_forward.26} parent=0 // pred_fallthru
    _
  %v26 = vld [vmem:[#allocation2] sm:$0xff]
  %v27 = vld [vmem:[#allocation2 + $0x8] sm:$0xff]
  %v28 = vld [vmem:[#allocation2 + $0x10] sm:$0xff]
  %v29 = vld [vmem:[#allocation2 + $0x18] sm:$0xff]
  %v30 = vld [vmem:[#allocation2 + $0x20] sm:$0xff]
  %v31 = vld [vmem:[#allocation2 + $0x28] sm:$0xff]
  %v32 = vld [vmem:[#allocation2 + $0x30] sm:$0xff]
  %v33 = vld [vmem:[#allocation2 + $0x38] sm:$0xff]
  %v34 = vld [vmem:[%s0] sm:$0xff]
  %v35 = vld [vmem:[%s0 + $0x8] sm:$0xff]
  %v36 = vld [vmem:[%s1] sm:$0xff]
  %v37 = vld [vmem:[%s1 + $0x8] sm:$0xff]
  %v38 = vld [vmem:[%s1 + $0x10] sm:$0xff]
  %v39 = vld [vmem:[%s1 + $0x18] sm:$0xff]
  %v40 = vld [vmem:[%s1 + $0x20] sm:$0xff]
  %v41 = vld [vmem:[%s1 + $0x28] sm:$0xff]
  %v42 = vld [vmem:[%s1 + $0x30] sm:$0xff]
  %v43 = vld [vmem:[%s1 + $0x38] sm:$0xff]
  %v44 = vld [vmem:[%s1 + $0x40] sm:$0xff]
  %v45 = vld [vmem:[%s1 + $0x48] sm:$0xff]
  %v46 = vld [vmem:[%s1 + $0x50] sm:$0xff]
  %v47 = vld [vmem:[%s1 + $0x58] sm:$0xff]
  %v48 = vld [vmem:[%s1 + $0x60] sm:$0xff]
  %v49 = vld [vmem:[%s1 + $0x68] sm:$0xff]
  %v50 = vld [vmem:[%s1 + $0x70] sm:$0xff]
  %v51 = vld [vmem:[%s1 + $0x78] sm:$0xff]
  %v52 = vld [vmem:[%s1 + $0x80] sm:$0xff]
  %v53 = vld [vmem:[%s1 + $0x88] sm:$0xff]
  %v54 = vld [vmem:[%s1 + $0x90] sm:$0xff]
  %v55 = vld [vmem:[%s1 + $0x98] sm:$0xff]
  %v56 = vld [vmem:[%s1 + $0xa0] sm:$0xff]
  %v57 = vld [vmem:[%s1 + $0xa8] sm:$0xff]
  %v58 = vld [vmem:[%s1 + $0xb0] sm:$0xff]
  %v59 = vld [vmem:[%s1 + $0xb8] sm:$0xff]
  %v60 = vld [vmem:[%s1 + $0xc0] sm:$0xff]
  %v61 = vld [vmem:[%s1 + $0xc8] sm:$0xff]
  %v62 = vld [vmem:[%s1 + $0xd0] sm:$0xff]
  %v63 = vld [vmem:[%s1 + $0xd8] sm:$0xff]
  %v64 = vld [vmem:[%s1 + $0xe0] sm:$0xff]
  %v65 = vld [vmem:[%s1 + $0xe8] sm:$0xff]
  %v66 = vld [vmem:[%s1 + $0xf0] sm:$0xff]
  %v67 = vld [vmem:[%s1 + $0xf8] sm:$0xff]
  %v68 = vld [vmem:[%s1 + $0x100] sm:$0xff]
  %v69 = vld [vmem:[%s1 + $0x108] sm:$0xff]
  %v70 = vld [vmem:[%s1 + $0x110] sm:$0xff]
  %v71 = vld [vmem:[%s1 + $0x118] sm:$0xff]
  %v72 = vld [vmem:[%s1 + $0x120] sm:$0xff]
  %v73 = vld [vmem:[%s1 + $0x128] sm:$0xff]
  %v74 = vld [vmem:[%s1 + $0x130] sm:$0xff]
  %v75 = vld [vmem:[%s1 + $0x138] sm:$0xff]
  %v76 = vld [vmem:[%s1 + $0x140] sm:$0xff]
  %v77 = vld [vmem:[%s1 + $0x148] sm:$0xff]
  %v78 = vld [vmem:[%s1 + $0x150] sm:$0xff]
  %v79 = vld [vmem:[%s1 + $0x158] sm:$0xff]
  %v80 = vld [vmem:[%s1 + $0x160] sm:$0xff]
  %v81 = vld [vmem:[%s1 + $0x168] sm:$0xff]
  %v82 = vld [vmem:[%s1 + $0x170] sm:$0xff]
  %v83 = vld [vmem:[%s1 + $0x178] sm:$0xff]
  %v84 = vld [vmem:[%s1 + $0x180] sm:$0xff]
  %v85 = vld [vmem:[%s1 + $0x188] sm:$0xff]
  %v86 = vld [vmem:[%s1 + $0x190] sm:$0xff]
  %v87 = vld [vmem:[%s1 + $0x198] sm:$0xff]
  %v88 = vld [vmem:[%s1 + $0x1a0] sm:$0xff]
  %v89 = vld [vmem:[%s1 + $0x1a8] sm:$0xff]
  %v90 = vld [vmem:[%s1 + $0x1b0] sm:$0xff]
  %v91 = vld [vmem:[%s1 + $0x1b8] sm:$0xff]
  %v92 = vld [vmem:[%s1 + $0x1c0] sm:$0xff]
  %v93 = vld [vmem:[%s1 + $0x1c8] sm:$0xff]
  %v94 = vld [vmem:[%s1 + $0x1d0] sm:$0xff]
  %v95 = vld [vmem:[%s1 + $0x1d8] sm:$0xff]
  %v96 = vld [vmem:[%s1 + $0x1e0] sm:$0xff]
  %v97 = vld [vmem:[%s1 + $0x1e8] sm:$0xff]
  %v98 = vld [vmem:[%s1 + $0x1f0] sm:$0xff]
  %v99 = vld [vmem:[%s1 + $0x1f8] sm:$0xff]
  %v102 = vunpack.c.l.b16 %v34
  %v103 = vunpack.c.h.b16 %v34
  %v104 = vunpack.c.l.b16 %v35
  %v105 = vunpack.c.h.b16 %v35
  %v106 = vpack.c.b16 %v104, %v102
  %v107 = vpack.c.b16 %v105, %v103
  %v174 = vunpack.c.l.b16 %v36
  %v175 = vunpack.c.h.b16 %v36
  %v176 = vunpack.c.l.b16 %v37
  %v177 = vunpack.c.h.b16 %v37
  %v178 = vunpack.c.l.b16 %v38
  %v179 = vunpack.c.h.b16 %v38
  %v180 = vunpack.c.l.b16 %v39
  %v181 = vunpack.c.h.b16 %v39
  %v182 = vunpack.c.l.b16 %v40
  %v183 = vunpack.c.h.b16 %v40
  %v184 = vunpack.c.l.b16 %v41
  %v185 = vunpack.c.h.b16 %v41
  %v186 = vunpack.c.l.b16 %v42
  %v187 = vunpack.c.h.b16 %v42
  %v188 = vunpack.c.l.b16 %v43
  %v189 = vunpack.c.h.b16 %v43
  %v190 = vunpack.c.l.b16 %v44
  %v191 = vunpack.c.h.b16 %v44
  %v192 = vunpack.c.l.b16 %v45
  %v193 = vunpack.c.h.b16 %v45
  %v194 = vunpack.c.l.b16 %v46
  %v195 = vunpack.c.h.b16 %v46
  %v196 = vunpack.c.l.b16 %v47
  %v197 = vunpack.c.h.b16 %v47
  %v198 = vunpack.c.l.b16 %v48
  %v199 = vunpack.c.h.b16 %v48
  %v200 = vunpack.c.l.b16 %v49
  %v201 = vunpack.c.h.b16 %v49
  %v202 = vunpack.c.l.b16 %v50
  %v203 = vunpack.c.h.b16 %v50
  %v204 = vunpack.c.l.b16 %v51
  %v205 = vunpack.c.h.b16 %v51
  %v206 = vunpack.c.l.b16 %v52
  %v207 = vunpack.c.h.b16 %v52
  %v208 = vunpack.c.l.b16 %v53
  %v209 = vunpack.c.h.b16 %v53
  %v210 = vunpack.c.l.b16 %v54
  %v211 = vunpack.c.h.b16 %v54
  %v212 = vunpack.c.l.b16 %v55
  %v213 = vunpack.c.h.b16 %v55
  %v214 = vunpack.c.l.b16 %v56
  %v215 = vunpack.c.h.b16 %v56
  %v216 = vunpack.c.l.b16 %v57
  %v217 = vunpack.c.h.b16 %v57
  %v218 = vunpack.c.l.b16 %v58
  %v219 = vunpack.c.h.b16 %v58
  %v220 = vunpack.c.l.b16 %v59
  %v221 = vunpack.c.h.b16 %v59
  %v222 = vunpack.c.l.b16 %v60
  %v223 = vunpack.c.h.b16 %v60
  %v224 = vunpack.c.l.b16 %v61
  %v225 = vunpack.c.h.b16 %v61
  %v226 = vunpack.c.l.b16 %v62
  %v227 = vunpack.c.h.b16 %v62
  %v228 = vunpack.c.l.b16 %v63
  %v229 = vunpack.c.h.b16 %v63
  %v230 = vunpack.c.l.b16 %v64
  %v231 = vunpack.c.h.b16 %v64
  %v232 = vunpack.c.l.b16 %v65
  %v233 = vunpack.c.h.b16 %v65
  %v234 = vunpack.c.l.b16 %v66
  %v235 = vunpack.c.h.b16 %v66
  %v236 = vunpack.c.l.b16 %v67
  %v237 = vunpack.c.h.b16 %v67
  %v238 = vunpack.c.l.b16 %v68
  %v239 = vunpack.c.h.b16 %v68
  %v240 = vunpack.c.l.b16 %v69
  %v241 = vunpack.c.h.b16 %v69
  %v242 = vunpack.c.l.b16 %v70
  %v243 = vunpack.c.h.b16 %v70
  %v244 = vunpack.c.l.b16 %v71
  %v245 = vunpack.c.h.b16 %v71
  %v246 = vunpack.c.l.b16 %v72
  %v247 = vunpack.c.h.b16 %v72
  %v248 = vunpack.c.l.b16 %v73
  %v249 = vunpack.c.h.b16 %v73
  %v250 = vunpack.c.l.b16 %v74
  %v251 = vunpack.c.h.b16 %v74
  %v252 = vunpack.c.l.b16 %v75
  %v253 = vunpack.c.h.b16 %v75
  %v254 = vunpack.c.l.b16 %v76
  %v255 = vunpack.c.h.b16 %v76
  %v256 = vunpack.c.l.b16 %v77
  %v257 = vunpack.c.h.b16 %v77
  %v258 = vunpack.c.l.b16 %v78
  %v259 = vunpack.c.h.b16 %v78
  %v260 = vunpack.c.l.b16 %v79
  %v261 = vunpack.c.h.b16 %v79
  %v262 = vunpack.c.l.b16 %v80
  %v263 = vunpack.c.h.b16 %v80
  %v264 = vunpack.c.l.b16 %v81
  %v265 = vunpack.c.h.b16 %v81
  %v266 = vunpack.c.l.b16 %v82
  %v267 = vunpack.c.h.b16 %v82
  %v268 = vunpack.c.l.b16 %v83
  %v269 = vunpack.c.h.b16 %v83
  %v270 = vunpack.c.l.b16 %v84
  %v271 = vunpack.c.h.b16 %v84
  %v272 = vunpack.c.l.b16 %v85
  %v273 = vunpack.c.h.b16 %v85
  %v274 = vunpack.c.l.b16 %v86
  %v275 = vunpack.c.h.b16 %v86
  %v276 = vunpack.c.l.b16 %v87
  %v277 = vunpack.c.h.b16 %v87
  %v278 = vunpack.c.l.b16 %v88
  %v279 = vunpack.c.h.b16 %v88
  %v280 = vunpack.c.l.b16 %v89
  %v281 = vunpack.c.h.b16 %v89
  %v282 = vunpack.c.l.b16 %v90
  %v283 = vunpack.c.h.b16 %v90
  %v284 = vunpack.c.l.b16 %v91
  %v285 = vunpack.c.h.b16 %v91
  %v286 = vunpack.c.l.b16 %v92
  %v287 = vunpack.c.h.b16 %v92
  %v288 = vunpack.c.l.b16 %v93
  %v289 = vunpack.c.h.b16 %v93
  %v290 = vunpack.c.l.b16 %v94
  %v291 = vunpack.c.h.b16 %v94
  %v292 = vunpack.c.l.b16 %v95
  %v293 = vunpack.c.h.b16 %v95
  %v294 = vunpack.c.l.b16 %v96
  %v295 = vunpack.c.h.b16 %v96
  %v296 = vunpack.c.l.b16 %v97
  %v297 = vunpack.c.h.b16 %v97
  %v298 = vunpack.c.l.b16 %v98
  %v299 = vunpack.c.h.b16 %v98
  %v300 = vunpack.c.l.b16 %v99
  %v301 = vunpack.c.h.b16 %v99
  %v302 = vpack.c.b16 %v178, %v174
  %v303 = vpack.c.b16 %v179, %v175
  %v304 = vpack.c.b16 %v180, %v176
  %v305 = vpack.c.b16 %v181, %v177
  %v306 = vpack.c.b16 %v186, %v182
  %v307 = vpack.c.b16 %v187, %v183
  %v308 = vpack.c.b16 %v188, %v184
  %v309 = vpack.c.b16 %v189, %v185
  %v310 = vpack.c.b16 %v194, %v190
  %v311 = vpack.c.b16 %v195, %v191
  %v312 = vpack.c.b16 %v196, %v192
  %v313 = vpack.c.b16 %v197, %v193
  %v314 = vpack.c.b16 %v202, %v198
  %v315 = vpack.c.b16 %v203, %v199
  %v316 = vpack.c.b16 %v204, %v200
  %v317 = vpack.c.b16 %v205, %v201
  %v318 = vpack.c.b16 %v210, %v206
  %v319 = vpack.c.b16 %v211, %v207
  %v320 = vpack.c.b16 %v212, %v208
  %v321 = vpack.c.b16 %v213, %v209
  %v322 = vpack.c.b16 %v218, %v214
  %v323 = vpack.c.b16 %v219, %v215
  %v324 = vpack.c.b16 %v220, %v216
  %v325 = vpack.c.b16 %v221, %v217
  %v326 = vpack.c.b16 %v226, %v222
  %v327 = vpack.c.b16 %v227, %v223
  %v328 = vpack.c.b16 %v228, %v224
  %v329 = vpack.c.b16 %v229, %v225
  %v330 = vpack.c.b16 %v234, %v230
  %v331 = vpack.c.b16 %v235, %v231
  %v332 = vpack.c.b16 %v236, %v232
  %v333 = vpack.c.b16 %v237, %v233
  %v334 = vpack.c.b16 %v242, %v238
  %v335 = vpack.c.b16 %v243, %v239
  %v336 = vpack.c.b16 %v244, %v240
  %v337 = vpack.c.b16 %v245, %v241
  %v338 = vpack.c.b16 %v250, %v246
  %v339 = vpack.c.b16 %v251, %v247
  %v340 = vpack.c.b16 %v252, %v248
  %v341 = vpack.c.b16 %v253, %v249
  %v342 = vpack.c.b16 %v258, %v254
  %v343 = vpack.c.b16 %v259, %v255
  %v344 = vpack.c.b16 %v260, %v256
  %v345 = vpack.c.b16 %v261, %v257
  %v346 = vpack.c.b16 %v266, %v262
  %v347 = vpack.c.b16 %v267, %v263
  %v348 = vpack.c.b16 %v268, %v264
  %v349 = vpack.c.b16 %v269, %v265
  %v350 = vpack.c.b16 %v274, %v270
  %v351 = vpack.c.b16 %v275, %v271
  %v352 = vpack.c.b16 %v276, %v272
  %v353 = vpack.c.b16 %v277, %v273
  %v354 = vpack.c.b16 %v282, %v278
  %v355 = vpack.c.b16 %v283, %v279
  %v356 = vpack.c.b16 %v284, %v280
  %v357 = vpack.c.b16 %v285, %v281
  %v358 = vpack.c.b16 %v290, %v286
  %v359 = vpack.c.b16 %v291, %v287
  %v360 = vpack.c.b16 %v292, %v288
  %v361 = vpack.c.b16 %v293, %v289
  %v362 = vpack.c.b16 %v298, %v294
  %v363 = vpack.c.b16 %v299, %v295
  %v364 = vpack.c.b16 %v300, %v296
  %v365 = vpack.c.b16 %v301, %v297
  %430 = vmatprep.subr.bf16.mxu0 %v303
  %431 = vmatpush1.bf16.msra.mxu0 %v302
  %432 = vmatprep.subr.bf16.mxu0 %v307
  %433 = vmatpush1.bf16.msra.mxu0 %v306
  %434 = vmatprep.subr.bf16.mxu0 %v311
  %435 = vmatpush1.bf16.msra.mxu0 %v310
  %436 = vmatprep.subr.bf16.mxu0 %v315
  %437 = vmatpush1.bf16.msra.mxu0 %v314
  %438 = vmatprep.subr.bf16.mxu0 %v319
  %439 = vmatpush1.bf16.msra.mxu0 %v318
  %440 = vmatprep.subr.bf16.mxu0 %v323
  %441 = vmatpush1.bf16.msra.mxu0 %v322
  %442 = vmatprep.subr.bf16.mxu0 %v327
  %443 = vmatpush1.bf16.msra.mxu0 %v326
  %444 = vmatprep.subr.bf16.mxu0 %v331
  %445 = vmatpush1.bf16.msra.mxu0 %v330
  %446 = vmatprep.subr.bf16.mxu0 %v335
  %447 = vmatpush1.bf16.msra.mxu0 %v334
  %448 = vmatprep.subr.bf16.mxu0 %v339
  %449 = vmatpush1.bf16.msra.mxu0 %v338
  %450 = vmatprep.subr.bf16.mxu0 %v343
  %451 = vmatpush1.bf16.msra.mxu0 %v342
  %452 = vmatprep.subr.bf16.mxu0 %v347
  %453 = vmatpush1.bf16.msra.mxu0 %v346
  %454 = vmatprep.subr.bf16.mxu0 %v351
  %455 = vmatpush1.bf16.msra.mxu0 %v350
  %456 = vmatprep.subr.bf16.mxu0 %v355
  %457 = vmatpush1.bf16.msra.mxu0 %v354
  %458 = vmatprep.subr.bf16.mxu0 %v359
  %459 = vmatpush1.bf16.msra.mxu0 %v358
  %460 = vmatprep.subr.bf16.mxu0 %v363
  %461 = vmatpush1.bf16.msra.mxu0 %v362
  %462 = vmatprep.mubr.bf16.mxu0 %v107
  %463 = vmatmul.mubr.bf16.gmra.mrb[0].mxu0 %v106
  %v464 = vpop.f32.mrb[0].mxu0
  %v465 = vadd.f32 0.0, %v464
  %v466 = vpop.f32.mrb[0].mxu0
  %v467 = vadd.f32 0.0, %v466
  %v468 = vpop.f32.mrb[0].mxu0
  %v469 = vadd.f32 0.0, %v468
  %v470 = vpop.f32.mrb[0].mxu0
  %v471 = vadd.f32 0.0, %v470
  %472 = vdwg.mxu0
  %473 = vmatprep.subr.bf16.mxu0 %v305
  %474 = vmatpush1.bf16.msra.mxu0 %v304
  %475 = vmatprep.subr.bf16.mxu0 %v309
  %476 = vmatpush1.bf16.msra.mxu0 %v308
  %477 = vmatprep.subr.bf16.mxu0 %v313
  %478 = vmatpush1.bf16.msra.mxu0 %v312
  %479 = vmatprep.subr.bf16.mxu0 %v317
  %480 = vmatpush1.bf16.msra.mxu0 %v316
  %481 = vmatprep.subr.bf16.mxu0 %v321
  %482 = vmatpush1.bf16.msra.mxu0 %v320
  %483 = vmatprep.subr.bf16.mxu0 %v325
  %484 = vmatpush1.bf16.msra.mxu0 %v324
  %485 = vmatprep.subr.bf16.mxu0 %v329
  %486 = vmatpush1.bf16.msra.mxu0 %v328
  %487 = vmatprep.subr.bf16.mxu0 %v333
  %488 = vmatpush1.bf16.msra.mxu0 %v332
  %489 = vmatprep.subr.bf16.mxu0 %v337
  %490 = vmatpush1.bf16.msra.mxu0 %v336
  %491 = vmatprep.subr.bf16.mxu0 %v341
  %492 = vmatpush1.bf16.msra.mxu0 %v340
  %493 = vmatprep.subr.bf16.mxu0 %v345
  %494 = vmatpush1.bf16.msra.mxu0 %v344
  %495 = vmatprep.subr.bf16.mxu0 %v349
  %496 = vmatpush1.bf16.msra.mxu0 %v348
  %497 = vmatprep.subr.bf16.mxu0 %v353
  %498 = vmatpush1.bf16.msra.mxu0 %v352
  %499 = vmatprep.subr.bf16.mxu0 %v357
  %500 = vmatpush1.bf16.msra.mxu0 %v356
  %501 = vmatprep.subr.bf16.mxu0 %v361
  %502 = vmatpush1.bf16.msra.mxu0 %v360
  %503 = vmatprep.subr.bf16.mxu0 %v365
  %504 = vmatpush1.bf16.msra.mxu0 %v364
  %505 = vmatprep.mubr.bf16.mxu0 %v107
  %506 = vmatmul.mubr.bf16.gmra.mrb[0].mxu0 %v106
  %v507 = vpop.f32.mrb[0].mxu0
  %v508 = vadd.f32 0.0, %v507
  %v509 = vpop.f32.mrb[0].mxu0
  %v510 = vadd.f32 0.0, %v509
  %v511 = vpop.f32.mrb[0].mxu0
  %v512 = vadd.f32 0.0, %v511
  %v513 = vpop.f32.mrb[0].mxu0
  %v514 = vadd.f32 0.0, %v513
  %515 = vdwg.mxu0
  %v516 = vadd.f32 %v26, %v465
  %v517 = vadd.f32 %v27, %v467
  %v518 = vadd.f32 %v28, %v508
  %v519 = vadd.f32 %v29, %v510
  %v520 = vadd.f32 %v30, %v469
  %v521 = vadd.f32 %v31, %v471
  %v522 = vadd.f32 %v32, %v512
  %v523 = vadd.f32 %v33, %v514
  %524 = vst [vmem:[#allocation2] sm:$0xff] %v516
  %525 = vst [vmem:[#allocation2 + $0x8] sm:$0xff] %v517
  %526 = vst [vmem:[#allocation2 + $0x10] sm:$0xff] %v518
  %527 = vst [vmem:[#allocation2 + $0x18] sm:$0xff] %v519
  %528 = vst [vmem:[#allocation2 + $0x20] sm:$0xff] %v520
  %529 = vst [vmem:[#allocation2 + $0x28] sm:$0xff] %v521
  %530 = vst [vmem:[#allocation2 + $0x30] sm:$0xff] %v522
  %531 = vst [vmem:[#allocation2 + $0x38] sm:$0xff] %v523
  // Predicated region
  $region18: #{decoder_forward.26} parent=0 // pred_check
    %p532 = pneg %p14
  $region19: #{decoder_forward.26} parent=0 // pred_check_branch
    %534 = sbr.rel (%p532) target = $region21
  $region20: #{decoder_forward.26} parent=0 // pred_region
    %v535 = vld [vmem:[#allocation2] sm:$0xff]
    %v536 = vld [vmem:[#allocation2 + $0x8] sm:$0xff]
    %v537 = vld [vmem:[#allocation2 + $0x10] sm:$0xff]
    %v538 = vld [vmem:[#allocation2 + $0x18] sm:$0xff]
    %v539 = vld [vmem:[#allocation2 + $0x20] sm:$0xff]
    %v540 = vld [vmem:[#allocation2 + $0x28] sm:$0xff]
    %v541 = vld [vmem:[#allocation2 + $0x30] sm:$0xff]
    %v542 = vld [vmem:[#allocation2 + $0x38] sm:$0xff]
    %v543 = vld [vmem:[%s2] sm:$0xf]
    %v544 = vunpack.c.l.bf16 %v543
    %v546 = vlaneseq
    %v547 = vshrl.u32 %v546, 7
    %v548 = vsub.s32 0, %v547
    %v549 = vrot.slane %v544, %v548
    %v550 = vlaneseq
    %v551 = vshrl.u32 %v550, 7
    %v552 = vsub.s32 2, %v551
    %v553 = vrot.slane %v544, %v552
    %v554 = vlaneseq
    %v555 = vshrl.u32 %v554, 7
    %v556 = vsub.s32 4, %v555
    %v557 = vrot.slane %v544, %v556
    %v558 = vlaneseq
    %v559 = vshrl.u32 %v558, 7
    %v560 = vsub.s32 6, %v559
    %v561 = vrot.slane %v544, %v560
    %v566 = vlaneseq
    %v567 = vshrl.u32 %v566, 7
    %v568 = vsub.s32 0, %v567
    %v569 = vrot.slane %v549, %v568
    %v570 = vlaneseq
    %v571 = vshrl.u32 %v570, 7
    %v572 = vsub.s32 0, %v571
    %v573 = vrot.slane %v553, %v572
    %v574 = vlaneseq
    %v575 = vshrl.u32 %v574, 7
    %v576 = vsub.s32 0, %v575
    %v577 = vrot.slane %v557, %v576
    %v578 = vlaneseq
    %v579 = vshrl.u32 %v578, 7
    %v580 = vsub.s32 0, %v579
    %v581 = vrot.slane %v561, %v580
    %v582 = vadd.f32 %v535, %v569
    %v583 = vadd.f32 %v536, %v573
    %v584 = vadd.f32 %v537, %v577
    %v585 = vadd.f32 %v538, %v581
    %v586 = vadd.f32 %v539, %v569
    %v587 = vadd.f32 %v540, %v573
    %v588 = vadd.f32 %v541, %v577
    %v589 = vadd.f32 %v542, %v581
    %v590 = vmul.f32 %v582, %v582
    %v591 = vmul.f32 %v583, %v583
    %v592 = vmul.f32 %v584, %v584
    %v593 = vmul.f32 %v585, %v585
    %v594 = vmul.f32 %v586, %v586
    %v595 = vmul.f32 %v587, %v587
    %v596 = vmul.f32 %v588, %v588
    %v597 = vmul.f32 %v589, %v589
    %v598 = vmul.f32 %v582, %v590
    %v599 = vmul.f32 %v583, %v591
    %v600 = vmul.f32 %v584, %v592
    %v601 = vmul.f32 %v585, %v593
    %v602 = vmul.f32 %v586, %v594
    %v603 = vmul.f32 %v587, %v595
    %v604 = vmul.f32 %v588, %v596
    %v605 = vmul.f32 %v589, %v597
    %v606 = vmul.f32 %v598, 0.044715
    %v607 = vmul.f32 %v599, 0.044715
    %v608 = vmul.f32 %v600, 0.044715
    %v609 = vmul.f32 %v601, 0.044715
    %v610 = vmul.f32 %v602, 0.044715
    %v611 = vmul.f32 %v603, 0.044715
    %v612 = vmul.f32 %v604, 0.044715
    %v613 = vmul.f32 %v605, 0.044715
    %v614 = vadd.f32 %v582, %v606
    %v615 = vadd.f32 %v583, %v607
    %v616 = vadd.f32 %v584, %v608
    %v617 = vadd.f32 %v585, %v609
    %v618 = vadd.f32 %v586, %v610
    %v619 = vadd.f32 %v587, %v611
    %v620 = vadd.f32 %v588, %v612
    %v621 = vadd.f32 %v589, %v613
    %v622 = vmul.f32 %v614, 0.7978846
    %v623 = vmul.f32 %v615, 0.7978846
    %v624 = vmul.f32 %v616, 0.7978846
    %v625 = vmul.f32 %v617, 0.7978846
    %v626 = vmul.f32 %v618, 0.7978846
    %v627 = vmul.f32 %v619, 0.7978846
    %v628 = vmul.f32 %v620, 0.7978846
    %v629 = vmul.f32 %v621, 0.7978846
    %v630 = vtanh.pop %v622
    %v631 = vtanh.pop %v623
    %v632 = vtanh.pop %v624
    %v633 = vtanh.pop %v625
    %v634 = vtanh.pop %v626
    %v635 = vtanh.pop %v627
    %v636 = vtanh.pop %v628
    %v637 = vtanh.pop %v629
    %v638 = vadd.f32 %v630, 1.0
    %v639 = vadd.f32 %v631, 1.0
    %v640 = vadd.f32 %v632, 1.0
    %v641 = vadd.f32 %v633, 1.0
    %v642 = vadd.f32 %v634, 1.0
    %v643 = vadd.f32 %v635, 1.0
    %v644 = vadd.f32 %v636, 1.0
    %v645 = vadd.f32 %v637, 1.0
    %v646 = vmul.f32 %v638, 0.5
    %v647 = vmul.f32 %v639, 0.5
    %v648 = vmul.f32 %v640, 0.5
    %v649 = vmul.f32 %v641, 0.5
    %v650 = vmul.f32 %v642, 0.5
    %v651 = vmul.f32 %v643, 0.5
    %v652 = vmul.f32 %v644, 0.5
    %v653 = vmul.f32 %v645, 0.5
    %v654 = vmul.f32 %v582, %v646
    %v655 = vmul.f32 %v583, %v647
    %v656 = vmul.f32 %v584, %v648
    %v657 = vmul.f32 %v585, %v649
    %v658 = vmul.f32 %v586, %v650
    %v659 = vmul.f32 %v587, %v651
    %v660 = vmul.f32 %v588, %v652
    %v661 = vmul.f32 %v589, %v653
    %v662 = vpack.c.bf16 %v658, %v654
    %v663 = vpack.c.bf16 %v659, %v655
    %v664 = vpack.c.bf16 %v660, %v656
    %v665 = vpack.c.bf16 %v661, %v657
    %v670 = vunpack.c.l.b16 %v662
    %v671 = vunpack.c.l.b16 %v663
    %v672 = vunpack.c.l.b16 %v664
    %v673 = vunpack.c.l.b16 %v665
    %v674 = vunpack.c.h.b16 %v662
    %v675 = vunpack.c.h.b16 %v663
    %v676 = vunpack.c.h.b16 %v664
    %v677 = vunpack.c.h.b16 %v665
    %v678 = vpack.c.b16 %v671, %v670
    %v679 = vpack.c.b16 %v673, %v672
    %v680 = vpack.c.b16 %v675, %v674
    %v681 = vpack.c.b16 %v677, %v676
    %686 = vst [vmem:[%s3] sm:$0xff] %v678
    %687 = vst [vmem:[%s3 + $0x8] sm:$0xff] %v679
    %688 = vst [vmem:[%s3 + $0x10] sm:$0xff] %v680
    %689 = vst [vmem:[%s3 + $0x18] sm:$0xff] %v681
  $region21: #{decoder_forward.26} parent=0 // pred_fallthru
    _
  // Predicated region
  $region22: #{decoder_forward.26} parent=0 // pred_check
    _
  $region23: #{decoder_forward.26} parent=0 // pred_check_branch
    %691 = sbr.rel (0) target = $region25
  $region24: #{decoder_forward.26} parent=0 // pred_region
    _
  $region25: #{decoder_forward.26} parent=0 // pred_fallthru
    _
  // Predicated region
  $region26: #{decoder_forward.26} parent=0 // pred_check
    _
  $region27: #{decoder_forward.26} parent=0 // pred_check_branch
    %693 = sbr.rel (0) target = $region29
  $region28: #{decoder_forward.26} parent=0 // pred_region
    _
  $region29: #{decoder_forward.26} parent=0 // pred_fallthru
    _

// kernel: decoder_forward.28
$region0: #{decoder_forward.28}
  #allocation0 [shape = 'u32[]', space=smem, size = 0x4, offset = 0x4, fixed_abs, tag = 'smem constant byte address 0x4 - core index']
  #allocation1 [shape = 'u32[144,128]{1,0:T(1,128)}', space=vmem, size = 0x12000, scoped, tag = 'internal scratch']
  #allocation2 [shape = 'f32[16,384]{1,0:T(8,128)}', space=vmem, size = 0x6000, scoped, tag = 'scratch operand']
  %s0 = inlined_call_operand.vmem [shape: bf16[16,256], index: 0, kind: input, shape index: {}]
  %s1 = inlined_call_operand.vmem [shape: bf16[256,768], index: 1, kind: input, shape index: {}]
  %s2 = inlined_call_operand.vmem [shape: bf16[1,768], index: 2, kind: input, shape index: {}]
  %s3 = inlined_call_operand.vmem [shape: bf16[16,768], index: 3, kind: output, shape index: {}]
  %s4 = sld [smem:[#allocation0]]
  $region101: #{decoder_forward.28} parent=0
    _
  %s6 = ssub.s32 1, %s4
  %s7 = scalar_select 0, %s6, %s4
  $region1: #{decoder_forward.28} parent=0
    #allocation3 [shape = 'u8[393216]{0}', space=vmem, size = 0x60000, scoped, tag = 'input window, operand 1']
    #allocation4 [shape = 'u8[24576]{0}', space=vmem, size = 0x6000, scoped, tag = 'output window, operand 0']
    loop: start=0, step=1, limit=4
    $region2: #{decoder_forward.28} parent=1 // loop_pre_header
      _
    $region3: #{decoder_forward.28} parent=1 // loop_header
      %s9 = sphi 0, %s13
      %p10 = scmp.ge.s32.totalorder %s9, 4
      %s16 = sphi 0, %s35
      %s17 = sphi 0, %s31
      %s18 = sphi 0, %s27
      %s19 = sphi 0, %s16
      %s20 = sphi 0, %s17
      %s21 = sphi 0, %s18
      %s22 = sphi 0, %s19
      %s23 = sphi 0, %s20
      %s24 = sphi 0, %s21
      %s40 = sphi 0, %s42
      %s43 = sphi 0, %s40
      %s44 = sphi 0, %s43
      %s60 = sphi 0, %s44
      %s68 = sphi 0, %s70
      %s71 = sphi 0, %s68
      %s72 = sphi 0, %s71
      %s88 = sphi 0, %s72
      %s94 = sphi 0, %s96
      %s97 = sphi 0, %s94
      %s98 = sphi 0, %s97
      %s114 = sphi 0, %s98
      %s122 = sphi 0, %s124
      %s125 = sphi 0, %s122
      %s126 = sphi 0, %s125
      %s142 = sphi 0, %s126
    $region4: #{decoder_forward.28} parent=1 // loop_header_branch
      %12 = sbr.rel (%p10) target = $region8
    $region5: #{decoder_forward.28} parent=1 // loop_body
      %s14 = ssub.s32 %s9, 1
      %s15 = ssub.s32 %s9, 2
      %s25 = sadd.s32 1, %s18
      %p26 = scmp.ge.s32.totalorder %s25, 1
      %s27 = scalar_select %p26, 0, %s25
      %s28 = sadd.s32 1, %s17
      %s29 = scalar_select %p26, %s28, %s17
      %p30 = scmp.ge.s32.totalorder %s29, 2
      %s31 = scalar_select %p30, 0, %s29
      %s32 = sadd.s32 1, %s16
      %s33 = scalar_select %p30, %s32, %s16
      %p34 = scmp.ge.s32.totalorder %s33, 1
      %s35 = scalar_select %p34, 0, %s33
      %s36 = ssub.s32 %s16, %s35
      %s37 = ssub.s32 %s18, %s27
      %s38 = sor.u32 %s36, %s37
      %p39 = scmp.eq.s32.totalorder %s38, 0
      %s41 = sadd.s32 %s40, 1
      %s42 = scalar_select %p39, %s40, %s41
      %p45 = pneg %p39
      %p46 = scmp.eq.s32.totalorder %s9, 1
      %p47 = por %p45, %p46
      %p48 = scmp.ne.s32.totalorder %s40, %s43
      %p49 = scmp.eq.s32.totalorder %s9, 0
      %p50 = por %p48, %p49
      %p51 = scmp.ne.s32.totalorder %s40, %s43
      %p52 = scmp.eq.s32.totalorder %s14, 1
      %p53 = por %p51, %p52
      %p54 = scmp.ne.s32.totalorder %s43, %s44
      %p55 = scmp.eq.s32.totalorder %s14, 0
      %p56 = por %p54, %p55
      %p57 = scmp.ne.s32.totalorder %s43, %s44
      %p58 = scmp.eq.s32.totalorder %s15, 1
      %p59 = por %p57, %p58
      %p61 = scmp.ne.s32.totalorder %s44, %s60
      %p62 = scmp.eq.s32.totalorder %s15, 0
      %p63 = por %p61, %p62
      %s64 = ssub.s32 %s18, %s27
      %s65 = ssub.s32 %s17, %s31
      %s66 = sor.u32 %s64, %s65
      %p67 = scmp.eq.s32.totalorder %s66, 0
      %s69 = sadd.s32 %s68, 1
      %s70 = scalar_select %p67, %s68, %s69
      %p73 = pneg %p67
      %p74 = scmp.eq.s32.totalorder %s9, 1
      %p75 = por %p73, %p74
      %p76 = scmp.ne.s32.totalorder %s68, %s71
      %p77 = scmp.eq.s32.totalorder %s9, 0
      %p78 = por %p76, %p77
      %p79 = scmp.ne.s32.totalorder %s68, %s71
      %p80 = scmp.eq.s32.totalorder %s14, 1
      %p81 = por %p79, %p80
      %p82 = scmp.ne.s32.totalorder %s71, %s72
      %p83 = scmp.eq.s32.totalorder %s14, 0
      %p84 = por %p82, %p83
      %p85 = scmp.ne.s32.totalorder %s71, %s72
      %p86 = scmp.eq.s32.totalorder %s15, 1
      %p87 = por %p85, %p86
      %p89 = scmp.ne.s32.totalorder %s72, %s88
      %p90 = scmp.eq.s32.totalorder %s15, 0
      %p91 = por %p89, %p90
      %s92 = ssub.s32 %s17, %s31
      %p93 = scmp.eq.s32.totalorder %s92, 0
      %s95 = sadd.s32 %s94, 1
      %s96 = scalar_select %p93, %s94, %s95
      %p99 = pneg %p93
      %p100 = scmp.eq.s32.totalorder %s9, 1
      %p101 = por %p99, %p100
      %p102 = scmp.ne.s32.totalorder %s94, %s97
      %p103 = scmp.eq.s32.totalorder %s9, 0
      %p104 = por %p102, %p103
      %p105 = scmp.ne.s32.totalorder %s94, %s97
      %p106 = scmp.eq.s32.totalorder %s14, 1
      %p107 = por %p105, %p106
      %p108 = scmp.ne.s32.totalorder %s97, %s98
      %p109 = scmp.eq.s32.totalorder %s14, 0
      %p110 = por %p108, %p109
      %p111 = scmp.ne.s32.totalorder %s97, %s98
      %p112 = scmp.eq.s32.totalorder %s15, 1
      %p113 = por %p111, %p112
      %p115 = scmp.ne.s32.totalorder %s98, %s114
      %p116 = scmp.eq.s32.totalorder %s15, 0
      %p117 = por %p115, %p116
      %s118 = ssub.s32 %s16, %s35
      %s119 = ssub.s32 %s17, %s31
      %s120 = sor.u32 %s118, %s119
      %p121 = scmp.eq.s32.totalorder %s120, 0
      %s123 = sadd.s32 %s122, 1
      %s124 = scalar_select %p121, %s122, %s123
      %p127 = pneg %p121
      %p128 = scmp.eq.s32.totalorder %s9, 1
      %p129 = por %p127, %p128
      %p130 = scmp.ne.s32.totalorder %s122, %s125
      %p131 = scmp.eq.s32.totalorder %s9, 0
      %p132 = por %p130, %p131
      %p133 = scmp.ne.s32.totalorder %s122, %s125
      %p134 = scmp.eq.s32.totalorder %s14, 1
      %p135 = por %p133, %p134
      %p136 = scmp.ne.s32.totalorder %s125, %s126
      %p137 = scmp.eq.s32.totalorder %s14, 0
      %p138 = por %p136, %p137
      %p139 = scmp.ne.s32.totalorder %s125, %s126
      %p140 = scmp.eq.s32.totalorder %s15, 1
      %p141 = por %p139, %p140
      %p143 = scmp.ne.s32.totalorder %s126, %s142
      %p144 = scmp.eq.s32.totalorder %s15, 0
      %p145 = por %p143, %p144
      %p146 = scmp.le.s32.totalorder 1, %s9
      %p147 = scmp.lt.s32.totalorder %s9, 3
      %p148 = pnand %p146, %p147
      %p149 = pneg %p148
      // Predicated region
      $region9: #{decoder_forward.28} parent=5 // pred_check
        _
      $region10: #{decoder_forward.28} parent=5 // pred_check_branch
        %151 = sbr.rel (%p148) target = $region12
      $region11: #{decoder_forward.28} parent=5 // pred_region
        %s152 = ssub.s32 %s9, 1
        // Predicated region
        $region13: #{decoder_forward.28} parent=11 // pred_check
          %p153 = pneg %p56
        $region14: #{decoder_forward.28} parent=11 // pred_check_branch
          %155 = sbr.rel (%p153) target = $region16
        $region15: #{decoder_forward.28} parent=11 // pred_region
          %s156 = smul.u32 2, %s19
          %s157 = smul.u32 2, %s21
          %p158 = scmp.lt.s32.totalorder %s156, 1
          %s159 = scalar_select %p158, %s156, 1
          %p160 = scmp.lt.s32.totalorder %s157, 1
          %s161 = scalar_select %p160, %s157, 1
          %s162 = smul.addr %s159, 2
          %s163 = sadd.s32 %s161, %s162
          %s164 = smul.addr %s163, 4
          %s165 = scalar_lea.vmem %s0, %s164
          %s166 = smul.u32 2, %s19
          %s167 = smul.u32 2, %s21
        $region16: #{decoder_forward.28} parent=11 // pred_fallthru
          _
      $region12: #{decoder_forward.28} parent=5 // pred_fallthru
        _
      %p168 = scmp.lt.s32.totalorder %s9, 2
      // Predicated region
      $region17: #{decoder_forward.28} parent=5 // pred_check
        %p169 = pneg %p168
      $region18: #{decoder_forward.28} parent=5 // pred_check_branch
        %171 = sbr.rel (%p169) target = $region20
      $region19: #{decoder_forward.28} parent=5 // pred_region
        // Predicated region
        $region21: #{decoder_forward.28} parent=19 // pred_check
          %p172 = pneg %p78
        $region22: #{decoder_forward.28} parent=19 // pred_check_branch
          %174 = sbr.rel (%p172) target = $region24
        $region23: #{decoder_forward.28} parent=19 // pred_region
          %s175 = sand.u32 %s68, 1
          %s176 = sand.u32 %s68, 1
          %s177 = smul.addr %s176, 384
          %s178 = scalar_lea.vmem [#allocation3], %s177
          %s179 = smul.u32 32, %s18
          %s180 = smul.u32 3, %s17
          %s181 = smul.addr %s179, 6
          %s182 = sadd.s32 %s180, %s181
          %s183 = smul.addr %s182, 4
          %s184 = scalar_lea.vmem %s1, %s183
          // Predicated region
          $region25: #{decoder_forward.28} parent=23 // pred_check
            _
          $region26: #{decoder_forward.28} parent=23 // pred_check_branch
            %186 = sbr.rel (0) target = $region28
          $region27: #{decoder_forward.28} parent=23 // pred_region
            // Predicated region
            $region29: #{decoder_forward.28} parent=27 // pred_check
              _
            $region30: #{decoder_forward.28} parent=27 // pred_check_branch
              %188 = sbr.rel (0) target = $region32
            $region31: #{decoder_forward.28} parent=27 // pred_region
              %s189 = scalar_lea.vmem %s184, 8
              %s190 = scalar_lea.vmem %s178, 8 [#allocation3]
              loop: start=0, step=1, limit=1
              $region33: #{decoder_forward.28} parent=31 // loop_pre_header
                _
              $region34: #{decoder_forward.28} parent=31 // loop_header
                %s192 = sphi 0, %s196
                %p193 = scmp.ge.s32.totalorder %s192, 1
                %s197 = sphi %s184, %s184
                %s198 = sphi %s178, %s178
              $region35: #{decoder_forward.28} parent=31 // loop_header_branch
                %195 = sbr.rel (%p193) target = $region39
              $region36: #{decoder_forward.28} parent=31 // loop_body
                %v199 = vld [vmem:[%s197] sm:$0xff]
                %200 = vst [vmem:[%s198] sm:$0xff] %v199
                %v201 = vld [vmem:[%s197 + $0x18] sm:$0xff]
                %202 = vst [vmem:[%s198 + $0xc] sm:$0xff] %v201
                %v203 = vld [vmem:[%s197 + $0x30] sm:$0xff]
                %204 = vst [vmem:[%s198 + $0x18] sm:$0xff] %v203
                %v205 = vld [vmem:[%s197 + $0x48] sm:$0xff]
                %206 = vst [vmem:[%s198 + $0x24] sm:$0xff] %v205
                %v207 = vld [vmem:[%s197 + $0x60] sm:$0xff]
                %208 = vst [vmem:[%s198 + $0x30] sm:$0xff] %v207
                %v209 = vld [vmem:[%s197 + $0x78] sm:$0xff]
                %210 = vst [vmem:[%s198 + $0x3c] sm:$0xff] %v209
                %v211 = vld [vmem:[%s197 + $0x90] sm:$0xff]
                %212 = vst [vmem:[%s198 + $0x48] sm:$0xff] %v211
                %v213 = vld [vmem:[%s197 + $0xa8] sm:$0xff]
                %214 = vst [vmem:[%s198 + $0x54] sm:$0xff] %v213
                %v215 = vld [vmem:[%s197 + $0xc0] sm:$0xff]
                %216 = vst [vmem:[%s198 + $0x60] sm:$0xff] %v215
                %v217 = vld [vmem:[%s197 + $0xd8] sm:$0xff]
                %218 = vst [vmem:[%s198 + $0x6c] sm:$0xff] %v217
                %v219 = vld [vmem:[%s197 + $0xf0] sm:$0xff]
                %220 = vst [vmem:[%s198 + $0x78] sm:$0xff] %v219
                %v221 = vld [vmem:[%s197 + $0x108] sm:$0xff]
                %222 = vst [vmem:[%s198 + $0x84] sm:$0xff] %v221
                %v223 = vld [vmem:[%s197 + $0x120] sm:$0xff]
                %224 = vst [vmem:[%s198 + $0x90] sm:$0xff] %v223
                %v225 = vld [vmem:[%s197 + $0x138] sm:$0xff]
                %226 = vst [vmem:[%s198 + $0x9c] sm:$0xff] %v225
                %v227 = vld [vmem:[%s197 + $0x150] sm:$0xff]
                %228 = vst [vmem:[%s198 + $0xa8] sm:$0xff] %v227
                %v229 = vld [vmem:[%s197 + $0x168] sm:$0xff]
                %230 = vst [vmem:[%s198 + $0xb4] sm:$0xff] %v229
                %v231 = vld [vmem:[%s197 + $0x180] sm:$0xff]
                %232 = vst [vmem:[%s198 + $0xc0] sm:$0xff] %v231
                %v233 = vld [vmem:[%s197 + $0x198] sm:$0xff]
                %234 = vst [vmem:[%s198 + $0xcc] sm:$0xff] %v233
                %v235 = vld [vmem:[%s197 + $0x1b0] sm:$0xff]
                %236 = vst [vmem:[%s198 + $0xd8] sm:$0xff] %v235
                %v237 = vld [vmem:[%s197 + $0x1c8] sm:$0xff]
                %238 = vst [vmem:[%s198 + $0xe4] sm:$0xff] %v237
                %v239 = vld [vmem:[%s197 + $0x1e0] sm:$0xff]
                %240 = vst [vmem:[%s198 + $0xf0] sm:$0xff] %v239
                %v241 = vld [vmem:[%s197 + $0x1f8] sm:$0xff]
                %242 = vst [vmem:[%s198 + $0xfc] sm:$0xff] %v241
                %v243 = vld [vmem:[%s197 + $0x210] sm:$0xff]
                %244 = vst [vmem:[%s198 + $0x108] sm:$0xff] %v243
                %v245 = vld [vmem:[%s197 + $0x228] sm:$0xff]
                %246 = vst [vmem:[%s198 + $0x114] sm:$0xff] %v245
                %v247 = vld [vmem:[%s197 + $0x240] sm:$0xff]
                %248 = vst [vmem:[%s198 + $0x120] sm:$0xff] %v247
                %v249 = vld [vmem:[%s197 + $0x258] sm:$0xff]
                %250 = vst [vmem:[%s198 + $0x12c] sm:$0xff] %v249
                %v251 = vld [vmem:[%s197 + $0x270] sm:$0xff]
                %252 = vst [vmem:[%s198 + $0x138] sm:$0xff] %v251
                %v253 = vld [vmem:[%s197 + $0x288] sm:$0xff]
                %254 = vst [vmem:[%s198 + $0x144] sm:$0xff] %v253
                %v255 = vld [vmem:[%s197 + $0x2a0] sm:$0xff]
                %256 = vst [vmem:[%s198 + $0x150] sm:$0xff] %v255
                %v257 = vld [vmem:[%s197 + $0x2b8] sm:$0xff]
                %258 = vst [vmem:[%s198 + $0x15c] sm:$0xff] %v257
                %v259 = vld [vmem:[%s197 + $0x2d0] sm:$0xff]
                %260 = vst [vmem:[%s198 + $0x168] sm:$0xff] %v259
                %v261 = vld [vmem:[%s197 + $0x2e8] sm:$0xff]
                %262 = vst [vmem:[%s198 + $0x174] sm:$0xff] %v261
              $region37: #{decoder_forward.28} parent=31 // loop_footer
                %s196 = sadd.s32 1, %s192
              $region38: #{decoder_forward.28} parent=31 // loop_footer_branch
                %191 = sbr.rel target = $region34
              $region39: #{decoder_forward.28} parent=31 // loop_exit
                _
              loop: start=0, step=1, limit=1
              $region40: #{decoder_forward.28} parent=31 // loop_pre_header
                _
              $region41: #{decoder_forward.28} parent=31 // loop_header
                %s265 = sphi 0, %s269
                %p266 = scmp.ge.s32.totalorder %s265, 1
                %s270 = sphi %s189, %s189
                %s271 = sphi %s190, %s190
              $region42: #{decoder_forward.28} parent=31 // loop_header_branch
                %268 = sbr.rel (%p266) target = $region46
              $region43: #{decoder_forward.28} parent=31 // loop_body
                %v272 = vld [vmem:[%s270] sm:$0xf]
                %273 = vst [vmem:[%s271] sm:$0xf] %v272
                %v274 = vld [vmem:[%s270 + $0x18] sm:$0xf]
                %275 = vst [vmem:[%s271 + $0xc] sm:$0xf] %v274
                %v276 = vld [vmem:[%s270 + $0x30] sm:$0xf]
                %277 = vst [vmem:[%s271 + $0x18] sm:$0xf] %v276
                %v278 = vld [vmem:[%s270 + $0x48] sm:$0xf]
                %279 = vst [vmem:[%s271 + $0x24] sm:$0xf] %v278
                %v280 = vld [vmem:[%s270 + $0x60] sm:$0xf]
                %281 = vst [vmem:[%s271 + $0x30] sm:$0xf] %v280
                %v282 = vld [vmem:[%s270 + $0x78] sm:$0xf]
                %283 = vst [vmem:[%s271 + $0x3c] sm:$0xf] %v282
                %v284 = vld [vmem:[%s270 + $0x90] sm:$0xf]
                %285 = vst [vmem:[%s271 + $0x48] sm:$0xf] %v284
                %v286 = vld [vmem:[%s270 + $0xa8] sm:$0xf]
                %287 = vst [vmem:[%s271 + $0x54] sm:$0xf] %v286
                %v288 = vld [vmem:[%s270 + $0xc0] sm:$0xf]
                %289 = vst [vmem:[%s271 + $0x60] sm:$0xf] %v288
                %v290 = vld [vmem:[%s270 + $0xd8] sm:$0xf]
                %291 = vst [vmem:[%s271 + $0x6c] sm:$0xf] %v290
                %v292 = vld [vmem:[%s270 + $0xf0] sm:$0xf]
                %293 = vst [vmem:[%s271 + $0x78] sm:$0xf] %v292
                %v294 = vld [vmem:[%s270 + $0x108] sm:$0xf]
                %295 = vst [vmem:[%s271 + $0x84] sm:$0xf] %v294
                %v296 = vld [vmem:[%s270 + $0x120] sm:$0xf]
                %297 = vst [vmem:[%s271 + $0x90] sm:$0xf] %v296
                %v298 = vld [vmem:[%s270 + $0x138] sm:$0xf]
                %299 = vst [vmem:[%s271 + $0x9c] sm:$0xf] %v298
                %v300 = vld [vmem:[%s270 + $0x150] sm:$0xf]
                %301 = vst [vmem:[%s271 + $0xa8] sm:$0xf] %v300
                %v302 = vld [vmem:[%s270 + $0x168] sm:$0xf]
                %303 = vst [vmem:[%s271 + $0xb4] sm:$0xf] %v302
                %v304 = vld [vmem:[%s270 + $0x180] sm:$0xf]
                %305 = vst [vmem:[%s271 + $0xc0] sm:$0xf] %v304
                %v306 = vld [vmem:[%s270 + $0x198] sm:$0xf]
                %307 = vst [vmem:[%s271 + $0xcc] sm:$0xf] %v306
                %v308 = vld [vmem:[%s270 + $0x1b0] sm:$0xf]
                %309 = vst [vmem:[%s271 + $0xd8] sm:$0xf] %v308
                %v310 = vld [vmem:[%s270 + $0x1c8] sm:$0xf]
                %311 = vst [vmem:[%s271 + $0xe4] sm:$0xf] %v310
                %v312 = vld [vmem:[%s270 + $0x1e0] sm:$0xf]
                %313 = vst [vmem:[%s271 + $0xf0] sm:$0xf] %v312
                %v314 = vld [vmem:[%s270 + $0x1f8] sm:$0xf]
                %315 = vst [vmem:[%s271 + $0xfc] sm:$0xf] %v314
                %v316 = vld [vmem:[%s270 + $0x210] sm:$0xf]
                %317 = vst [vmem:[%s271 + $0x108] sm:$0xf] %v316
                %v318 = vld [vmem:[%s270 + $0x228] sm:$0xf]
                %319 = vst [vmem:[%s271 + $0x114] sm:$0xf] %v318
                %v320 = vld [vmem:[%s270 + $0x240] sm:$0xf]
                %321 = vst [vmem:[%s271 + $0x120] sm:$0xf] %v320
                %v322 = vld [vmem:[%s270 + $0x258] sm:$0xf]
                %323 = vst [vmem:[%s271 + $0x12c] sm:$0xf] %v322
                %v324 = vld [vmem:[%s270 + $0x270] sm:$0xf]
                %325 = vst [vmem:[%s271 + $0x138] sm:$0xf] %v324
                %v326 = vld [vmem:[%s270 + $0x288] sm:$0xf]
                %327 = vst [vmem:[%s271 + $0x144] sm:$0xf] %v326
                %v328 = vld [vmem:[%s270 + $0x2a0] sm:$0xf]
                %329 = vst [vmem:[%s271 + $0x150] sm:$0xf] %v328
                %v330 = vld [vmem:[%s270 + $0x2b8] sm:$0xf]
                %331 = vst [vmem:[%s271 + $0x15c] sm:$0xf] %v330
                %v332 = vld [vmem:[%s270 + $0x2d0] sm:$0xf]
                %333 = vst [vmem:[%s271 + $0x168] sm:$0xf] %v332
                %v334 = vld [vmem:[%s270 + $0x2e8] sm:$0xf]
                %335 = vst [vmem:[%s271 + $0x174] sm:$0xf] %v334
              $region44: #{decoder_forward.28} parent=31 // loop_footer
                %s269 = sadd.s32 1, %s265
              $region45: #{decoder_forward.28} parent=31 // loop_footer_branch
                %264 = sbr.rel target = $region41
              $region46: #{decoder_forward.28} parent=31 // loop_exit
                _
            $region32: #{decoder_forward.28} parent=27 // pred_fallthru
              _
          $region28: #{decoder_forward.28} parent=23 // pred_fallthru
            _
          %336 = vnop
        $region24: #{decoder_forward.28} parent=19 // pred_fallthru
          _
        // Predicated region
        $region47: #{decoder_forward.28} parent=19 // pred_check
          %p337 = pneg %p104
        $region48: #{decoder_forward.28} parent=19 // pred_check_branch
          %339 = sbr.rel (%p337) target = $region50
        $region49: #{decoder_forward.28} parent=19 // pred_region
          %s340 = smul.u32 3, %s17
          %p341 = scmp.lt.s32.totalorder %s340, 5
          %s342 = scalar_select %p341, %s340, 5
          %s343 = scalar_lea.vmem %s2, %s342
          %s344 = smul.u32 3, %s17
        $region50: #{decoder_forward.28} parent=19 // pred_fallthru
          _
      $region20: #{decoder_forward.28} parent=5 // pred_fallthru
        _
      %p345 = scmp.le.s32.totalorder 1, %s9
      %p346 = scmp.lt.s32.totalorder %s9, 3
      %p347 = pnand %p345, %p346
      %p348 = pneg %p347
      // Predicated region
      $region51: #{decoder_forward.28} parent=5 // pred_check
        _
      $region52: #{decoder_forward.28} parent=5 // pred_check_branch
        %350 = sbr.rel (%p347) target = $region54
      $region53: #{decoder_forward.28} parent=5 // pred_region
        %s351 = ssub.s32 %s9, 1
        %s352 = sand.u32 %s71, 1
        %s353 = sand.u32 %s71, 1
        %s354 = smul.addr %s353, 384
        %s355 = scalar_lea.vmem [#allocation3], %s354
        // Predicated region
        $region55: #{decoder_forward.28} parent=53 // pred_check
          %p356 = pneg %p84
        $region56: #{decoder_forward.28} parent=53 // pred_check_branch
          %358 = sbr.rel (%p356) target = $region58
        $region57: #{decoder_forward.28} parent=53 // pred_region
          _
        $region58: #{decoder_forward.28} parent=53 // pred_fallthru
          _
        %s359 = smul.u32 2, %s19
        %s360 = smul.u32 2, %s21
        %p361 = scmp.lt.s32.totalorder %s359, 1
        %s362 = scalar_select %p361, %s359, 1
        %p363 = scmp.lt.s32.totalorder %s360, 1
        %s364 = scalar_select %p363, %s360, 1
        %s365 = smul.addr %s362, 2
        %s366 = sadd.s32 %s364, %s365
        %s367 = smul.addr %s366, 4
        %s368 = scalar_lea.vmem %s0, %s367
        %p369 = pneg %p56
        %p370 = pneg %p53
        %s371 = sand.u32 %s71, 1
        %s372 = sand.u32 %s71, 1
        %s373 = smul.addr %s372, 384
        %s374 = scalar_lea.vmem [#allocation3], %s373
        %p375 = pneg %p84
        %p376 = pneg %p81
        %s377 = smul.u32 3, %s20
        %p378 = scmp.lt.s32.totalorder %s377, 5
        %s379 = scalar_select %p378, %s377, 5
        %s380 = scalar_lea.vmem %s2, %s379
        %p381 = pneg %p110
        %p382 = pneg %p107
        %p383 = pneg %p138
        %p384 = pneg %p135
        %s385 = sand.u32 %s125, 1
        %s386 = sand.u32 %s125, 1
        %s387 = smul.addr %s386, 24
        %s388 = scalar_lea.vmem [#allocation4], %s387
        %s389 = smul.u32 2, %s19
        %s390 = smul.u32 2, %s21
        %p391 = scmp.lt.s32.totalorder %s389, 1
        %s392 = scalar_select %p391, %s389, 1
        %p393 = scmp.lt.s32.totalorder %s390, 1
        %s394 = scalar_select %p393, %s390, 1
        %s395 = smul.addr %s392, 2
        %s396 = sadd.s32 %s394, %s395
        %s397 = smul.addr %s396, 4
        %s398 = scalar_lea.vmem %s0, %s397
        %s399 = smul.u32 2, %s19
        %s400 = smul.u32 2, %s21
        %s401 = smul.u32 32, %s21
        %s402 = smul.u32 3, %s20
        %s403 = smul.u32 3, %s20
        %p404 = scmp.lt.s32.totalorder %s403, 5
        %s405 = scalar_select %p404, %s403, 5
        %s406 = scalar_lea.vmem %s2, %s405
        %s407 = smul.u32 3, %s20
        %s408 = smul.u32 2, %s19
        %s409 = smul.u32 3, %s20
        %p411 = scmp.eq.s32.totalorder %s21, 0
        // Predicated region
        $region59: #{decoder_forward.28} parent=53 // pred_check
          %p412 = pneg %p411
        $region60: #{decoder_forward.28} parent=53 // pred_check_branch
          %414 = sbr.rel (%p412) target = $region62
        $region61: #{decoder_forward.28} parent=53 // pred_region
          %415 = vst [vmem:[#allocation2] sm:$0xff] 0.0
          %416 = vst [vmem:[#allocation2 + $0x8] sm:$0xff] 0.0
          %417 = vst [vmem:[#allocation2 + $0x10] sm:$0xff] 0.0
          %418 = vst [vmem:[#allocation2 + $0x18] sm:$0xff] 0.0
          %419 = vst [vmem:[#allocation2 + $0x20] sm:$0xff] 0.0
          %420 = vst [vmem:[#allocation2 + $0x28] sm:$0xff] 0.0
        $region62: #{decoder_forward.28} parent=53 // pred_fallthru
          _
        %v421 = vld [vmem:[#allocation2] sm:$0xff]
        %v422 = vld [vmem:[#allocation2 + $0x8] sm:$0xff]
        %v423 = vld [vmem:[#allocation2 + $0x10] sm:$0xff]
        %v424 = vld [vmem:[#allocation2 + $0x18] sm:$0xff]
        %v425 = vld [vmem:[#allocation2 + $0x20] sm:$0xff]
        %v426 = vld [vmem:[#allocation2 + $0x28] sm:$0xff]
        %v427 = vld [vmem:[%s398] sm:$0xff]
        %v428 = vld [vmem:[%s398 + $0x8] sm:$0xff]
        %v429 = vld [vmem:[%s355] sm:$0xff]
        %v430 = vld [vmem:[%s355 + $0x8] sm:$0xf]
        %v431 = vld [vmem:[%s355 + $0xc] sm:$0xff]
        %v432 = vld [vmem:[%s355 + $0x14] sm:$0xf]
        %v433 = vld [vmem:[%s355 + $0x18] sm:$0xff]
        %v434 = vld [vmem:[%s355 + $0x20] sm:$0xf]
        %v435 = vld [vmem:[%s355 + $0x24] sm:$0xff]
        %v436 = vld [vmem:[%s355 + $0x2c] sm:$0xf]
        %v437 = vld [vmem:[%s355 + $0x30] sm:$0xff]
        %v438 = vld [vmem:[%s355 + $0x38] sm:$0xf]
        %v439 = vld [vmem:[%s355 + $0x3c] sm:$0xff]
        %v440 = vld [vmem:[%s355 + $0x44] sm:$0xf]
        %v441 = vld [vmem:[%s355 + $0x48] sm:$0xff]
        %v442 = vld [vmem:[%s355 + $0x50] sm:$0xf]
        %v443 = vld [vmem:[%s355 + $0x54] sm:$0xff]
        %v444 = vld [vmem:[%s355 + $0x5c] sm:$0xf]
        %v445 = vld [vmem:[%s355 + $0x60] sm:$0xff]
        %v446 = vld [vmem:[%s355 + $0x68] sm:$0xf]
        %v447 = vld [vmem:[%s355 + $0x6c] sm:$0xff]
        %v448 = vld [vmem:[%s355 + $0x74] sm:$0xf]
        %v449 = vld [vmem:[%s355 + $0x78] sm:$0xff]
        %v450 = vld [vmem:[%s355 + $0x80] sm:$0xf]
        %v451 = vld [vmem:[%s355 + $0x84] sm:$0xff]
        %v452 = vld [vmem:[%s355 + $0x8c] sm:$0xf]
        %v453 = vld [vmem:[%s355 + $0x90] sm:$0xff]
        %v454 = vld [vmem:[%s355 + $0x98] sm:$0xf]
        %v455 = vld [vmem:[%s355 + $0x9c] sm:$0xff]
        %v456 = vld [vmem:[%s355 + $0xa4] sm:$0xf]
        %v457 = vld [vmem:[%s355 + $0xa8] sm:$0xff]
        %v458 = vld [vmem:[%s355 + $0xb0] sm:$0xf]
        %v459 = vld [vmem:[%s355 + $0xb4] sm:$0xff]
        %v460 = vld [vmem:[%s355 + $0xbc] sm:$0xf]
        %v461 = vld [vmem:[%s355 + $0xc0] sm:$0xff]
        %v462 = vld [vmem:[%s355 + $0xc8] sm:$0xf]
        %v463 = vld [vmem:[%s355 + $0xcc] sm:$0xff]
        %v464 = vld [vmem:[%s355 + $0xd4] sm:$0xf]
        %v465 = vld [vmem:[%s355 + $0xd8] sm:$0xff]
        %v466 = vld [vmem:[%s355 + $0xe0] sm:$0xf]
        %v467 = vld [vmem:[%s355 + $0xe4] sm:$0xff]
        %v468 = vld [vmem:[%s355 + $0xec] sm:$0xf]
        %v469 = vld [vmem:[%s355 + $0xf0] sm:$0xff]
        %v470 = vld [vmem:[%s355 + $0xf8] sm:$0xf]
        %v471 = vld [vmem:[%s355 + $0xfc] sm:$0xff]
        %v472 = vld [vmem:[%s355 + $0x104] sm:$0xf]
        %v473 = vld [vmem:[%s355 + $0x108] sm:$0xff]
        %v474 = vld [vmem:[%s355 + $0x110] sm:$0xf]
        %v475 = vld [vmem:[%s355 + $0x114] sm:$0xff]
        %v476 = vld [vmem:[%s355 + $0x11c] sm:$0xf]
        %v477 = vld [vmem:[%s355 + $0x120] sm:$0xff]
        %v478 = vld [vmem:[%s355 + $0x128] sm:$0xf]
        %v479 = vld [vmem:[%s355 + $0x12c] sm:$0xff]
        %v480 = vld [vmem:[%s355 + $0x134] sm:$0xf]
        %v481 = vld [vmem:[%s355 + $0x138] sm:$0xff]
        %v482 = vld [vmem:[%s355 + $0x140] sm:$0xf]
        %v483 = vld [vmem:[%s355 + $0x144] sm:$0xff]
        %v484 = vld [vmem:[%s355 + $0x14c] sm:$0xf]
        %v485 = vld [vmem:[%s355 + $0x150] sm:$0xff]
        %v486 = vld [vmem:[%s355 + $0x158] sm:$0xf]
        %v487 = vld [vmem:[%s355 + $0x15c] sm:$0xff]
        %v488 = vld [vmem:[%s355 + $0x164] sm:$0xf]
        %v489 = vld [vmem:[%s355 + $0x168] sm:$0xff]
        %v490 = vld [vmem:[%s355 + $0x170] sm:$0xf]
        %v491 = vld [vmem:[%s355 + $0x174] sm:$0xff]
        %v492 = vld [vmem:[%s355 + $0x17c] sm:$0xf]
        %v495 = vunpack.c.l.b16 %v427
        %v496 = vunpack.c.h.b16 %v427
        %v497 = vunpack.c.l.b16 %v428
        %v498 = vunpack.c.h.b16 %v428
        %v499 = vpack.c.b16 %v497, %v495
        %v500 = vpack.c.b16 %v498, %v496
        %v567 = vunpack.c.l.b16 %v429
        %v568 = vunpack.c.h.b16 %v429
        %v569 = vunpack.c.l.b16 %v430
        %v570 = vunpack.c.l.b16 %v431
        %v571 = vunpack.c.h.b16 %v431
        %v572 = vunpack.c.l.b16 %v432
        %v573 = vunpack.c.l.b16 %v433
        %v574 = vunpack.c.h.b16 %v433
        %v575 = vunpack.c.l.b16 %v434
        %v576 = vunpack.c.l.b16 %v435
        %v577 = vunpack.c.h.b16 %v435
        %v578 = vunpack.c.l.b16 %v436
        %v579 = vunpack.c.l.b16 %v437
        %v580 = vunpack.c.h.b16 %v437
        %v581 = vunpack.c.l.b16 %v438
        %v582 = vunpack.c.l.b16 %v439
        %v583 = vunpack.c.h.b16 %v439
        %v584 = vunpack.c.l.b16 %v440
        %v585 = vunpack.c.l.b16 %v441
        %v586 = vunpack.c.h.b16 %v441
        %v587 = vunpack.c.l.b16 %v442
        %v588 = vunpack.c.l.b16 %v443
        %v589 = vunpack.c.h.b16 %v443
        %v590 = vunpack.c.l.b16 %v444
        %v591 = vunpack.c.l.b16 %v445
        %v592 = vunpack.c.h.b16 %v445
        %v593 = vunpack.c.l.b16 %v446
        %v594 = vunpack.c.l.b16 %v447
        %v595 = vunpack.c.h.b16 %v447
        %v596 = vunpack.c.l.b16 %v448
        %v597 = vunpack.c.l.b16 %v449
        %v598 = vunpack.c.h.b16 %v449
        %v599 = vunpack.c.l.b16 %v450
        %v600 = vunpack.c.l.b16 %v451
        %v601 = vunpack.c.h.b16 %v451
        %v602 = vunpack.c.l.b16 %v452
        %v603 = vunpack.c.l.b16 %v453
        %v604 = vunpack.c.h.b16 %v453
        %v605 = vunpack.c.l.b16 %v454
        %v606 = vunpack.c.l.b16 %v455
        %v607 = vunpack.c.h.b16 %v455
        %v608 = vunpack.c.l.b16 %v456
        %v609 = vunpack.c.l.b16 %v457
        %v610 = vunpack.c.h.b16 %v457
        %v611 = vunpack.c.l.b16 %v458
        %v612 = vunpack.c.l.b16 %v459
        %v613 = vunpack.c.h.b16 %v459
        %v614 = vunpack.c.l.b16 %v460
        %v615 = vunpack.c.l.b16 %v461
        %v616 = vunpack.c.h.b16 %v461
        %v617 = vunpack.c.l.b16 %v462
        %v618 = vunpack.c.l.b16 %v463
        %v619 = vunpack.c.h.b16 %v463
        %v620 = vunpack.c.l.b16 %v464
        %v621 = vunpack.c.l.b16 %v465
        %v622 = vunpack.c.h.b16 %v465
        %v623 = vunpack.c.l.b16 %v466
        %v624 = vunpack.c.l.b16 %v467
        %v625 = vunpack.c.h.b16 %v467
        %v626 = vunpack.c.l.b16 %v468
        %v627 = vunpack.c.l.b16 %v469
        %v628 = vunpack.c.h.b16 %v469
        %v629 = vunpack.c.l.b16 %v470
        %v630 = vunpack.c.l.b16 %v471
        %v631 = vunpack.c.h.b16 %v471
        %v632 = vunpack.c.l.b16 %v472
        %v633 = vunpack.c.l.b16 %v473
        %v634 = vunpack.c.h.b16 %v473
        %v635 = vunpack.c.l.b16 %v474
        %v636 = vunpack.c.l.b16 %v475
        %v637 = vunpack.c.h.b16 %v475
        %v638 = vunpack.c.l.b16 %v476
        %v639 = vunpack.c.l.b16 %v477
        %v640 = vunpack.c.h.b16 %v477
        %v641 = vunpack.c.l.b16 %v478
        %v642 = vunpack.c.l.b16 %v479
        %v643 = vunpack.c.h.b16 %v479
        %v644 = vunpack.c.l.b16 %v480
        %v645 = vunpack.c.l.b16 %v481
        %v646 = vunpack.c.h.b16 %v481
        %v647 = vunpack.c.l.b16 %v482
        %v648 = vunpack.c.l.b16 %v483
        %v649 = vunpack.c.h.b16 %v483
        %v650 = vunpack.c.l.b16 %v484
        %v651 = vunpack.c.l.b16 %v485
        %v652 = vunpack.c.h.b16 %v485
        %v653 = vunpack.c.l.b16 %v486
        %v654 = vunpack.c.l.b16 %v487
        %v655 = vunpack.c.h.b16 %v487
        %v656 = vunpack.c.l.b16 %v488
        %v657 = vunpack.c.l.b16 %v489
        %v658 = vunpack.c.h.b16 %v489
        %v659 = vunpack.c.l.b16 %v490
        %v660 = vunpack.c.l.b16 %v491
        %v661 = vunpack.c.h.b16 %v491
        %v662 = vunpack.c.l.b16 %v492
        %v663 = vpack.c.b16 %v570, %v567
        %v664 = vpack.c.b16 %v571, %v568
        %v665 = vpack.c.b16 %v572, %v569
        %v666 = vpack.c.b16 %v576, %v573
        %v667 = vpack.c.b16 %v577, %v574
        %v668 = vpack.c.b16 %v578, %v575
        %v669 = vpack.c.b16 %v582, %v579
        %v670 = vpack.c.b16 %v583, %v580
        %v671 = vpack.c.b16 %v584, %v581
        %v672 = vpack.c.b16 %v588, %v585
        %v673 = vpack.c.b16 %v589, %v586
        %v674 = vpack.c.b16 %v590, %v587
        %v675 = vpack.c.b16 %v594, %v591
        %v676 = vpack.c.b16 %v595, %v592
        %v677 = vpack.c.b16 %v596, %v593
        %v678 = vpack.c.b16 %v600, %v597
        %v679 = vpack.c.b16 %v601, %v598
        %v680 = vpack.c.b16 %v602, %v599
        %v681 = vpack.c.b16 %v606, %v603
        %v682 = vpack.c.b16 %v607, %v604
        %v683 = vpack.c.b16 %v608, %v605
        %v684 = vpack.c.b16 %v612, %v609
        %v685 = vpack.c.b16 %v613, %v610
        %v686 = vpack.c.b16 %v614, %v611
        %v687 = vpack.c.b16 %v618, %v615
        %v688 = vpack.c.b16 %v619, %v616
        %v689 = vpack.c.b16 %v620, %v617
        %v690 = vpack.c.b16 %v624, %v621
        %v691 = vpack.c.b16 %v625, %v622
        %v692 = vpack.c.b16 %v626, %v623
        %v693 = vpack.c.b16 %v630, %v627
        %v694 = vpack.c.b16 %v631, %v628
        %v695 = vpack.c.b16 %v632, %v629
        %v696 = vpack.c.b16 %v636, %v633
        %v697 = vpack.c.b16 %v637, %v634
        %v698 = vpack.c.b16 %v638, %v635
        %v699 = vpack.c.b16 %v642, %v639
        %v700 = vpack.c.b16 %v643, %v640
        %v701 = vpack.c.b16 %v644, %v641
        %v702 = vpack.c.b16 %v648, %v645
        %v703 = vpack.c.b16 %v649, %v646
        %v704 = vpack.c.b16 %v650, %v647
        %v705 = vpack.c.b16 %v654, %v651
        %v706 = vpack.c.b16 %v655, %v652
        %v707 = vpack.c.b16 %v656, %v653
        %v708 = vpack.c.b16 %v660, %v657
        %v709 = vpack.c.b16 %v661, %v658
        %v710 = vpack.c.b16 %v662, %v659
        %759 = vmatprep.subr.bf16.mxu0 %v664
        %760 = vmatpush1.bf16.msra.mxu0 %v663
        %761 = vmatprep.subr.bf16.mxu0 %v667
        %762 = vmatpush1.bf16.msra.mxu0 %v666
        %763 = vmatprep.subr.bf16.mxu0 %v670
        %764 = vmatpush1.bf16.msra.mxu0 %v669
        %765 = vmatprep.subr.bf16.mxu0 %v673
        %766 = vmatpush1.bf16.msra.mxu0 %v672
        %767 = vmatprep.subr.bf16.mxu0 %v676
        %768 = vmatpush1.bf16.msra.mxu0 %v675
        %769 = vmatprep.subr.bf16.mxu0 %v679
        %770 = vmatpush1.bf16.msra.mxu0 %v678
        %771 = vmatprep.subr.bf16.mxu0 %v682
        %772 = vmatpush1.bf16.msra.mxu0 %v681
        %773 = vmatprep.subr.bf16.mxu0 %v685
        %774 = vmatpush1.bf16.msra.mxu0 %v684
        %775 = vmatprep.subr.bf16.mxu0 %v688
        %776 = vmatpush1.bf16.msra.mxu0 %v687
        %777 = vmatprep.subr.bf16.mxu0 %v691
        %778 = vmatpush1.bf16.msra.mxu0 %v690
        %779 = vmatprep.subr.bf16.mxu0 %v694
        %780 = vmatpush1.bf16.msra.mxu0 %v693
        %781 = vmatprep.subr.bf16.mxu0 %v697
        %782 = vmatpush1.bf16.msra.mxu0 %v696
        %783 = vmatprep.subr.bf16.mxu0 %v700
        %784 = vmatpush1.bf16.msra.mxu0 %v699
        %785 = vmatprep.subr.bf16.mxu0 %v703
        %786 = vmatpush1.bf16.msra.mxu0 %v702
        %787 = vmatprep.subr.bf16.mxu0 %v706
        %788 = vmatpush1.bf16.msra.mxu0 %v705
        %789 = vmatprep.subr.bf16.mxu0 %v709
        %790 = vmatpush1.bf16.msra.mxu0 %v708
        %791 = vmatprep.mubr.bf16.mxu0 %v500
        %792 = vmatmul.mubr.bf16.gmra.mrb[0].mxu0 %v499
        %v793 = vpop.f32.mrb[0].mxu0
        %v794 = vadd.f32 0.0, %v793
        %v795 = vpop.f32.mrb[0].mxu0
        %v796 = vadd.f32 0.0, %v795
        %v797 = vpop.f32.mrb[0].mxu0
        %v798 = vadd.f32 0.0, %v797
        %v799 = vpop.f32.mrb[0].mxu0
        %v800 = vadd.f32 0.0, %v799
        %801 = vdwg.mxu0
        %802 = vmatprep.subr.bf16.mxu0 0
        %803 = vmatpush1.bf16.msra.mxu0 %v665
        %804 = vmatprep.subr.bf16.mxu0 0
        %805 = vmatpush1.bf16.msra.mxu0 %v668
        %806 = vmatprep.subr.bf16.mxu0 0
        %807 = vmatpush1.bf16.msra.mxu0 %v671
        %808 = vmatprep.subr.bf16.mxu0 0
        %809 = vmatpush1.bf16.msra.mxu0 %v674
        %810 = vmatprep.subr.bf16.mxu0 0
        %811 = vmatpush1.bf16.msra.mxu0 %v677
        %812 = vmatprep.subr.bf16.mxu0 0
        %813 = vmatpush1.bf16.msra.mxu0 %v680
        %814 = vmatprep.subr.bf16.mxu0 0
        %815 = vmatpush1.bf16.msra.mxu0 %v683
        %816 = vmatprep.subr.bf16.mxu0 0
        %817 = vmatpush1.bf16.msra.mxu0 %v686
        %818 = vmatprep.subr.bf16.mxu0 0
        %819 = vmatpush1.bf16.msra.mxu0 %v689
        %820 = vmatprep.subr.bf16.mxu0 0
        %821 = vmatpush1.bf16.msra.mxu0 %v692
        %822 = vmatprep.subr.bf16.mxu0 0
        %823 = vmatpush1.bf16.msra.mxu0 %v695
        %824 = vmatprep.subr.bf16.mxu0 0
        %825 = vmatpush1.bf16.msra.mxu0 %v698
        %826 = vmatprep.subr.bf16.mxu0 0
        %827 = vmatpush1.bf16.msra.mxu0 %v701
        %828 = vmatprep.subr.bf16.mxu0 0
        %829 = vmatpush1.bf16.msra.mxu0 %v704
        %830 = vmatprep.subr.bf16.mxu0 0
        %831 = vmatpush1.bf16.msra.mxu0 %v707
        %832 = vmatprep.subr.bf16.mxu0 0
        %833 = vmatpush1.bf16.msra.mxu0 %v710
        %834 = vmatprep.mubr.bf16.mxu0 %v500
        %835 = vmatmul.mubr.bf16.gmra.mrb[0].mxu0 %v499
        %v836 = vpop.f32.mrb[0].mxu0
        %v837 = vadd.f32 0.0, %v836
        %v838 = vpop.f32.mrb[0].mxu0
        %v839 = vpop.f32.mrb[0].mxu0
        %v840 = vadd.f32 0.0, %v839
        %v841 = vpop.f32.mrb[0].mxu0
        %842 = vdwg.mxu0
        %v843 = vadd.f32 %v421, %v794
        %v844 = vadd.f32 %v422, %v796
        %v845 = vadd.f32 %v423, %v837
        %v846 = vadd.f32 %v424, %v798
        %v847 = vadd.f32 %v425, %v800
        %v848 = vadd.f32 %v426, %v840
        %849 = vst [vmem:[#allocation2] sm:$0xff] %v843
        %850 = vst [vmem:[#allocation2 + $0x8] sm:$0xff] %v844
        %851 = vst [vmem:[#allocation2 + $0x10] sm:$0xff] %v845
        %852 = vst [vmem:[#allocation2 + $0x18] sm:$0xff] %v846
        %853 = vst [vmem:[#allocation2 + $0x20] sm:$0xff] %v847
        %854 = vst [vmem:[#allocation2 + $0x28] sm:$0xff] %v848
        // Predicated region
        $region63: #{decoder_forward.28} parent=53 // pred_check
          %p855 = pneg %p411
        $region64: #{decoder_forward.28} parent=53 // pred_check_branch
          %857 = sbr.rel (%p855) target = $region66
        $region65: #{decoder_forward.28} parent=53 // pred_region
          %v858 = vld [vmem:[#allocation2] sm:$0xff]
          %v859 = vld [vmem:[#allocation2 + $0x8] sm:$0xff]
          %v860 = vld [vmem:[#allocation2 + $0x10] sm:$0xff]
          %v861 = vld [vmem:[#allocation2 + $0x18] sm:$0xff]
          %v862 = vld [vmem:[#allocation2 + $0x20] sm:$0xff]
          %v863 = vld [vmem:[#allocation2 + $0x28] sm:$0xff]
          %v864 = vld [vmem:[%s406] sm:$0x7]
          %v865 = vunpack.c.l.bf16 %v864
          %v867 = vlaneseq
          %v868 = vshrl.u32 %v867, 7
          %v869 = vsub.s32 0, %v868
          %v870 = vrot.slane %v865, %v869
          %v871 = vlaneseq
          %v872 = vshrl.u32 %v871, 7
          %v873 = vsub.s32 2, %v872
          %v874 = vrot.slane %v865, %v873
          %v875 = vlaneseq
          %v876 = vshrl.u32 %v875, 7
          %v877 = vsub.s32 4, %v876
          %v878 = vrot.slane %v865, %v877
          %v882 = vlaneseq
          %v883 = vshrl.u32 %v882, 7
          %v884 = vsub.s32 0, %v883
          %v885 = vrot.slane %v870, %v884
          %v886 = vlaneseq
          %v887 = vshrl.u32 %v886, 7
          %v888 = vsub.s32 0, %v887
          %v889 = vrot.slane %v874, %v888
          %v890 = vlaneseq
          %v891 = vshrl.u32 %v890, 7
          %v892 = vsub.s32 0, %v891
          %v893 = vrot.slane %v878, %v892
          %v894 = vadd.f32 %v858, %v885
          %v895 = vadd.f32 %v859, %v889
          %v896 = vadd.f32 %v860, %v893
          %v897 = vadd.f32 %v861, %v885
          %v898 = vadd.f32 %v862, %v889
          %v899 = vadd.f32 %v863, %v893
          %v900 = vpack.c.bf16 %v897, %v894
          %v901 = vpack.c.bf16 %v898, %v895
          %v902 = vpack.c.bf16 %v899, %v896
          %v906 = vunpack.c.l.b16 %v900
          %v907 = vunpack.c.l.b16 %v901
          %v908 = vunpack.c.l.b16 %v902
          %v909 = vunpack.c.h.b16 %v900
          %v910 = vunpack.c.h.b16 %v901
          %v911 = vunpack.c.h.b16 %v902
          %v912 = vpack.c.b16 %v907, %v906
          %v913 = vpack.c.b16 %v908, %v908
          %v914 = vpack.c.b16 %v910, %v909
          %v915 = vpack.c.b16 %v911, %v911
          %920 = vst [vmem:[%s388] sm:$0xff] %v912
          %921 = vst [vmem:[%s388 + $0x8] sm:$0xf] %v913
          %922 = vst [vmem:[%s388 + $0xc] sm:$0xff] %v914
          %923 = vst [vmem:[%s388 + $0x14] sm:$0xf] %v915
        $region66: #{decoder_forward.28} parent=53 // pred_fallthru
          _
        %s924 = sand.u32 %s125, 1
        %s925 = sand.u32 %s125, 1
        %s926 = smul.addr %s925, 24
        %s927 = scalar_lea.vmem [#allocation4], %s926
        // Predicated region
        $region67: #{decoder_forward.28} parent=53 // pred_check
          %p928 = pneg %p135
        $region68: #{decoder_forward.28} parent=53 // pred_check_branch
          %930 = sbr.rel (%p928) target = $region70
        $region69: #{decoder_forward.28} parent=53 // pred_region
          %s931 = smul.u32 2, %s19
          %s932 = smul.u32 3, %s20
          %s933 = smul.addr %s931, 6
          %s934 = sadd.s32 %s932, %s933
          %s935 = smul.addr %s934, 4
          %s936 = scalar_lea.vmem %s3, %s935
          // Predicated region
          $region71: #{decoder_forward.28} parent=69 // pred_check
            _
          $region72: #{decoder_forward.28} parent=69 // pred_check_branch
            %938 = sbr.rel (0) target = $region74
          $region73: #{decoder_forward.28} parent=69 // pred_region
            // Predicated region
            $region75: #{decoder_forward.28} parent=73 // pred_check
              _
            $region76: #{decoder_forward.28} parent=73 // pred_check_branch
              %940 = sbr.rel (0) target = $region78
            $region77: #{decoder_forward.28} parent=73 // pred_region
              %s941 = scalar_lea.vmem %s927, 8 [#allocation4]
              %s942 = scalar_lea.vmem %s936, 8
              loop: start=0, step=1, limit=1
              $region79: #{decoder_forward.28} parent=77 // loop_pre_header
                _
              $region80: #{decoder_forward.28} parent=77 // loop_header
                %s944 = sphi 0, %s948
                %p945 = scmp.ge.s32.totalorder %s944, 1
                %s949 = sphi %s927, %s927
                %s950 = sphi %s936, %s936
              $region81: #{decoder_forward.28} parent=77 // loop_header_branch
                %947 = sbr.rel (%p945) target = $region85
              $region82: #{decoder_forward.28} parent=77 // loop_body
                %v951 = vld [vmem:[%s949] sm:$0xff]
                %952 = vst [vmem:[%s950] sm:$0xff] %v951
                %v953 = vld [vmem:[%s949 + $0xc] sm:$0xff]
                %954 = vst [vmem:[%s950 + $0x18] sm:$0xff] %v953
              $region83: #{decoder_forward.28} parent=77 // loop_footer
                %s948 = sadd.s32 1, %s944
              $region84: #{decoder_forward.28} parent=77 // loop_footer_branch
                %943 = sbr.rel target = $region80
              $region85: #{decoder_forward.28} parent=77 // loop_exit
                _
              loop: start=0, step=1, limit=1
              $region86: #{decoder_forward.28} parent=77 // loop_pre_header
                _
              $region87: #{decoder_forward.28} parent=77 // loop_header
                %s957 = sphi 0, %s961
                %p958 = scmp.ge.s32.totalorder %s957, 1
                %s962 = sphi %s941, %s941
                %s963 = sphi %s942, %s942
              $region88: #{decoder_forward.28} parent=77 // loop_header_branch
                %960 = sbr.rel (%p958) target = $region92
              $region89: #{decoder_forward.28} parent=77 // loop_body
                %v964 = vld [vmem:[%s962] sm:$0xf]
                %965 = vst [vmem:[%s963] sm:$0xf] %v964
                %v966 = vld [vmem:[%s962 + $0xc] sm:$0xf]
                %967 = vst [vmem:[%s963 + $0x18] sm:$0xf] %v966
              $region90: #{decoder_forward.28} parent=77 // loop_footer
                %s961 = sadd.s32 1, %s957
              $region91: #{decoder_forward.28} parent=77 // loop_footer_branch
                %956 = sbr.rel target = $region87
              $region92: #{decoder_forward.28} parent=77 // loop_exit
                _
            $region78: #{decoder_forward.28} parent=73 // pred_fallthru
              _
          $region74: #{decoder_forward.28} parent=69 // pred_fallthru
            _
          %968 = vnop
        $region70: #{decoder_forward.28} parent=53 // pred_fallthru
          _
      $region54: #{decoder_forward.28} parent=5 // pred_fallthru
        _
      %p969 = scmp.le.s32.totalorder 2, %s9
      // Predicated region
      $region93: #{decoder_forward.28} parent=5 // pred_check
        %p970 = pneg %p969
      $region94: #{decoder_forward.28} parent=5 // pred_check_branch
        %972 = sbr.rel (%p970) target = $region96
      $region95: #{decoder_forward.28} parent=5 // pred_region
        %s973 = ssub.s32 %s9, 2
        // Predicated region
        $region97: #{decoder_forward.28} parent=95 // pred_check
          %p974 = pneg %p141
        $region98: #{decoder_forward.28} parent=95 // pred_check_branch
          %976 = sbr.rel (%p974) target = $region100
        $region99: #{decoder_forward.28} parent=95 // pred_region
          %s977 = sand.u32 %s126, 1
          %s978 = sand.u32 %s126, 1
          %s979 = smul.addr %s978, 24
          %s980 = scalar_lea.vmem [#allocation4], %s979
        $region100: #{decoder_forward.28} parent=95 // pred_fallthru
          _
      $region96: #{decoder_forward.28} parent=5 // pred_fallthru
        _
    $region6: #{decoder_forward.28} parent=1 // loop_footer
      %s13 = sadd.s32 1, %s9
    $region7: #{decoder_forward.28} parent=1 // loop_footer_branch
      %8 = sbr.rel target = $region3
    $region8: #{decoder_forward.28} parent=1 // loop_exit
      _

// kernel: decoder_forward.37
$region0: #{decoder_forward.37}
  #allocation0 [shape = 'u32[]', space=smem, size = 0x4, offset = 0x4, fixed_abs, tag = 'smem constant byte address 0x4 - core index']
  #allocation1 [shape = 'u32[144,128]{1,0:T(1,128)}', space=vmem, size = 0x12000, scoped, tag = 'internal scratch']
  #allocation2 [shape = 'f32[16,384]{1,0:T(8,128)}', space=vmem, size = 0x6000, scoped, tag = 'scratch operand']
  %s0 = inlined_call_operand.vmem [shape: bf16[16,256], index: 0, kind: input, shape index: {}]
  %s1 = inlined_call_operand.vmem [shape: bf16[256,384], index: 1, kind: input, shape index: {}]
  %s2 = inlined_call_operand.vmem [shape: bf16[1,384], index: 2, kind: input, shape index: {}]
  %s3 = inlined_call_operand.hbm [shape: bf16[16,384], index: 3, kind: output, shape index: {}]
  %s4 = sld [smem:[#allocation0]]
  $region30: #{decoder_forward.37} parent=0
    _
  %s6 = ssub.s32 1, %s4
  %s7 = scalar_select 0, %s6, %s4
  $region1: #{decoder_forward.37} parent=0
    #allocation3 [shape = 'u8[12288]{0}', space=vmem, size = 0x3000, scoped, tag = 'output window, operand 0, single buffered']
    #allocation4 [shape = 's32[1]{0}', space=sflag, size = 0x4, scoped, tag = 'scoped memory for decoder_forward.37']
    %8 = vsyncpa [#allocation4], 0
    // Predicated region
    $region2: #{decoder_forward.37} parent=1 // pred_check
      _
    $region3: #{decoder_forward.37} parent=1 // pred_check_branch
      %10 = sbr.rel (0) target = $region5
    $region4: #{decoder_forward.37} parent=1 // pred_region
      _
    $region5: #{decoder_forward.37} parent=1 // pred_fallthru
      _
    // Predicated region
    $region6: #{decoder_forward.37} parent=1 // pred_check
      _
    $region7: #{decoder_forward.37} parent=1 // pred_check_branch
      %12 = sbr.rel (0) target = $region9
    $region8: #{decoder_forward.37} parent=1 // pred_region
      _
    $region9: #{decoder_forward.37} parent=1 // pred_fallthru
      _
    // Predicated region
    $region10: #{decoder_forward.37} parent=1 // pred_check
      _
    $region11: #{decoder_forward.37} parent=1 // pred_check_branch
      %14 = sbr.rel (0) target = $region13
    $region12: #{decoder_forward.37} parent=1 // pred_region
      _
    $region13: #{decoder_forward.37} parent=1 // pred_fallthru
      _
    %p16 = scmp.eq.s32.totalorder 0, 0
    // Predicated region
    $region14: #{decoder_forward.37} parent=1 // pred_check
      %p17 = pneg %p16
    $region15: #{decoder_forward.37} parent=1 // pred_check_branch
      %19 = sbr.rel (%p17) target = $region17
    $region16: #{decoder_forward.37} parent=1 // pred_region
      %20 = vst [vmem:[#allocation2] sm:$0xff] 0.0
      %21 = vst [vmem:[#allocation2 + $0x8] sm:$0xff] 0.0
      %22 = vst [vmem:[#allocation2 + $0x10] sm:$0xff] 0.0
      %23 = vst [vmem:[#allocation2 + $0x18] sm:$0xff] 0.0
      %24 = vst [vmem:[#allocation2 + $0x20] sm:$0xff] 0.0
      %25 = vst [vmem:[#allocation2 + $0x28] sm:$0xff] 0.0
    $region17: #{decoder_forward.37} parent=1 // pred_fallthru
      _
    %v26 = vld [vmem:[#allocation2] sm:$0xff]
    %v27 = vld [vmem:[#allocation2 + $0x8] sm:$0xff]
    %v28 = vld [vmem:[#allocation2 + $0x10] sm:$0xff]
    %v29 = vld [vmem:[#allocation2 + $0x18] sm:$0xff]
    %v30 = vld [vmem:[#allocation2 + $0x20] sm:$0xff]
    %v31 = vld [vmem:[#allocation2 + $0x28] sm:$0xff]
    %v32 = vld [vmem:[%s0] sm:$0xff]
    %v33 = vld [vmem:[%s0 + $0x8] sm:$0xff]
    %v34 = vld [vmem:[%s1] sm:$0xff]
    %v35 = vld [vmem:[%s1 + $0x8] sm:$0xf]
    %v36 = vld [vmem:[%s1 + $0xc] sm:$0xff]
    %v37 = vld [vmem:[%s1 + $0x14] sm:$0xf]
    %v38 = vld [vmem:[%s1 + $0x18] sm:$0xff]
    %v39 = vld [vmem:[%s1 + $0x20] sm:$0xf]
    %v40 = vld [vmem:[%s1 + $0x24] sm:$0xff]
    %v41 = vld [vmem:[%s1 + $0x2c] sm:$0xf]
    %v42 = vld [vmem:[%s1 + $0x30] sm:$0xff]
    %v43 = vld [vmem:[%s1 + $0x38] sm:$0xf]
    %v44 = vld [vmem:[%s1 + $0x3c] sm:$0xff]
    %v45 = vld [vmem:[%s1 + $0x44] sm:$0xf]
    %v46 = vld [vmem:[%s1 + $0x48] sm:$0xff]
    %v47 = vld [vmem:[%s1 + $0x50] sm:$0xf]
    %v48 = vld [vmem:[%s1 + $0x54] sm:$0xff]
    %v49 = vld [vmem:[%s1 + $0x5c] sm:$0xf]
    %v50 = vld [vmem:[%s1 + $0x60] sm:$0xff]
    %v51 = vld [vmem:[%s1 + $0x68] sm:$0xf]
    %v52 = vld [vmem:[%s1 + $0x6c] sm:$0xff]
    %v53 = vld [vmem:[%s1 + $0x74] sm:$0xf]
    %v54 = vld [vmem:[%s1 + $0x78] sm:$0xff]
    %v55 = vld [vmem:[%s1 + $0x80] sm:$0xf]
    %v56 = vld [vmem:[%s1 + $0x84] sm:$0xff]
    %v57 = vld [vmem:[%s1 + $0x8c] sm:$0xf]
    %v58 = vld [vmem:[%s1 + $0x90] sm:$0xff]
    %v59 = vld [vmem:[%s1 + $0x98] sm:$0xf]
    %v60 = vld [vmem:[%s1 + $0x9c] sm:$0xff]
    %v61 = vld [vmem:[%s1 + $0xa4] sm:$0xf]
    %v62 = vld [vmem:[%s1 + $0xa8] sm:$0xff]
    %v63 = vld [vmem:[%s1 + $0xb0] sm:$0xf]
    %v64 = vld [vmem:[%s1 + $0xb4] sm:$0xff]
    %v65 = vld [vmem:[%s1 + $0xbc] sm:$0xf]
    %v66 = vld [vmem:[%s1 + $0xc0] sm:$0xff]
    %v67 = vld [vmem:[%s1 + $0xc8] sm:$0xf]
    %v68 = vld [vmem:[%s1 + $0xcc] sm:$0xff]
    %v69 = vld [vmem:[%s1 + $0xd4] sm:$0xf]
    %v70 = vld [vmem:[%s1 + $0xd8] sm:$0xff]
    %v71 = vld [vmem:[%s1 + $0xe0] sm:$0xf]
    %v72 = vld [vmem:[%s1 + $0xe4] sm:$0xff]
    %v73 = vld [vmem:[%s1 + $0xec] sm:$0xf]
    %v74 = vld [vmem:[%s1 + $0xf0] sm:$0xff]
    %v75 = vld [vmem:[%s1 + $0xf8] sm:$0xf]
    %v76 = vld [vmem:[%s1 + $0xfc] sm:$0xff]
    %v77 = vld [vmem:[%s1 + $0x104] sm:$0xf]
    %v78 = vld [vmem:[%s1 + $0x108] sm:$0xff]
    %v79 = vld [vmem:[%s1 + $0x110] sm:$0xf]
    %v80 = vld [vmem:[%s1 + $0x114] sm:$0xff]
    %v81 = vld [vmem:[%s1 + $0x11c] sm:$0xf]
    %v82 = vld [vmem:[%s1 + $0x120] sm:$0xff]
    %v83 = vld [vmem:[%s1 + $0x128] sm:$0xf]
    %v84 = vld [vmem:[%s1 + $0x12c] sm:$0xff]
    %v85 = vld [vmem:[%s1 + $0x134] sm:$0xf]
    %v86 = vld [vmem:[%s1 + $0x138] sm:$0xff]
    %v87 = vld [vmem:[%s1 + $0x140] sm:$0xf]
    %v88 = vld [vmem:[%s1 + $0x144] sm:$0xff]
    %v89 = vld [vmem:[%s1 + $0x14c] sm:$0xf]
    %v90 = vld [vmem:[%s1 + $0x150] sm:$0xff]
    %v91 = vld [vmem:[%s1 + $0x158] sm:$0xf]
    %v92 = vld [vmem:[%s1 + $0x15c] sm:$0xff]
    %v93 = vld [vmem:[%s1 + $0x164] sm:$0xf]
    %v94 = vld [vmem:[%s1 + $0x168] sm:$0xff]
    %v95 = vld [vmem:[%s1 + $0x170] sm:$0xf]
    %v96 = vld [vmem:[%s1 + $0x174] sm:$0xff]
    %v97 = vld [vmem:[%s1 + $0x17c] sm:$0xf]
    %v100 = vunpack.c.l.b16 %v32
    %v101 = vunpack.c.h.b16 %v32
    %v102 = vunpack.c.l.b16 %v33
    %v103 = vunpack.c.h.b16 %v33
    %v104 = vpack.c.b16 %v102, %v100
    %v105 = vpack.c.b16 %v103, %v101
    %v172 = vunpack.c.l.b16 %v34
    %v173 = vunpack.c.h.b16 %v34
    %v174 = vunpack.c.l.b16 %v35
    %v175 = vunpack.c.l.b16 %v36
    %v176 = vunpack.c.h.b16 %v36
    %v177 = vunpack.c.l.b16 %v37
    %v178 = vunpack.c.l.b16 %v38
    %v179 = vunpack.c.h.b16 %v38
    %v180 = vunpack.c.l.b16 %v39
    %v181 = vunpack.c.l.b16 %v40
    %v182 = vunpack.c.h.b16 %v40
    %v183 = vunpack.c.l.b16 %v41
    %v184 = vunpack.c.l.b16 %v42
    %v185 = vunpack.c.h.b16 %v42
    %v186 = vunpack.c.l.b16 %v43
    %v187 = vunpack.c.l.b16 %v44
    %v188 = vunpack.c.h.b16 %v44
    %v189 = vunpack.c.l.b16 %v45
    %v190 = vunpack.c.l.b16 %v46
    %v191 = vunpack.c.h.b16 %v46
    %v192 = vunpack.c.l.b16 %v47
    %v193 = vunpack.c.l.b16 %v48
    %v194 = vunpack.c.h.b16 %v48
    %v195 = vunpack.c.l.b16 %v49
    %v196 = vunpack.c.l.b16 %v50
    %v197 = vunpack.c.h.b16 %v50
    %v198 = vunpack.c.l.b16 %v51
    %v199 = vunpack.c.l.b16 %v52
    %v200 = vunpack.c.h.b16 %v52
    %v201 = vunpack.c.l.b16 %v53
    %v202 = vunpack.c.l.b16 %v54
    %v203 = vunpack.c.h.b16 %v54
    %v204 = vunpack.c.l.b16 %v55
    %v205 = vunpack.c.l.b16 %v56
    %v206 = vunpack.c.h.b16 %v56
    %v207 = vunpack.c.l.b16 %v57
    %v208 = vunpack.c.l.b16 %v58
    %v209 = vunpack.c.h.b16 %v58
    %v210 = vunpack.c.l.b16 %v59
    %v211 = vunpack.c.l.b16 %v60
    %v212 = vunpack.c.h.b16 %v60
    %v213 = vunpack.c.l.b16 %v61
    %v214 = vunpack.c.l.b16 %v62
    %v215 = vunpack.c.h.b16 %v62
    %v216 = vunpack.c.l.b16 %v63
    %v217 = vunpack.c.l.b16 %v64
    %v218 = vunpack.c.h.b16 %v64
    %v219 = vunpack.c.l.b16 %v65
    %v220 = vunpack.c.l.b16 %v66
    %v221 = vunpack.c.h.b16 %v66
    %v222 = vunpack.c.l.b16 %v67
    %v223 = vunpack.c.l.b16 %v68
    %v224 = vunpack.c.h.b16 %v68
    %v225 = vunpack.c.l.b16 %v69
    %v226 = vunpack.c.l.b16 %v70
    %v227 = vunpack.c.h.b16 %v70
    %v228 = vunpack.c.l.b16 %v71
    %v229 = vunpack.c.l.b16 %v72
    %v230 = vunpack.c.h.b16 %v72
    %v231 = vunpack.c.l.b16 %v73
    %v232 = vunpack.c.l.b16 %v74
    %v233 = vunpack.c.h.b16 %v74
    %v234 = vunpack.c.l.b16 %v75
    %v235 = vunpack.c.l.b16 %v76
    %v236 = vunpack.c.h.b16 %v76
    %v237 = vunpack.c.l.b16 %v77
    %v238 = vunpack.c.l.b16 %v78
    %v239 = vunpack.c.h.b16 %v78
    %v240 = vunpack.c.l.b16 %v79
    %v241 = vunpack.c.l.b16 %v80
    %v242 = vunpack.c.h.b16 %v80
    %v243 = vunpack.c.l.b16 %v81
    %v244 = vunpack.c.l.b16 %v82
    %v245 = vunpack.c.h.b16 %v82
    %v246 = vunpack.c.l.b16 %v83
    %v247 = vunpack.c.l.b16 %v84
    %v248 = vunpack.c.h.b16 %v84
    %v249 = vunpack.c.l.b16 %v85
    %v250 = vunpack.c.l.b16 %v86
    %v251 = vunpack.c.h.b16 %v86
    %v252 = vunpack.c.l.b16 %v87
    %v253 = vunpack.c.l.b16 %v88
    %v254 = vunpack.c.h.b16 %v88
    %v255 = vunpack.c.l.b16 %v89
    %v256 = vunpack.c.l.b16 %v90
    %v257 = vunpack.c.h.b16 %v90
    %v258 = vunpack.c.l.b16 %v91
    %v259 = vunpack.c.l.b16 %v92
    %v260 = vunpack.c.h.b16 %v92
    %v261 = vunpack.c.l.b16 %v93
    %v262 = vunpack.c.l.b16 %v94
    %v263 = vunpack.c.h.b16 %v94
    %v264 = vunpack.c.l.b16 %v95
    %v265 = vunpack.c.l.b16 %v96
    %v266 = vunpack.c.h.b16 %v96
    %v267 = vunpack.c.l.b16 %v97
    %v268 = vpack.c.b16 %v175, %v172
    %v269 = vpack.c.b16 %v176, %v173
    %v270 = vpack.c.b16 %v177, %v174
    %v271 = vpack.c.b16 %v181, %v178
    %v272 = vpack.c.b16 %v182, %v179
    %v273 = vpack.c.b16 %v183, %v180
    %v274 = vpack.c.b16 %v187, %v184
    %v275 = vpack.c.b16 %v188, %v185
    %v276 = vpack.c.b16 %v189, %v186
    %v277 = vpack.c.b16 %v193, %v190
    %v278 = vpack.c.b16 %v194, %v191
    %v279 = vpack.c.b16 %v195, %v192
    %v280 = vpack.c.b16 %v199, %v196
    %v281 = vpack.c.b16 %v200, %v197
    %v282 = vpack.c.b16 %v201, %v198
    %v283 = vpack.c.b16 %v205, %v202
    %v284 = vpack.c.b16 %v206, %v203
    %v285 = vpack.c.b16 %v207, %v204
    %v286 = vpack.c.b16 %v211, %v208
    %v287 = vpack.c.b16 %v212, %v209
    %v288 = vpack.c.b16 %v213, %v210
    %v289 = vpack.c.b16 %v217, %v214
    %v290 = vpack.c.b16 %v218, %v215
    %v291 = vpack.c.b16 %v219, %v216
    %v292 = vpack.c.b16 %v223, %v220
    %v293 = vpack.c.b16 %v224, %v221
    %v294 = vpack.c.b16 %v225, %v222
    %v295 = vpack.c.b16 %v229, %v226
    %v296 = vpack.c.b16 %v230, %v227
    %v297 = vpack.c.b16 %v231, %v228
    %v298 = vpack.c.b16 %v235, %v232
    %v299 = vpack.c.b16 %v236, %v233
    %v300 = vpack.c.b16 %v237, %v234
    %v301 = vpack.c.b16 %v241, %v238
    %v302 = vpack.c.b16 %v242, %v239
    %v303 = vpack.c.b16 %v243, %v240
    %v304 = vpack.c.b16 %v247, %v244
    %v305 = vpack.c.b16 %v248, %v245
    %v306 = vpack.c.b16 %v249, %v246
    %v307 = vpack.c.b16 %v253, %v250
    %v308 = vpack.c.b16 %v254, %v251
    %v309 = vpack.c.b16 %v255, %v252
    %v310 = vpack.c.b16 %v259, %v256
    %v311 = vpack.c.b16 %v260, %v257
    %v312 = vpack.c.b16 %v261, %v258
    %v313 = vpack.c.b16 %v265, %v262
    %v314 = vpack.c.b16 %v266, %v263
    %v315 = vpack.c.b16 %v267, %v264
    %364 = vmatprep.subr.bf16.mxu0 %v269
    %365 = vmatpush1.bf16.msra.mxu0 %v268
    %366 = vmatprep.subr.bf16.mxu0 %v272
    %367 = vmatpush1.bf16.msra.mxu0 %v271
    %368 = vmatprep.subr.bf16.mxu0 %v275
    %369 = vmatpush1.bf16.msra.mxu0 %v274
    %370 = vmatprep.subr.bf16.mxu0 %v278
    %371 = vmatpush1.bf16.msra.mxu0 %v277
    %372 = vmatprep.subr.bf16.mxu0 %v281
    %373 = vmatpush1.bf16.msra.mxu0 %v280
    %374 = vmatprep.subr.bf16.mxu0 %v284
    %375 = vmatpush1.bf16.msra.mxu0 %v283
    %376 = vmatprep.subr.bf16.mxu0 %v287
    %377 = vmatpush1.bf16.msra.mxu0 %v286
    %378 = vmatprep.subr.bf16.mxu0 %v290
    %379 = vmatpush1.bf16.msra.mxu0 %v289
    %380 = vmatprep.subr.bf16.mxu0 %v293
    %381 = vmatpush1.bf16.msra.mxu0 %v292
    %382 = vmatprep.subr.bf16.mxu0 %v296
    %383 = vmatpush1.bf16.msra.mxu0 %v295
    %384 = vmatprep.subr.bf16.mxu0 %v299
    %385 = vmatpush1.bf16.msra.mxu0 %v298
    %386 = vmatprep.subr.bf16.mxu0 %v302
    %387 = vmatpush1.bf16.msra.mxu0 %v301
    %388 = vmatprep.subr.bf16.mxu0 %v305
    %389 = vmatpush1.bf16.msra.mxu0 %v304
    %390 = vmatprep.subr.bf16.mxu0 %v308
    %391 = vmatpush1.bf16.msra.mxu0 %v307
    %392 = vmatprep.subr.bf16.mxu0 %v311
    %393 = vmatpush1.bf16.msra.mxu0 %v310
    %394 = vmatprep.subr.bf16.mxu0 %v314
    %395 = vmatpush1.bf16.msra.mxu0 %v313
    %396 = vmatprep.mubr.bf16.mxu0 %v105
    %397 = vmatmul.mubr.bf16.gmra.mrb[0].mxu0 %v104
    %v398 = vpop.f32.mrb[0].mxu0
    %v399 = vadd.f32 0.0, %v398
    %v400 = vpop.f32.mrb[0].mxu0
    %v401 = vadd.f32 0.0, %v400
    %v402 = vpop.f32.mrb[0].mxu0
    %v403 = vadd.f32 0.0, %v402
    %v404 = vpop.f32.mrb[0].mxu0
    %v405 = vadd.f32 0.0, %v404
    %406 = vdwg.mxu0
    %407 = vmatprep.subr.bf16.mxu0 0
    %408 = vmatpush1.bf16.msra.mxu0 %v270
    %409 = vmatprep.subr.bf16.mxu0 0
    %410 = vmatpush1.bf16.msra.mxu0 %v273
    %411 = vmatprep.subr.bf16.mxu0 0
    %412 = vmatpush1.bf16.msra.mxu0 %v276
    %413 = vmatprep.subr.bf16.mxu0 0
    %414 = vmatpush1.bf16.msra.mxu0 %v279
    %415 = vmatprep.subr.bf16.mxu0 0
    %416 = vmatpush1.bf16.msra.mxu0 %v282
    %417 = vmatprep.subr.bf16.mxu0 0
    %418 = vmatpush1.bf16.msra.mxu0 %v285
    %419 = vmatprep.subr.bf16.mxu0 0
    %420 = vmatpush1.bf16.msra.mxu0 %v288
    %421 = vmatprep.subr.bf16.mxu0 0
    %422 = vmatpush1.bf16.msra.mxu0 %v291
    %423 = vmatprep.subr.bf16.mxu0 0
    %424 = vmatpush1.bf16.msra.mxu0 %v294
    %425 = vmatprep.subr.bf16.mxu0 0
    %426 = vmatpush1.bf16.msra.mxu0 %v297
    %427 = vmatprep.subr.bf16.mxu0 0
    %428 = vmatpush1.bf16.msra.mxu0 %v300
    %429 = vmatprep.subr.bf16.mxu0 0
    %430 = vmatpush1.bf16.msra.mxu0 %v303
    %431 = vmatprep.subr.bf16.mxu0 0
    %432 = vmatpush1.bf16.msra.mxu0 %v306
    %433 = vmatprep.subr.bf16.mxu0 0
    %434 = vmatpush1.bf16.msra.mxu0 %v309
    %435 = vmatprep.subr.bf16.mxu0 0
    %436 = vmatpush1.bf16.msra.mxu0 %v312
    %437 = vmatprep.subr.bf16.mxu0 0
    %438 = vmatpush1.bf16.msra.mxu0 %v315
    %439 = vmatprep.mubr.bf16.mxu0 %v105
    %440 = vmatmul.mubr.bf16.gmra.mrb[0].mxu0 %v104
    %v441 = vpop.f32.mrb[0].mxu0
    %v442 = vadd.f32 0.0, %v441
    %v443 = vpop.f32.mrb[0].mxu0
    %v444 = vpop.f32.mrb[0].mxu0
    %v445 = vadd.f32 0.0, %v444
    %v446 = vpop.f32.mrb[0].mxu0
    %447 = vdwg.mxu0
    %v448 = vadd.f32 %v26, %v399
    %v449 = vadd.f32 %v27, %v401
    %v450 = vadd.f32 %v28, %v442
    %v451 = vadd.f32 %v29, %v403
    %v452 = vadd.f32 %v30, %v405
    %v453 = vadd.f32 %v31, %v445
    %454 = vst [vmem:[#allocation2] sm:$0xff] %v448
    %455 = vst [vmem:[#allocation2 + $0x8] sm:$0xff] %v449
    %456 = vst [vmem:[#allocation2 + $0x10] sm:$0xff] %v450
    %457 = vst [vmem:[#allocation2 + $0x18] sm:$0xff] %v451
    %458 = vst [vmem:[#allocation2 + $0x20] sm:$0xff] %v452
    %459 = vst [vmem:[#allocation2 + $0x28] sm:$0xff] %v453
    // Predicated region
    $region18: #{decoder_forward.37} parent=1 // pred_check
      %p460 = pneg %p16
    $region19: #{decoder_forward.37} parent=1 // pred_check_branch
      %462 = sbr.rel (%p460) target = $region21
    $region20: #{decoder_forward.37} parent=1 // pred_region
      %v463 = vld [vmem:[#allocation2] sm:$0xff]
      %v464 = vld [vmem:[#allocation2 + $0x8] sm:$0xff]
      %v465 = vld [vmem:[#allocation2 + $0x10] sm:$0xff]
      %v466 = vld [vmem:[#allocation2 + $0x18] sm:$0xff]
      %v467 = vld [vmem:[#allocation2 + $0x20] sm:$0xff]
      %v468 = vld [vmem:[#allocation2 + $0x28] sm:$0xff]
      %v469 = vld [vmem:[%s2] sm:$0x7]
      %v470 = vunpack.c.l.bf16 %v469
      %v472 = vlaneseq
      %v473 = vshrl.u32 %v472, 7
      %v474 = vsub.s32 0, %v473
      %v475 = vrot.slane %v470, %v474
      %v476 = vlaneseq
      %v477 = vshrl.u32 %v476, 7
      %v478 = vsub.s32 2, %v477
      %v479 = vrot.slane %v470, %v478
      %v480 = vlaneseq
      %v481 = vshrl.u32 %v480, 7
      %v482 = vsub.s32 4, %v481
      %v483 = vrot.slane %v470, %v482
      %v487 = vlaneseq
      %v488 = vshrl.u32 %v487, 7
      %v489 = vsub.s32 0, %v488
      %v490 = vrot.slane %v475, %v489
      %v491 = vlaneseq
      %v492 = vshrl.u32 %v491, 7
      %v493 = vsub.s32 0, %v492
      %v494 = vrot.slane %v479, %v493
      %v495 = vlaneseq
      %v496 = vshrl.u32 %v495, 7
      %v497 = vsub.s32 0, %v496
      %v498 = vrot.slane %v483, %v497
      %v499 = vadd.f32 %v463, %v490
      %v500 = vadd.f32 %v464, %v494
      %v501 = vadd.f32 %v465, %v498
      %v502 = vadd.f32 %v466, %v490
      %v503 = vadd.f32 %v467, %v494
      %v504 = vadd.f32 %v468, %v498
      %v505 = vpack.c.bf16 %v502, %v499
      %v506 = vpack.c.bf16 %v503, %v500
      %v507 = vpack.c.bf16 %v504, %v501
      %v511 = vunpack.c.l.b16 %v505
      %v512 = vunpack.c.l.b16 %v506
      %v513 = vunpack.c.l.b16 %v507
      %v514 = vunpack.c.h.b16 %v505
      %v515 = vunpack.c.h.b16 %v506
      %v516 = vunpack.c.h.b16 %v507
      %v517 = vpack.c.b16 %v512, %v511
      %v518 = vpack.c.b16 %v513, %v513
      %v519 = vpack.c.b16 %v515, %v514
      %v520 = vpack.c.b16 %v516, %v516
      %525 = vst [vmem:[#allocation3] sm:$0xff] %v517
      %526 = vst [vmem:[#allocation3 + $0x8] sm:$0xf] %v518
      %527 = vst [vmem:[#allocation3 + $0xc] sm:$0xff] %v519
      %528 = vst [vmem:[#allocation3 + $0x14] sm:$0xf] %v520
    $region21: #{decoder_forward.37} parent=1 // pred_fallthru
      _
    // Predicated region
    $region22: #{decoder_forward.37} parent=1 // pred_check
      _
    $region23: #{decoder_forward.37} parent=1 // pred_check_branch
      %530 = sbr.rel (0) target = $region25
    $region24: #{decoder_forward.37} parent=1 // pred_region
      %s532 = ssub.s32 384, 384
      %533 = vsyncadd [#allocation4], %s532
      %s534 = sshll.u32 [#allocation3], 4
      %s535 = int_to_ptr.vmem [resolvable:$true] %s534
      %540 = dma.vmem_to_hbm [thread:$0]  %s535, 384, %s3, [#allocation4], 192, 192, 12
    $region25: #{decoder_forward.37} parent=1 // pred_fallthru
      _
    // Predicated region
    $region26: #{decoder_forward.37} parent=1 // pred_check
      _
    $region27: #{decoder_forward.37} parent=1 // pred_check_branch
      %542 = sbr.rel (0) target = $region29
    $region28: #{decoder_forward.37} parent=1 // pred_region
      %543 = dma.done [#allocation4], 384
    $region29: #{decoder_forward.37} parent=1 // pred_fallthru
      _
    %544 = vsyncpa [#allocation4], 1

// kernel: decoder_forward.27
$region0: #{decoder_forward.27}
  #allocation0 [shape = 'u32[]', space=smem, size = 0x4, offset = 0x4, fixed_abs, tag = 'smem constant byte address 0x4 - core index']
  #allocation1 [shape = 'u32[144,128]{1,0:T(1,128)}', space=vmem, size = 0x12000, scoped, tag = 'internal scratch']
  #allocation2 [shape = 'f32[16,256]{1,0:T(8,128)}', space=vmem, size = 0x4000, scoped, tag = 'scratch operand']
  %s0 = inlined_call_operand.vmem [shape: bf16[16,512], index: 0, kind: input, shape index: {}]
  %s1 = inlined_call_operand.vmem [shape: bf16[512,256], index: 1, kind: input, shape index: {}]
  %s2 = inlined_call_operand.vmem [shape: bf16[1,256], index: 2, kind: input, shape index: {}]
  %s3 = inlined_call_operand.vmem [shape: bf16[16,256], index: 3, kind: input, shape index: {}]
  %s4 = inlined_call_operand.vmem [shape: bf16[1,256], index: 4, kind: input, shape index: {}]
  %s5 = inlined_call_operand.vmem [shape: bf16[1,256], index: 5, kind: input, shape index: {}]
  %s6 = inlined_call_operand.vmem [shape: bf16[16,256], index: 6, kind: output, shape index: {}]
  %s7 = sld [smem:[#allocation0]]
  $region42: #{decoder_forward.27} parent=0
    _
  %s9 = ssub.s32 1, %s7
  %s10 = scalar_select 0, %s9, %s7
  // Predicated region
  $region2: #{decoder_forward.27} parent=0 // pred_check
    _
  $region3: #{decoder_forward.27} parent=0 // pred_check_branch
    %12 = sbr.rel (0) target = $region5
  $region4: #{decoder_forward.27} parent=0 // pred_region
    _
  $region5: #{decoder_forward.27} parent=0 // pred_fallthru
    _
  // Predicated region
  $region6: #{decoder_forward.27} parent=0 // pred_check
    _
  $region7: #{decoder_forward.27} parent=0 // pred_check_branch
    %14 = sbr.rel (0) target = $region9
  $region8: #{decoder_forward.27} parent=0 // pred_region
    _
  $region9: #{decoder_forward.27} parent=0 // pred_fallthru
    _
  // Predicated region
  $region10: #{decoder_forward.27} parent=0 // pred_check
    _
  $region11: #{decoder_forward.27} parent=0 // pred_check_branch
    %16 = sbr.rel (0) target = $region13
  $region12: #{decoder_forward.27} parent=0 // pred_region
    _
  $region13: #{decoder_forward.27} parent=0 // pred_fallthru
    _
  // Predicated region
  $region14: #{decoder_forward.27} parent=0 // pred_check
    _
  $region15: #{decoder_forward.27} parent=0 // pred_check_branch
    %18 = sbr.rel (0) target = $region17
  $region16: #{decoder_forward.27} parent=0 // pred_region
    _
  $region17: #{decoder_forward.27} parent=0 // pred_fallthru
    _
  // Predicated region
  $region18: #{decoder_forward.27} parent=0 // pred_check
    _
  $region19: #{decoder_forward.27} parent=0 // pred_check_branch
    %20 = sbr.rel (0) target = $region21
  $region20: #{decoder_forward.27} parent=0 // pred_region
    _
  $region21: #{decoder_forward.27} parent=0 // pred_fallthru
    _
  // Predicated region
  $region22: #{decoder_forward.27} parent=0 // pred_check
    _
  $region23: #{decoder_forward.27} parent=0 // pred_check_branch
    %22 = sbr.rel (0) target = $region25
  $region24: #{decoder_forward.27} parent=0 // pred_region
    _
  $region25: #{decoder_forward.27} parent=0 // pred_fallthru
    _
  %p23 = scmp.eq.s32.totalorder 0, 0
  // Predicated region
  $region26: #{decoder_forward.27} parent=0 // pred_check
    %p24 = pneg %p23
  $region27: #{decoder_forward.27} parent=0 // pred_check_branch
    %26 = sbr.rel (%p24) target = $region29
  $region28: #{decoder_forward.27} parent=0 // pred_region
    %27 = vst [vmem:[#allocation2] sm:$0xff] 0.0
    %28 = vst [vmem:[#allocation2 + $0x8] sm:$0xff] 0.0
    %29 = vst [vmem:[#allocation2 + $0x10] sm:$0xff] 0.0
    %30 = vst [vmem:[#allocation2 + $0x18] sm:$0xff] 0.0
  $region29: #{decoder_forward.27} parent=0 // pred_fallthru
    _
  %v31 = vld [vmem:[#allocation2] sm:$0xff]
  %v32 = vld [vmem:[#allocation2 + $0x8] sm:$0xff]
  %v33 = vld [vmem:[#allocation2 + $0x10] sm:$0xff]
  %v34 = vld [vmem:[#allocation2 + $0x18] sm:$0xff]
  %v35 = vld [vmem:[%s0] sm:$0xff]
  %v36 = vld [vmem:[%s0 + $0x8] sm:$0xff]
  %v37 = vld [vmem:[%s0 + $0x10] sm:$0xff]
  %v38 = vld [vmem:[%s0 + $0x18] sm:$0xff]
  %v39 = vld [vmem:[%s1] sm:$0xff]
  %v40 = vld [vmem:[%s1 + $0x8] sm:$0xff]
  %v41 = vld [vmem:[%s1 + $0x10] sm:$0xff]
  %v42 = vld [vmem:[%s1 + $0x18] sm:$0xff]
  %v43 = vld [vmem:[%s1 + $0x20] sm:$0xff]
  %v44 = vld [vmem:[%s1 + $0x28] sm:$0xff]
  %v45 = vld [vmem:[%s1 + $0x30] sm:$0xff]
  %v46 = vld [vmem:[%s1 + $0x38] sm:$0xff]
  %v47 = vld [vmem:[%s1 + $0x40] sm:$0xff]
  %v48 = vld [vmem:[%s1 + $0x48] sm:$0xff]
  %v49 = vld [vmem:[%s1 + $0x50] sm:$0xff]
  %v50 = vld [vmem:[%s1 + $0x58] sm:$0xff]
  %v51 = vld [vmem:[%s1 + $0x60] sm:$0xff]
  %v52 = vld [vmem:[%s1 + $0x68] sm:$0xff]
  %v53 = vld [vmem:[%s1 + $0x70] sm:$0xff]
  %v54 = vld [vmem:[%s1 + $0x78] sm:$0xff]
  %v55 = vld [vmem:[%s1 + $0x80] sm:$0xff]
  %v56 = vld [vmem:[%s1 + $0x88] sm:$0xff]
  %v57 = vld [vmem:[%s1 + $0x90] sm:$0xff]
  %v58 = vld [vmem:[%s1 + $0x98] sm:$0xff]
  %v59 = vld [vmem:[%s1 + $0xa0] sm:$0xff]
  %v60 = vld [vmem:[%s1 + $0xa8] sm:$0xff]
  %v61 = vld [vmem:[%s1 + $0xb0] sm:$0xff]
  %v62 = vld [vmem:[%s1 + $0xb8] sm:$0xff]
  %v63 = vld [vmem:[%s1 + $0xc0] sm:$0xff]
  %v64 = vld [vmem:[%s1 + $0xc8] sm:$0xff]
  %v65 = vld [vmem:[%s1 + $0xd0] sm:$0xff]
  %v66 = vld [vmem:[%s1 + $0xd8] sm:$0xff]
  %v67 = vld [vmem:[%s1 + $0xe0] sm:$0xff]
  %v68 = vld [vmem:[%s1 + $0xe8] sm:$0xff]
  %v69 = vld [vmem:[%s1 + $0xf0] sm:$0xff]
  %v70 = vld [vmem:[%s1 + $0xf8] sm:$0xff]
  %v71 = vld [vmem:[%s1 + $0x100] sm:$0xff]
  %v72 = vld [vmem:[%s1 + $0x108] sm:$0xff]
  %v73 = vld [vmem:[%s1 + $0x110] sm:$0xff]
  %v74 = vld [vmem:[%s1 + $0x118] sm:$0xff]
  %v75 = vld [vmem:[%s1 + $0x120] sm:$0xff]
  %v76 = vld [vmem:[%s1 + $0x128] sm:$0xff]
  %v77 = vld [vmem:[%s1 + $0x130] sm:$0xff]
  %v78 = vld [vmem:[%s1 + $0x138] sm:$0xff]
  %v79 = vld [vmem:[%s1 + $0x140] sm:$0xff]
  %v80 = vld [vmem:[%s1 + $0x148] sm:$0xff]
  %v81 = vld [vmem:[%s1 + $0x150] sm:$0xff]
  %v82 = vld [vmem:[%s1 + $0x158] sm:$0xff]
  %v83 = vld [vmem:[%s1 + $0x160] sm:$0xff]
  %v84 = vld [vmem:[%s1 + $0x168] sm:$0xff]
  %v85 = vld [vmem:[%s1 + $0x170] sm:$0xff]
  %v86 = vld [vmem:[%s1 + $0x178] sm:$0xff]
  %v87 = vld [vmem:[%s1 + $0x180] sm:$0xff]
  %v88 = vld [vmem:[%s1 + $0x188] sm:$0xff]
  %v89 = vld [vmem:[%s1 + $0x190] sm:$0xff]
  %v90 = vld [vmem:[%s1 + $0x198] sm:$0xff]
  %v91 = vld [vmem:[%s1 + $0x1a0] sm:$0xff]
  %v92 = vld [vmem:[%s1 + $0x1a8] sm:$0xff]
  %v93 = vld [vmem:[%s1 + $0x1b0] sm:$0xff]
  %v94 = vld [vmem:[%s1 + $0x1b8] sm:$0xff]
  %v95 = vld [vmem:[%s1 + $0x1c0] sm:$0xff]
  %v96 = vld [vmem:[%s1 + $0x1c8] sm:$0xff]
  %v97 = vld [vmem:[%s1 + $0x1d0] sm:$0xff]
  %v98 = vld [vmem:[%s1 + $0x1d8] sm:$0xff]
  %v99 = vld [vmem:[%s1 + $0x1e0] sm:$0xff]
  %v100 = vld [vmem:[%s1 + $0x1e8] sm:$0xff]
  %v101 = vld [vmem:[%s1 + $0x1f0] sm:$0xff]
  %v102 = vld [vmem:[%s1 + $0x1f8] sm:$0xff]
  %v107 = vunpack.c.l.b16 %v35
  %v108 = vunpack.c.h.b16 %v35
  %v109 = vunpack.c.l.b16 %v36
  %v110 = vunpack.c.h.b16 %v36
  %v111 = vunpack.c.l.b16 %v37
  %v112 = vunpack.c.h.b16 %v37
  %v113 = vunpack.c.l.b16 %v38
  %v114 = vunpack.c.h.b16 %v38
  %v115 = vpack.c.b16 %v111, %v107
  %v116 = vpack.c.b16 %v112, %v108
  %v117 = vpack.c.b16 %v113, %v109
  %v118 = vpack.c.b16 %v114, %v110
  %v187 = vunpack.c.l.b16 %v39
  %v188 = vunpack.c.h.b16 %v39
  %v189 = vunpack.c.l.b16 %v40
  %v190 = vunpack.c.h.b16 %v40
  %v191 = vunpack.c.l.b16 %v41
  %v192 = vunpack.c.h.b16 %v41
  %v193 = vunpack.c.l.b16 %v42
  %v194 = vunpack.c.h.b16 %v42
  %v195 = vunpack.c.l.b16 %v43
  %v196 = vunpack.c.h.b16 %v43
  %v197 = vunpack.c.l.b16 %v44
  %v198 = vunpack.c.h.b16 %v44
  %v199 = vunpack.c.l.b16 %v45
  %v200 = vunpack.c.h.b16 %v45
  %v201 = vunpack.c.l.b16 %v46
  %v202 = vunpack.c.h.b16 %v46
  %v203 = vunpack.c.l.b16 %v47
  %v204 = vunpack.c.h.b16 %v47
  %v205 = vunpack.c.l.b16 %v48
  %v206 = vunpack.c.h.b16 %v48
  %v207 = vunpack.c.l.b16 %v49
  %v208 = vunpack.c.h.b16 %v49
  %v209 = vunpack.c.l.b16 %v50
  %v210 = vunpack.c.h.b16 %v50
  %v211 = vunpack.c.l.b16 %v51
  %v212 = vunpack.c.h.b16 %v51
  %v213 = vunpack.c.l.b16 %v52
  %v214 = vunpack.c.h.b16 %v52
  %v215 = vunpack.c.l.b16 %v53
  %v216 = vunpack.c.h.b16 %v53
  %v217 = vunpack.c.l.b16 %v54
  %v218 = vunpack.c.h.b16 %v54
  %v219 = vunpack.c.l.b16 %v55
  %v220 = vunpack.c.h.b16 %v55
  %v221 = vunpack.c.l.b16 %v56
  %v222 = vunpack.c.h.b16 %v56
  %v223 = vunpack.c.l.b16 %v57
  %v224 = vunpack.c.h.b16 %v57
  %v225 = vunpack.c.l.b16 %v58
  %v226 = vunpack.c.h.b16 %v58
  %v227 = vunpack.c.l.b16 %v59
  %v228 = vunpack.c.h.b16 %v59
  %v229 = vunpack.c.l.b16 %v60
  %v230 = vunpack.c.h.b16 %v60
  %v231 = vunpack.c.l.b16 %v61
  %v232 = vunpack.c.h.b16 %v61
  %v233 = vunpack.c.l.b16 %v62
  %v234 = vunpack.c.h.b16 %v62
  %v235 = vunpack.c.l.b16 %v63
  %v236 = vunpack.c.h.b16 %v63
  %v237 = vunpack.c.l.b16 %v64
  %v238 = vunpack.c.h.b16 %v64
  %v239 = vunpack.c.l.b16 %v65
  %v240 = vunpack.c.h.b16 %v65
  %v241 = vunpack.c.l.b16 %v66
  %v242 = vunpack.c.h.b16 %v66
  %v243 = vunpack.c.l.b16 %v67
  %v244 = vunpack.c.h.b16 %v67
  %v245 = vunpack.c.l.b16 %v68
  %v246 = vunpack.c.h.b16 %v68
  %v247 = vunpack.c.l.b16 %v69
  %v248 = vunpack.c.h.b16 %v69
  %v249 = vunpack.c.l.b16 %v70
  %v250 = vunpack.c.h.b16 %v70
  %v251 = vunpack.c.l.b16 %v71
  %v252 = vunpack.c.h.b16 %v71
  %v253 = vunpack.c.l.b16 %v72
  %v254 = vunpack.c.h.b16 %v72
  %v255 = vunpack.c.l.b16 %v73
  %v256 = vunpack.c.h.b16 %v73
  %v257 = vunpack.c.l.b16 %v74
  %v258 = vunpack.c.h.b16 %v74
  %v259 = vunpack.c.l.b16 %v75
  %v260 = vunpack.c.h.b16 %v75
  %v261 = vunpack.c.l.b16 %v76
  %v262 = vunpack.c.h.b16 %v76
  %v263 = vunpack.c.l.b16 %v77
  %v264 = vunpack.c.h.b16 %v77
  %v265 = vunpack.c.l.b16 %v78
  %v266 = vunpack.c.h.b16 %v78
  %v267 = vunpack.c.l.b16 %v79
  %v268 = vunpack.c.h.b16 %v79
  %v269 = vunpack.c.l.b16 %v80
  %v270 = vunpack.c.h.b16 %v80
  %v271 = vunpack.c.l.b16 %v81
  %v272 = vunpack.c.h.b16 %v81
  %v273 = vunpack.c.l.b16 %v82
  %v274 = vunpack.c.h.b16 %v82
  %v275 = vunpack.c.l.b16 %v83
  %v276 = vunpack.c.h.b16 %v83
  %v277 = vunpack.c.l.b16 %v84
  %v278 = vunpack.c.h.b16 %v84
  %v279 = vunpack.c.l.b16 %v85
  %v280 = vunpack.c.h.b16 %v85
  %v281 = vunpack.c.l.b16 %v86
  %v282 = vunpack.c.h.b16 %v86
  %v283 = vunpack.c.l.b16 %v87
  %v284 = vunpack.c.h.b16 %v87
  %v285 = vunpack.c.l.b16 %v88
  %v286 = vunpack.c.h.b16 %v88
  %v287 = vunpack.c.l.b16 %v89
  %v288 = vunpack.c.h.b16 %v89
  %v289 = vunpack.c.l.b16 %v90
  %v290 = vunpack.c.h.b16 %v90
  %v291 = vunpack.c.l.b16 %v91
  %v292 = vunpack.c.h.b16 %v91
  %v293 = vunpack.c.l.b16 %v92
  %v294 = vunpack.c.h.b16 %v92
  %v295 = vunpack.c.l.b16 %v93
  %v296 = vunpack.c.h.b16 %v93
  %v297 = vunpack.c.l.b16 %v94
  %v298 = vunpack.c.h.b16 %v94
  %v299 = vunpack.c.l.b16 %v95
  %v300 = vunpack.c.h.b16 %v95
  %v301 = vunpack.c.l.b16 %v96
  %v302 = vunpack.c.h.b16 %v96
  %v303 = vunpack.c.l.b16 %v97
  %v304 = vunpack.c.h.b16 %v97
  %v305 = vunpack.c.l.b16 %v98
  %v306 = vunpack.c.h.b16 %v98
  %v307 = vunpack.c.l.b16 %v99
  %v308 = vunpack.c.h.b16 %v99
  %v309 = vunpack.c.l.b16 %v100
  %v310 = vunpack.c.h.b16 %v100
  %v311 = vunpack.c.l.b16 %v101
  %v312 = vunpack.c.h.b16 %v101
  %v313 = vunpack.c.l.b16 %v102
  %v314 = vunpack.c.h.b16 %v102
  %v315 = vpack.c.b16 %v189, %v187
  %v316 = vpack.c.b16 %v190, %v188
  %v317 = vpack.c.b16 %v193, %v191
  %v318 = vpack.c.b16 %v194, %v192
  %v319 = vpack.c.b16 %v197, %v195
  %v320 = vpack.c.b16 %v198, %v196
  %v321 = vpack.c.b16 %v201, %v199
  %v322 = vpack.c.b16 %v202, %v200
  %v323 = vpack.c.b16 %v205, %v203
  %v324 = vpack.c.b16 %v206, %v204
  %v325 = vpack.c.b16 %v209, %v207
  %v326 = vpack.c.b16 %v210, %v208
  %v327 = vpack.c.b16 %v213, %v211
  %v328 = vpack.c.b16 %v214, %v212
  %v329 = vpack.c.b16 %v217, %v215
  %v330 = vpack.c.b16 %v218, %v216
  %v331 = vpack.c.b16 %v221, %v219
  %v332 = vpack.c.b16 %v222, %v220
  %v333 = vpack.c.b16 %v225, %v223
  %v334 = vpack.c.b16 %v226, %v224
  %v335 = vpack.c.b16 %v229, %v227
  %v336 = vpack.c.b16 %v230, %v228
  %v337 = vpack.c.b16 %v233, %v231
  %v338 = vpack.c.b16 %v234, %v232
  %v339 = vpack.c.b16 %v237, %v235
  %v340 = vpack.c.b16 %v238, %v236
  %v341 = vpack.c.b16 %v241, %v239
  %v342 = vpack.c.b16 %v242, %v240
  %v343 = vpack.c.b16 %v245, %v243
  %v344 = vpack.c.b16 %v246, %v244
  %v345 = vpack.c.b16 %v249, %v247
  %v346 = vpack.c.b16 %v250, %v248
  %v347 = vpack.c.b16 %v253, %v251
  %v348 = vpack.c.b16 %v254, %v252
  %v349 = vpack.c.b16 %v257, %v255
  %v350 = vpack.c.b16 %v258, %v256
  %v351 = vpack.c.b16 %v261, %v259
  %v352 = vpack.c.b16 %v262, %v260
  %v353 = vpack.c.b16 %v265, %v263
  %v354 = vpack.c.b16 %v266, %v264
  %v355 = vpack.c.b16 %v269, %v267
  %v356 = vpack.c.b16 %v270, %v268
  %v357 = vpack.c.b16 %v273, %v271
  %v358 = vpack.c.b16 %v274, %v272
  %v359 = vpack.c.b16 %v277, %v275
  %v360 = vpack.c.b16 %v278, %v276
  %v361 = vpack.c.b16 %v281, %v279
  %v362 = vpack.c.b16 %v282, %v280
  %v363 = vpack.c.b16 %v285, %v283
  %v364 = vpack.c.b16 %v286, %v284
  %v365 = vpack.c.b16 %v289, %v287
  %v366 = vpack.c.b16 %v290, %v288
  %v367 = vpack.c.b16 %v293, %v291
  %v368 = vpack.c.b16 %v294, %v292
  %v369 = vpack.c.b16 %v297, %v295
  %v370 = vpack.c.b16 %v298, %v296
  %v371 = vpack.c.b16 %v301, %v299
  %v372 = vpack.c.b16 %v302, %v300
  %v373 = vpack.c.b16 %v305, %v303
  %v374 = vpack.c.b16 %v306, %v304
  %v375 = vpack.c.b16 %v309, %v307
  %v376 = vpack.c.b16 %v310, %v308
  %v377 = vpack.c.b16 %v313, %v311
  %v378 = vpack.c.b16 %v314, %v312
  %443 = vmatprep.subr.bf16.mxu0 %v316
  %444 = vmatpush1.bf16.msra.mxu0 %v315
  %445 = vmatprep.subr.bf16.mxu0 %v318
  %446 = vmatpush1.bf16.msra.mxu0 %v317
  %447 = vmatprep.subr.bf16.mxu0 %v320
  %448 = vmatpush1.bf16.msra.mxu0 %v319
  %449 = vmatprep.subr.bf16.mxu0 %v322
  %450 = vmatpush1.bf16.msra.mxu0 %v321
  %451 = vmatprep.subr.bf16.mxu0 %v324
  %452 = vmatpush1.bf16.msra.mxu0 %v323
  %453 = vmatprep.subr.bf16.mxu0 %v326
  %454 = vmatpush1.bf16.msra.mxu0 %v325
  %455 = vmatprep.subr.bf16.mxu0 %v328
  %456 = vmatpush1.bf16.msra.mxu0 %v327
  %457 = vmatprep.subr.bf16.mxu0 %v330
  %458 = vmatpush1.bf16.msra.mxu0 %v329
  %459 = vmatprep.subr.bf16.mxu0 %v332
  %460 = vmatpush1.bf16.msra.mxu0 %v331
  %461 = vmatprep.subr.bf16.mxu0 %v334
  %462 = vmatpush1.bf16.msra.mxu0 %v333
  %463 = vmatprep.subr.bf16.mxu0 %v336
  %464 = vmatpush1.bf16.msra.mxu0 %v335
  %465 = vmatprep.subr.bf16.mxu0 %v338
  %466 = vmatpush1.bf16.msra.mxu0 %v337
  %467 = vmatprep.subr.bf16.mxu0 %v340
  %468 = vmatpush1.bf16.msra.mxu0 %v339
  %469 = vmatprep.subr.bf16.mxu0 %v342
  %470 = vmatpush1.bf16.msra.mxu0 %v341
  %471 = vmatprep.subr.bf16.mxu0 %v344
  %472 = vmatpush1.bf16.msra.mxu0 %v343
  %473 = vmatprep.subr.bf16.mxu0 %v346
  %474 = vmatpush1.bf16.msra.mxu0 %v345
  %475 = vmatprep.mubr.bf16.mxu0 %v116
  %476 = vmatmul.mubr.bf16.gmra.mrb[0].mxu0 %v115
  %v477 = vpop.f32.mrb[0].mxu0
  %v478 = vadd.f32 0.0, %v477
  %v479 = vpop.f32.mrb[0].mxu0
  %v480 = vadd.f32 0.0, %v479
  %v481 = vpop.f32.mrb[0].mxu0
  %v482 = vadd.f32 0.0, %v481
  %v483 = vpop.f32.mrb[0].mxu0
  %v484 = vadd.f32 0.0, %v483
  %485 = vdwg.mxu0
  %486 = vmatprep.subr.bf16.mxu0 %v348
  %487 = vmatpush1.bf16.msra.mxu0 %v347
  %488 = vmatprep.subr.bf16.mxu0 %v350
  %489 = vmatpush1.bf16.msra.mxu0 %v349
  %490 = vmatprep.subr.bf16.mxu0 %v352
  %491 = vmatpush1.bf16.msra.mxu0 %v351
  %492 = vmatprep.subr.bf16.mxu0 %v354
  %493 = vmatpush1.bf16.msra.mxu0 %v353
  %494 = vmatprep.subr.bf16.mxu0 %v356
  %495 = vmatpush1.bf16.msra.mxu0 %v355
  %496 = vmatprep.subr.bf16.mxu0 %v358
  %497 = vmatpush1.bf16.msra.mxu0 %v357
  %498 = vmatprep.subr.bf16.mxu0 %v360
  %499 = vmatpush1.bf16.msra.mxu0 %v359
  %500 = vmatprep.subr.bf16.mxu0 %v362
  %501 = vmatpush1.bf16.msra.mxu0 %v361
  %502 = vmatprep.subr.bf16.mxu0 %v364
  %503 = vmatpush1.bf16.msra.mxu0 %v363
  %504 = vmatprep.subr.bf16.mxu0 %v366
  %505 = vmatpush1.bf16.msra.mxu0 %v365
  %506 = vmatprep.subr.bf16.mxu0 %v368
  %507 = vmatpush1.bf16.msra.mxu0 %v367
  %508 = vmatprep.subr.bf16.mxu0 %v370
  %509 = vmatpush1.bf16.msra.mxu0 %v369
  %510 = vmatprep.subr.bf16.mxu0 %v372
  %511 = vmatpush1.bf16.msra.mxu0 %v371
  %512 = vmatprep.subr.bf16.mxu0 %v374
  %513 = vmatpush1.bf16.msra.mxu0 %v373
  %514 = vmatprep.subr.bf16.mxu0 %v376
  %515 = vmatpush1.bf16.msra.mxu0 %v375
  %516 = vmatprep.subr.bf16.mxu0 %v378
  %517 = vmatpush1.bf16.msra.mxu0 %v377
  %518 = vmatprep.mubr.bf16.mxu0 %v118
  %519 = vmatmul.mubr.bf16.gmra.mrb[0].mxu0 %v117
  %v520 = vpop.f32.mrb[0].mxu0
  %v521 = vadd.f32 %v478, %v520
  %v522 = vpop.f32.mrb[0].mxu0
  %v523 = vadd.f32 %v480, %v522
  %v524 = vpop.f32.mrb[0].mxu0
  %v525 = vadd.f32 %v482, %v524
  %v526 = vpop.f32.mrb[0].mxu0
  %v527 = vadd.f32 %v484, %v526
  %528 = vdwg.mxu0
  %v529 = vadd.f32 %v31, %v521
  %v530 = vadd.f32 %v32, %v523
  %v531 = vadd.f32 %v33, %v525
  %v532 = vadd.f32 %v34, %v527
  %533 = vst [vmem:[#allocation2] sm:$0xff] %v529
  %534 = vst [vmem:[#allocation2 + $0x8] sm:$0xff] %v530
  %535 = vst [vmem:[#allocation2 + $0x10] sm:$0xff] %v531
  %536 = vst [vmem:[#allocation2 + $0x18] sm:$0xff] %v532
  // Predicated region
  $region30: #{decoder_forward.27} parent=0 // pred_check
    %p537 = pneg %p23
  $region31: #{decoder_forward.27} parent=0 // pred_check_branch
    %539 = sbr.rel (%p537) target = $region33
  $region32: #{decoder_forward.27} parent=0 // pred_region
    %v540 = vld [vmem:[#allocation2] sm:$0xff]
    %v541 = vld [vmem:[#allocation2 + $0x8] sm:$0xff]
    %v542 = vld [vmem:[#allocation2 + $0x10] sm:$0xff]
    %v543 = vld [vmem:[#allocation2 + $0x18] sm:$0xff]
    %v544 = vld [vmem:[%s2] sm:$0x3]
    %v545 = vunpack.c.l.bf16 %v544
    %v547 = vlaneseq
    %v548 = vshrl.u32 %v547, 7
    %v549 = vsub.s32 0, %v548
    %v550 = vrot.slane %v545, %v549
    %v551 = vlaneseq
    %v552 = vshrl.u32 %v551, 7
    %v553 = vsub.s32 2, %v552
    %v554 = vrot.slane %v545, %v553
    %v557 = vlaneseq
    %v558 = vshrl.u32 %v557, 7
    %v559 = vsub.s32 0, %v558
    %v560 = vrot.slane %v550, %v559
    %v561 = vlaneseq
    %v562 = vshrl.u32 %v561, 7
    %v563 = vsub.s32 0, %v562
    %v564 = vrot.slane %v554, %v563
    %v565 = vadd.f32 %v540, %v560
    %v566 = vadd.f32 %v541, %v564
    %v567 = vadd.f32 %v542, %v560
    %v568 = vadd.f32 %v543, %v564
    %v569 = vld [vmem:[%s3] sm:$0xff]
    %v570 = vld [vmem:[%s3 + $0x8] sm:$0xff]
    %v571 = vunpack.c.l.bf16 %v569
    %v572 = vunpack.c.h.bf16 %v569
    %v573 = vunpack.c.l.bf16 %v570
    %v574 = vunpack.c.h.bf16 %v570
    %v575 = vadd.f32 %v565, %v571
    %v576 = vadd.f32 %v566, %v572
    %v577 = vadd.f32 %v567, %v573
    %v578 = vadd.f32 %v568, %v574
    %v579 = vadd.f32 %v575, %v576
    %580 = vadd.xlane.f32.xlu0 %v579
    %v581 = vpop.xlane.xlu0 %580
    %v582 = vadd.f32 %v577, %v578
    %583 = vadd.xlane.f32.xlu0 %v582
    %v584 = vpop.xlane.xlu0 %583
    %v585 = vrcp.pop 256.0
    %v586 = vmul.f32 %v581, %v585
    %v587 = vmul.f32 %v584, %v585
    %v588 = vsub.f32 %v575, %v586
    %v589 = vsub.f32 %v576, %v586
    %v590 = vsub.f32 %v577, %v587
    %v591 = vsub.f32 %v578, %v587
    %v592 = vmul.f32 %v588, %v588
    %v593 = vmul.f32 %v589, %v589
    %v594 = vmul.f32 %v590, %v590
    %v595 = vmul.f32 %v591, %v591
    %v596 = vadd.f32 %v592, %v593
    %597 = vadd.xlane.f32.xlu0 %v596
    %v598 = vpop.xlane.xlu0 %597
    %v599 = vadd.f32 %v594, %v595
    %600 = vadd.xlane.f32.xlu0 %v599
    %v601 = vpop.xlane.xlu0 %600
    %v602 = vmul.f32 %v598, %v585
    %v603 = vmul.f32 %v601, %v585
    %v604 = vadd.f32 %v602, 1e-12
    %v605 = vadd.f32 %v603, 1e-12
    %v606 = vrsqrt.pop %v604
    %v607 = vrsqrt.pop %v605
    %v608 = vmul.f32 %v588, %v606
    %v609 = vmul.f32 %v589, %v606
    %v610 = vmul.f32 %v590, %v607
    %v611 = vmul.f32 %v591, %v607
    %v612 = vld [vmem:[%s4] sm:$0x3]
    %v613 = vunpack.c.l.bf16 %v612
    %v615 = vlaneseq
    %v616 = vshrl.u32 %v615, 7
    %v617 = vsub.s32 0, %v616
    %v618 = vrot.slane %v613, %v617
    %v619 = vlaneseq
    %v620 = vshrl.u32 %v619, 7
    %v621 = vsub.s32 2, %v620
    %v622 = vrot.slane %v613, %v621
    %v625 = vlaneseq
    %v626 = vshrl.u32 %v625, 7
    %v627 = vsub.s32 0, %v626
    %v628 = vrot.slane %v618, %v627
    %v629 = vlaneseq
    %v630 = vshrl.u32 %v629, 7
    %v631 = vsub.s32 0, %v630
    %v632 = vrot.slane %v622, %v631
    %v633 = vmul.f32 %v608, %v628
    %v634 = vmul.f32 %v609, %v632
    %v635 = vmul.f32 %v610, %v628
    %v636 = vmul.f32 %v611, %v632
    %v637 = vld [vmem:[%s5] sm:$0x3]
    %v638 = vunpack.c.l.bf16 %v637
    %v640 = vlaneseq
    %v641 = vshrl.u32 %v640, 7
    %v642 = vsub.s32 0, %v641
    %v643 = vrot.slane %v638, %v642
    %v644 = vlaneseq
    %v645 = vshrl.u32 %v644, 7
    %v646 = vsub.s32 2, %v645
    %v647 = vrot.slane %v638, %v646
    %v650 = vlaneseq
    %v651 = vshrl.u32 %v650, 7
    %v652 = vsub.s32 0, %v651
    %v653 = vrot.slane %v643, %v652
    %v654 = vlaneseq
    %v655 = vshrl.u32 %v654, 7
    %v656 = vsub.s32 0, %v655
    %v657 = vrot.slane %v647, %v656
    %v658 = vadd.f32 %v633, %v653
    %v659 = vadd.f32 %v634, %v657
    %v660 = vadd.f32 %v635, %v653
    %v661 = vadd.f32 %v636, %v657
    %v662 = vpack.c.bf16 %v660, %v658
    %v663 = vpack.c.bf16 %v661, %v659
    %v666 = vunpack.c.l.b16 %v662
    %v667 = vunpack.c.l.b16 %v663
    %v668 = vunpack.c.h.b16 %v662
    %v669 = vunpack.c.h.b16 %v663
    %v670 = vpack.c.b16 %v667, %v666
    %v671 = vpack.c.b16 %v669, %v668
    %674 = vst [vmem:[%s6] sm:$0xff] %v670
    %675 = vst [vmem:[%s6 + $0x8] sm:$0xff] %v671
  $region33: #{decoder_forward.27} parent=0 // pred_fallthru
    _
  // Predicated region
  $region34: #{decoder_forward.27} parent=0 // pred_check
    _
  $region35: #{decoder_forward.27} parent=0 // pred_check_branch
    %677 = sbr.rel (0) target = $region37
  $region36: #{decoder_forward.27} parent=0 // pred_region
    _
  $region37: #{decoder_forward.27} parent=0 // pred_fallthru
    _
  // Predicated region
  $region38: #{decoder_forward.27} parent=0 // pred_check
    _
  $region39: #{decoder_forward.27} parent=0 // pred_check_branch
    %679 = sbr.rel (0) target = $region41
  $region40: #{decoder_forward.27} parent=0 // pred_region
    _
  $region41: #{decoder_forward.27} parent=0 // pred_fallthru
    _

</llo_original>
